<compile_context>
chip_gen: v5e
topology: v5e:2x2
jax: 0.10.0
libtpu: 0.0.40
codegen_flags: <defaults>
</compile_context>

<pallas_src>
import numpy as np
import jax
import jax.numpy as jnp
from jax import lax
from jax.experimental import pallas as pl
from jax.experimental.pallas import tpu as pltpu

_DN = ("NCHW", "OIHW", "NCHW")


def _round_up(x, m):
    return ((x + m - 1) // m) * m


# ----------------------------------------------------------------------------
# One-time parameter transform: fold each conv / convT layer into one dense
# (in_flat, out_flat) matrix (exact, built by probing with basis images).
# ----------------------------------------------------------------------------
def _conv_nobias(h, w):
    return lax.conv_general_dilated(h, w, (2, 2), ((1, 1), (1, 1)), dimension_numbers=_DN)


def _convT_nobias(h, wt):
    w = jnp.flip(wt, (2, 3)).transpose(1, 0, 2, 3)
    return lax.conv_general_dilated(h, w, (1, 1), ((2, 2), (2, 2)),
                                    lhs_dilation=(2, 2), dimension_numbers=_DN)


def _dense_from_linop(apply_fn, C, H, W):
    """Dense matrix of the linear map, in channels-last (h*W + w)*C + c flatten order."""
    n = C * H * W
    eye = jnp.eye(n, dtype=jnp.float32).reshape(n, H, W, C).transpose(0, 3, 1, 2)  # NCHW basis
    out = apply_fn(eye)                                                            # (n, Co, Ho, Wo)
    Co, Ho, Wo = out.shape[1], out.shape[2], out.shape[3]
    return out.transpose(0, 2, 3, 1).reshape(n, Ho * Wo * Co), Co


def prepare_params(params):
    """PyTorch-layout conv params -> per-layer (bf16 dense weight, f32 bias), lane-padded."""
    cfg = [("enc1", "conv", (3, 16, 16)), ("enc2", "conv", (12, 8, 8)), ("enc3", "conv", (24, 4, 4)),
           ("dec1", "convT", (48, 2, 2)), ("dec2", "convT", (24, 4, 4)), ("dec3", "convT", (12, 8, 8))]
    flat = []
    for name, kind, (C, H, W) in cfg:
        w = jnp.asarray(params[name + "_w"], jnp.float32)
        b = np.asarray(params[name + "_b"], np.float32)
        op = (lambda h, w=w: _conv_nobias(h, w)) if kind == "conv" else (lambda h, w=w: _convT_nobias(h, w))
        M, Cout = _dense_from_linop(op, C, H, W)                  # (in_flat, out_flat) f32
        in_flat, out_flat = M.shape
        bias = np.tile(b, out_flat // Cout)[None, :]              # (1, out_flat)
        # Zero-pad both dims to multiples of 128 (only the 192-wide bottleneck actually pads).
        in_p, out_p = _round_up(in_flat, 128), _round_up(out_flat, 128)
        Mp = jnp.zeros((in_p, out_p), jnp.float32).at[:in_flat, :out_flat].set(M)
        bp = np.zeros((1, out_p), np.float32)
        bp[:, :out_flat] = bias                                   # padded lanes stay exactly 0
        flat += [Mp.astype(jnp.bfloat16), jnp.asarray(bp)]
    return tuple(flat)


# ----------------------------------------------------------------------------
# Fused Pallas kernel: all 6 layers for one batch block per grid step
# ----------------------------------------------------------------------------
def _autoencoder_kernel(x_ref,
                        w1, b1, w2, b2, w3, b3, w4, b4, w5, b5, w6, b6,
                        o_ref):
    layers = ((w1, b1), (w2, b2), (w3, b3), (w4, b4), (w5, b5), (w6, b6))
    a = x_ref[...]                                            # (BM, 768) bf16, lane-dense
    for i, (w_ref, b_ref) in enumerate(layers):
        y = jnp.dot(a, w_ref[...], preferred_element_type=jnp.float32) + b_ref[...]
        if i < 5:
            a = jnp.maximum(y, 0.0).astype(jnp.bfloat16)      # ReLU in f32, store bf16
        else:
            o_ref[...] = jnp.tanh(y)                          # final tanh in f32


def conv_autoencoder_forward(prepared, x):
    """x: (N, 3, 16, 16) NCHW (PyTorch layout) -> (N, 3, 16, 16)."""
    N, C, H, W = x.shape
    F = C * H * W                                             # 768, multiple of 128
    # Channels-last flatten (one image per row), bf16 feed for the MXU.
    x2d = jnp.transpose(x, (0, 2, 3, 1)).reshape(N, F).astype(jnp.bfloat16)

    # Batch tiling: up to 256 rows per grid step (MXU-fill target); pad batch with zeros.
    BM = min(256, _round_up(max(N, 1), 8))
    padN = _round_up(N, BM)
    if padN > N:
        x2d = jnp.pad(x2d, ((0, padN - N), (0, 0)))
    grid = (padN // BM,)

    in_specs = [pl.BlockSpec((BM, F), lambda n: (n, 0))]
    for p in prepared:                                        # weights/biases: full-array blocks,
        in_specs.append(pl.BlockSpec(p.shape, lambda n: (0, 0)))   # VMEM-resident, never re-fetched

    out2d = pl.pallas_call(
        _autoencoder_kernel,
        out_shape=jax.ShapeDtypeStruct((padN, F), jnp.float32),
        grid=grid,                                            # batch blocks; parallel across TCs
        in_specs=in_specs,
        out_specs=pl.BlockSpec((BM, F), lambda n: (n, 0)),
        compiler_params=pltpu.CompilerParams(dimension_semantics=("parallel",)),
    )(x2d, *prepared)

    out2d = out2d[:N]
    return jnp.transpose(out2d.reshape(N, H, W, C), (0, 3, 1, 2))


# ----------------------------------------------------------------------------
# Deterministic parameter init (PyTorch-style uniform(+-1/sqrt(fan_in)))
# ----------------------------------------------------------------------------
def init_params(key):
    shapes = [
        # encoder Conv2d: (Cout, Cin, 4, 4)
        ("enc1", (12, 3, 4, 4)), ("enc2", (24, 12, 4, 4)), ("enc3", (48, 24, 4, 4)),
        # decoder ConvTranspose2d: (Cin, Cout, 4, 4)
        ("dec1", (48, 24, 4, 4)), ("dec2", (24, 12, 4, 4)), ("dec3", (12, 3, 4, 4)),
    ]
    params = {}
    for name, shp in shapes:
        key, kw, kb = jax.random.split(key, 3)
        fan_in = shp[1] * shp[2] * shp[3]
        bound = 1.0 / float(np.sqrt(fan_in))
        n_bias = shp[0] if name.startswith("enc") else shp[1]
        params[name + "_w"] = jax.random.uniform(kw, shp, jnp.float32, -bound, bound)
        params[name + "_b"] = jax.random.uniform(kb, (n_bias,), jnp.float32, -bound, bound)
    return params


# ----------------------------------------------------------------------------
# Pure-JAX reference (for correctness validation only)
# ----------------------------------------------------------------------------
def reference_forward(params, x):
    def conv(h, w, b):
        return _conv_nobias(h, w) + b[None, :, None, None]

    def convT(h, wt, b):
        return _convT_nobias(h, wt) + b[None, :, None, None]

    h = jax.nn.relu(conv(x, params["enc1_w"], params["enc1_b"]))
    h = jax.nn.relu(conv(h, params["enc2_w"], params["enc2_b"]))
    h = jax.nn.relu(conv(h, params["enc3_w"], params["enc3_b"]))
    h = jax.nn.relu(convT(h, params["dec1_w"], params["dec1_b"]))
    h = jax.nn.relu(convT(h, params["dec2_w"], params["dec2_b"]))
    h = jnp.tanh(convT(h, params["dec3_w"], params["dec3_b"]))
    return h


if __name__ == "__main__":
    key = jax.random.PRNGKey(0)
    kx, kp = jax.random.split(key)
    x = jax.random.normal(kx, (2, 3, 16, 16), jnp.float32)   # NCHW like the PyTorch module
    params = init_params(kp)
    prepared = prepare_params(params)                        # one-time weight transform

    fwd = jax.jit(conv_autoencoder_forward)
    out = jax.block_until_ready(fwd(prepared, x))

    assert out.shape == (2, 3, 16, 16), out.shape
    assert out.dtype == jnp.float32
    assert bool(jnp.all(jnp.isfinite(out)))
    assert bool(jnp.all(jnp.abs(out) <= 1.0 + 1e-6))         # tanh output range

    ref = reference_forward(params, x)
    err = float(jnp.max(jnp.abs(out - ref)))
    assert err < 5e-2, f"max abs error vs f32 conv reference: {err}"
    print("KERNEL_OK")
</pallas_src>

<mosaic_0001>
module attributes {stable_mosaic.version = 11 : i64} {
  func.func @_autoencoder_kernel(%arg0: i32, %arg1: memref<8x768xbf16, #tpu.memory_space<vmem>>, %arg2: memref<768x768xbf16, #tpu.memory_space<vmem>>, %arg3: memref<1x768xf32, #tpu.memory_space<vmem>>, %arg4: memref<768x384xbf16, #tpu.memory_space<vmem>>, %arg5: memref<1x384xf32, #tpu.memory_space<vmem>>, %arg6: memref<384x256xbf16, #tpu.memory_space<vmem>>, %arg7: memref<1x256xf32, #tpu.memory_space<vmem>>, %arg8: memref<256x384xbf16, #tpu.memory_space<vmem>>, %arg9: memref<1x384xf32, #tpu.memory_space<vmem>>, %arg10: memref<384x768xbf16, #tpu.memory_space<vmem>>, %arg11: memref<1x768xf32, #tpu.memory_space<vmem>>, %arg12: memref<768x768xbf16, #tpu.memory_space<vmem>>, %arg13: memref<1x768xf32, #tpu.memory_space<vmem>>, %arg14: memref<8x768xf32, #tpu.memory_space<vmem>>) attributes {dimension_semantics = [#tpu.dimension_semantics<parallel>], iteration_bounds = array<i64: 1>, scalar_prefetch = 0 : i64, scratch_operands = 0 : i64, tpu.core_type = #tpu.core_type<tc>, window_params = [{transform_indices = @transform_0, window_bounds = array<i64: 8, 768>}, {pipeline_mode = #tpu.pipeline_mode<synchronous>, transform_indices = @transform_1, window_bounds = array<i64: 768, 768>}, {pipeline_mode = #tpu.pipeline_mode<synchronous>, transform_indices = @transform_2, window_bounds = array<i64: 1, 768>}, {pipeline_mode = #tpu.pipeline_mode<synchronous>, transform_indices = @transform_3, window_bounds = array<i64: 768, 384>}, {pipeline_mode = #tpu.pipeline_mode<synchronous>, transform_indices = @transform_4, window_bounds = array<i64: 1, 384>}, {pipeline_mode = #tpu.pipeline_mode<synchronous>, transform_indices = @transform_5, window_bounds = array<i64: 384, 256>}, {pipeline_mode = #tpu.pipeline_mode<synchronous>, transform_indices = @transform_6, window_bounds = array<i64: 1, 256>}, {pipeline_mode = #tpu.pipeline_mode<synchronous>, transform_indices = @transform_7, window_bounds = array<i64: 256, 384>}, {pipeline_mode = #tpu.pipeline_mode<synchronous>, transform_indices = @transform_8, window_bounds = array<i64: 1, 384>}, {pipeline_mode = #tpu.pipeline_mode<synchronous>, transform_indices = @transform_9, window_bounds = array<i64: 384, 768>}, {pipeline_mode = #tpu.pipeline_mode<synchronous>, transform_indices = @transform_10, window_bounds = array<i64: 1, 768>}, {pipeline_mode = #tpu.pipeline_mode<synchronous>, transform_indices = @transform_11, window_bounds = array<i64: 768, 768>}, {pipeline_mode = #tpu.pipeline_mode<synchronous>, transform_indices = @transform_12, window_bounds = array<i64: 1, 768>}, {transform_indices = @transform_13, window_bounds = array<i64: 8, 768>}]} {
    %c0 = arith.constant 0 : index
    %c0_0 = arith.constant 0 : index
    %0 = vector.load %arg1[%c0, %c0_0] : memref<8x768xbf16, #tpu.memory_space<vmem>>, vector<8x768xbf16>
    %c0_1 = arith.constant 0 : index
    %c0_2 = arith.constant 0 : index
    %1 = vector.load %arg2[%c0_1, %c0_2] : memref<768x768xbf16, #tpu.memory_space<vmem>>, vector<768x768xbf16>
    %cst = arith.constant dense<0.000000e+00> : vector<8x768xf32>
    %2 = tpu.matmul %0, %1, %cst {dimension_numbers = #tpu.dot_dimension_numbers<[1], [0], [0], [1], [0, 0, 1, 1], [], []>} : vector<8x768xbf16>, vector<768x768xbf16>, vector<8x768xf32> -> vector<8x768xf32>
    %c0_3 = arith.constant 0 : index
    %c0_4 = arith.constant 0 : index
    %3 = vector.load %arg3[%c0_3, %c0_4] : memref<1x768xf32, #tpu.memory_space<vmem>>, vector<1x768xf32>
    %4 = vector.broadcast %3 : vector<1x768xf32> to vector<8x768xf32>
    %5 = arith.addf %2, %4 : vector<8x768xf32>
    %cst_5 = arith.constant 0.000000e+00 : f32
    %6 = vector.broadcast %cst_5 : f32 to vector<8x768xf32>
    %7 = arith.maximumf %5, %6 : vector<8x768xf32>
    %8 = arith.truncf %7 : vector<8x768xf32> to vector<8x768xbf16>
    %c0_6 = arith.constant 0 : index
    %c0_7 = arith.constant 0 : index
    %9 = vector.load %arg4[%c0_6, %c0_7] : memref<768x384xbf16, #tpu.memory_space<vmem>>, vector<768x384xbf16>
    %cst_8 = arith.constant dense<0.000000e+00> : vector<8x384xf32>
    %10 = tpu.matmul %8, %9, %cst_8 {dimension_numbers = #tpu.dot_dimension_numbers<[1], [0], [0], [1], [0, 0, 1, 1], [], []>} : vector<8x768xbf16>, vector<768x384xbf16>, vector<8x384xf32> -> vector<8x384xf32>
    %c0_9 = arith.constant 0 : index
    %c0_10 = arith.constant 0 : index
    %11 = vector.load %arg5[%c0_9, %c0_10] : memref<1x384xf32, #tpu.memory_space<vmem>>, vector<1x384xf32>
    %12 = vector.broadcast %11 : vector<1x384xf32> to vector<8x384xf32>
    %13 = arith.addf %10, %12 : vector<8x384xf32>
    %cst_11 = arith.constant 0.000000e+00 : f32
    %14 = vector.broadcast %cst_11 : f32 to vector<8x384xf32>
    %15 = arith.maximumf %13, %14 : vector<8x384xf32>
    %16 = arith.truncf %15 : vector<8x384xf32> to vector<8x384xbf16>
    %c0_12 = arith.constant 0 : index
    %c0_13 = arith.constant 0 : index
    %17 = vector.load %arg6[%c0_12, %c0_13] : memref<384x256xbf16, #tpu.memory_space<vmem>>, vector<384x256xbf16>
    %cst_14 = arith.constant dense<0.000000e+00> : vector<8x256xf32>
    %18 = tpu.matmul %16, %17, %cst_14 {dimension_numbers = #tpu.dot_dimension_numbers<[1], [0], [0], [1], [0, 0, 1, 1], [], []>} : vector<8x384xbf16>, vector<384x256xbf16>, vector<8x256xf32> -> vector<8x256xf32>
    %c0_15 = arith.constant 0 : index
    %c0_16 = arith.constant 0 : index
    %19 = vector.load %arg7[%c0_15, %c0_16] : memref<1x256xf32, #tpu.memory_space<vmem>>, vector<1x256xf32>
    %20 = vector.broadcast %19 : vector<1x256xf32> to vector<8x256xf32>
    %21 = arith.addf %18, %20 : vector<8x256xf32>
    %cst_17 = arith.constant 0.000000e+00 : f32
    %22 = vector.broadcast %cst_17 : f32 to vector<8x256xf32>
    %23 = arith.maximumf %21, %22 : vector<8x256xf32>
    %24 = arith.truncf %23 : vector<8x256xf32> to vector<8x256xbf16>
    %c0_18 = arith.constant 0 : index
    %c0_19 = arith.constant 0 : index
    %25 = vector.load %arg8[%c0_18, %c0_19] : memref<256x384xbf16, #tpu.memory_space<vmem>>, vector<256x384xbf16>
    %cst_20 = arith.constant dense<0.000000e+00> : vector<8x384xf32>
    %26 = tpu.matmul %24, %25, %cst_20 {dimension_numbers = #tpu.dot_dimension_numbers<[1], [0], [0], [1], [0, 0, 1, 1], [], []>} : vector<8x256xbf16>, vector<256x384xbf16>, vector<8x384xf32> -> vector<8x384xf32>
    %c0_21 = arith.constant 0 : index
    %c0_22 = arith.constant 0 : index
    %27 = vector.load %arg9[%c0_21, %c0_22] : memref<1x384xf32, #tpu.memory_space<vmem>>, vector<1x384xf32>
    %28 = vector.broadcast %27 : vector<1x384xf32> to vector<8x384xf32>
    %29 = arith.addf %26, %28 : vector<8x384xf32>
    %cst_23 = arith.constant 0.000000e+00 : f32
    %30 = vector.broadcast %cst_23 : f32 to vector<8x384xf32>
    %31 = arith.maximumf %29, %30 : vector<8x384xf32>
    %32 = arith.truncf %31 : vector<8x384xf32> to vector<8x384xbf16>
    %c0_24 = arith.constant 0 : index
    %c0_25 = arith.constant 0 : index
    %33 = vector.load %arg10[%c0_24, %c0_25] : memref<384x768xbf16, #tpu.memory_space<vmem>>, vector<384x768xbf16>
    %cst_26 = arith.constant dense<0.000000e+00> : vector<8x768xf32>
    %34 = tpu.matmul %32, %33, %cst_26 {dimension_numbers = #tpu.dot_dimension_numbers<[1], [0], [0], [1], [0, 0, 1, 1], [], []>} : vector<8x384xbf16>, vector<384x768xbf16>, vector<8x768xf32> -> vector<8x768xf32>
    %c0_27 = arith.constant 0 : index
    %c0_28 = arith.constant 0 : index
    %35 = vector.load %arg11[%c0_27, %c0_28] : memref<1x768xf32, #tpu.memory_space<vmem>>, vector<1x768xf32>
    %36 = vector.broadcast %35 : vector<1x768xf32> to vector<8x768xf32>
    %37 = arith.addf %34, %36 : vector<8x768xf32>
    %cst_29 = arith.constant 0.000000e+00 : f32
    %38 = vector.broadcast %cst_29 : f32 to vector<8x768xf32>
    %39 = arith.maximumf %37, %38 : vector<8x768xf32>
    %40 = arith.truncf %39 : vector<8x768xf32> to vector<8x768xbf16>
    %c0_30 = arith.constant 0 : index
    %c0_31 = arith.constant 0 : index
    %41 = vector.load %arg12[%c0_30, %c0_31] : memref<768x768xbf16, #tpu.memory_space<vmem>>, vector<768x768xbf16>
    %cst_32 = arith.constant dense<0.000000e+00> : vector<8x768xf32>
    %42 = tpu.matmul %40, %41, %cst_32 {dimension_numbers = #tpu.dot_dimension_numbers<[1], [0], [0], [1], [0, 0, 1, 1], [], []>} : vector<8x768xbf16>, vector<768x768xbf16>, vector<8x768xf32> -> vector<8x768xf32>
    %c0_33 = arith.constant 0 : index
    %c0_34 = arith.constant 0 : index
    %43 = vector.load %arg13[%c0_33, %c0_34] : memref<1x768xf32, #tpu.memory_space<vmem>>, vector<1x768xf32>
    %44 = vector.broadcast %43 : vector<1x768xf32> to vector<8x768xf32>
    %45 = arith.addf %42, %44 : vector<8x768xf32>
    %46 = math.tanh %45 : vector<8x768xf32>
    %c0_35 = arith.constant 0 : index
    %c0_36 = arith.constant 0 : index
    %47 = vector.load %arg14[%c0_35, %c0_36] : memref<8x768xf32, #tpu.memory_space<vmem>>, vector<8x768xf32>
    tpu.vector_store %arg14[%c0_35, %c0_36], %46 {strides = array<i32>} : memref<8x768xf32, #tpu.memory_space<vmem>>, vector<8x768xf32>,
    return
  }
  func.func @transform_0(%arg0: i32) -> (i32, i32) {
    %c0_i32 = arith.constant 0 : i32
    %c0_i32_0 = arith.constant 0 : i32
    return %arg0, %c0_i32 : i32, i32
  }
  func.func @transform_1(%arg0: i32) -> (i32, i32) {
    %c0_i32 = arith.constant 0 : i32
    %c0_i32_0 = arith.constant 0 : i32
    %c0_i32_1 = arith.constant 0 : i32
    return %c0_i32, %c0_i32_0 : i32, i32
  }
  func.func @transform_2(%arg0: i32) -> (i32, i32) {
    %c0_i32 = arith.constant 0 : i32
    %c0_i32_0 = arith.constant 0 : i32
    %c0_i32_1 = arith.constant 0 : i32
    return %c0_i32, %c0_i32_0 : i32, i32
  }
  func.func @transform_3(%arg0: i32) -> (i32, i32) {
    %c0_i32 = arith.constant 0 : i32
    %c0_i32_0 = arith.constant 0 : i32
    %c0_i32_1 = arith.constant 0 : i32
    return %c0_i32, %c0_i32_0 : i32, i32
  }
  func.func @transform_4(%arg0: i32) -> (i32, i32) {
    %c0_i32 = arith.constant 0 : i32
    %c0_i32_0 = arith.constant 0 : i32
    %c0_i32_1 = arith.constant 0 : i32
    return %c0_i32, %c0_i32_0 : i32, i32
  }
  func.func @transform_5(%arg0: i32) -> (i32, i32) {
    %c0_i32 = arith.constant 0 : i32
    %c0_i32_0 = arith.constant 0 : i32
    %c0_i32_1 = arith.constant 0 : i32
    return %c0_i32, %c0_i32_0 : i32, i32
  }
  func.func @transform_6(%arg0: i32) -> (i32, i32) {
    %c0_i32 = arith.constant 0 : i32
    %c0_i32_0 = arith.constant 0 : i32
    %c0_i32_1 = arith.constant 0 : i32
    return %c0_i32, %c0_i32_0 : i32, i32
  }
  func.func @transform_7(%arg0: i32) -> (i32, i32) {
    %c0_i32 = arith.constant 0 : i32
    %c0_i32_0 = arith.constant 0 : i32
    %c0_i32_1 = arith.constant 0 : i32
    return %c0_i32, %c0_i32_0 : i32, i32
  }
  func.func @transform_8(%arg0: i32) -> (i32, i32) {
    %c0_i32 = arith.constant 0 : i32
    %c0_i32_0 = arith.constant 0 : i32
    %c0_i32_1 = arith.constant 0 : i32
    return %c0_i32, %c0_i32_0 : i32, i32
  }
  func.func @transform_9(%arg0: i32) -> (i32, i32) {
    %c0_i32 = arith.constant 0 : i32
    %c0_i32_0 = arith.constant 0 : i32
    %c0_i32_1 = arith.constant 0 : i32
    return %c0_i32, %c0_i32_0 : i32, i32
  }
  func.func @transform_10(%arg0: i32) -> (i32, i32) {
    %c0_i32 = arith.constant 0 : i32
    %c0_i32_0 = arith.constant 0 : i32
    %c0_i32_1 = arith.constant 0 : i32
    return %c0_i32, %c0_i32_0 : i32, i32
  }
  func.func @transform_11(%arg0: i32) -> (i32, i32) {
    %c0_i32 = arith.constant 0 : i32
    %c0_i32_0 = arith.constant 0 : i32
    %c0_i32_1 = arith.constant 0 : i32
    return %c0_i32, %c0_i32_0 : i32, i32
  }
  func.func @transform_12(%arg0: i32) -> (i32, i32) {
    %c0_i32 = arith.constant 0 : i32
    %c0_i32_0 = arith.constant 0 : i32
    %c0_i32_1 = arith.constant 0 : i32
    return %c0_i32, %c0_i32_0 : i32, i32
  }
  func.func @transform_13(%arg0: i32) -> (i32, i32) {
    %c0_i32 = arith.constant 0 : i32
    %c0_i32_0 = arith.constant 0 : i32
    return %arg0, %c0_i32 : i32, i32
  }
}

</mosaic_0001>

<llo_original>
// kernel: conv_autoencoder_forward.1
$region0: #{conv_autoencoder_forward.1}
  #allocation0 [shape = 'u32[]', space=smem, size = 0x4, offset = 0x4, fixed_abs, tag = 'smem constant byte address 0x4 - core index']
  #allocation1 [shape = 'u32[72,128]{1,0:T(1,128)}', space=vmem, size = 0x9000, scoped, tag = 'internal scratch']
  %s0 = inlined_call_operand.vmem [shape: bf16[8,768], index: 0, kind: input, shape index: {}]
  %s1 = inlined_call_operand.hbm [shape: bf16[768,768], index: 1, kind: input, shape index: {}]
  %s2 = inlined_call_operand.hbm [shape: f32[1,768], index: 2, kind: input, shape index: {}]
  %s3 = inlined_call_operand.hbm [shape: bf16[768,384], index: 3, kind: input, shape index: {}]
  %s4 = inlined_call_operand.hbm [shape: f32[1,384], index: 4, kind: input, shape index: {}]
  %s5 = inlined_call_operand.hbm [shape: bf16[384,256], index: 5, kind: input, shape index: {}]
  %s6 = inlined_call_operand.hbm [shape: f32[1,256], index: 6, kind: input, shape index: {}]
  %s7 = inlined_call_operand.hbm [shape: bf16[256,384], index: 7, kind: input, shape index: {}]
  %s8 = inlined_call_operand.hbm [shape: f32[1,384], index: 8, kind: input, shape index: {}]
  %s9 = inlined_call_operand.hbm [shape: bf16[384,768], index: 9, kind: input, shape index: {}]
  %s10 = inlined_call_operand.hbm [shape: f32[1,768], index: 10, kind: input, shape index: {}]
  %s11 = inlined_call_operand.hbm [shape: bf16[768,768], index: 11, kind: input, shape index: {}]
  %s12 = inlined_call_operand.hbm [shape: f32[1,768], index: 12, kind: input, shape index: {}]
  %s13 = inlined_call_operand.vmem [shape: f32[8,768], index: 13, kind: output, shape index: {}]
  %s14 = sld [smem:[#allocation0]]
  $region110: #{conv_autoencoder_forward.1} parent=0
    _
  %s16 = ssub.s32 1, %s14
  %s17 = scalar_select 0, %s16, %s14
  $region1: #{conv_autoencoder_forward.1} parent=0
    #allocation2 [shape = 'u8[1179648]{0}', space=vmem, size = 0x120000, scoped, tag = 'input window, operand 1, single buffered']
    #allocation3 [shape = 's32[1]{0}', space=sflag, size = 0x4, scoped, tag = 'scoped memory for conv_autoencoder_forward.1']
    #allocation4 [shape = 'u8[3072]{0}', space=vmem, size = 0xc00, scoped, tag = 'input window, operand 2, single buffered']
    #allocation5 [shape = 's32[1]{0}', space=sflag, size = 0x4, scoped, tag = 'scoped memory for conv_autoencoder_forward.1']
    #allocation6 [shape = 'u8[589824]{0}', space=vmem, size = 0x90000, scoped, tag = 'input window, operand 3, single buffered']
    #allocation7 [shape = 'u8[1536]{0}', space=vmem, size = 0x800, scoped, tag = 'input window, operand 4, single buffered']
    #allocation8 [shape = 's32[1]{0}', space=sflag, size = 0x4, scoped, tag = 'scoped memory for conv_autoencoder_forward.1']
    #allocation9 [shape = 'u8[196608]{0}', space=vmem, size = 0x30000, scoped, tag = 'input window, operand 5, single buffered']
    #allocation10 [shape = 'u8[1024]{0}', space=vmem, size = 0x400, scoped, tag = 'input window, operand 6, single buffered']
    #allocation11 [shape = 's32[1]{0}', space=sflag, size = 0x4, scoped, tag = 'scoped memory for conv_autoencoder_forward.1']
    #allocation12 [shape = 'u8[196608]{0}', space=vmem, size = 0x30000, scoped, tag = 'input window, operand 7, single buffered']
    #allocation13 [shape = 'u8[1536]{0}', space=vmem, size = 0x800, scoped, tag = 'input window, operand 8, single buffered']
    #allocation14 [shape = 's32[1]{0}', space=sflag, size = 0x4, scoped, tag = 'scoped memory for conv_autoencoder_forward.1']
    #allocation15 [shape = 'u8[589824]{0}', space=vmem, size = 0x90000, scoped, tag = 'input window, operand 9, single buffered']
    #allocation16 [shape = 'u8[3072]{0}', space=vmem, size = 0xc00, scoped, tag = 'input window, operand 10, single buffered']
    #allocation17 [shape = 's32[1]{0}', space=sflag, size = 0x4, scoped, tag = 'scoped memory for conv_autoencoder_forward.1']
    #allocation18 [shape = 'u8[1179648]{0}', space=vmem, size = 0x120000, scoped, tag = 'input window, operand 11, single buffered']
    #allocation19 [shape = 'u8[3072]{0}', space=vmem, size = 0xc00, scoped, tag = 'input window, operand 12, single buffered']
    #allocation20 [shape = 's32[1]{0}', space=sflag, size = 0x4, scoped, tag = 'scoped memory for conv_autoencoder_forward.1']
    %18 = vsyncpa [#allocation3], 0
    %19 = vsyncpa [#allocation5], 0
    %20 = vsyncpa [#allocation8], 0
    %21 = vsyncpa [#allocation11], 0
    %22 = vsyncpa [#allocation14], 0
    %23 = vsyncpa [#allocation17], 0
    %24 = vsyncpa [#allocation20], 0
    // Predicated region
    $region2: #{conv_autoencoder_forward.1} parent=1 // pred_check
      _
    $region3: #{conv_autoencoder_forward.1} parent=1 // pred_check_branch
      %26 = sbr.rel (0) target = $region5
    $region4: #{conv_autoencoder_forward.1} parent=1 // pred_region
      _
    $region5: #{conv_autoencoder_forward.1} parent=1 // pred_fallthru
      _
    // Predicated region
    $region6: #{conv_autoencoder_forward.1} parent=1 // pred_check
      _
    $region7: #{conv_autoencoder_forward.1} parent=1 // pred_check_branch
      %28 = sbr.rel (0) target = $region9
    $region8: #{conv_autoencoder_forward.1} parent=1 // pred_region
      %30 = vsyncadd [#allocation3], 0
      %s31 = sshll.u32 %s1, 4
      %s32 = int_to_ptr.hbm [resolvable:$true] %s31
      %s33 = sshll.u32 [#allocation2], 4
      %s34 = int_to_ptr.vmem [resolvable:$true] %s33
      %39 = dma.hbm_to_vmem [thread:$0]  %s32, 36864, %s34, [#allocation3], 384, 384, 24
    $region9: #{conv_autoencoder_forward.1} parent=1 // pred_fallthru
      _
    // Predicated region
    $region10: #{conv_autoencoder_forward.1} parent=1 // pred_check
      _
    $region11: #{conv_autoencoder_forward.1} parent=1 // pred_check_branch
      %41 = sbr.rel (0) target = $region13
    $region12: #{conv_autoencoder_forward.1} parent=1 // pred_region
      %43 = vsyncadd [#allocation5], 0
      %s45 = sshll.u32 %s2, 4
      %s46 = int_to_ptr.hbm [resolvable:$true] %s45
      %s47 = sshll.u32 [#allocation4], 4
      %s48 = int_to_ptr.vmem [resolvable:$true] %s47
      %50 = dma.hbm_to_vmem [thread:$0]  %s46, 96, %s48, [#allocation5]
    $region13: #{conv_autoencoder_forward.1} parent=1 // pred_fallthru
      _
    // Predicated region
    $region14: #{conv_autoencoder_forward.1} parent=1 // pred_check
      _
    $region15: #{conv_autoencoder_forward.1} parent=1 // pred_check_branch
      %52 = sbr.rel (0) target = $region17
    $region16: #{conv_autoencoder_forward.1} parent=1 // pred_region
      %54 = vsyncadd [#allocation5], 0
      %s55 = sshll.u32 %s3, 4
      %s56 = int_to_ptr.hbm [resolvable:$true] %s55
      %s57 = sshll.u32 [#allocation6], 4
      %s58 = int_to_ptr.vmem [resolvable:$true] %s57
      %63 = dma.hbm_to_vmem [thread:$0]  %s56, 18432, %s58, [#allocation5], 192, 192, 12
    $region17: #{conv_autoencoder_forward.1} parent=1 // pred_fallthru
      _
    // Predicated region
    $region18: #{conv_autoencoder_forward.1} parent=1 // pred_check
      _
    $region19: #{conv_autoencoder_forward.1} parent=1 // pred_check_branch
      %65 = sbr.rel (0) target = $region21
    $region20: #{conv_autoencoder_forward.1} parent=1 // pred_region
      %67 = vsyncadd [#allocation8], 0
      %s69 = sshll.u32 %s4, 4
      %s70 = int_to_ptr.hbm [resolvable:$true] %s69
      %s71 = sshll.u32 [#allocation7], 4
      %s72 = int_to_ptr.vmem [resolvable:$true] %s71
      %74 = dma.hbm_to_vmem [thread:$0]  %s70, 48, %s72, [#allocation8]
    $region21: #{conv_autoencoder_forward.1} parent=1 // pred_fallthru
      _
    // Predicated region
    $region22: #{conv_autoencoder_forward.1} parent=1 // pred_check
      _
    $region23: #{conv_autoencoder_forward.1} parent=1 // pred_check_branch
      %76 = sbr.rel (0) target = $region25
    $region24: #{conv_autoencoder_forward.1} parent=1 // pred_region
      %78 = vsyncadd [#allocation8], 0
      %s79 = sshll.u32 %s5, 4
      %s80 = int_to_ptr.hbm [resolvable:$true] %s79
      %s81 = sshll.u32 [#allocation9], 4
      %s82 = int_to_ptr.vmem [resolvable:$true] %s81
      %87 = dma.hbm_to_vmem [thread:$0]  %s80, 6144, %s82, [#allocation8], 128, 128, 8
    $region25: #{conv_autoencoder_forward.1} parent=1 // pred_fallthru
      _
    // Predicated region
    $region26: #{conv_autoencoder_forward.1} parent=1 // pred_check
      _
    $region27: #{conv_autoencoder_forward.1} parent=1 // pred_check_branch
      %89 = sbr.rel (0) target = $region29
    $region28: #{conv_autoencoder_forward.1} parent=1 // pred_region
      %91 = vsyncadd [#allocation11], 0
      %s93 = sshll.u32 %s6, 4
      %s94 = int_to_ptr.hbm [resolvable:$true] %s93
      %s95 = sshll.u32 [#allocation10], 4
      %s96 = int_to_ptr.vmem [resolvable:$true] %s95
      %98 = dma.hbm_to_vmem [thread:$0]  %s94, 32, %s96, [#allocation11]
    $region29: #{conv_autoencoder_forward.1} parent=1 // pred_fallthru
      _
    // Predicated region
    $region30: #{conv_autoencoder_forward.1} parent=1 // pred_check
      _
    $region31: #{conv_autoencoder_forward.1} parent=1 // pred_check_branch
      %100 = sbr.rel (0) target = $region33
    $region32: #{conv_autoencoder_forward.1} parent=1 // pred_region
      %102 = vsyncadd [#allocation11], 0
      %s103 = sshll.u32 %s7, 4
      %s104 = int_to_ptr.hbm [resolvable:$true] %s103
      %s105 = sshll.u32 [#allocation12], 4
      %s106 = int_to_ptr.vmem [resolvable:$true] %s105
      %111 = dma.hbm_to_vmem [thread:$0]  %s104, 6144, %s106, [#allocation11], 192, 192, 12
    $region33: #{conv_autoencoder_forward.1} parent=1 // pred_fallthru
      _
    // Predicated region
    $region34: #{conv_autoencoder_forward.1} parent=1 // pred_check
      _
    $region35: #{conv_autoencoder_forward.1} parent=1 // pred_check_branch
      %113 = sbr.rel (0) target = $region37
    $region36: #{conv_autoencoder_forward.1} parent=1 // pred_region
      %115 = vsyncadd [#allocation14], 0
      %s117 = sshll.u32 %s8, 4
      %s118 = int_to_ptr.hbm [resolvable:$true] %s117
      %s119 = sshll.u32 [#allocation13], 4
      %s120 = int_to_ptr.vmem [resolvable:$true] %s119
      %122 = dma.hbm_to_vmem [thread:$0]  %s118, 48, %s120, [#allocation14]
    $region37: #{conv_autoencoder_forward.1} parent=1 // pred_fallthru
      _
    // Predicated region
    $region38: #{conv_autoencoder_forward.1} parent=1 // pred_check
      _
    $region39: #{conv_autoencoder_forward.1} parent=1 // pred_check_branch
      %124 = sbr.rel (0) target = $region41
    $region40: #{conv_autoencoder_forward.1} parent=1 // pred_region
      %126 = vsyncadd [#allocation14], 0
      %s127 = sshll.u32 %s9, 4
      %s128 = int_to_ptr.hbm [resolvable:$true] %s127
      %s129 = sshll.u32 [#allocation15], 4
      %s130 = int_to_ptr.vmem [resolvable:$true] %s129
      %135 = dma.hbm_to_vmem [thread:$0]  %s128, 18432, %s130, [#allocation14], 384, 384, 24
    $region41: #{conv_autoencoder_forward.1} parent=1 // pred_fallthru
      _
    // Predicated region
    $region42: #{conv_autoencoder_forward.1} parent=1 // pred_check
      _
    $region43: #{conv_autoencoder_forward.1} parent=1 // pred_check_branch
      %137 = sbr.rel (0) target = $region45
    $region44: #{conv_autoencoder_forward.1} parent=1 // pred_region
      %139 = vsyncadd [#allocation17], 0
      %s141 = sshll.u32 %s10, 4
      %s142 = int_to_ptr.hbm [resolvable:$true] %s141
      %s143 = sshll.u32 [#allocation16], 4
      %s144 = int_to_ptr.vmem [resolvable:$true] %s143
      %146 = dma.hbm_to_vmem [thread:$0]  %s142, 96, %s144, [#allocation17]
    $region45: #{conv_autoencoder_forward.1} parent=1 // pred_fallthru
      _
    // Predicated region
    $region46: #{conv_autoencoder_forward.1} parent=1 // pred_check
      _
    $region47: #{conv_autoencoder_forward.1} parent=1 // pred_check_branch
      %148 = sbr.rel (0) target = $region49
    $region48: #{conv_autoencoder_forward.1} parent=1 // pred_region
      %150 = vsyncadd [#allocation17], 0
      %s151 = sshll.u32 %s11, 4
      %s152 = int_to_ptr.hbm [resolvable:$true] %s151
      %s153 = sshll.u32 [#allocation18], 4
      %s154 = int_to_ptr.vmem [resolvable:$true] %s153
      %159 = dma.hbm_to_vmem [thread:$0]  %s152, 36864, %s154, [#allocation17], 384, 384, 24
    $region49: #{conv_autoencoder_forward.1} parent=1 // pred_fallthru
      _
    // Predicated region
    $region50: #{conv_autoencoder_forward.1} parent=1 // pred_check
      _
    $region51: #{conv_autoencoder_forward.1} parent=1 // pred_check_branch
      %161 = sbr.rel (0) target = $region53
    $region52: #{conv_autoencoder_forward.1} parent=1 // pred_region
      %163 = vsyncadd [#allocation20], 0
      %s165 = sshll.u32 %s12, 4
      %s166 = int_to_ptr.hbm [resolvable:$true] %s165
      %s167 = sshll.u32 [#allocation19], 4
      %s168 = int_to_ptr.vmem [resolvable:$true] %s167
      %170 = dma.hbm_to_vmem [thread:$0]  %s166, 96, %s168, [#allocation20]
    $region53: #{conv_autoencoder_forward.1} parent=1 // pred_fallthru
      _
    // Predicated region
    $region54: #{conv_autoencoder_forward.1} parent=1 // pred_check
      _
    $region55: #{conv_autoencoder_forward.1} parent=1 // pred_check_branch
      %172 = sbr.rel (0) target = $region57
    $region56: #{conv_autoencoder_forward.1} parent=1 // pred_region
      %174 = dma.done [#allocation3], 36864
    $region57: #{conv_autoencoder_forward.1} parent=1 // pred_fallthru
      _
    // Predicated region
    $region58: #{conv_autoencoder_forward.1} parent=1 // pred_check
      _
    $region59: #{conv_autoencoder_forward.1} parent=1 // pred_check_branch
      %176 = sbr.rel (0) target = $region61
    $region60: #{conv_autoencoder_forward.1} parent=1 // pred_region
      %178 = dma.done [#allocation5], 96
    $region61: #{conv_autoencoder_forward.1} parent=1 // pred_fallthru
      _
    // Predicated region
    $region62: #{conv_autoencoder_forward.1} parent=1 // pred_check
      _
    $region63: #{conv_autoencoder_forward.1} parent=1 // pred_check_branch
      %180 = sbr.rel (0) target = $region65
    $region64: #{conv_autoencoder_forward.1} parent=1 // pred_region
      %182 = dma.done [#allocation5], 18432
    $region65: #{conv_autoencoder_forward.1} parent=1 // pred_fallthru
      _
    // Predicated region
    $region66: #{conv_autoencoder_forward.1} parent=1 // pred_check
      _
    $region67: #{conv_autoencoder_forward.1} parent=1 // pred_check_branch
      %184 = sbr.rel (0) target = $region69
    $region68: #{conv_autoencoder_forward.1} parent=1 // pred_region
      %186 = dma.done [#allocation8], 48
    $region69: #{conv_autoencoder_forward.1} parent=1 // pred_fallthru
      _
    // Predicated region
    $region70: #{conv_autoencoder_forward.1} parent=1 // pred_check
      _
    $region71: #{conv_autoencoder_forward.1} parent=1 // pred_check_branch
      %188 = sbr.rel (0) target = $region73
    $region72: #{conv_autoencoder_forward.1} parent=1 // pred_region
      %190 = dma.done [#allocation8], 6144
    $region73: #{conv_autoencoder_forward.1} parent=1 // pred_fallthru
      _
    // Predicated region
    $region74: #{conv_autoencoder_forward.1} parent=1 // pred_check
      _
    $region75: #{conv_autoencoder_forward.1} parent=1 // pred_check_branch
      %192 = sbr.rel (0) target = $region77
    $region76: #{conv_autoencoder_forward.1} parent=1 // pred_region
      %194 = dma.done [#allocation11], 32
    $region77: #{conv_autoencoder_forward.1} parent=1 // pred_fallthru
      _
    // Predicated region
    $region78: #{conv_autoencoder_forward.1} parent=1 // pred_check
      _
    $region79: #{conv_autoencoder_forward.1} parent=1 // pred_check_branch
      %196 = sbr.rel (0) target = $region81
    $region80: #{conv_autoencoder_forward.1} parent=1 // pred_region
      %198 = dma.done [#allocation11], 6144
    $region81: #{conv_autoencoder_forward.1} parent=1 // pred_fallthru
      _
    // Predicated region
    $region82: #{conv_autoencoder_forward.1} parent=1 // pred_check
      _
    $region83: #{conv_autoencoder_forward.1} parent=1 // pred_check_branch
      %200 = sbr.rel (0) target = $region85
    $region84: #{conv_autoencoder_forward.1} parent=1 // pred_region
      %202 = dma.done [#allocation14], 48
    $region85: #{conv_autoencoder_forward.1} parent=1 // pred_fallthru
      _
    // Predicated region
    $region86: #{conv_autoencoder_forward.1} parent=1 // pred_check
      _
    $region87: #{conv_autoencoder_forward.1} parent=1 // pred_check_branch
      %204 = sbr.rel (0) target = $region89
    $region88: #{conv_autoencoder_forward.1} parent=1 // pred_region
      %206 = dma.done [#allocation14], 18432
    $region89: #{conv_autoencoder_forward.1} parent=1 // pred_fallthru
      _
    // Predicated region
    $region90: #{conv_autoencoder_forward.1} parent=1 // pred_check
      _
    $region91: #{conv_autoencoder_forward.1} parent=1 // pred_check_branch
      %208 = sbr.rel (0) target = $region93
    $region92: #{conv_autoencoder_forward.1} parent=1 // pred_region
      %210 = dma.done [#allocation17], 96
    $region93: #{conv_autoencoder_forward.1} parent=1 // pred_fallthru
      _
    // Predicated region
    $region94: #{conv_autoencoder_forward.1} parent=1 // pred_check
      _
    $region95: #{conv_autoencoder_forward.1} parent=1 // pred_check_branch
      %212 = sbr.rel (0) target = $region97
    $region96: #{conv_autoencoder_forward.1} parent=1 // pred_region
      %214 = dma.done [#allocation17], 36864
    $region97: #{conv_autoencoder_forward.1} parent=1 // pred_fallthru
      _
    // Predicated region
    $region98: #{conv_autoencoder_forward.1} parent=1 // pred_check
      _
    $region99: #{conv_autoencoder_forward.1} parent=1 // pred_check_branch
      %216 = sbr.rel (0) target = $region101
    $region100: #{conv_autoencoder_forward.1} parent=1 // pred_region
      %218 = dma.done [#allocation20], 96
    $region101: #{conv_autoencoder_forward.1} parent=1 // pred_fallthru
      _
    %v219 = vld [vmem:[%s0] sm:$0xff]
    %v220 = vld [vmem:[%s0 + $0x8] sm:$0xff]
    %v221 = vld [vmem:[%s0 + $0x10] sm:$0xff]
    %v222 = vld [vmem:[#allocation2] sm:$0xff]
    %v223 = vld [vmem:[#allocation2 + $0x8] sm:$0xff]
    %v224 = vld [vmem:[#allocation2 + $0x10] sm:$0xff]
    %v225 = vld [vmem:[#allocation2 + $0x18] sm:$0xff]
    %v226 = vld [vmem:[#allocation2 + $0x20] sm:$0xff]
    %v227 = vld [vmem:[#allocation2 + $0x28] sm:$0xff]
    %v228 = vld [vmem:[#allocation2 + $0x30] sm:$0xff]
    %v229 = vld [vmem:[#allocation2 + $0x38] sm:$0xff]
    %v230 = vld [vmem:[#allocation2 + $0x40] sm:$0xff]
    %v231 = vld [vmem:[#allocation2 + $0x48] sm:$0xff]
    %v232 = vld [vmem:[#allocation2 + $0x50] sm:$0xff]
    %v233 = vld [vmem:[#allocation2 + $0x58] sm:$0xff]
    %v234 = vld [vmem:[#allocation2 + $0x60] sm:$0xff]
    %v235 = vld [vmem:[#allocation2 + $0x68] sm:$0xff]
    %v236 = vld [vmem:[#allocation2 + $0x70] sm:$0xff]
    %v237 = vld [vmem:[#allocation2 + $0x78] sm:$0xff]
    %v238 = vld [vmem:[#allocation2 + $0x80] sm:$0xff]
    %v239 = vld [vmem:[#allocation2 + $0x88] sm:$0xff]
    %v240 = vld [vmem:[#allocation2 + $0x90] sm:$0xff]
    %v241 = vld [vmem:[#allocation2 + $0x98] sm:$0xff]
    %v242 = vld [vmem:[#allocation2 + $0xa0] sm:$0xff]
    %v243 = vld [vmem:[#allocation2 + $0xa8] sm:$0xff]
    %v244 = vld [vmem:[#allocation2 + $0xb0] sm:$0xff]
    %v245 = vld [vmem:[#allocation2 + $0xb8] sm:$0xff]
    %v246 = vld [vmem:[#allocation2 + $0xc0] sm:$0xff]
    %v247 = vld [vmem:[#allocation2 + $0xc8] sm:$0xff]
    %v248 = vld [vmem:[#allocation2 + $0xd0] sm:$0xff]
    %v249 = vld [vmem:[#allocation2 + $0xd8] sm:$0xff]
    %v250 = vld [vmem:[#allocation2 + $0xe0] sm:$0xff]
    %v251 = vld [vmem:[#allocation2 + $0xe8] sm:$0xff]
    %v252 = vld [vmem:[#allocation2 + $0xf0] sm:$0xff]
    %v253 = vld [vmem:[#allocation2 + $0xf8] sm:$0xff]
    %v254 = vld [vmem:[#allocation2 + $0x100] sm:$0xff]
    %v255 = vld [vmem:[#allocation2 + $0x108] sm:$0xff]
    %v256 = vld [vmem:[#allocation2 + $0x110] sm:$0xff]
    %v257 = vld [vmem:[#allocation2 + $0x118] sm:$0xff]
    %v258 = vld [vmem:[#allocation2 + $0x120] sm:$0xff]
    %v259 = vld [vmem:[#allocation2 + $0x128] sm:$0xff]
    %v260 = vld [vmem:[#allocation2 + $0x130] sm:$0xff]
    %v261 = vld [vmem:[#allocation2 + $0x138] sm:$0xff]
    %v262 = vld [vmem:[#allocation2 + $0x140] sm:$0xff]
    %v263 = vld [vmem:[#allocation2 + $0x148] sm:$0xff]
    %v264 = vld [vmem:[#allocation2 + $0x150] sm:$0xff]
    %v265 = vld [vmem:[#allocation2 + $0x158] sm:$0xff]
    %v266 = vld [vmem:[#allocation2 + $0x160] sm:$0xff]
    %v267 = vld [vmem:[#allocation2 + $0x168] sm:$0xff]
    %v268 = vld [vmem:[#allocation2 + $0x170] sm:$0xff]
    %v269 = vld [vmem:[#allocation2 + $0x178] sm:$0xff]
    %v270 = vld [vmem:[#allocation2 + $0x180] sm:$0xff]
    %v271 = vld [vmem:[#allocation2 + $0x188] sm:$0xff]
    %v272 = vld [vmem:[#allocation2 + $0x190] sm:$0xff]
    %v273 = vld [vmem:[#allocation2 + $0x198] sm:$0xff]
    %v274 = vld [vmem:[#allocation2 + $0x1a0] sm:$0xff]
    %v275 = vld [vmem:[#allocation2 + $0x1a8] sm:$0xff]
    %v276 = vld [vmem:[#allocation2 + $0x1b0] sm:$0xff]
    %v277 = vld [vmem:[#allocation2 + $0x1b8] sm:$0xff]
    %v278 = vld [vmem:[#allocation2 + $0x1c0] sm:$0xff]
    %v279 = vld [vmem:[#allocation2 + $0x1c8] sm:$0xff]
    %v280 = vld [vmem:[#allocation2 + $0x1d0] sm:$0xff]
    %v281 = vld [vmem:[#allocation2 + $0x1d8] sm:$0xff]
    %v282 = vld [vmem:[#allocation2 + $0x1e0] sm:$0xff]
    %v283 = vld [vmem:[#allocation2 + $0x1e8] sm:$0xff]
    %v284 = vld [vmem:[#allocation2 + $0x1f0] sm:$0xff]
    %v285 = vld [vmem:[#allocation2 + $0x1f8] sm:$0xff]
    %v286 = vld [vmem:[#allocation2 + $0x200] sm:$0xff]
    %v287 = vld [vmem:[#allocation2 + $0x208] sm:$0xff]
    %v288 = vld [vmem:[#allocation2 + $0x210] sm:$0xff]
    %v289 = vld [vmem:[#allocation2 + $0x218] sm:$0xff]
    %v290 = vld [vmem:[#allocation2 + $0x220] sm:$0xff]
    %v291 = vld [vmem:[#allocation2 + $0x228] sm:$0xff]
    %v292 = vld [vmem:[#allocation2 + $0x230] sm:$0xff]
    %v293 = vld [vmem:[#allocation2 + $0x238] sm:$0xff]
    %v294 = vld [vmem:[#allocation2 + $0x240] sm:$0xff]
    %v295 = vld [vmem:[#allocation2 + $0x248] sm:$0xff]
    %v296 = vld [vmem:[#allocation2 + $0x250] sm:$0xff]
    %v297 = vld [vmem:[#allocation2 + $0x258] sm:$0xff]
    %v298 = vld [vmem:[#allocation2 + $0x260] sm:$0xff]
    %v299 = vld [vmem:[#allocation2 + $0x268] sm:$0xff]
    %v300 = vld [vmem:[#allocation2 + $0x270] sm:$0xff]
    %v301 = vld [vmem:[#allocation2 + $0x278] sm:$0xff]
    %v302 = vld [vmem:[#allocation2 + $0x280] sm:$0xff]
    %v303 = vld [vmem:[#allocation2 + $0x288] sm:$0xff]
    %v304 = vld [vmem:[#allocation2 + $0x290] sm:$0xff]
    %v305 = vld [vmem:[#allocation2 + $0x298] sm:$0xff]
    %v306 = vld [vmem:[#allocation2 + $0x2a0] sm:$0xff]
    %v307 = vld [vmem:[#allocation2 + $0x2a8] sm:$0xff]
    %v308 = vld [vmem:[#allocation2 + $0x2b0] sm:$0xff]
    %v309 = vld [vmem:[#allocation2 + $0x2b8] sm:$0xff]
    %v310 = vld [vmem:[#allocation2 + $0x2c0] sm:$0xff]
    %v311 = vld [vmem:[#allocation2 + $0x2c8] sm:$0xff]
    %v312 = vld [vmem:[#allocation2 + $0x2d0] sm:$0xff]
    %v313 = vld [vmem:[#allocation2 + $0x2d8] sm:$0xff]
    %v314 = vld [vmem:[#allocation2 + $0x2e0] sm:$0xff]
    %v315 = vld [vmem:[#allocation2 + $0x2e8] sm:$0xff]
    %v316 = vld [vmem:[#allocation2 + $0x2f0] sm:$0xff]
    %v317 = vld [vmem:[#allocation2 + $0x2f8] sm:$0xff]
    %v318 = vld [vmem:[#allocation2 + $0x300] sm:$0xff]
    %v319 = vld [vmem:[#allocation2 + $0x308] sm:$0xff]
    %v320 = vld [vmem:[#allocation2 + $0x310] sm:$0xff]
    %v321 = vld [vmem:[#allocation2 + $0x318] sm:$0xff]
    %v322 = vld [vmem:[#allocation2 + $0x320] sm:$0xff]
    %v323 = vld [vmem:[#allocation2 + $0x328] sm:$0xff]
    %v324 = vld [vmem:[#allocation2 + $0x330] sm:$0xff]
    %v325 = vld [vmem:[#allocation2 + $0x338] sm:$0xff]
    %v326 = vld [vmem:[#allocation2 + $0x340] sm:$0xff]
    %v327 = vld [vmem:[#allocation2 + $0x348] sm:$0xff]
    %v328 = vld [vmem:[#allocation2 + $0x350] sm:$0xff]
    %v329 = vld [vmem:[#allocation2 + $0x358] sm:$0xff]
    %v330 = vld [vmem:[#allocation2 + $0x360] sm:$0xff]
    %v331 = vld [vmem:[#allocation2 + $0x368] sm:$0xff]
    %v332 = vld [vmem:[#allocation2 + $0x370] sm:$0xff]
    %v333 = vld [vmem:[#allocation2 + $0x378] sm:$0xff]
    %v334 = vld [vmem:[#allocation2 + $0x380] sm:$0xff]
    %v335 = vld [vmem:[#allocation2 + $0x388] sm:$0xff]
    %v336 = vld [vmem:[#allocation2 + $0x390] sm:$0xff]
    %v337 = vld [vmem:[#allocation2 + $0x398] sm:$0xff]
    %v338 = vld [vmem:[#allocation2 + $0x3a0] sm:$0xff]
    %v339 = vld [vmem:[#allocation2 + $0x3a8] sm:$0xff]
    %v340 = vld [vmem:[#allocation2 + $0x3b0] sm:$0xff]
    %v341 = vld [vmem:[#allocation2 + $0x3b8] sm:$0xff]
    %v342 = vld [vmem:[#allocation2 + $0x3c0] sm:$0xff]
    %v343 = vld [vmem:[#allocation2 + $0x3c8] sm:$0xff]
    %v344 = vld [vmem:[#allocation2 + $0x3d0] sm:$0xff]
    %v345 = vld [vmem:[#allocation2 + $0x3d8] sm:$0xff]
    %v346 = vld [vmem:[#allocation2 + $0x3e0] sm:$0xff]
    %v347 = vld [vmem:[#allocation2 + $0x3e8] sm:$0xff]
    %v348 = vld [vmem:[#allocation2 + $0x3f0] sm:$0xff]
    %v349 = vld [vmem:[#allocation2 + $0x3f8] sm:$0xff]
    %v350 = vld [vmem:[#allocation2 + $0x400] sm:$0xff]
    %v351 = vld [vmem:[#allocation2 + $0x408] sm:$0xff]
    %v352 = vld [vmem:[#allocation2 + $0x410] sm:$0xff]
    %v353 = vld [vmem:[#allocation2 + $0x418] sm:$0xff]
    %v354 = vld [vmem:[#allocation2 + $0x420] sm:$0xff]
    %v355 = vld [vmem:[#allocation2 + $0x428] sm:$0xff]
    %v356 = vld [vmem:[#allocation2 + $0x430] sm:$0xff]
    %v357 = vld [vmem:[#allocation2 + $0x438] sm:$0xff]
    %v358 = vld [vmem:[#allocation2 + $0x440] sm:$0xff]
    %v359 = vld [vmem:[#allocation2 + $0x448] sm:$0xff]
    %v360 = vld [vmem:[#allocation2 + $0x450] sm:$0xff]
    %v361 = vld [vmem:[#allocation2 + $0x458] sm:$0xff]
    %v362 = vld [vmem:[#allocation2 + $0x460] sm:$0xff]
    %v363 = vld [vmem:[#allocation2 + $0x468] sm:$0xff]
    %v364 = vld [vmem:[#allocation2 + $0x470] sm:$0xff]
    %v365 = vld [vmem:[#allocation2 + $0x478] sm:$0xff]
    %v366 = vld [vmem:[#allocation2 + $0x480] sm:$0xff]
    %v367 = vld [vmem:[#allocation2 + $0x488] sm:$0xff]
    %v368 = vld [vmem:[#allocation2 + $0x490] sm:$0xff]
    %v369 = vld [vmem:[#allocation2 + $0x498] sm:$0xff]
    %v370 = vld [vmem:[#allocation2 + $0x4a0] sm:$0xff]
    %v371 = vld [vmem:[#allocation2 + $0x4a8] sm:$0xff]
    %v372 = vld [vmem:[#allocation2 + $0x4b0] sm:$0xff]
    %v373 = vld [vmem:[#allocation2 + $0x4b8] sm:$0xff]
    %v374 = vld [vmem:[#allocation2 + $0x4c0] sm:$0xff]
    %v375 = vld [vmem:[#allocation2 + $0x4c8] sm:$0xff]
    %v376 = vld [vmem:[#allocation2 + $0x4d0] sm:$0xff]
    %v377 = vld [vmem:[#allocation2 + $0x4d8] sm:$0xff]
    %v378 = vld [vmem:[#allocation2 + $0x4e0] sm:$0xff]
    %v379 = vld [vmem:[#allocation2 + $0x4e8] sm:$0xff]
    %v380 = vld [vmem:[#allocation2 + $0x4f0] sm:$0xff]
    %v381 = vld [vmem:[#allocation2 + $0x4f8] sm:$0xff]
    %v382 = vld [vmem:[#allocation2 + $0x500] sm:$0xff]
    %v383 = vld [vmem:[#allocation2 + $0x508] sm:$0xff]
    %v384 = vld [vmem:[#allocation2 + $0x510] sm:$0xff]
    %v385 = vld [vmem:[#allocation2 + $0x518] sm:$0xff]
    %v386 = vld [vmem:[#allocation2 + $0x520] sm:$0xff]
    %v387 = vld [vmem:[#allocation2 + $0x528] sm:$0xff]
    %v388 = vld [vmem:[#allocation2 + $0x530] sm:$0xff]
    %v389 = vld [vmem:[#allocation2 + $0x538] sm:$0xff]
    %v390 = vld [vmem:[#allocation2 + $0x540] sm:$0xff]
    %v391 = vld [vmem:[#allocation2 + $0x548] sm:$0xff]
    %v392 = vld [vmem:[#allocation2 + $0x550] sm:$0xff]
    %v393 = vld [vmem:[#allocation2 + $0x558] sm:$0xff]
    %v394 = vld [vmem:[#allocation2 + $0x560] sm:$0xff]
    %v395 = vld [vmem:[#allocation2 + $0x568] sm:$0xff]
    %v396 = vld [vmem:[#allocation2 + $0x570] sm:$0xff]
    %v397 = vld [vmem:[#allocation2 + $0x578] sm:$0xff]
    %v398 = vld [vmem:[#allocation2 + $0x580] sm:$0xff]
    %v399 = vld [vmem:[#allocation2 + $0x588] sm:$0xff]
    %v400 = vld [vmem:[#allocation2 + $0x590] sm:$0xff]
    %v401 = vld [vmem:[#allocation2 + $0x598] sm:$0xff]
    %v402 = vld [vmem:[#allocation2 + $0x5a0] sm:$0xff]
    %v403 = vld [vmem:[#allocation2 + $0x5a8] sm:$0xff]
    %v404 = vld [vmem:[#allocation2 + $0x5b0] sm:$0xff]
    %v405 = vld [vmem:[#allocation2 + $0x5b8] sm:$0xff]
    %v406 = vld [vmem:[#allocation2 + $0x5c0] sm:$0xff]
    %v407 = vld [vmem:[#allocation2 + $0x5c8] sm:$0xff]
    %v408 = vld [vmem:[#allocation2 + $0x5d0] sm:$0xff]
    %v409 = vld [vmem:[#allocation2 + $0x5d8] sm:$0xff]
    %v410 = vld [vmem:[#allocation2 + $0x5e0] sm:$0xff]
    %v411 = vld [vmem:[#allocation2 + $0x5e8] sm:$0xff]
    %v412 = vld [vmem:[#allocation2 + $0x5f0] sm:$0xff]
    %v413 = vld [vmem:[#allocation2 + $0x5f8] sm:$0xff]
    %v414 = vld [vmem:[#allocation2 + $0x600] sm:$0xff]
    %v415 = vld [vmem:[#allocation2 + $0x608] sm:$0xff]
    %v416 = vld [vmem:[#allocation2 + $0x610] sm:$0xff]
    %v417 = vld [vmem:[#allocation2 + $0x618] sm:$0xff]
    %v418 = vld [vmem:[#allocation2 + $0x620] sm:$0xff]
    %v419 = vld [vmem:[#allocation2 + $0x628] sm:$0xff]
    %v420 = vld [vmem:[#allocation2 + $0x630] sm:$0xff]
    %v421 = vld [vmem:[#allocation2 + $0x638] sm:$0xff]
    %v422 = vld [vmem:[#allocation2 + $0x640] sm:$0xff]
    %v423 = vld [vmem:[#allocation2 + $0x648] sm:$0xff]
    %v424 = vld [vmem:[#allocation2 + $0x650] sm:$0xff]
    %v425 = vld [vmem:[#allocation2 + $0x658] sm:$0xff]
    %v426 = vld [vmem:[#allocation2 + $0x660] sm:$0xff]
    %v427 = vld [vmem:[#allocation2 + $0x668] sm:$0xff]
    %v428 = vld [vmem:[#allocation2 + $0x670] sm:$0xff]
    %v429 = vld [vmem:[#allocation2 + $0x678] sm:$0xff]
    %v430 = vld [vmem:[#allocation2 + $0x680] sm:$0xff]
    %v431 = vld [vmem:[#allocation2 + $0x688] sm:$0xff]
    %v432 = vld [vmem:[#allocation2 + $0x690] sm:$0xff]
    %v433 = vld [vmem:[#allocation2 + $0x698] sm:$0xff]
    %v434 = vld [vmem:[#allocation2 + $0x6a0] sm:$0xff]
    %v435 = vld [vmem:[#allocation2 + $0x6a8] sm:$0xff]
    %v436 = vld [vmem:[#allocation2 + $0x6b0] sm:$0xff]
    %v437 = vld [vmem:[#allocation2 + $0x6b8] sm:$0xff]
    %v438 = vld [vmem:[#allocation2 + $0x6c0] sm:$0xff]
    %v439 = vld [vmem:[#allocation2 + $0x6c8] sm:$0xff]
    %v440 = vld [vmem:[#allocation2 + $0x6d0] sm:$0xff]
    %v441 = vld [vmem:[#allocation2 + $0x6d8] sm:$0xff]
    %v442 = vld [vmem:[#allocation2 + $0x6e0] sm:$0xff]
    %v443 = vld [vmem:[#allocation2 + $0x6e8] sm:$0xff]
    %v444 = vld [vmem:[#allocation2 + $0x6f0] sm:$0xff]
    %v445 = vld [vmem:[#allocation2 + $0x6f8] sm:$0xff]
    %v446 = vld [vmem:[#allocation2 + $0x700] sm:$0xff]
    %v447 = vld [vmem:[#allocation2 + $0x708] sm:$0xff]
    %v448 = vld [vmem:[#allocation2 + $0x710] sm:$0xff]
    %v449 = vld [vmem:[#allocation2 + $0x718] sm:$0xff]
    %v450 = vld [vmem:[#allocation2 + $0x720] sm:$0xff]
    %v451 = vld [vmem:[#allocation2 + $0x728] sm:$0xff]
    %v452 = vld [vmem:[#allocation2 + $0x730] sm:$0xff]
    %v453 = vld [vmem:[#allocation2 + $0x738] sm:$0xff]
    %v454 = vld [vmem:[#allocation2 + $0x740] sm:$0xff]
    %v455 = vld [vmem:[#allocation2 + $0x748] sm:$0xff]
    %v456 = vld [vmem:[#allocation2 + $0x750] sm:$0xff]
    %v457 = vld [vmem:[#allocation2 + $0x758] sm:$0xff]
    %v458 = vld [vmem:[#allocation2 + $0x760] sm:$0xff]
    %v459 = vld [vmem:[#allocation2 + $0x768] sm:$0xff]
    %v460 = vld [vmem:[#allocation2 + $0x770] sm:$0xff]
    %v461 = vld [vmem:[#allocation2 + $0x778] sm:$0xff]
    %v462 = vld [vmem:[#allocation2 + $0x780] sm:$0xff]
    %v463 = vld [vmem:[#allocation2 + $0x788] sm:$0xff]
    %v464 = vld [vmem:[#allocation2 + $0x790] sm:$0xff]
    %v465 = vld [vmem:[#allocation2 + $0x798] sm:$0xff]
    %v466 = vld [vmem:[#allocation2 + $0x7a0] sm:$0xff]
    %v467 = vld [vmem:[#allocation2 + $0x7a8] sm:$0xff]
    %v468 = vld [vmem:[#allocation2 + $0x7b0] sm:$0xff]
    %v469 = vld [vmem:[#allocation2 + $0x7b8] sm:$0xff]
    %v470 = vld [vmem:[#allocation2 + $0x7c0] sm:$0xff]
    %v471 = vld [vmem:[#allocation2 + $0x7c8] sm:$0xff]
    %v472 = vld [vmem:[#allocation2 + $0x7d0] sm:$0xff]
    %v473 = vld [vmem:[#allocation2 + $0x7d8] sm:$0xff]
    %v474 = vld [vmem:[#allocation2 + $0x7e0] sm:$0xff]
    %v475 = vld [vmem:[#allocation2 + $0x7e8] sm:$0xff]
    %v476 = vld [vmem:[#allocation2 + $0x7f0] sm:$0xff]
    %v477 = vld [vmem:[#allocation2 + $0x7f8] sm:$0xff]
    %v478 = vld [vmem:[#allocation2 + $0x800] sm:$0xff]
    %v479 = vld [vmem:[#allocation2 + $0x808] sm:$0xff]
    %v480 = vld [vmem:[#allocation2 + $0x810] sm:$0xff]
    %v481 = vld [vmem:[#allocation2 + $0x818] sm:$0xff]
    %v482 = vld [vmem:[#allocation2 + $0x820] sm:$0xff]
    %v483 = vld [vmem:[#allocation2 + $0x828] sm:$0xff]
    %v484 = vld [vmem:[#allocation2 + $0x830] sm:$0xff]
    %v485 = vld [vmem:[#allocation2 + $0x838] sm:$0xff]
    %v486 = vld [vmem:[#allocation2 + $0x840] sm:$0xff]
    %v487 = vld [vmem:[#allocation2 + $0x848] sm:$0xff]
    %v488 = vld [vmem:[#allocation2 + $0x850] sm:$0xff]
    %v489 = vld [vmem:[#allocation2 + $0x858] sm:$0xff]
    %v490 = vld [vmem:[#allocation2 + $0x860] sm:$0xff]
    %v491 = vld [vmem:[#allocation2 + $0x868] sm:$0xff]
    %v492 = vld [vmem:[#allocation2 + $0x870] sm:$0xff]
    %v493 = vld [vmem:[#allocation2 + $0x878] sm:$0xff]
    %v494 = vld [vmem:[#allocation2 + $0x880] sm:$0xff]
    %v495 = vld [vmem:[#allocation2 + $0x888] sm:$0xff]
    %v496 = vld [vmem:[#allocation2 + $0x890] sm:$0xff]
    %v497 = vld [vmem:[#allocation2 + $0x898] sm:$0xff]
    %v498 = vld [vmem:[#allocation2 + $0x8a0] sm:$0xff]
    %v499 = vld [vmem:[#allocation2 + $0x8a8] sm:$0xff]
    %v500 = vld [vmem:[#allocation2 + $0x8b0] sm:$0xff]
    %v501 = vld [vmem:[#allocation2 + $0x8b8] sm:$0xff]
    %v502 = vld [vmem:[#allocation2 + $0x8c0] sm:$0xff]
    %v503 = vld [vmem:[#allocation2 + $0x8c8] sm:$0xff]
    %v504 = vld [vmem:[#allocation2 + $0x8d0] sm:$0xff]
    %v505 = vld [vmem:[#allocation2 + $0x8d8] sm:$0xff]
    %v506 = vld [vmem:[#allocation2 + $0x8e0] sm:$0xff]
    %v507 = vld [vmem:[#allocation2 + $0x8e8] sm:$0xff]
    %v508 = vld [vmem:[#allocation2 + $0x8f0] sm:$0xff]
    %v509 = vld [vmem:[#allocation2 + $0x8f8] sm:$0xff]
    %v510 = vld [vmem:[#allocation4] sm:$0x3f]
    %v512 = vperm.slane %v510, 0
    %v513 = vperm.slane %v510, 1
    %v514 = vperm.slane %v510, 2
    %v515 = vperm.slane %v510, 3
    %v516 = vperm.slane %v510, 4
    %v517 = vperm.slane %v510, 5
    %v527 = vunpack.c.l.b16 %v219
    %v528 = vunpack.c.h.b16 %v219
    %v529 = vunpack.c.l.b16 %v220
    %v530 = vunpack.c.h.b16 %v220
    %v531 = vunpack.c.l.b16 %v221
    %v532 = vunpack.c.h.b16 %v221
    %v533 = vpack.c.b16 %v527, %v527
    %v534 = vpack.c.b16 %v528, %v528
    %v535 = vpack.c.b16 %v529, %v529
    %v536 = vpack.c.b16 %v530, %v530
    %v537 = vpack.c.b16 %v531, %v531
    %v538 = vpack.c.b16 %v532, %v532
    %v833 = vunpack.c.l.b16 %v222
    %v834 = vunpack.c.h.b16 %v222
    %v835 = vunpack.c.l.b16 %v223
    %v836 = vunpack.c.h.b16 %v223
    %v837 = vunpack.c.l.b16 %v224
    %v838 = vunpack.c.h.b16 %v224
    %v839 = vunpack.c.l.b16 %v225
    %v840 = vunpack.c.h.b16 %v225
    %v841 = vunpack.c.l.b16 %v226
    %v842 = vunpack.c.h.b16 %v226
    %v843 = vunpack.c.l.b16 %v227
    %v844 = vunpack.c.h.b16 %v227
    %v845 = vunpack.c.l.b16 %v228
    %v846 = vunpack.c.h.b16 %v228
    %v847 = vunpack.c.l.b16 %v229
    %v848 = vunpack.c.h.b16 %v229
    %v849 = vunpack.c.l.b16 %v230
    %v850 = vunpack.c.h.b16 %v230
    %v851 = vunpack.c.l.b16 %v231
    %v852 = vunpack.c.h.b16 %v231
    %v853 = vunpack.c.l.b16 %v232
    %v854 = vunpack.c.h.b16 %v232
    %v855 = vunpack.c.l.b16 %v233
    %v856 = vunpack.c.h.b16 %v233
    %v857 = vunpack.c.l.b16 %v234
    %v858 = vunpack.c.h.b16 %v234
    %v859 = vunpack.c.l.b16 %v235
    %v860 = vunpack.c.h.b16 %v235
    %v861 = vunpack.c.l.b16 %v236
    %v862 = vunpack.c.h.b16 %v236
    %v863 = vunpack.c.l.b16 %v237
    %v864 = vunpack.c.h.b16 %v237
    %v865 = vunpack.c.l.b16 %v238
    %v866 = vunpack.c.h.b16 %v238
    %v867 = vunpack.c.l.b16 %v239
    %v868 = vunpack.c.h.b16 %v239
    %v869 = vunpack.c.l.b16 %v240
    %v870 = vunpack.c.h.b16 %v240
    %v871 = vunpack.c.l.b16 %v241
    %v872 = vunpack.c.h.b16 %v241
    %v873 = vunpack.c.l.b16 %v242
    %v874 = vunpack.c.h.b16 %v242
    %v875 = vunpack.c.l.b16 %v243
    %v876 = vunpack.c.h.b16 %v243
    %v877 = vunpack.c.l.b16 %v244
    %v878 = vunpack.c.h.b16 %v244
    %v879 = vunpack.c.l.b16 %v245
    %v880 = vunpack.c.h.b16 %v245
    %v881 = vunpack.c.l.b16 %v246
    %v882 = vunpack.c.h.b16 %v246
    %v883 = vunpack.c.l.b16 %v247
    %v884 = vunpack.c.h.b16 %v247
    %v885 = vunpack.c.l.b16 %v248
    %v886 = vunpack.c.h.b16 %v248
    %v887 = vunpack.c.l.b16 %v249
    %v888 = vunpack.c.h.b16 %v249
    %v889 = vunpack.c.l.b16 %v250
    %v890 = vunpack.c.h.b16 %v250
    %v891 = vunpack.c.l.b16 %v251
    %v892 = vunpack.c.h.b16 %v251
    %v893 = vunpack.c.l.b16 %v252
    %v894 = vunpack.c.h.b16 %v252
    %v895 = vunpack.c.l.b16 %v253
    %v896 = vunpack.c.h.b16 %v253
    %v897 = vunpack.c.l.b16 %v254
    %v898 = vunpack.c.h.b16 %v254
    %v899 = vunpack.c.l.b16 %v255
    %v900 = vunpack.c.h.b16 %v255
    %v901 = vunpack.c.l.b16 %v256
    %v902 = vunpack.c.h.b16 %v256
    %v903 = vunpack.c.l.b16 %v257
    %v904 = vunpack.c.h.b16 %v257
    %v905 = vunpack.c.l.b16 %v258
    %v906 = vunpack.c.h.b16 %v258
    %v907 = vunpack.c.l.b16 %v259
    %v908 = vunpack.c.h.b16 %v259
    %v909 = vunpack.c.l.b16 %v260
    %v910 = vunpack.c.h.b16 %v260
    %v911 = vunpack.c.l.b16 %v261
    %v912 = vunpack.c.h.b16 %v261
    %v913 = vunpack.c.l.b16 %v262
    %v914 = vunpack.c.h.b16 %v262
    %v915 = vunpack.c.l.b16 %v263
    %v916 = vunpack.c.h.b16 %v263
    %v917 = vunpack.c.l.b16 %v264
    %v918 = vunpack.c.h.b16 %v264
    %v919 = vunpack.c.l.b16 %v265
    %v920 = vunpack.c.h.b16 %v265
    %v921 = vunpack.c.l.b16 %v266
    %v922 = vunpack.c.h.b16 %v266
    %v923 = vunpack.c.l.b16 %v267
    %v924 = vunpack.c.h.b16 %v267
    %v925 = vunpack.c.l.b16 %v268
    %v926 = vunpack.c.h.b16 %v268
    %v927 = vunpack.c.l.b16 %v269
    %v928 = vunpack.c.h.b16 %v269
    %v929 = vunpack.c.l.b16 %v270
    %v930 = vunpack.c.h.b16 %v270
    %v931 = vunpack.c.l.b16 %v271
    %v932 = vunpack.c.h.b16 %v271
    %v933 = vunpack.c.l.b16 %v272
    %v934 = vunpack.c.h.b16 %v272
    %v935 = vunpack.c.l.b16 %v273
    %v936 = vunpack.c.h.b16 %v273
    %v937 = vunpack.c.l.b16 %v274
    %v938 = vunpack.c.h.b16 %v274
    %v939 = vunpack.c.l.b16 %v275
    %v940 = vunpack.c.h.b16 %v275
    %v941 = vunpack.c.l.b16 %v276
    %v942 = vunpack.c.h.b16 %v276
    %v943 = vunpack.c.l.b16 %v277
    %v944 = vunpack.c.h.b16 %v277
    %v945 = vunpack.c.l.b16 %v278
    %v946 = vunpack.c.h.b16 %v278
    %v947 = vunpack.c.l.b16 %v279
    %v948 = vunpack.c.h.b16 %v279
    %v949 = vunpack.c.l.b16 %v280
    %v950 = vunpack.c.h.b16 %v280
    %v951 = vunpack.c.l.b16 %v281
    %v952 = vunpack.c.h.b16 %v281
    %v953 = vunpack.c.l.b16 %v282
    %v954 = vunpack.c.h.b16 %v282
    %v955 = vunpack.c.l.b16 %v283
    %v956 = vunpack.c.h.b16 %v283
    %v957 = vunpack.c.l.b16 %v284
    %v958 = vunpack.c.h.b16 %v284
    %v959 = vunpack.c.l.b16 %v285
    %v960 = vunpack.c.h.b16 %v285
    %v961 = vunpack.c.l.b16 %v286
    %v962 = vunpack.c.h.b16 %v286
    %v963 = vunpack.c.l.b16 %v287
    %v964 = vunpack.c.h.b16 %v287
    %v965 = vunpack.c.l.b16 %v288
    %v966 = vunpack.c.h.b16 %v288
    %v967 = vunpack.c.l.b16 %v289
    %v968 = vunpack.c.h.b16 %v289
    %v969 = vunpack.c.l.b16 %v290
    %v970 = vunpack.c.h.b16 %v290
    %v971 = vunpack.c.l.b16 %v291
    %v972 = vunpack.c.h.b16 %v291
    %v973 = vunpack.c.l.b16 %v292
    %v974 = vunpack.c.h.b16 %v292
    %v975 = vunpack.c.l.b16 %v293
    %v976 = vunpack.c.h.b16 %v293
    %v977 = vunpack.c.l.b16 %v294
    %v978 = vunpack.c.h.b16 %v294
    %v979 = vunpack.c.l.b16 %v295
    %v980 = vunpack.c.h.b16 %v295
    %v981 = vunpack.c.l.b16 %v296
    %v982 = vunpack.c.h.b16 %v296
    %v983 = vunpack.c.l.b16 %v297
    %v984 = vunpack.c.h.b16 %v297
    %v985 = vunpack.c.l.b16 %v298
    %v986 = vunpack.c.h.b16 %v298
    %v987 = vunpack.c.l.b16 %v299
    %v988 = vunpack.c.h.b16 %v299
    %v989 = vunpack.c.l.b16 %v300
    %v990 = vunpack.c.h.b16 %v300
    %v991 = vunpack.c.l.b16 %v301
    %v992 = vunpack.c.h.b16 %v301
    %v993 = vunpack.c.l.b16 %v302
    %v994 = vunpack.c.h.b16 %v302
    %v995 = vunpack.c.l.b16 %v303
    %v996 = vunpack.c.h.b16 %v303
    %v997 = vunpack.c.l.b16 %v304
    %v998 = vunpack.c.h.b16 %v304
    %v999 = vunpack.c.l.b16 %v305
    %v1000 = vunpack.c.h.b16 %v305
    %v1001 = vunpack.c.l.b16 %v306
    %v1002 = vunpack.c.h.b16 %v306
    %v1003 = vunpack.c.l.b16 %v307
    %v1004 = vunpack.c.h.b16 %v307
    %v1005 = vunpack.c.l.b16 %v308
    %v1006 = vunpack.c.h.b16 %v308
    %v1007 = vunpack.c.l.b16 %v309
    %v1008 = vunpack.c.h.b16 %v309
    %v1009 = vunpack.c.l.b16 %v310
    %v1010 = vunpack.c.h.b16 %v310
    %v1011 = vunpack.c.l.b16 %v311
    %v1012 = vunpack.c.h.b16 %v311
    %v1013 = vunpack.c.l.b16 %v312
    %v1014 = vunpack.c.h.b16 %v312
    %v1015 = vunpack.c.l.b16 %v313
    %v1016 = vunpack.c.h.b16 %v313
    %v1017 = vunpack.c.l.b16 %v314
    %v1018 = vunpack.c.h.b16 %v314
    %v1019 = vunpack.c.l.b16 %v315
    %v1020 = vunpack.c.h.b16 %v315
    %v1021 = vunpack.c.l.b16 %v316
    %v1022 = vunpack.c.h.b16 %v316
    %v1023 = vunpack.c.l.b16 %v317
    %v1024 = vunpack.c.h.b16 %v317
    %v1025 = vunpack.c.l.b16 %v318
    %v1026 = vunpack.c.h.b16 %v318
    %v1027 = vunpack.c.l.b16 %v319
    %v1028 = vunpack.c.h.b16 %v319
    %v1029 = vunpack.c.l.b16 %v320
    %v1030 = vunpack.c.h.b16 %v320
    %v1031 = vunpack.c.l.b16 %v321
    %v1032 = vunpack.c.h.b16 %v321
    %v1033 = vunpack.c.l.b16 %v322
    %v1034 = vunpack.c.h.b16 %v322
    %v1035 = vunpack.c.l.b16 %v323
    %v1036 = vunpack.c.h.b16 %v323
    %v1037 = vunpack.c.l.b16 %v324
    %v1038 = vunpack.c.h.b16 %v324
    %v1039 = vunpack.c.l.b16 %v325
    %v1040 = vunpack.c.h.b16 %v325
    %v1041 = vunpack.c.l.b16 %v326
    %v1042 = vunpack.c.h.b16 %v326
    %v1043 = vunpack.c.l.b16 %v327
    %v1044 = vunpack.c.h.b16 %v327
    %v1045 = vunpack.c.l.b16 %v328
    %v1046 = vunpack.c.h.b16 %v328
    %v1047 = vunpack.c.l.b16 %v329
    %v1048 = vunpack.c.h.b16 %v329
    %v1049 = vunpack.c.l.b16 %v330
    %v1050 = vunpack.c.h.b16 %v330
    %v1051 = vunpack.c.l.b16 %v331
    %v1052 = vunpack.c.h.b16 %v331
    %v1053 = vunpack.c.l.b16 %v332
    %v1054 = vunpack.c.h.b16 %v332
    %v1055 = vunpack.c.l.b16 %v333
    %v1056 = vunpack.c.h.b16 %v333
    %v1057 = vunpack.c.l.b16 %v334
    %v1058 = vunpack.c.h.b16 %v334
    %v1059 = vunpack.c.l.b16 %v335
    %v1060 = vunpack.c.h.b16 %v335
    %v1061 = vunpack.c.l.b16 %v336
    %v1062 = vunpack.c.h.b16 %v336
    %v1063 = vunpack.c.l.b16 %v337
    %v1064 = vunpack.c.h.b16 %v337
    %v1065 = vunpack.c.l.b16 %v338
    %v1066 = vunpack.c.h.b16 %v338
    %v1067 = vunpack.c.l.b16 %v339
    %v1068 = vunpack.c.h.b16 %v339
    %v1069 = vunpack.c.l.b16 %v340
    %v1070 = vunpack.c.h.b16 %v340
    %v1071 = vunpack.c.l.b16 %v341
    %v1072 = vunpack.c.h.b16 %v341
    %v1073 = vunpack.c.l.b16 %v342
    %v1074 = vunpack.c.h.b16 %v342
    %v1075 = vunpack.c.l.b16 %v343
    %v1076 = vunpack.c.h.b16 %v343
    %v1077 = vunpack.c.l.b16 %v344
    %v1078 = vunpack.c.h.b16 %v344
    %v1079 = vunpack.c.l.b16 %v345
    %v1080 = vunpack.c.h.b16 %v345
    %v1081 = vunpack.c.l.b16 %v346
    %v1082 = vunpack.c.h.b16 %v346
    %v1083 = vunpack.c.l.b16 %v347
    %v1084 = vunpack.c.h.b16 %v347
    %v1085 = vunpack.c.l.b16 %v348
    %v1086 = vunpack.c.h.b16 %v348
    %v1087 = vunpack.c.l.b16 %v349
    %v1088 = vunpack.c.h.b16 %v349
    %v1089 = vunpack.c.l.b16 %v350
    %v1090 = vunpack.c.h.b16 %v350
    %v1091 = vunpack.c.l.b16 %v351
    %v1092 = vunpack.c.h.b16 %v351
    %v1093 = vunpack.c.l.b16 %v352
    %v1094 = vunpack.c.h.b16 %v352
    %v1095 = vunpack.c.l.b16 %v353
    %v1096 = vunpack.c.h.b16 %v353
    %v1097 = vunpack.c.l.b16 %v354
    %v1098 = vunpack.c.h.b16 %v354
    %v1099 = vunpack.c.l.b16 %v355
    %v1100 = vunpack.c.h.b16 %v355
    %v1101 = vunpack.c.l.b16 %v356
    %v1102 = vunpack.c.h.b16 %v356
    %v1103 = vunpack.c.l.b16 %v357
    %v1104 = vunpack.c.h.b16 %v357
    %v1105 = vunpack.c.l.b16 %v358
    %v1106 = vunpack.c.h.b16 %v358
    %v1107 = vunpack.c.l.b16 %v359
    %v1108 = vunpack.c.h.b16 %v359
    %v1109 = vunpack.c.l.b16 %v360
    %v1110 = vunpack.c.h.b16 %v360
    %v1111 = vunpack.c.l.b16 %v361
    %v1112 = vunpack.c.h.b16 %v361
    %v1113 = vunpack.c.l.b16 %v362
    %v1114 = vunpack.c.h.b16 %v362
    %v1115 = vunpack.c.l.b16 %v363
    %v1116 = vunpack.c.h.b16 %v363
    %v1117 = vunpack.c.l.b16 %v364
    %v1118 = vunpack.c.h.b16 %v364
    %v1119 = vunpack.c.l.b16 %v365
    %v1120 = vunpack.c.h.b16 %v365
    %v1121 = vunpack.c.l.b16 %v366
    %v1122 = vunpack.c.h.b16 %v366
    %v1123 = vunpack.c.l.b16 %v367
    %v1124 = vunpack.c.h.b16 %v367
    %v1125 = vunpack.c.l.b16 %v368
    %v1126 = vunpack.c.h.b16 %v368
    %v1127 = vunpack.c.l.b16 %v369
    %v1128 = vunpack.c.h.b16 %v369
    %v1129 = vunpack.c.l.b16 %v370
    %v1130 = vunpack.c.h.b16 %v370
    %v1131 = vunpack.c.l.b16 %v371
    %v1132 = vunpack.c.h.b16 %v371
    %v1133 = vunpack.c.l.b16 %v372
    %v1134 = vunpack.c.h.b16 %v372
    %v1135 = vunpack.c.l.b16 %v373
    %v1136 = vunpack.c.h.b16 %v373
    %v1137 = vunpack.c.l.b16 %v374
    %v1138 = vunpack.c.h.b16 %v374
    %v1139 = vunpack.c.l.b16 %v375
    %v1140 = vunpack.c.h.b16 %v375
    %v1141 = vunpack.c.l.b16 %v376
    %v1142 = vunpack.c.h.b16 %v376
    %v1143 = vunpack.c.l.b16 %v377
    %v1144 = vunpack.c.h.b16 %v377
    %v1145 = vunpack.c.l.b16 %v378
    %v1146 = vunpack.c.h.b16 %v378
    %v1147 = vunpack.c.l.b16 %v379
    %v1148 = vunpack.c.h.b16 %v379
    %v1149 = vunpack.c.l.b16 %v380
    %v1150 = vunpack.c.h.b16 %v380
    %v1151 = vunpack.c.l.b16 %v381
    %v1152 = vunpack.c.h.b16 %v381
    %v1153 = vunpack.c.l.b16 %v382
    %v1154 = vunpack.c.h.b16 %v382
    %v1155 = vunpack.c.l.b16 %v383
    %v1156 = vunpack.c.h.b16 %v383
    %v1157 = vunpack.c.l.b16 %v384
    %v1158 = vunpack.c.h.b16 %v384
    %v1159 = vunpack.c.l.b16 %v385
    %v1160 = vunpack.c.h.b16 %v385
    %v1161 = vunpack.c.l.b16 %v386
    %v1162 = vunpack.c.h.b16 %v386
    %v1163 = vunpack.c.l.b16 %v387
    %v1164 = vunpack.c.h.b16 %v387
    %v1165 = vunpack.c.l.b16 %v388
    %v1166 = vunpack.c.h.b16 %v388
    %v1167 = vunpack.c.l.b16 %v389
    %v1168 = vunpack.c.h.b16 %v389
    %v1169 = vunpack.c.l.b16 %v390
    %v1170 = vunpack.c.h.b16 %v390
    %v1171 = vunpack.c.l.b16 %v391
    %v1172 = vunpack.c.h.b16 %v391
    %v1173 = vunpack.c.l.b16 %v392
    %v1174 = vunpack.c.h.b16 %v392
    %v1175 = vunpack.c.l.b16 %v393
    %v1176 = vunpack.c.h.b16 %v393
    %v1177 = vunpack.c.l.b16 %v394
    %v1178 = vunpack.c.h.b16 %v394
    %v1179 = vunpack.c.l.b16 %v395
    %v1180 = vunpack.c.h.b16 %v395
    %v1181 = vunpack.c.l.b16 %v396
    %v1182 = vunpack.c.h.b16 %v396
    %v1183 = vunpack.c.l.b16 %v397
    %v1184 = vunpack.c.h.b16 %v397
    %v1185 = vunpack.c.l.b16 %v398
    %v1186 = vunpack.c.h.b16 %v398
    %v1187 = vunpack.c.l.b16 %v399
    %v1188 = vunpack.c.h.b16 %v399
    %v1189 = vunpack.c.l.b16 %v400
    %v1190 = vunpack.c.h.b16 %v400
    %v1191 = vunpack.c.l.b16 %v401
    %v1192 = vunpack.c.h.b16 %v401
    %v1193 = vunpack.c.l.b16 %v402
    %v1194 = vunpack.c.h.b16 %v402
    %v1195 = vunpack.c.l.b16 %v403
    %v1196 = vunpack.c.h.b16 %v403
    %v1197 = vunpack.c.l.b16 %v404
    %v1198 = vunpack.c.h.b16 %v404
    %v1199 = vunpack.c.l.b16 %v405
    %v1200 = vunpack.c.h.b16 %v405
    %v1201 = vunpack.c.l.b16 %v406
    %v1202 = vunpack.c.h.b16 %v406
    %v1203 = vunpack.c.l.b16 %v407
    %v1204 = vunpack.c.h.b16 %v407
    %v1205 = vunpack.c.l.b16 %v408
    %v1206 = vunpack.c.h.b16 %v408
    %v1207 = vunpack.c.l.b16 %v409
    %v1208 = vunpack.c.h.b16 %v409
    %v1209 = vunpack.c.l.b16 %v410
    %v1210 = vunpack.c.h.b16 %v410
    %v1211 = vunpack.c.l.b16 %v411
    %v1212 = vunpack.c.h.b16 %v411
    %v1213 = vunpack.c.l.b16 %v412
    %v1214 = vunpack.c.h.b16 %v412
    %v1215 = vunpack.c.l.b16 %v413
    %v1216 = vunpack.c.h.b16 %v413
    %v1217 = vunpack.c.l.b16 %v414
    %v1218 = vunpack.c.h.b16 %v414
    %v1219 = vunpack.c.l.b16 %v415
    %v1220 = vunpack.c.h.b16 %v415
    %v1221 = vunpack.c.l.b16 %v416
    %v1222 = vunpack.c.h.b16 %v416
    %v1223 = vunpack.c.l.b16 %v417
    %v1224 = vunpack.c.h.b16 %v417
    %v1225 = vunpack.c.l.b16 %v418
    %v1226 = vunpack.c.h.b16 %v418
    %v1227 = vunpack.c.l.b16 %v419
    %v1228 = vunpack.c.h.b16 %v419
    %v1229 = vunpack.c.l.b16 %v420
    %v1230 = vunpack.c.h.b16 %v420
    %v1231 = vunpack.c.l.b16 %v421
    %v1232 = vunpack.c.h.b16 %v421
    %v1233 = vunpack.c.l.b16 %v422
    %v1234 = vunpack.c.h.b16 %v422
    %v1235 = vunpack.c.l.b16 %v423
    %v1236 = vunpack.c.h.b16 %v423
    %v1237 = vunpack.c.l.b16 %v424
    %v1238 = vunpack.c.h.b16 %v424
    %v1239 = vunpack.c.l.b16 %v425
    %v1240 = vunpack.c.h.b16 %v425
    %v1241 = vunpack.c.l.b16 %v426
    %v1242 = vunpack.c.h.b16 %v426
    %v1243 = vunpack.c.l.b16 %v427
    %v1244 = vunpack.c.h.b16 %v427
    %v1245 = vunpack.c.l.b16 %v428
    %v1246 = vunpack.c.h.b16 %v428
    %v1247 = vunpack.c.l.b16 %v429
    %v1248 = vunpack.c.h.b16 %v429
    %v1249 = vunpack.c.l.b16 %v430
    %v1250 = vunpack.c.h.b16 %v430
    %v1251 = vunpack.c.l.b16 %v431
    %v1252 = vunpack.c.h.b16 %v431
    %v1253 = vunpack.c.l.b16 %v432
    %v1254 = vunpack.c.h.b16 %v432
    %v1255 = vunpack.c.l.b16 %v433
    %v1256 = vunpack.c.h.b16 %v433
    %v1257 = vunpack.c.l.b16 %v434
    %v1258 = vunpack.c.h.b16 %v434
    %v1259 = vunpack.c.l.b16 %v435
    %v1260 = vunpack.c.h.b16 %v435
    %v1261 = vunpack.c.l.b16 %v436
    %v1262 = vunpack.c.h.b16 %v436
    %v1263 = vunpack.c.l.b16 %v437
    %v1264 = vunpack.c.h.b16 %v437
    %v1265 = vunpack.c.l.b16 %v438
    %v1266 = vunpack.c.h.b16 %v438
    %v1267 = vunpack.c.l.b16 %v439
    %v1268 = vunpack.c.h.b16 %v439
    %v1269 = vunpack.c.l.b16 %v440
    %v1270 = vunpack.c.h.b16 %v440
    %v1271 = vunpack.c.l.b16 %v441
    %v1272 = vunpack.c.h.b16 %v441
    %v1273 = vunpack.c.l.b16 %v442
    %v1274 = vunpack.c.h.b16 %v442
    %v1275 = vunpack.c.l.b16 %v443
    %v1276 = vunpack.c.h.b16 %v443
    %v1277 = vunpack.c.l.b16 %v444
    %v1278 = vunpack.c.h.b16 %v444
    %v1279 = vunpack.c.l.b16 %v445
    %v1280 = vunpack.c.h.b16 %v445
    %v1281 = vunpack.c.l.b16 %v446
    %v1282 = vunpack.c.h.b16 %v446
    %v1283 = vunpack.c.l.b16 %v447
    %v1284 = vunpack.c.h.b16 %v447
    %v1285 = vunpack.c.l.b16 %v448
    %v1286 = vunpack.c.h.b16 %v448
    %v1287 = vunpack.c.l.b16 %v449
    %v1288 = vunpack.c.h.b16 %v449
    %v1289 = vunpack.c.l.b16 %v450
    %v1290 = vunpack.c.h.b16 %v450
    %v1291 = vunpack.c.l.b16 %v451
    %v1292 = vunpack.c.h.b16 %v451
    %v1293 = vunpack.c.l.b16 %v452
    %v1294 = vunpack.c.h.b16 %v452
    %v1295 = vunpack.c.l.b16 %v453
    %v1296 = vunpack.c.h.b16 %v453
    %v1297 = vunpack.c.l.b16 %v454
    %v1298 = vunpack.c.h.b16 %v454
    %v1299 = vunpack.c.l.b16 %v455
    %v1300 = vunpack.c.h.b16 %v455
    %v1301 = vunpack.c.l.b16 %v456
    %v1302 = vunpack.c.h.b16 %v456
    %v1303 = vunpack.c.l.b16 %v457
    %v1304 = vunpack.c.h.b16 %v457
    %v1305 = vunpack.c.l.b16 %v458
    %v1306 = vunpack.c.h.b16 %v458
    %v1307 = vunpack.c.l.b16 %v459
    %v1308 = vunpack.c.h.b16 %v459
    %v1309 = vunpack.c.l.b16 %v460
    %v1310 = vunpack.c.h.b16 %v460
    %v1311 = vunpack.c.l.b16 %v461
    %v1312 = vunpack.c.h.b16 %v461
    %v1313 = vunpack.c.l.b16 %v462
    %v1314 = vunpack.c.h.b16 %v462
    %v1315 = vunpack.c.l.b16 %v463
    %v1316 = vunpack.c.h.b16 %v463
    %v1317 = vunpack.c.l.b16 %v464
    %v1318 = vunpack.c.h.b16 %v464
    %v1319 = vunpack.c.l.b16 %v465
    %v1320 = vunpack.c.h.b16 %v465
    %v1321 = vunpack.c.l.b16 %v466
    %v1322 = vunpack.c.h.b16 %v466
    %v1323 = vunpack.c.l.b16 %v467
    %v1324 = vunpack.c.h.b16 %v467
    %v1325 = vunpack.c.l.b16 %v468
    %v1326 = vunpack.c.h.b16 %v468
    %v1327 = vunpack.c.l.b16 %v469
    %v1328 = vunpack.c.h.b16 %v469
    %v1329 = vunpack.c.l.b16 %v470
    %v1330 = vunpack.c.h.b16 %v470
    %v1331 = vunpack.c.l.b16 %v471
    %v1332 = vunpack.c.h.b16 %v471
    %v1333 = vunpack.c.l.b16 %v472
    %v1334 = vunpack.c.h.b16 %v472
    %v1335 = vunpack.c.l.b16 %v473
    %v1336 = vunpack.c.h.b16 %v473
    %v1337 = vunpack.c.l.b16 %v474
    %v1338 = vunpack.c.h.b16 %v474
    %v1339 = vunpack.c.l.b16 %v475
    %v1340 = vunpack.c.h.b16 %v475
    %v1341 = vunpack.c.l.b16 %v476
    %v1342 = vunpack.c.h.b16 %v476
    %v1343 = vunpack.c.l.b16 %v477
    %v1344 = vunpack.c.h.b16 %v477
    %v1345 = vunpack.c.l.b16 %v478
    %v1346 = vunpack.c.h.b16 %v478
    %v1347 = vunpack.c.l.b16 %v479
    %v1348 = vunpack.c.h.b16 %v479
    %v1349 = vunpack.c.l.b16 %v480
    %v1350 = vunpack.c.h.b16 %v480
    %v1351 = vunpack.c.l.b16 %v481
    %v1352 = vunpack.c.h.b16 %v481
    %v1353 = vunpack.c.l.b16 %v482
    %v1354 = vunpack.c.h.b16 %v482
    %v1355 = vunpack.c.l.b16 %v483
    %v1356 = vunpack.c.h.b16 %v483
    %v1357 = vunpack.c.l.b16 %v484
    %v1358 = vunpack.c.h.b16 %v484
    %v1359 = vunpack.c.l.b16 %v485
    %v1360 = vunpack.c.h.b16 %v485
    %v1361 = vunpack.c.l.b16 %v486
    %v1362 = vunpack.c.h.b16 %v486
    %v1363 = vunpack.c.l.b16 %v487
    %v1364 = vunpack.c.h.b16 %v487
    %v1365 = vunpack.c.l.b16 %v488
    %v1366 = vunpack.c.h.b16 %v488
    %v1367 = vunpack.c.l.b16 %v489
    %v1368 = vunpack.c.h.b16 %v489
    %v1369 = vunpack.c.l.b16 %v490
    %v1370 = vunpack.c.h.b16 %v490
    %v1371 = vunpack.c.l.b16 %v491
    %v1372 = vunpack.c.h.b16 %v491
    %v1373 = vunpack.c.l.b16 %v492
    %v1374 = vunpack.c.h.b16 %v492
    %v1375 = vunpack.c.l.b16 %v493
    %v1376 = vunpack.c.h.b16 %v493
    %v1377 = vunpack.c.l.b16 %v494
    %v1378 = vunpack.c.h.b16 %v494
    %v1379 = vunpack.c.l.b16 %v495
    %v1380 = vunpack.c.h.b16 %v495
    %v1381 = vunpack.c.l.b16 %v496
    %v1382 = vunpack.c.h.b16 %v496
    %v1383 = vunpack.c.l.b16 %v497
    %v1384 = vunpack.c.h.b16 %v497
    %v1385 = vunpack.c.l.b16 %v498
    %v1386 = vunpack.c.h.b16 %v498
    %v1387 = vunpack.c.l.b16 %v499
    %v1388 = vunpack.c.h.b16 %v499
    %v1389 = vunpack.c.l.b16 %v500
    %v1390 = vunpack.c.h.b16 %v500
    %v1391 = vunpack.c.l.b16 %v501
    %v1392 = vunpack.c.h.b16 %v501
    %v1393 = vunpack.c.l.b16 %v502
    %v1394 = vunpack.c.h.b16 %v502
    %v1395 = vunpack.c.l.b16 %v503
    %v1396 = vunpack.c.h.b16 %v503
    %v1397 = vunpack.c.l.b16 %v504
    %v1398 = vunpack.c.h.b16 %v504
    %v1399 = vunpack.c.l.b16 %v505
    %v1400 = vunpack.c.h.b16 %v505
    %v1401 = vunpack.c.l.b16 %v506
    %v1402 = vunpack.c.h.b16 %v506
    %v1403 = vunpack.c.l.b16 %v507
    %v1404 = vunpack.c.h.b16 %v507
    %v1405 = vunpack.c.l.b16 %v508
    %v1406 = vunpack.c.h.b16 %v508
    %v1407 = vunpack.c.l.b16 %v509
    %v1408 = vunpack.c.h.b16 %v509
    %v1409 = vpack.c.b16 %v839, %v833
    %v1410 = vpack.c.b16 %v840, %v834
    %v1411 = vpack.c.b16 %v841, %v835
    %v1412 = vpack.c.b16 %v842, %v836
    %v1413 = vpack.c.b16 %v843, %v837
    %v1414 = vpack.c.b16 %v844, %v838
    %v1415 = vpack.c.b16 %v851, %v845
    %v1416 = vpack.c.b16 %v852, %v846
    %v1417 = vpack.c.b16 %v853, %v847
    %v1418 = vpack.c.b16 %v854, %v848
    %v1419 = vpack.c.b16 %v855, %v849
    %v1420 = vpack.c.b16 %v856, %v850
    %v1421 = vpack.c.b16 %v863, %v857
    %v1422 = vpack.c.b16 %v864, %v858
    %v1423 = vpack.c.b16 %v865, %v859
    %v1424 = vpack.c.b16 %v866, %v860
    %v1425 = vpack.c.b16 %v867, %v861
    %v1426 = vpack.c.b16 %v868, %v862
    %v1427 = vpack.c.b16 %v875, %v869
    %v1428 = vpack.c.b16 %v876, %v870
    %v1429 = vpack.c.b16 %v877, %v871
    %v1430 = vpack.c.b16 %v878, %v872
    %v1431 = vpack.c.b16 %v879, %v873
    %v1432 = vpack.c.b16 %v880, %v874
    %v1433 = vpack.c.b16 %v887, %v881
    %v1434 = vpack.c.b16 %v888, %v882
    %v1435 = vpack.c.b16 %v889, %v883
    %v1436 = vpack.c.b16 %v890, %v884
    %v1437 = vpack.c.b16 %v891, %v885
    %v1438 = vpack.c.b16 %v892, %v886
    %v1439 = vpack.c.b16 %v899, %v893
    %v1440 = vpack.c.b16 %v900, %v894
    %v1441 = vpack.c.b16 %v901, %v895
    %v1442 = vpack.c.b16 %v902, %v896
    %v1443 = vpack.c.b16 %v903, %v897
    %v1444 = vpack.c.b16 %v904, %v898
    %v1445 = vpack.c.b16 %v911, %v905
    %v1446 = vpack.c.b16 %v912, %v906
    %v1447 = vpack.c.b16 %v913, %v907
    %v1448 = vpack.c.b16 %v914, %v908
    %v1449 = vpack.c.b16 %v915, %v909
    %v1450 = vpack.c.b16 %v916, %v910
    %v1451 = vpack.c.b16 %v923, %v917
    %v1452 = vpack.c.b16 %v924, %v918
    %v1453 = vpack.c.b16 %v925, %v919
    %v1454 = vpack.c.b16 %v926, %v920
    %v1455 = vpack.c.b16 %v927, %v921
    %v1456 = vpack.c.b16 %v928, %v922
    %v1457 = vpack.c.b16 %v935, %v929
    %v1458 = vpack.c.b16 %v936, %v930
    %v1459 = vpack.c.b16 %v937, %v931
    %v1460 = vpack.c.b16 %v938, %v932
    %v1461 = vpack.c.b16 %v939, %v933
    %v1462 = vpack.c.b16 %v940, %v934
    %v1463 = vpack.c.b16 %v947, %v941
    %v1464 = vpack.c.b16 %v948, %v942
    %v1465 = vpack.c.b16 %v949, %v943
    %v1466 = vpack.c.b16 %v950, %v944
    %v1467 = vpack.c.b16 %v951, %v945
    %v1468 = vpack.c.b16 %v952, %v946
    %v1469 = vpack.c.b16 %v959, %v953
    %v1470 = vpack.c.b16 %v960, %v954
    %v1471 = vpack.c.b16 %v961, %v955
    %v1472 = vpack.c.b16 %v962, %v956
    %v1473 = vpack.c.b16 %v963, %v957
    %v1474 = vpack.c.b16 %v964, %v958
    %v1475 = vpack.c.b16 %v971, %v965
    %v1476 = vpack.c.b16 %v972, %v966
    %v1477 = vpack.c.b16 %v973, %v967
    %v1478 = vpack.c.b16 %v974, %v968
    %v1479 = vpack.c.b16 %v975, %v969
    %v1480 = vpack.c.b16 %v976, %v970
    %v1481 = vpack.c.b16 %v983, %v977
    %v1482 = vpack.c.b16 %v984, %v978
    %v1483 = vpack.c.b16 %v985, %v979
    %v1484 = vpack.c.b16 %v986, %v980
    %v1485 = vpack.c.b16 %v987, %v981
    %v1486 = vpack.c.b16 %v988, %v982
    %v1487 = vpack.c.b16 %v995, %v989
    %v1488 = vpack.c.b16 %v996, %v990
    %v1489 = vpack.c.b16 %v997, %v991
    %v1490 = vpack.c.b16 %v998, %v992
    %v1491 = vpack.c.b16 %v999, %v993
    %v1492 = vpack.c.b16 %v1000, %v994
    %v1493 = vpack.c.b16 %v1007, %v1001
    %v1494 = vpack.c.b16 %v1008, %v1002
    %v1495 = vpack.c.b16 %v1009, %v1003
    %v1496 = vpack.c.b16 %v1010, %v1004
    %v1497 = vpack.c.b16 %v1011, %v1005
    %v1498 = vpack.c.b16 %v1012, %v1006
    %v1499 = vpack.c.b16 %v1019, %v1013
    %v1500 = vpack.c.b16 %v1020, %v1014
    %v1501 = vpack.c.b16 %v1021, %v1015
    %v1502 = vpack.c.b16 %v1022, %v1016
    %v1503 = vpack.c.b16 %v1023, %v1017
    %v1504 = vpack.c.b16 %v1024, %v1018
    %v1505 = vpack.c.b16 %v1031, %v1025
    %v1506 = vpack.c.b16 %v1032, %v1026
    %v1507 = vpack.c.b16 %v1033, %v1027
    %v1508 = vpack.c.b16 %v1034, %v1028
    %v1509 = vpack.c.b16 %v1035, %v1029
    %v1510 = vpack.c.b16 %v1036, %v1030
    %v1511 = vpack.c.b16 %v1043, %v1037
    %v1512 = vpack.c.b16 %v1044, %v1038
    %v1513 = vpack.c.b16 %v1045, %v1039
    %v1514 = vpack.c.b16 %v1046, %v1040
    %v1515 = vpack.c.b16 %v1047, %v1041
    %v1516 = vpack.c.b16 %v1048, %v1042
    %v1517 = vpack.c.b16 %v1055, %v1049
    %v1518 = vpack.c.b16 %v1056, %v1050
    %v1519 = vpack.c.b16 %v1057, %v1051
    %v1520 = vpack.c.b16 %v1058, %v1052
    %v1521 = vpack.c.b16 %v1059, %v1053
    %v1522 = vpack.c.b16 %v1060, %v1054
    %v1523 = vpack.c.b16 %v1067, %v1061
    %v1524 = vpack.c.b16 %v1068, %v1062
    %v1525 = vpack.c.b16 %v1069, %v1063
    %v1526 = vpack.c.b16 %v1070, %v1064
    %v1527 = vpack.c.b16 %v1071, %v1065
    %v1528 = vpack.c.b16 %v1072, %v1066
    %v1529 = vpack.c.b16 %v1079, %v1073
    %v1530 = vpack.c.b16 %v1080, %v1074
    %v1531 = vpack.c.b16 %v1081, %v1075
    %v1532 = vpack.c.b16 %v1082, %v1076
    %v1533 = vpack.c.b16 %v1083, %v1077
    %v1534 = vpack.c.b16 %v1084, %v1078
    %v1535 = vpack.c.b16 %v1091, %v1085
    %v1536 = vpack.c.b16 %v1092, %v1086
    %v1537 = vpack.c.b16 %v1093, %v1087
    %v1538 = vpack.c.b16 %v1094, %v1088
    %v1539 = vpack.c.b16 %v1095, %v1089
    %v1540 = vpack.c.b16 %v1096, %v1090
    %v1541 = vpack.c.b16 %v1103, %v1097
    %v1542 = vpack.c.b16 %v1104, %v1098
    %v1543 = vpack.c.b16 %v1105, %v1099
    %v1544 = vpack.c.b16 %v1106, %v1100
    %v1545 = vpack.c.b16 %v1107, %v1101
    %v1546 = vpack.c.b16 %v1108, %v1102
    %v1547 = vpack.c.b16 %v1115, %v1109
    %v1548 = vpack.c.b16 %v1116, %v1110
    %v1549 = vpack.c.b16 %v1117, %v1111
    %v1550 = vpack.c.b16 %v1118, %v1112
    %v1551 = vpack.c.b16 %v1119, %v1113
    %v1552 = vpack.c.b16 %v1120, %v1114
    %v1553 = vpack.c.b16 %v1127, %v1121
    %v1554 = vpack.c.b16 %v1128, %v1122
    %v1555 = vpack.c.b16 %v1129, %v1123
    %v1556 = vpack.c.b16 %v1130, %v1124
    %v1557 = vpack.c.b16 %v1131, %v1125
    %v1558 = vpack.c.b16 %v1132, %v1126
    %v1559 = vpack.c.b16 %v1139, %v1133
    %v1560 = vpack.c.b16 %v1140, %v1134
    %v1561 = vpack.c.b16 %v1141, %v1135
    %v1562 = vpack.c.b16 %v1142, %v1136
    %v1563 = vpack.c.b16 %v1143, %v1137
    %v1564 = vpack.c.b16 %v1144, %v1138
    %v1565 = vpack.c.b16 %v1151, %v1145
    %v1566 = vpack.c.b16 %v1152, %v1146
    %v1567 = vpack.c.b16 %v1153, %v1147
    %v1568 = vpack.c.b16 %v1154, %v1148
    %v1569 = vpack.c.b16 %v1155, %v1149
    %v1570 = vpack.c.b16 %v1156, %v1150
    %v1571 = vpack.c.b16 %v1163, %v1157
    %v1572 = vpack.c.b16 %v1164, %v1158
    %v1573 = vpack.c.b16 %v1165, %v1159
    %v1574 = vpack.c.b16 %v1166, %v1160
    %v1575 = vpack.c.b16 %v1167, %v1161
    %v1576 = vpack.c.b16 %v1168, %v1162
    %v1577 = vpack.c.b16 %v1175, %v1169
    %v1578 = vpack.c.b16 %v1176, %v1170
    %v1579 = vpack.c.b16 %v1177, %v1171
    %v1580 = vpack.c.b16 %v1178, %v1172
    %v1581 = vpack.c.b16 %v1179, %v1173
    %v1582 = vpack.c.b16 %v1180, %v1174
    %v1583 = vpack.c.b16 %v1187, %v1181
    %v1584 = vpack.c.b16 %v1188, %v1182
    %v1585 = vpack.c.b16 %v1189, %v1183
    %v1586 = vpack.c.b16 %v1190, %v1184
    %v1587 = vpack.c.b16 %v1191, %v1185
    %v1588 = vpack.c.b16 %v1192, %v1186
    %v1589 = vpack.c.b16 %v1199, %v1193
    %v1590 = vpack.c.b16 %v1200, %v1194
    %v1591 = vpack.c.b16 %v1201, %v1195
    %v1592 = vpack.c.b16 %v1202, %v1196
    %v1593 = vpack.c.b16 %v1203, %v1197
    %v1594 = vpack.c.b16 %v1204, %v1198
    %v1595 = vpack.c.b16 %v1211, %v1205
    %v1596 = vpack.c.b16 %v1212, %v1206
    %v1597 = vpack.c.b16 %v1213, %v1207
    %v1598 = vpack.c.b16 %v1214, %v1208
    %v1599 = vpack.c.b16 %v1215, %v1209
    %v1600 = vpack.c.b16 %v1216, %v1210
    %v1601 = vpack.c.b16 %v1223, %v1217
    %v1602 = vpack.c.b16 %v1224, %v1218
    %v1603 = vpack.c.b16 %v1225, %v1219
    %v1604 = vpack.c.b16 %v1226, %v1220
    %v1605 = vpack.c.b16 %v1227, %v1221
    %v1606 = vpack.c.b16 %v1228, %v1222
    %v1607 = vpack.c.b16 %v1235, %v1229
    %v1608 = vpack.c.b16 %v1236, %v1230
    %v1609 = vpack.c.b16 %v1237, %v1231
    %v1610 = vpack.c.b16 %v1238, %v1232
    %v1611 = vpack.c.b16 %v1239, %v1233
    %v1612 = vpack.c.b16 %v1240, %v1234
    %v1613 = vpack.c.b16 %v1247, %v1241
    %v1614 = vpack.c.b16 %v1248, %v1242
    %v1615 = vpack.c.b16 %v1249, %v1243
    %v1616 = vpack.c.b16 %v1250, %v1244
    %v1617 = vpack.c.b16 %v1251, %v1245
    %v1618 = vpack.c.b16 %v1252, %v1246
    %v1619 = vpack.c.b16 %v1259, %v1253
    %v1620 = vpack.c.b16 %v1260, %v1254
    %v1621 = vpack.c.b16 %v1261, %v1255
    %v1622 = vpack.c.b16 %v1262, %v1256
    %v1623 = vpack.c.b16 %v1263, %v1257
    %v1624 = vpack.c.b16 %v1264, %v1258
    %v1625 = vpack.c.b16 %v1271, %v1265
    %v1626 = vpack.c.b16 %v1272, %v1266
    %v1627 = vpack.c.b16 %v1273, %v1267
    %v1628 = vpack.c.b16 %v1274, %v1268
    %v1629 = vpack.c.b16 %v1275, %v1269
    %v1630 = vpack.c.b16 %v1276, %v1270
    %v1631 = vpack.c.b16 %v1283, %v1277
    %v1632 = vpack.c.b16 %v1284, %v1278
    %v1633 = vpack.c.b16 %v1285, %v1279
    %v1634 = vpack.c.b16 %v1286, %v1280
    %v1635 = vpack.c.b16 %v1287, %v1281
    %v1636 = vpack.c.b16 %v1288, %v1282
    %v1637 = vpack.c.b16 %v1295, %v1289
    %v1638 = vpack.c.b16 %v1296, %v1290
    %v1639 = vpack.c.b16 %v1297, %v1291
    %v1640 = vpack.c.b16 %v1298, %v1292
    %v1641 = vpack.c.b16 %v1299, %v1293
    %v1642 = vpack.c.b16 %v1300, %v1294
    %v1643 = vpack.c.b16 %v1307, %v1301
    %v1644 = vpack.c.b16 %v1308, %v1302
    %v1645 = vpack.c.b16 %v1309, %v1303
    %v1646 = vpack.c.b16 %v1310, %v1304
    %v1647 = vpack.c.b16 %v1311, %v1305
    %v1648 = vpack.c.b16 %v1312, %v1306
    %v1649 = vpack.c.b16 %v1319, %v1313
    %v1650 = vpack.c.b16 %v1320, %v1314
    %v1651 = vpack.c.b16 %v1321, %v1315
    %v1652 = vpack.c.b16 %v1322, %v1316
    %v1653 = vpack.c.b16 %v1323, %v1317
    %v1654 = vpack.c.b16 %v1324, %v1318
    %v1655 = vpack.c.b16 %v1331, %v1325
    %v1656 = vpack.c.b16 %v1332, %v1326
    %v1657 = vpack.c.b16 %v1333, %v1327
    %v1658 = vpack.c.b16 %v1334, %v1328
    %v1659 = vpack.c.b16 %v1335, %v1329
    %v1660 = vpack.c.b16 %v1336, %v1330
    %v1661 = vpack.c.b16 %v1343, %v1337
    %v1662 = vpack.c.b16 %v1344, %v1338
    %v1663 = vpack.c.b16 %v1345, %v1339
    %v1664 = vpack.c.b16 %v1346, %v1340
    %v1665 = vpack.c.b16 %v1347, %v1341
    %v1666 = vpack.c.b16 %v1348, %v1342
    %v1667 = vpack.c.b16 %v1355, %v1349
    %v1668 = vpack.c.b16 %v1356, %v1350
    %v1669 = vpack.c.b16 %v1357, %v1351
    %v1670 = vpack.c.b16 %v1358, %v1352
    %v1671 = vpack.c.b16 %v1359, %v1353
    %v1672 = vpack.c.b16 %v1360, %v1354
    %v1673 = vpack.c.b16 %v1367, %v1361
    %v1674 = vpack.c.b16 %v1368, %v1362
    %v1675 = vpack.c.b16 %v1369, %v1363
    %v1676 = vpack.c.b16 %v1370, %v1364
    %v1677 = vpack.c.b16 %v1371, %v1365
    %v1678 = vpack.c.b16 %v1372, %v1366
    %v1679 = vpack.c.b16 %v1379, %v1373
    %v1680 = vpack.c.b16 %v1380, %v1374
    %v1681 = vpack.c.b16 %v1381, %v1375
    %v1682 = vpack.c.b16 %v1382, %v1376
    %v1683 = vpack.c.b16 %v1383, %v1377
    %v1684 = vpack.c.b16 %v1384, %v1378
    %v1685 = vpack.c.b16 %v1391, %v1385
    %v1686 = vpack.c.b16 %v1392, %v1386
    %v1687 = vpack.c.b16 %v1393, %v1387
    %v1688 = vpack.c.b16 %v1394, %v1388
    %v1689 = vpack.c.b16 %v1395, %v1389
    %v1690 = vpack.c.b16 %v1396, %v1390
    %v1691 = vpack.c.b16 %v1403, %v1397
    %v1692 = vpack.c.b16 %v1404, %v1398
    %v1693 = vpack.c.b16 %v1405, %v1399
    %v1694 = vpack.c.b16 %v1406, %v1400
    %v1695 = vpack.c.b16 %v1407, %v1401
    %v1696 = vpack.c.b16 %v1408, %v1402
    %1985 = vmatpush.bf16.msra.mxu0 %v1451
    %1986 = vmatpush.bf16.msra.mxu0 %v1445
    %1987 = vmatpush.bf16.msra.mxu0 %v1439
    %1988 = vmatpush.bf16.msra.mxu0 %v1433
    %1989 = vmatpush.bf16.msra.mxu0 %v1427
    %1990 = vmatpush.bf16.msra.mxu0 %v1421
    %1991 = vmatpush.bf16.msra.mxu0 %v1415
    %1992 = vmatpush.bf16.msra.mxu0 %v1409
    %1993 = vmatmul.bf16.gmra.mxu0 %v533
    %v1994 = vpop.f32.mrf.mxu0
    %v1995 = vadd.f32 %v512, %v1994
    %v1996 = vpop.f32.mrf.mxu0
    %1997 = vdwg.mxu0
    %1998 = vmatpush.bf16.msra.mxu0 %v1499
    %1999 = vmatpush.bf16.msra.mxu0 %v1493
    %2000 = vmatpush.bf16.msra.mxu0 %v1487
    %2001 = vmatpush.bf16.msra.mxu0 %v1481
    %2002 = vmatpush.bf16.msra.mxu0 %v1475
    %2003 = vmatpush.bf16.msra.mxu0 %v1469
    %2004 = vmatpush.bf16.msra.mxu0 %v1463
    %2005 = vmatpush.bf16.msra.mxu0 %v1457
    %2006 = vmatmul.bf16.gmra.mxu0 %v534
    %v2007 = vpop.f32.mrf.mxu0
    %v2008 = vadd.f32 %v1995, %v2007
    %v2009 = vpop.f32.mrf.mxu0
    %2010 = vdwg.mxu0
    %2011 = vmatpush.bf16.msra.mxu0 %v1547
    %2012 = vmatpush.bf16.msra.mxu0 %v1541
    %2013 = vmatpush.bf16.msra.mxu0 %v1535
    %2014 = vmatpush.bf16.msra.mxu0 %v1529
    %2015 = vmatpush.bf16.msra.mxu0 %v1523
    %2016 = vmatpush.bf16.msra.mxu0 %v1517
    %2017 = vmatpush.bf16.msra.mxu0 %v1511
    %2018 = vmatpush.bf16.msra.mxu0 %v1505
    %2019 = vmatmul.bf16.gmra.mxu0 %v535
    %v2020 = vpop.f32.mrf.mxu0
    %v2021 = vadd.f32 %v2008, %v2020
    %v2022 = vpop.f32.mrf.mxu0
    %2023 = vdwg.mxu0
    %2024 = vmatpush.bf16.msra.mxu0 %v1595
    %2025 = vmatpush.bf16.msra.mxu0 %v1589
    %2026 = vmatpush.bf16.msra.mxu0 %v1583
    %2027 = vmatpush.bf16.msra.mxu0 %v1577
    %2028 = vmatpush.bf16.msra.mxu0 %v1571
    %2029 = vmatpush.bf16.msra.mxu0 %v1565
    %2030 = vmatpush.bf16.msra.mxu0 %v1559
    %2031 = vmatpush.bf16.msra.mxu0 %v1553
    %2032 = vmatmul.bf16.gmra.mxu0 %v536
    %v2033 = vpop.f32.mrf.mxu0
    %v2034 = vadd.f32 %v2021, %v2033
    %v2035 = vpop.f32.mrf.mxu0
    %2036 = vdwg.mxu0
    %2037 = vmatpush.bf16.msra.mxu0 %v1643
    %2038 = vmatpush.bf16.msra.mxu0 %v1637
    %2039 = vmatpush.bf16.msra.mxu0 %v1631
    %2040 = vmatpush.bf16.msra.mxu0 %v1625
    %2041 = vmatpush.bf16.msra.mxu0 %v1619
    %2042 = vmatpush.bf16.msra.mxu0 %v1613
    %2043 = vmatpush.bf16.msra.mxu0 %v1607
    %2044 = vmatpush.bf16.msra.mxu0 %v1601
    %2045 = vmatmul.bf16.gmra.mxu0 %v537
    %v2046 = vpop.f32.mrf.mxu0
    %v2047 = vadd.f32 %v2034, %v2046
    %v2048 = vpop.f32.mrf.mxu0
    %2049 = vdwg.mxu0
    %2050 = vmatpush.bf16.msra.mxu0 %v1691
    %2051 = vmatpush.bf16.msra.mxu0 %v1685
    %2052 = vmatpush.bf16.msra.mxu0 %v1679
    %2053 = vmatpush.bf16.msra.mxu0 %v1673
    %2054 = vmatpush.bf16.msra.mxu0 %v1667
    %2055 = vmatpush.bf16.msra.mxu0 %v1661
    %2056 = vmatpush.bf16.msra.mxu0 %v1655
    %2057 = vmatpush.bf16.msra.mxu0 %v1649
    %2058 = vmatmul.bf16.gmra.mxu0 %v538
    %v2059 = vpop.f32.mrf.mxu0
    %v2060 = vadd.f32 %v2047, %v2059
    %v2061 = vpop.f32.mrf.mxu0
    %2062 = vdwg.mxu0
    %2063 = vmatpush.bf16.msra.mxu0 %v1452
    %2064 = vmatpush.bf16.msra.mxu0 %v1446
    %2065 = vmatpush.bf16.msra.mxu0 %v1440
    %2066 = vmatpush.bf16.msra.mxu0 %v1434
    %2067 = vmatpush.bf16.msra.mxu0 %v1428
    %2068 = vmatpush.bf16.msra.mxu0 %v1422
    %2069 = vmatpush.bf16.msra.mxu0 %v1416
    %2070 = vmatpush.bf16.msra.mxu0 %v1410
    %2071 = vmatmul.bf16.gmra.mxu0 %v533
    %v2072 = vpop.f32.mrf.mxu0
    %v2073 = vadd.f32 %v513, %v2072
    %v2074 = vpop.f32.mrf.mxu0
    %2075 = vdwg.mxu0
    %2076 = vmatpush.bf16.msra.mxu0 %v1500
    %2077 = vmatpush.bf16.msra.mxu0 %v1494
    %2078 = vmatpush.bf16.msra.mxu0 %v1488
    %2079 = vmatpush.bf16.msra.mxu0 %v1482
    %2080 = vmatpush.bf16.msra.mxu0 %v1476
    %2081 = vmatpush.bf16.msra.mxu0 %v1470
    %2082 = vmatpush.bf16.msra.mxu0 %v1464
    %2083 = vmatpush.bf16.msra.mxu0 %v1458
    %2084 = vmatmul.bf16.gmra.mxu0 %v534
    %v2085 = vpop.f32.mrf.mxu0
    %v2086 = vadd.f32 %v2073, %v2085
    %v2087 = vpop.f32.mrf.mxu0
    %2088 = vdwg.mxu0
    %2089 = vmatpush.bf16.msra.mxu0 %v1548
    %2090 = vmatpush.bf16.msra.mxu0 %v1542
    %2091 = vmatpush.bf16.msra.mxu0 %v1536
    %2092 = vmatpush.bf16.msra.mxu0 %v1530
    %2093 = vmatpush.bf16.msra.mxu0 %v1524
    %2094 = vmatpush.bf16.msra.mxu0 %v1518
    %2095 = vmatpush.bf16.msra.mxu0 %v1512
    %2096 = vmatpush.bf16.msra.mxu0 %v1506
    %2097 = vmatmul.bf16.gmra.mxu0 %v535
    %v2098 = vpop.f32.mrf.mxu0
    %v2099 = vadd.f32 %v2086, %v2098
    %v2100 = vpop.f32.mrf.mxu0
    %2101 = vdwg.mxu0
    %2102 = vmatpush.bf16.msra.mxu0 %v1596
    %2103 = vmatpush.bf16.msra.mxu0 %v1590
    %2104 = vmatpush.bf16.msra.mxu0 %v1584
    %2105 = vmatpush.bf16.msra.mxu0 %v1578
    %2106 = vmatpush.bf16.msra.mxu0 %v1572
    %2107 = vmatpush.bf16.msra.mxu0 %v1566
    %2108 = vmatpush.bf16.msra.mxu0 %v1560
    %2109 = vmatpush.bf16.msra.mxu0 %v1554
    %2110 = vmatmul.bf16.gmra.mxu0 %v536
    %v2111 = vpop.f32.mrf.mxu0
    %v2112 = vadd.f32 %v2099, %v2111
    %v2113 = vpop.f32.mrf.mxu0
    %2114 = vdwg.mxu0
    %2115 = vmatpush.bf16.msra.mxu0 %v1644
    %2116 = vmatpush.bf16.msra.mxu0 %v1638
    %2117 = vmatpush.bf16.msra.mxu0 %v1632
    %2118 = vmatpush.bf16.msra.mxu0 %v1626
    %2119 = vmatpush.bf16.msra.mxu0 %v1620
    %2120 = vmatpush.bf16.msra.mxu0 %v1614
    %2121 = vmatpush.bf16.msra.mxu0 %v1608
    %2122 = vmatpush.bf16.msra.mxu0 %v1602
    %2123 = vmatmul.bf16.gmra.mxu0 %v537
    %v2124 = vpop.f32.mrf.mxu0
    %v2125 = vadd.f32 %v2112, %v2124
    %v2126 = vpop.f32.mrf.mxu0
    %2127 = vdwg.mxu0
    %2128 = vmatpush.bf16.msra.mxu0 %v1692
    %2129 = vmatpush.bf16.msra.mxu0 %v1686
    %2130 = vmatpush.bf16.msra.mxu0 %v1680
    %2131 = vmatpush.bf16.msra.mxu0 %v1674
    %2132 = vmatpush.bf16.msra.mxu0 %v1668
    %2133 = vmatpush.bf16.msra.mxu0 %v1662
    %2134 = vmatpush.bf16.msra.mxu0 %v1656
    %2135 = vmatpush.bf16.msra.mxu0 %v1650
    %2136 = vmatmul.bf16.gmra.mxu0 %v538
    %v2137 = vpop.f32.mrf.mxu0
    %v2138 = vadd.f32 %v2125, %v2137
    %v2139 = vpop.f32.mrf.mxu0
    %2140 = vdwg.mxu0
    %2141 = vmatpush.bf16.msra.mxu0 %v1453
    %2142 = vmatpush.bf16.msra.mxu0 %v1447
    %2143 = vmatpush.bf16.msra.mxu0 %v1441
    %2144 = vmatpush.bf16.msra.mxu0 %v1435
    %2145 = vmatpush.bf16.msra.mxu0 %v1429
    %2146 = vmatpush.bf16.msra.mxu0 %v1423
    %2147 = vmatpush.bf16.msra.mxu0 %v1417
    %2148 = vmatpush.bf16.msra.mxu0 %v1411
    %2149 = vmatmul.bf16.gmra.mxu0 %v533
    %v2150 = vpop.f32.mrf.mxu0
    %v2151 = vadd.f32 %v514, %v2150
    %v2152 = vpop.f32.mrf.mxu0
    %2153 = vdwg.mxu0
    %2154 = vmatpush.bf16.msra.mxu0 %v1501
    %2155 = vmatpush.bf16.msra.mxu0 %v1495
    %2156 = vmatpush.bf16.msra.mxu0 %v1489
    %2157 = vmatpush.bf16.msra.mxu0 %v1483
    %2158 = vmatpush.bf16.msra.mxu0 %v1477
    %2159 = vmatpush.bf16.msra.mxu0 %v1471
    %2160 = vmatpush.bf16.msra.mxu0 %v1465
    %2161 = vmatpush.bf16.msra.mxu0 %v1459
    %2162 = vmatmul.bf16.gmra.mxu0 %v534
    %v2163 = vpop.f32.mrf.mxu0
    %v2164 = vadd.f32 %v2151, %v2163
    %v2165 = vpop.f32.mrf.mxu0
    %2166 = vdwg.mxu0
    %2167 = vmatpush.bf16.msra.mxu0 %v1549
    %2168 = vmatpush.bf16.msra.mxu0 %v1543
    %2169 = vmatpush.bf16.msra.mxu0 %v1537
    %2170 = vmatpush.bf16.msra.mxu0 %v1531
    %2171 = vmatpush.bf16.msra.mxu0 %v1525
    %2172 = vmatpush.bf16.msra.mxu0 %v1519
    %2173 = vmatpush.bf16.msra.mxu0 %v1513
    %2174 = vmatpush.bf16.msra.mxu0 %v1507
    %2175 = vmatmul.bf16.gmra.mxu0 %v535
    %v2176 = vpop.f32.mrf.mxu0
    %v2177 = vadd.f32 %v2164, %v2176
    %v2178 = vpop.f32.mrf.mxu0
    %2179 = vdwg.mxu0
    %2180 = vmatpush.bf16.msra.mxu0 %v1597
    %2181 = vmatpush.bf16.msra.mxu0 %v1591
    %2182 = vmatpush.bf16.msra.mxu0 %v1585
    %2183 = vmatpush.bf16.msra.mxu0 %v1579
    %2184 = vmatpush.bf16.msra.mxu0 %v1573
    %2185 = vmatpush.bf16.msra.mxu0 %v1567
    %2186 = vmatpush.bf16.msra.mxu0 %v1561
    %2187 = vmatpush.bf16.msra.mxu0 %v1555
    %2188 = vmatmul.bf16.gmra.mxu0 %v536
    %v2189 = vpop.f32.mrf.mxu0
    %v2190 = vadd.f32 %v2177, %v2189
    %v2191 = vpop.f32.mrf.mxu0
    %2192 = vdwg.mxu0
    %2193 = vmatpush.bf16.msra.mxu0 %v1645
    %2194 = vmatpush.bf16.msra.mxu0 %v1639
    %2195 = vmatpush.bf16.msra.mxu0 %v1633
    %2196 = vmatpush.bf16.msra.mxu0 %v1627
    %2197 = vmatpush.bf16.msra.mxu0 %v1621
    %2198 = vmatpush.bf16.msra.mxu0 %v1615
    %2199 = vmatpush.bf16.msra.mxu0 %v1609
    %2200 = vmatpush.bf16.msra.mxu0 %v1603
    %2201 = vmatmul.bf16.gmra.mxu0 %v537
    %v2202 = vpop.f32.mrf.mxu0
    %v2203 = vadd.f32 %v2190, %v2202
    %v2204 = vpop.f32.mrf.mxu0
    %2205 = vdwg.mxu0
    %2206 = vmatpush.bf16.msra.mxu0 %v1693
    %2207 = vmatpush.bf16.msra.mxu0 %v1687
    %2208 = vmatpush.bf16.msra.mxu0 %v1681
    %2209 = vmatpush.bf16.msra.mxu0 %v1675
    %2210 = vmatpush.bf16.msra.mxu0 %v1669
    %2211 = vmatpush.bf16.msra.mxu0 %v1663
    %2212 = vmatpush.bf16.msra.mxu0 %v1657
    %2213 = vmatpush.bf16.msra.mxu0 %v1651
    %2214 = vmatmul.bf16.gmra.mxu0 %v538
    %v2215 = vpop.f32.mrf.mxu0
    %v2216 = vadd.f32 %v2203, %v2215
    %v2217 = vpop.f32.mrf.mxu0
    %2218 = vdwg.mxu0
    %2219 = vmatpush.bf16.msra.mxu0 %v1454
    %2220 = vmatpush.bf16.msra.mxu0 %v1448
    %2221 = vmatpush.bf16.msra.mxu0 %v1442
    %2222 = vmatpush.bf16.msra.mxu0 %v1436
    %2223 = vmatpush.bf16.msra.mxu0 %v1430
    %2224 = vmatpush.bf16.msra.mxu0 %v1424
    %2225 = vmatpush.bf16.msra.mxu0 %v1418
    %2226 = vmatpush.bf16.msra.mxu0 %v1412
    %2227 = vmatmul.bf16.gmra.mxu0 %v533
    %v2228 = vpop.f32.mrf.mxu0
    %v2229 = vadd.f32 %v515, %v2228
    %v2230 = vpop.f32.mrf.mxu0
    %2231 = vdwg.mxu0
    %2232 = vmatpush.bf16.msra.mxu0 %v1502
    %2233 = vmatpush.bf16.msra.mxu0 %v1496
    %2234 = vmatpush.bf16.msra.mxu0 %v1490
    %2235 = vmatpush.bf16.msra.mxu0 %v1484
    %2236 = vmatpush.bf16.msra.mxu0 %v1478
    %2237 = vmatpush.bf16.msra.mxu0 %v1472
    %2238 = vmatpush.bf16.msra.mxu0 %v1466
    %2239 = vmatpush.bf16.msra.mxu0 %v1460
    %2240 = vmatmul.bf16.gmra.mxu0 %v534
    %v2241 = vpop.f32.mrf.mxu0
    %v2242 = vadd.f32 %v2229, %v2241
    %v2243 = vpop.f32.mrf.mxu0
    %2244 = vdwg.mxu0
    %2245 = vmatpush.bf16.msra.mxu0 %v1550
    %2246 = vmatpush.bf16.msra.mxu0 %v1544
    %2247 = vmatpush.bf16.msra.mxu0 %v1538
    %2248 = vmatpush.bf16.msra.mxu0 %v1532
    %2249 = vmatpush.bf16.msra.mxu0 %v1526
    %2250 = vmatpush.bf16.msra.mxu0 %v1520
    %2251 = vmatpush.bf16.msra.mxu0 %v1514
    %2252 = vmatpush.bf16.msra.mxu0 %v1508
    %2253 = vmatmul.bf16.gmra.mxu0 %v535
    %v2254 = vpop.f32.mrf.mxu0
    %v2255 = vadd.f32 %v2242, %v2254
    %v2256 = vpop.f32.mrf.mxu0
    %2257 = vdwg.mxu0
    %2258 = vmatpush.bf16.msra.mxu0 %v1598
    %2259 = vmatpush.bf16.msra.mxu0 %v1592
    %2260 = vmatpush.bf16.msra.mxu0 %v1586
    %2261 = vmatpush.bf16.msra.mxu0 %v1580
    %2262 = vmatpush.bf16.msra.mxu0 %v1574
    %2263 = vmatpush.bf16.msra.mxu0 %v1568
    %2264 = vmatpush.bf16.msra.mxu0 %v1562
    %2265 = vmatpush.bf16.msra.mxu0 %v1556
    %2266 = vmatmul.bf16.gmra.mxu0 %v536
    %v2267 = vpop.f32.mrf.mxu0
    %v2268 = vadd.f32 %v2255, %v2267
    %v2269 = vpop.f32.mrf.mxu0
    %2270 = vdwg.mxu0
    %2271 = vmatpush.bf16.msra.mxu0 %v1646
    %2272 = vmatpush.bf16.msra.mxu0 %v1640
    %2273 = vmatpush.bf16.msra.mxu0 %v1634
    %2274 = vmatpush.bf16.msra.mxu0 %v1628
    %2275 = vmatpush.bf16.msra.mxu0 %v1622
    %2276 = vmatpush.bf16.msra.mxu0 %v1616
    %2277 = vmatpush.bf16.msra.mxu0 %v1610
    %2278 = vmatpush.bf16.msra.mxu0 %v1604
    %2279 = vmatmul.bf16.gmra.mxu0 %v537
    %v2280 = vpop.f32.mrf.mxu0
    %v2281 = vadd.f32 %v2268, %v2280
    %v2282 = vpop.f32.mrf.mxu0
    %2283 = vdwg.mxu0
    %2284 = vmatpush.bf16.msra.mxu0 %v1694
    %2285 = vmatpush.bf16.msra.mxu0 %v1688
    %2286 = vmatpush.bf16.msra.mxu0 %v1682
    %2287 = vmatpush.bf16.msra.mxu0 %v1676
    %2288 = vmatpush.bf16.msra.mxu0 %v1670
    %2289 = vmatpush.bf16.msra.mxu0 %v1664
    %2290 = vmatpush.bf16.msra.mxu0 %v1658
    %2291 = vmatpush.bf16.msra.mxu0 %v1652
    %2292 = vmatmul.bf16.gmra.mxu0 %v538
    %v2293 = vpop.f32.mrf.mxu0
    %v2294 = vadd.f32 %v2281, %v2293
    %v2295 = vpop.f32.mrf.mxu0
    %2296 = vdwg.mxu0
    %2297 = vmatpush.bf16.msra.mxu0 %v1455
    %2298 = vmatpush.bf16.msra.mxu0 %v1449
    %2299 = vmatpush.bf16.msra.mxu0 %v1443
    %2300 = vmatpush.bf16.msra.mxu0 %v1437
    %2301 = vmatpush.bf16.msra.mxu0 %v1431
    %2302 = vmatpush.bf16.msra.mxu0 %v1425
    %2303 = vmatpush.bf16.msra.mxu0 %v1419
    %2304 = vmatpush.bf16.msra.mxu0 %v1413
    %2305 = vmatmul.bf16.gmra.mxu0 %v533
    %v2306 = vpop.f32.mrf.mxu0
    %v2307 = vadd.f32 %v516, %v2306
    %v2308 = vpop.f32.mrf.mxu0
    %2309 = vdwg.mxu0
    %2310 = vmatpush.bf16.msra.mxu0 %v1503
    %2311 = vmatpush.bf16.msra.mxu0 %v1497
    %2312 = vmatpush.bf16.msra.mxu0 %v1491
    %2313 = vmatpush.bf16.msra.mxu0 %v1485
    %2314 = vmatpush.bf16.msra.mxu0 %v1479
    %2315 = vmatpush.bf16.msra.mxu0 %v1473
    %2316 = vmatpush.bf16.msra.mxu0 %v1467
    %2317 = vmatpush.bf16.msra.mxu0 %v1461
    %2318 = vmatmul.bf16.gmra.mxu0 %v534
    %v2319 = vpop.f32.mrf.mxu0
    %v2320 = vadd.f32 %v2307, %v2319
    %v2321 = vpop.f32.mrf.mxu0
    %2322 = vdwg.mxu0
    %2323 = vmatpush.bf16.msra.mxu0 %v1551
    %2324 = vmatpush.bf16.msra.mxu0 %v1545
    %2325 = vmatpush.bf16.msra.mxu0 %v1539
    %2326 = vmatpush.bf16.msra.mxu0 %v1533
    %2327 = vmatpush.bf16.msra.mxu0 %v1527
    %2328 = vmatpush.bf16.msra.mxu0 %v1521
    %2329 = vmatpush.bf16.msra.mxu0 %v1515
    %2330 = vmatpush.bf16.msra.mxu0 %v1509
    %2331 = vmatmul.bf16.gmra.mxu0 %v535
    %v2332 = vpop.f32.mrf.mxu0
    %v2333 = vadd.f32 %v2320, %v2332
    %v2334 = vpop.f32.mrf.mxu0
    %2335 = vdwg.mxu0
    %2336 = vmatpush.bf16.msra.mxu0 %v1599
    %2337 = vmatpush.bf16.msra.mxu0 %v1593
    %2338 = vmatpush.bf16.msra.mxu0 %v1587
    %2339 = vmatpush.bf16.msra.mxu0 %v1581
    %2340 = vmatpush.bf16.msra.mxu0 %v1575
    %2341 = vmatpush.bf16.msra.mxu0 %v1569
    %2342 = vmatpush.bf16.msra.mxu0 %v1563
    %2343 = vmatpush.bf16.msra.mxu0 %v1557
    %2344 = vmatmul.bf16.gmra.mxu0 %v536
    %v2345 = vpop.f32.mrf.mxu0
    %v2346 = vadd.f32 %v2333, %v2345
    %v2347 = vpop.f32.mrf.mxu0
    %2348 = vdwg.mxu0
    %2349 = vmatpush.bf16.msra.mxu0 %v1647
    %2350 = vmatpush.bf16.msra.mxu0 %v1641
    %2351 = vmatpush.bf16.msra.mxu0 %v1635
    %2352 = vmatpush.bf16.msra.mxu0 %v1629
    %2353 = vmatpush.bf16.msra.mxu0 %v1623
    %2354 = vmatpush.bf16.msra.mxu0 %v1617
    %2355 = vmatpush.bf16.msra.mxu0 %v1611
    %2356 = vmatpush.bf16.msra.mxu0 %v1605
    %2357 = vmatmul.bf16.gmra.mxu0 %v537
    %v2358 = vpop.f32.mrf.mxu0
    %v2359 = vadd.f32 %v2346, %v2358
    %v2360 = vpop.f32.mrf.mxu0
    %2361 = vdwg.mxu0
    %2362 = vmatpush.bf16.msra.mxu0 %v1695
    %2363 = vmatpush.bf16.msra.mxu0 %v1689
    %2364 = vmatpush.bf16.msra.mxu0 %v1683
    %2365 = vmatpush.bf16.msra.mxu0 %v1677
    %2366 = vmatpush.bf16.msra.mxu0 %v1671
    %2367 = vmatpush.bf16.msra.mxu0 %v1665
    %2368 = vmatpush.bf16.msra.mxu0 %v1659
    %2369 = vmatpush.bf16.msra.mxu0 %v1653
    %2370 = vmatmul.bf16.gmra.mxu0 %v538
    %v2371 = vpop.f32.mrf.mxu0
    %v2372 = vadd.f32 %v2359, %v2371
    %v2373 = vpop.f32.mrf.mxu0
    %2374 = vdwg.mxu0
    %2375 = vmatpush.bf16.msra.mxu0 %v1456
    %2376 = vmatpush.bf16.msra.mxu0 %v1450
    %2377 = vmatpush.bf16.msra.mxu0 %v1444
    %2378 = vmatpush.bf16.msra.mxu0 %v1438
    %2379 = vmatpush.bf16.msra.mxu0 %v1432
    %2380 = vmatpush.bf16.msra.mxu0 %v1426
    %2381 = vmatpush.bf16.msra.mxu0 %v1420
    %2382 = vmatpush.bf16.msra.mxu0 %v1414
    %2383 = vmatmul.bf16.gmra.mxu0 %v533
    %v2384 = vpop.f32.mrf.mxu0
    %v2385 = vadd.f32 %v517, %v2384
    %v2386 = vpop.f32.mrf.mxu0
    %2387 = vdwg.mxu0
    %2388 = vmatpush.bf16.msra.mxu0 %v1504
    %2389 = vmatpush.bf16.msra.mxu0 %v1498
    %2390 = vmatpush.bf16.msra.mxu0 %v1492
    %2391 = vmatpush.bf16.msra.mxu0 %v1486
    %2392 = vmatpush.bf16.msra.mxu0 %v1480
    %2393 = vmatpush.bf16.msra.mxu0 %v1474
    %2394 = vmatpush.bf16.msra.mxu0 %v1468
    %2395 = vmatpush.bf16.msra.mxu0 %v1462
    %2396 = vmatmul.bf16.gmra.mxu0 %v534
    %v2397 = vpop.f32.mrf.mxu0
    %v2398 = vadd.f32 %v2385, %v2397
    %v2399 = vpop.f32.mrf.mxu0
    %2400 = vdwg.mxu0
    %2401 = vmatpush.bf16.msra.mxu0 %v1552
    %2402 = vmatpush.bf16.msra.mxu0 %v1546
    %2403 = vmatpush.bf16.msra.mxu0 %v1540
    %2404 = vmatpush.bf16.msra.mxu0 %v1534
    %2405 = vmatpush.bf16.msra.mxu0 %v1528
    %2406 = vmatpush.bf16.msra.mxu0 %v1522
    %2407 = vmatpush.bf16.msra.mxu0 %v1516
    %2408 = vmatpush.bf16.msra.mxu0 %v1510
    %2409 = vmatmul.bf16.gmra.mxu0 %v535
    %v2410 = vpop.f32.mrf.mxu0
    %v2411 = vadd.f32 %v2398, %v2410
    %v2412 = vpop.f32.mrf.mxu0
    %2413 = vdwg.mxu0
    %2414 = vmatpush.bf16.msra.mxu0 %v1600
    %2415 = vmatpush.bf16.msra.mxu0 %v1594
    %2416 = vmatpush.bf16.msra.mxu0 %v1588
    %2417 = vmatpush.bf16.msra.mxu0 %v1582
    %2418 = vmatpush.bf16.msra.mxu0 %v1576
    %2419 = vmatpush.bf16.msra.mxu0 %v1570
    %2420 = vmatpush.bf16.msra.mxu0 %v1564
    %2421 = vmatpush.bf16.msra.mxu0 %v1558
    %2422 = vmatmul.bf16.gmra.mxu0 %v536
    %v2423 = vpop.f32.mrf.mxu0
    %v2424 = vadd.f32 %v2411, %v2423
    %v2425 = vpop.f32.mrf.mxu0
    %2426 = vdwg.mxu0
    %2427 = vmatpush.bf16.msra.mxu0 %v1648
    %2428 = vmatpush.bf16.msra.mxu0 %v1642
    %2429 = vmatpush.bf16.msra.mxu0 %v1636
    %2430 = vmatpush.bf16.msra.mxu0 %v1630
    %2431 = vmatpush.bf16.msra.mxu0 %v1624
    %2432 = vmatpush.bf16.msra.mxu0 %v1618
    %2433 = vmatpush.bf16.msra.mxu0 %v1612
    %2434 = vmatpush.bf16.msra.mxu0 %v1606
    %2435 = vmatmul.bf16.gmra.mxu0 %v537
    %v2436 = vpop.f32.mrf.mxu0
    %v2437 = vadd.f32 %v2424, %v2436
    %v2438 = vpop.f32.mrf.mxu0
    %2439 = vdwg.mxu0
    %2440 = vmatpush.bf16.msra.mxu0 %v1696
    %2441 = vmatpush.bf16.msra.mxu0 %v1690
    %2442 = vmatpush.bf16.msra.mxu0 %v1684
    %2443 = vmatpush.bf16.msra.mxu0 %v1678
    %2444 = vmatpush.bf16.msra.mxu0 %v1672
    %2445 = vmatpush.bf16.msra.mxu0 %v1666
    %2446 = vmatpush.bf16.msra.mxu0 %v1660
    %2447 = vmatpush.bf16.msra.mxu0 %v1654
    %2448 = vmatmul.bf16.gmra.mxu0 %v538
    %v2449 = vpop.f32.mrf.mxu0
    %v2450 = vadd.f32 %v2437, %v2449
    %v2451 = vpop.f32.mrf.mxu0
    %2452 = vdwg.mxu0
    %v2453 = vmax.f32 %v2060, 0.0
    %v2454 = vmax.f32 %v2138, 0.0
    %v2455 = vmax.f32 %v2216, 0.0
    %v2456 = vmax.f32 %v2294, 0.0
    %v2457 = vmax.f32 %v2372, 0.0
    %v2458 = vmax.f32 %v2450, 0.0
    %v2459 = vpack.c.bf16 %v2453, %v2453
    %v2460 = vpack.c.bf16 %v2454, %v2454
    %v2461 = vpack.c.bf16 %v2455, %v2455
    %v2462 = vpack.c.bf16 %v2456, %v2456
    %v2463 = vpack.c.bf16 %v2457, %v2457
    %v2464 = vpack.c.bf16 %v2458, %v2458
    %v2465 = vld [vmem:[#allocation6] sm:$0xff]
    %v2466 = vld [vmem:[#allocation6 + $0x8] sm:$0xf]
    %v2467 = vld [vmem:[#allocation6 + $0xc] sm:$0xff]
    %v2468 = vld [vmem:[#allocation6 + $0x14] sm:$0xf]
    %v2469 = vld [vmem:[#allocation6 + $0x18] sm:$0xff]
    %v2470 = vld [vmem:[#allocation6 + $0x20] sm:$0xf]
    %v2471 = vld [vmem:[#allocation6 + $0x24] sm:$0xff]
    %v2472 = vld [vmem:[#allocation6 + $0x2c] sm:$0xf]
    %v2473 = vld [vmem:[#allocation6 + $0x30] sm:$0xff]
    %v2474 = vld [vmem:[#allocation6 + $0x38] sm:$0xf]
    %v2475 = vld [vmem:[#allocation6 + $0x3c] sm:$0xff]
    %v2476 = vld [vmem:[#allocation6 + $0x44] sm:$0xf]
    %v2477 = vld [vmem:[#allocation6 + $0x48] sm:$0xff]
    %v2478 = vld [vmem:[#allocation6 + $0x50] sm:$0xf]
    %v2479 = vld [vmem:[#allocation6 + $0x54] sm:$0xff]
    %v2480 = vld [vmem:[#allocation6 + $0x5c] sm:$0xf]
    %v2481 = vld [vmem:[#allocation6 + $0x60] sm:$0xff]
    %v2482 = vld [vmem:[#allocation6 + $0x68] sm:$0xf]
    %v2483 = vld [vmem:[#allocation6 + $0x6c] sm:$0xff]
    %v2484 = vld [vmem:[#allocation6 + $0x74] sm:$0xf]
    %v2485 = vld [vmem:[#allocation6 + $0x78] sm:$0xff]
    %v2486 = vld [vmem:[#allocation6 + $0x80] sm:$0xf]
    %v2487 = vld [vmem:[#allocation6 + $0x84] sm:$0xff]
    %v2488 = vld [vmem:[#allocation6 + $0x8c] sm:$0xf]
    %v2489 = vld [vmem:[#allocation6 + $0x90] sm:$0xff]
    %v2490 = vld [vmem:[#allocation6 + $0x98] sm:$0xf]
    %v2491 = vld [vmem:[#allocation6 + $0x9c] sm:$0xff]
    %v2492 = vld [vmem:[#allocation6 + $0xa4] sm:$0xf]
    %v2493 = vld [vmem:[#allocation6 + $0xa8] sm:$0xff]
    %v2494 = vld [vmem:[#allocation6 + $0xb0] sm:$0xf]
    %v2495 = vld [vmem:[#allocation6 + $0xb4] sm:$0xff]
    %v2496 = vld [vmem:[#allocation6 + $0xbc] sm:$0xf]
    %v2497 = vld [vmem:[#allocation6 + $0xc0] sm:$0xff]
    %v2498 = vld [vmem:[#allocation6 + $0xc8] sm:$0xf]
    %v2499 = vld [vmem:[#allocation6 + $0xcc] sm:$0xff]
    %v2500 = vld [vmem:[#allocation6 + $0xd4] sm:$0xf]
    %v2501 = vld [vmem:[#allocation6 + $0xd8] sm:$0xff]
    %v2502 = vld [vmem:[#allocation6 + $0xe0] sm:$0xf]
    %v2503 = vld [vmem:[#allocation6 + $0xe4] sm:$0xff]
    %v2504 = vld [vmem:[#allocation6 + $0xec] sm:$0xf]
    %v2505 = vld [vmem:[#allocation6 + $0xf0] sm:$0xff]
    %v2506 = vld [vmem:[#allocation6 + $0xf8] sm:$0xf]
    %v2507 = vld [vmem:[#allocation6 + $0xfc] sm:$0xff]
    %v2508 = vld [vmem:[#allocation6 + $0x104] sm:$0xf]
    %v2509 = vld [vmem:[#allocation6 + $0x108] sm:$0xff]
    %v2510 = vld [vmem:[#allocation6 + $0x110] sm:$0xf]
    %v2511 = vld [vmem:[#allocation6 + $0x114] sm:$0xff]
    %v2512 = vld [vmem:[#allocation6 + $0x11c] sm:$0xf]
    %v2513 = vld [vmem:[#allocation6 + $0x120] sm:$0xff]
    %v2514 = vld [vmem:[#allocation6 + $0x128] sm:$0xf]
    %v2515 = vld [vmem:[#allocation6 + $0x12c] sm:$0xff]
    %v2516 = vld [vmem:[#allocation6 + $0x134] sm:$0xf]
    %v2517 = vld [vmem:[#allocation6 + $0x138] sm:$0xff]
    %v2518 = vld [vmem:[#allocation6 + $0x140] sm:$0xf]
    %v2519 = vld [vmem:[#allocation6 + $0x144] sm:$0xff]
    %v2520 = vld [vmem:[#allocation6 + $0x14c] sm:$0xf]
    %v2521 = vld [vmem:[#allocation6 + $0x150] sm:$0xff]
    %v2522 = vld [vmem:[#allocation6 + $0x158] sm:$0xf]
    %v2523 = vld [vmem:[#allocation6 + $0x15c] sm:$0xff]
    %v2524 = vld [vmem:[#allocation6 + $0x164] sm:$0xf]
    %v2525 = vld [vmem:[#allocation6 + $0x168] sm:$0xff]
    %v2526 = vld [vmem:[#allocation6 + $0x170] sm:$0xf]
    %v2527 = vld [vmem:[#allocation6 + $0x174] sm:$0xff]
    %v2528 = vld [vmem:[#allocation6 + $0x17c] sm:$0xf]
    %v2529 = vld [vmem:[#allocation6 + $0x180] sm:$0xff]
    %v2530 = vld [vmem:[#allocation6 + $0x188] sm:$0xf]
    %v2531 = vld [vmem:[#allocation6 + $0x18c] sm:$0xff]
    %v2532 = vld [vmem:[#allocation6 + $0x194] sm:$0xf]
    %v2533 = vld [vmem:[#allocation6 + $0x198] sm:$0xff]
    %v2534 = vld [vmem:[#allocation6 + $0x1a0] sm:$0xf]
    %v2535 = vld [vmem:[#allocation6 + $0x1a4] sm:$0xff]
    %v2536 = vld [vmem:[#allocation6 + $0x1ac] sm:$0xf]
    %v2537 = vld [vmem:[#allocation6 + $0x1b0] sm:$0xff]
    %v2538 = vld [vmem:[#allocation6 + $0x1b8] sm:$0xf]
    %v2539 = vld [vmem:[#allocation6 + $0x1bc] sm:$0xff]
    %v2540 = vld [vmem:[#allocation6 + $0x1c4] sm:$0xf]
    %v2541 = vld [vmem:[#allocation6 + $0x1c8] sm:$0xff]
    %v2542 = vld [vmem:[#allocation6 + $0x1d0] sm:$0xf]
    %v2543 = vld [vmem:[#allocation6 + $0x1d4] sm:$0xff]
    %v2544 = vld [vmem:[#allocation6 + $0x1dc] sm:$0xf]
    %v2545 = vld [vmem:[#allocation6 + $0x1e0] sm:$0xff]
    %v2546 = vld [vmem:[#allocation6 + $0x1e8] sm:$0xf]
    %v2547 = vld [vmem:[#allocation6 + $0x1ec] sm:$0xff]
    %v2548 = vld [vmem:[#allocation6 + $0x1f4] sm:$0xf]
    %v2549 = vld [vmem:[#allocation6 + $0x1f8] sm:$0xff]
    %v2550 = vld [vmem:[#allocation6 + $0x200] sm:$0xf]
    %v2551 = vld [vmem:[#allocation6 + $0x204] sm:$0xff]
    %v2552 = vld [vmem:[#allocation6 + $0x20c] sm:$0xf]
    %v2553 = vld [vmem:[#allocation6 + $0x210] sm:$0xff]
    %v2554 = vld [vmem:[#allocation6 + $0x218] sm:$0xf]
    %v2555 = vld [vmem:[#allocation6 + $0x21c] sm:$0xff]
    %v2556 = vld [vmem:[#allocation6 + $0x224] sm:$0xf]
    %v2557 = vld [vmem:[#allocation6 + $0x228] sm:$0xff]
    %v2558 = vld [vmem:[#allocation6 + $0x230] sm:$0xf]
    %v2559 = vld [vmem:[#allocation6 + $0x234] sm:$0xff]
    %v2560 = vld [vmem:[#allocation6 + $0x23c] sm:$0xf]
    %v2561 = vld [vmem:[#allocation6 + $0x240] sm:$0xff]
    %v2562 = vld [vmem:[#allocation6 + $0x248] sm:$0xf]
    %v2563 = vld [vmem:[#allocation6 + $0x24c] sm:$0xff]
    %v2564 = vld [vmem:[#allocation6 + $0x254] sm:$0xf]
    %v2565 = vld [vmem:[#allocation6 + $0x258] sm:$0xff]
    %v2566 = vld [vmem:[#allocation6 + $0x260] sm:$0xf]
    %v2567 = vld [vmem:[#allocation6 + $0x264] sm:$0xff]
    %v2568 = vld [vmem:[#allocation6 + $0x26c] sm:$0xf]
    %v2569 = vld [vmem:[#allocation6 + $0x270] sm:$0xff]
    %v2570 = vld [vmem:[#allocation6 + $0x278] sm:$0xf]
    %v2571 = vld [vmem:[#allocation6 + $0x27c] sm:$0xff]
    %v2572 = vld [vmem:[#allocation6 + $0x284] sm:$0xf]
    %v2573 = vld [vmem:[#allocation6 + $0x288] sm:$0xff]
    %v2574 = vld [vmem:[#allocation6 + $0x290] sm:$0xf]
    %v2575 = vld [vmem:[#allocation6 + $0x294] sm:$0xff]
    %v2576 = vld [vmem:[#allocation6 + $0x29c] sm:$0xf]
    %v2577 = vld [vmem:[#allocation6 + $0x2a0] sm:$0xff]
    %v2578 = vld [vmem:[#allocation6 + $0x2a8] sm:$0xf]
    %v2579 = vld [vmem:[#allocation6 + $0x2ac] sm:$0xff]
    %v2580 = vld [vmem:[#allocation6 + $0x2b4] sm:$0xf]
    %v2581 = vld [vmem:[#allocation6 + $0x2b8] sm:$0xff]
    %v2582 = vld [vmem:[#allocation6 + $0x2c0] sm:$0xf]
    %v2583 = vld [vmem:[#allocation6 + $0x2c4] sm:$0xff]
    %v2584 = vld [vmem:[#allocation6 + $0x2cc] sm:$0xf]
    %v2585 = vld [vmem:[#allocation6 + $0x2d0] sm:$0xff]
    %v2586 = vld [vmem:[#allocation6 + $0x2d8] sm:$0xf]
    %v2587 = vld [vmem:[#allocation6 + $0x2dc] sm:$0xff]
    %v2588 = vld [vmem:[#allocation6 + $0x2e4] sm:$0xf]
    %v2589 = vld [vmem:[#allocation6 + $0x2e8] sm:$0xff]
    %v2590 = vld [vmem:[#allocation6 + $0x2f0] sm:$0xf]
    %v2591 = vld [vmem:[#allocation6 + $0x2f4] sm:$0xff]
    %v2592 = vld [vmem:[#allocation6 + $0x2fc] sm:$0xf]
    %v2593 = vld [vmem:[#allocation6 + $0x300] sm:$0xff]
    %v2594 = vld [vmem:[#allocation6 + $0x308] sm:$0xf]
    %v2595 = vld [vmem:[#allocation6 + $0x30c] sm:$0xff]
    %v2596 = vld [vmem:[#allocation6 + $0x314] sm:$0xf]
    %v2597 = vld [vmem:[#allocation6 + $0x318] sm:$0xff]
    %v2598 = vld [vmem:[#allocation6 + $0x320] sm:$0xf]
    %v2599 = vld [vmem:[#allocation6 + $0x324] sm:$0xff]
    %v2600 = vld [vmem:[#allocation6 + $0x32c] sm:$0xf]
    %v2601 = vld [vmem:[#allocation6 + $0x330] sm:$0xff]
    %v2602 = vld [vmem:[#allocation6 + $0x338] sm:$0xf]
    %v2603 = vld [vmem:[#allocation6 + $0x33c] sm:$0xff]
    %v2604 = vld [vmem:[#allocation6 + $0x344] sm:$0xf]
    %v2605 = vld [vmem:[#allocation6 + $0x348] sm:$0xff]
    %v2606 = vld [vmem:[#allocation6 + $0x350] sm:$0xf]
    %v2607 = vld [vmem:[#allocation6 + $0x354] sm:$0xff]
    %v2608 = vld [vmem:[#allocation6 + $0x35c] sm:$0xf]
    %v2609 = vld [vmem:[#allocation6 + $0x360] sm:$0xff]
    %v2610 = vld [vmem:[#allocation6 + $0x368] sm:$0xf]
    %v2611 = vld [vmem:[#allocation6 + $0x36c] sm:$0xff]
    %v2612 = vld [vmem:[#allocation6 + $0x374] sm:$0xf]
    %v2613 = vld [vmem:[#allocation6 + $0x378] sm:$0xff]
    %v2614 = vld [vmem:[#allocation6 + $0x380] sm:$0xf]
    %v2615 = vld [vmem:[#allocation6 + $0x384] sm:$0xff]
    %v2616 = vld [vmem:[#allocation6 + $0x38c] sm:$0xf]
    %v2617 = vld [vmem:[#allocation6 + $0x390] sm:$0xff]
    %v2618 = vld [vmem:[#allocation6 + $0x398] sm:$0xf]
    %v2619 = vld [vmem:[#allocation6 + $0x39c] sm:$0xff]
    %v2620 = vld [vmem:[#allocation6 + $0x3a4] sm:$0xf]
    %v2621 = vld [vmem:[#allocation6 + $0x3a8] sm:$0xff]
    %v2622 = vld [vmem:[#allocation6 + $0x3b0] sm:$0xf]
    %v2623 = vld [vmem:[#allocation6 + $0x3b4] sm:$0xff]
    %v2624 = vld [vmem:[#allocation6 + $0x3bc] sm:$0xf]
    %v2625 = vld [vmem:[#allocation6 + $0x3c0] sm:$0xff]
    %v2626 = vld [vmem:[#allocation6 + $0x3c8] sm:$0xf]
    %v2627 = vld [vmem:[#allocation6 + $0x3cc] sm:$0xff]
    %v2628 = vld [vmem:[#allocation6 + $0x3d4] sm:$0xf]
    %v2629 = vld [vmem:[#allocation6 + $0x3d8] sm:$0xff]
    %v2630 = vld [vmem:[#allocation6 + $0x3e0] sm:$0xf]
    %v2631 = vld [vmem:[#allocation6 + $0x3e4] sm:$0xff]
    %v2632 = vld [vmem:[#allocation6 + $0x3ec] sm:$0xf]
    %v2633 = vld [vmem:[#allocation6 + $0x3f0] sm:$0xff]
    %v2634 = vld [vmem:[#allocation6 + $0x3f8] sm:$0xf]
    %v2635 = vld [vmem:[#allocation6 + $0x3fc] sm:$0xff]
    %v2636 = vld [vmem:[#allocation6 + $0x404] sm:$0xf]
    %v2637 = vld [vmem:[#allocation6 + $0x408] sm:$0xff]
    %v2638 = vld [vmem:[#allocation6 + $0x410] sm:$0xf]
    %v2639 = vld [vmem:[#allocation6 + $0x414] sm:$0xff]
    %v2640 = vld [vmem:[#allocation6 + $0x41c] sm:$0xf]
    %v2641 = vld [vmem:[#allocation6 + $0x420] sm:$0xff]
    %v2642 = vld [vmem:[#allocation6 + $0x428] sm:$0xf]
    %v2643 = vld [vmem:[#allocation6 + $0x42c] sm:$0xff]
    %v2644 = vld [vmem:[#allocation6 + $0x434] sm:$0xf]
    %v2645 = vld [vmem:[#allocation6 + $0x438] sm:$0xff]
    %v2646 = vld [vmem:[#allocation6 + $0x440] sm:$0xf]
    %v2647 = vld [vmem:[#allocation6 + $0x444] sm:$0xff]
    %v2648 = vld [vmem:[#allocation6 + $0x44c] sm:$0xf]
    %v2649 = vld [vmem:[#allocation6 + $0x450] sm:$0xff]
    %v2650 = vld [vmem:[#allocation6 + $0x458] sm:$0xf]
    %v2651 = vld [vmem:[#allocation6 + $0x45c] sm:$0xff]
    %v2652 = vld [vmem:[#allocation6 + $0x464] sm:$0xf]
    %v2653 = vld [vmem:[#allocation6 + $0x468] sm:$0xff]
    %v2654 = vld [vmem:[#allocation6 + $0x470] sm:$0xf]
    %v2655 = vld [vmem:[#allocation6 + $0x474] sm:$0xff]
    %v2656 = vld [vmem:[#allocation6 + $0x47c] sm:$0xf]
    %v2657 = vld [vmem:[#allocation7] sm:$0x7]
    %v2659 = vperm.slane %v2657, 0
    %v2660 = vperm.slane %v2657, 1
    %v2661 = vperm.slane %v2657, 2
    %v2857 = vunpack.c.l.b16 %v2465
    %v2858 = vunpack.c.h.b16 %v2465
    %v2859 = vunpack.c.l.b16 %v2466
    %v2860 = vunpack.c.l.b16 %v2467
    %v2861 = vunpack.c.h.b16 %v2467
    %v2862 = vunpack.c.l.b16 %v2468
    %v2863 = vunpack.c.l.b16 %v2469
    %v2864 = vunpack.c.h.b16 %v2469
    %v2865 = vunpack.c.l.b16 %v2470
    %v2866 = vunpack.c.l.b16 %v2471
    %v2867 = vunpack.c.h.b16 %v2471
    %v2868 = vunpack.c.l.b16 %v2472
    %v2869 = vunpack.c.l.b16 %v2473
    %v2870 = vunpack.c.h.b16 %v2473
    %v2871 = vunpack.c.l.b16 %v2474
    %v2872 = vunpack.c.l.b16 %v2475
    %v2873 = vunpack.c.h.b16 %v2475
    %v2874 = vunpack.c.l.b16 %v2476
    %v2875 = vunpack.c.l.b16 %v2477
    %v2876 = vunpack.c.h.b16 %v2477
    %v2877 = vunpack.c.l.b16 %v2478
    %v2878 = vunpack.c.l.b16 %v2479
    %v2879 = vunpack.c.h.b16 %v2479
    %v2880 = vunpack.c.l.b16 %v2480
    %v2881 = vunpack.c.l.b16 %v2481
    %v2882 = vunpack.c.h.b16 %v2481
    %v2883 = vunpack.c.l.b16 %v2482
    %v2884 = vunpack.c.l.b16 %v2483
    %v2885 = vunpack.c.h.b16 %v2483
    %v2886 = vunpack.c.l.b16 %v2484
    %v2887 = vunpack.c.l.b16 %v2485
    %v2888 = vunpack.c.h.b16 %v2485
    %v2889 = vunpack.c.l.b16 %v2486
    %v2890 = vunpack.c.l.b16 %v2487
    %v2891 = vunpack.c.h.b16 %v2487
    %v2892 = vunpack.c.l.b16 %v2488
    %v2893 = vunpack.c.l.b16 %v2489
    %v2894 = vunpack.c.h.b16 %v2489
    %v2895 = vunpack.c.l.b16 %v2490
    %v2896 = vunpack.c.l.b16 %v2491
    %v2897 = vunpack.c.h.b16 %v2491
    %v2898 = vunpack.c.l.b16 %v2492
    %v2899 = vunpack.c.l.b16 %v2493
    %v2900 = vunpack.c.h.b16 %v2493
    %v2901 = vunpack.c.l.b16 %v2494
    %v2902 = vunpack.c.l.b16 %v2495
    %v2903 = vunpack.c.h.b16 %v2495
    %v2904 = vunpack.c.l.b16 %v2496
    %v2905 = vunpack.c.l.b16 %v2497
    %v2906 = vunpack.c.h.b16 %v2497
    %v2907 = vunpack.c.l.b16 %v2498
    %v2908 = vunpack.c.l.b16 %v2499
    %v2909 = vunpack.c.h.b16 %v2499
    %v2910 = vunpack.c.l.b16 %v2500
    %v2911 = vunpack.c.l.b16 %v2501
    %v2912 = vunpack.c.h.b16 %v2501
    %v2913 = vunpack.c.l.b16 %v2502
    %v2914 = vunpack.c.l.b16 %v2503
    %v2915 = vunpack.c.h.b16 %v2503
    %v2916 = vunpack.c.l.b16 %v2504
    %v2917 = vunpack.c.l.b16 %v2505
    %v2918 = vunpack.c.h.b16 %v2505
    %v2919 = vunpack.c.l.b16 %v2506
    %v2920 = vunpack.c.l.b16 %v2507
    %v2921 = vunpack.c.h.b16 %v2507
    %v2922 = vunpack.c.l.b16 %v2508
    %v2923 = vunpack.c.l.b16 %v2509
    %v2924 = vunpack.c.h.b16 %v2509
    %v2925 = vunpack.c.l.b16 %v2510
    %v2926 = vunpack.c.l.b16 %v2511
    %v2927 = vunpack.c.h.b16 %v2511
    %v2928 = vunpack.c.l.b16 %v2512
    %v2929 = vunpack.c.l.b16 %v2513
    %v2930 = vunpack.c.h.b16 %v2513
    %v2931 = vunpack.c.l.b16 %v2514
    %v2932 = vunpack.c.l.b16 %v2515
    %v2933 = vunpack.c.h.b16 %v2515
    %v2934 = vunpack.c.l.b16 %v2516
    %v2935 = vunpack.c.l.b16 %v2517
    %v2936 = vunpack.c.h.b16 %v2517
    %v2937 = vunpack.c.l.b16 %v2518
    %v2938 = vunpack.c.l.b16 %v2519
    %v2939 = vunpack.c.h.b16 %v2519
    %v2940 = vunpack.c.l.b16 %v2520
    %v2941 = vunpack.c.l.b16 %v2521
    %v2942 = vunpack.c.h.b16 %v2521
    %v2943 = vunpack.c.l.b16 %v2522
    %v2944 = vunpack.c.l.b16 %v2523
    %v2945 = vunpack.c.h.b16 %v2523
    %v2946 = vunpack.c.l.b16 %v2524
    %v2947 = vunpack.c.l.b16 %v2525
    %v2948 = vunpack.c.h.b16 %v2525
    %v2949 = vunpack.c.l.b16 %v2526
    %v2950 = vunpack.c.l.b16 %v2527
    %v2951 = vunpack.c.h.b16 %v2527
    %v2952 = vunpack.c.l.b16 %v2528
    %v2953 = vunpack.c.l.b16 %v2529
    %v2954 = vunpack.c.h.b16 %v2529
    %v2955 = vunpack.c.l.b16 %v2530
    %v2956 = vunpack.c.l.b16 %v2531
    %v2957 = vunpack.c.h.b16 %v2531
    %v2958 = vunpack.c.l.b16 %v2532
    %v2959 = vunpack.c.l.b16 %v2533
    %v2960 = vunpack.c.h.b16 %v2533
    %v2961 = vunpack.c.l.b16 %v2534
    %v2962 = vunpack.c.l.b16 %v2535
    %v2963 = vunpack.c.h.b16 %v2535
    %v2964 = vunpack.c.l.b16 %v2536
    %v2965 = vunpack.c.l.b16 %v2537
    %v2966 = vunpack.c.h.b16 %v2537
    %v2967 = vunpack.c.l.b16 %v2538
    %v2968 = vunpack.c.l.b16 %v2539
    %v2969 = vunpack.c.h.b16 %v2539
    %v2970 = vunpack.c.l.b16 %v2540
    %v2971 = vunpack.c.l.b16 %v2541
    %v2972 = vunpack.c.h.b16 %v2541
    %v2973 = vunpack.c.l.b16 %v2542
    %v2974 = vunpack.c.l.b16 %v2543
    %v2975 = vunpack.c.h.b16 %v2543
    %v2976 = vunpack.c.l.b16 %v2544
    %v2977 = vunpack.c.l.b16 %v2545
    %v2978 = vunpack.c.h.b16 %v2545
    %v2979 = vunpack.c.l.b16 %v2546
    %v2980 = vunpack.c.l.b16 %v2547
    %v2981 = vunpack.c.h.b16 %v2547
    %v2982 = vunpack.c.l.b16 %v2548
    %v2983 = vunpack.c.l.b16 %v2549
    %v2984 = vunpack.c.h.b16 %v2549
    %v2985 = vunpack.c.l.b16 %v2550
    %v2986 = vunpack.c.l.b16 %v2551
    %v2987 = vunpack.c.h.b16 %v2551
    %v2988 = vunpack.c.l.b16 %v2552
    %v2989 = vunpack.c.l.b16 %v2553
    %v2990 = vunpack.c.h.b16 %v2553
    %v2991 = vunpack.c.l.b16 %v2554
    %v2992 = vunpack.c.l.b16 %v2555
    %v2993 = vunpack.c.h.b16 %v2555
    %v2994 = vunpack.c.l.b16 %v2556
    %v2995 = vunpack.c.l.b16 %v2557
    %v2996 = vunpack.c.h.b16 %v2557
    %v2997 = vunpack.c.l.b16 %v2558
    %v2998 = vunpack.c.l.b16 %v2559
    %v2999 = vunpack.c.h.b16 %v2559
    %v3000 = vunpack.c.l.b16 %v2560
    %v3001 = vunpack.c.l.b16 %v2561
    %v3002 = vunpack.c.h.b16 %v2561
    %v3003 = vunpack.c.l.b16 %v2562
    %v3004 = vunpack.c.l.b16 %v2563
    %v3005 = vunpack.c.h.b16 %v2563
    %v3006 = vunpack.c.l.b16 %v2564
    %v3007 = vunpack.c.l.b16 %v2565
    %v3008 = vunpack.c.h.b16 %v2565
    %v3009 = vunpack.c.l.b16 %v2566
    %v3010 = vunpack.c.l.b16 %v2567
    %v3011 = vunpack.c.h.b16 %v2567
    %v3012 = vunpack.c.l.b16 %v2568
    %v3013 = vunpack.c.l.b16 %v2569
    %v3014 = vunpack.c.h.b16 %v2569
    %v3015 = vunpack.c.l.b16 %v2570
    %v3016 = vunpack.c.l.b16 %v2571
    %v3017 = vunpack.c.h.b16 %v2571
    %v3018 = vunpack.c.l.b16 %v2572
    %v3019 = vunpack.c.l.b16 %v2573
    %v3020 = vunpack.c.h.b16 %v2573
    %v3021 = vunpack.c.l.b16 %v2574
    %v3022 = vunpack.c.l.b16 %v2575
    %v3023 = vunpack.c.h.b16 %v2575
    %v3024 = vunpack.c.l.b16 %v2576
    %v3025 = vunpack.c.l.b16 %v2577
    %v3026 = vunpack.c.h.b16 %v2577
    %v3027 = vunpack.c.l.b16 %v2578
    %v3028 = vunpack.c.l.b16 %v2579
    %v3029 = vunpack.c.h.b16 %v2579
    %v3030 = vunpack.c.l.b16 %v2580
    %v3031 = vunpack.c.l.b16 %v2581
    %v3032 = vunpack.c.h.b16 %v2581
    %v3033 = vunpack.c.l.b16 %v2582
    %v3034 = vunpack.c.l.b16 %v2583
    %v3035 = vunpack.c.h.b16 %v2583
    %v3036 = vunpack.c.l.b16 %v2584
    %v3037 = vunpack.c.l.b16 %v2585
    %v3038 = vunpack.c.h.b16 %v2585
    %v3039 = vunpack.c.l.b16 %v2586
    %v3040 = vunpack.c.l.b16 %v2587
    %v3041 = vunpack.c.h.b16 %v2587
    %v3042 = vunpack.c.l.b16 %v2588
    %v3043 = vunpack.c.l.b16 %v2589
    %v3044 = vunpack.c.h.b16 %v2589
    %v3045 = vunpack.c.l.b16 %v2590
    %v3046 = vunpack.c.l.b16 %v2591
    %v3047 = vunpack.c.h.b16 %v2591
    %v3048 = vunpack.c.l.b16 %v2592
    %v3049 = vunpack.c.l.b16 %v2593
    %v3050 = vunpack.c.h.b16 %v2593
    %v3051 = vunpack.c.l.b16 %v2594
    %v3052 = vunpack.c.l.b16 %v2595
    %v3053 = vunpack.c.h.b16 %v2595
    %v3054 = vunpack.c.l.b16 %v2596
    %v3055 = vunpack.c.l.b16 %v2597
    %v3056 = vunpack.c.h.b16 %v2597
    %v3057 = vunpack.c.l.b16 %v2598
    %v3058 = vunpack.c.l.b16 %v2599
    %v3059 = vunpack.c.h.b16 %v2599
    %v3060 = vunpack.c.l.b16 %v2600
    %v3061 = vunpack.c.l.b16 %v2601
    %v3062 = vunpack.c.h.b16 %v2601
    %v3063 = vunpack.c.l.b16 %v2602
    %v3064 = vunpack.c.l.b16 %v2603
    %v3065 = vunpack.c.h.b16 %v2603
    %v3066 = vunpack.c.l.b16 %v2604
    %v3067 = vunpack.c.l.b16 %v2605
    %v3068 = vunpack.c.h.b16 %v2605
    %v3069 = vunpack.c.l.b16 %v2606
    %v3070 = vunpack.c.l.b16 %v2607
    %v3071 = vunpack.c.h.b16 %v2607
    %v3072 = vunpack.c.l.b16 %v2608
    %v3073 = vunpack.c.l.b16 %v2609
    %v3074 = vunpack.c.h.b16 %v2609
    %v3075 = vunpack.c.l.b16 %v2610
    %v3076 = vunpack.c.l.b16 %v2611
    %v3077 = vunpack.c.h.b16 %v2611
    %v3078 = vunpack.c.l.b16 %v2612
    %v3079 = vunpack.c.l.b16 %v2613
    %v3080 = vunpack.c.h.b16 %v2613
    %v3081 = vunpack.c.l.b16 %v2614
    %v3082 = vunpack.c.l.b16 %v2615
    %v3083 = vunpack.c.h.b16 %v2615
    %v3084 = vunpack.c.l.b16 %v2616
    %v3085 = vunpack.c.l.b16 %v2617
    %v3086 = vunpack.c.h.b16 %v2617
    %v3087 = vunpack.c.l.b16 %v2618
    %v3088 = vunpack.c.l.b16 %v2619
    %v3089 = vunpack.c.h.b16 %v2619
    %v3090 = vunpack.c.l.b16 %v2620
    %v3091 = vunpack.c.l.b16 %v2621
    %v3092 = vunpack.c.h.b16 %v2621
    %v3093 = vunpack.c.l.b16 %v2622
    %v3094 = vunpack.c.l.b16 %v2623
    %v3095 = vunpack.c.h.b16 %v2623
    %v3096 = vunpack.c.l.b16 %v2624
    %v3097 = vunpack.c.l.b16 %v2625
    %v3098 = vunpack.c.h.b16 %v2625
    %v3099 = vunpack.c.l.b16 %v2626
    %v3100 = vunpack.c.l.b16 %v2627
    %v3101 = vunpack.c.h.b16 %v2627
    %v3102 = vunpack.c.l.b16 %v2628
    %v3103 = vunpack.c.l.b16 %v2629
    %v3104 = vunpack.c.h.b16 %v2629
    %v3105 = vunpack.c.l.b16 %v2630
    %v3106 = vunpack.c.l.b16 %v2631
    %v3107 = vunpack.c.h.b16 %v2631
    %v3108 = vunpack.c.l.b16 %v2632
    %v3109 = vunpack.c.l.b16 %v2633
    %v3110 = vunpack.c.h.b16 %v2633
    %v3111 = vunpack.c.l.b16 %v2634
    %v3112 = vunpack.c.l.b16 %v2635
    %v3113 = vunpack.c.h.b16 %v2635
    %v3114 = vunpack.c.l.b16 %v2636
    %v3115 = vunpack.c.l.b16 %v2637
    %v3116 = vunpack.c.h.b16 %v2637
    %v3117 = vunpack.c.l.b16 %v2638
    %v3118 = vunpack.c.l.b16 %v2639
    %v3119 = vunpack.c.h.b16 %v2639
    %v3120 = vunpack.c.l.b16 %v2640
    %v3121 = vunpack.c.l.b16 %v2641
    %v3122 = vunpack.c.h.b16 %v2641
    %v3123 = vunpack.c.l.b16 %v2642
    %v3124 = vunpack.c.l.b16 %v2643
    %v3125 = vunpack.c.h.b16 %v2643
    %v3126 = vunpack.c.l.b16 %v2644
    %v3127 = vunpack.c.l.b16 %v2645
    %v3128 = vunpack.c.h.b16 %v2645
    %v3129 = vunpack.c.l.b16 %v2646
    %v3130 = vunpack.c.l.b16 %v2647
    %v3131 = vunpack.c.h.b16 %v2647
    %v3132 = vunpack.c.l.b16 %v2648
    %v3133 = vunpack.c.l.b16 %v2649
    %v3134 = vunpack.c.h.b16 %v2649
    %v3135 = vunpack.c.l.b16 %v2650
    %v3136 = vunpack.c.l.b16 %v2651
    %v3137 = vunpack.c.h.b16 %v2651
    %v3138 = vunpack.c.l.b16 %v2652
    %v3139 = vunpack.c.l.b16 %v2653
    %v3140 = vunpack.c.h.b16 %v2653
    %v3141 = vunpack.c.l.b16 %v2654
    %v3142 = vunpack.c.l.b16 %v2655
    %v3143 = vunpack.c.h.b16 %v2655
    %v3144 = vunpack.c.l.b16 %v2656
    %v3145 = vpack.c.b16 %v2860, %v2857
    %v3146 = vpack.c.b16 %v2861, %v2858
    %v3147 = vpack.c.b16 %v2862, %v2859
    %v3148 = vpack.c.b16 %v2866, %v2863
    %v3149 = vpack.c.b16 %v2867, %v2864
    %v3150 = vpack.c.b16 %v2868, %v2865
    %v3151 = vpack.c.b16 %v2872, %v2869
    %v3152 = vpack.c.b16 %v2873, %v2870
    %v3153 = vpack.c.b16 %v2874, %v2871
    %v3154 = vpack.c.b16 %v2878, %v2875
    %v3155 = vpack.c.b16 %v2879, %v2876
    %v3156 = vpack.c.b16 %v2880, %v2877
    %v3157 = vpack.c.b16 %v2884, %v2881
    %v3158 = vpack.c.b16 %v2885, %v2882
    %v3159 = vpack.c.b16 %v2886, %v2883
    %v3160 = vpack.c.b16 %v2890, %v2887
    %v3161 = vpack.c.b16 %v2891, %v2888
    %v3162 = vpack.c.b16 %v2892, %v2889
    %v3163 = vpack.c.b16 %v2896, %v2893
    %v3164 = vpack.c.b16 %v2897, %v2894
    %v3165 = vpack.c.b16 %v2898, %v2895
    %v3166 = vpack.c.b16 %v2902, %v2899
    %v3167 = vpack.c.b16 %v2903, %v2900
    %v3168 = vpack.c.b16 %v2904, %v2901
    %v3169 = vpack.c.b16 %v2908, %v2905
    %v3170 = vpack.c.b16 %v2909, %v2906
    %v3171 = vpack.c.b16 %v2910, %v2907
    %v3172 = vpack.c.b16 %v2914, %v2911
    %v3173 = vpack.c.b16 %v2915, %v2912
    %v3174 = vpack.c.b16 %v2916, %v2913
    %v3175 = vpack.c.b16 %v2920, %v2917
    %v3176 = vpack.c.b16 %v2921, %v2918
    %v3177 = vpack.c.b16 %v2922, %v2919
    %v3178 = vpack.c.b16 %v2926, %v2923
    %v3179 = vpack.c.b16 %v2927, %v2924
    %v3180 = vpack.c.b16 %v2928, %v2925
    %v3181 = vpack.c.b16 %v2932, %v2929
    %v3182 = vpack.c.b16 %v2933, %v2930
    %v3183 = vpack.c.b16 %v2934, %v2931
    %v3184 = vpack.c.b16 %v2938, %v2935
    %v3185 = vpack.c.b16 %v2939, %v2936
    %v3186 = vpack.c.b16 %v2940, %v2937
    %v3187 = vpack.c.b16 %v2944, %v2941
    %v3188 = vpack.c.b16 %v2945, %v2942
    %v3189 = vpack.c.b16 %v2946, %v2943
    %v3190 = vpack.c.b16 %v2950, %v2947
    %v3191 = vpack.c.b16 %v2951, %v2948
    %v3192 = vpack.c.b16 %v2952, %v2949
    %v3193 = vpack.c.b16 %v2956, %v2953
    %v3194 = vpack.c.b16 %v2957, %v2954
    %v3195 = vpack.c.b16 %v2958, %v2955
    %v3196 = vpack.c.b16 %v2962, %v2959
    %v3197 = vpack.c.b16 %v2963, %v2960
    %v3198 = vpack.c.b16 %v2964, %v2961
    %v3199 = vpack.c.b16 %v2968, %v2965
    %v3200 = vpack.c.b16 %v2969, %v2966
    %v3201 = vpack.c.b16 %v2970, %v2967
    %v3202 = vpack.c.b16 %v2974, %v2971
    %v3203 = vpack.c.b16 %v2975, %v2972
    %v3204 = vpack.c.b16 %v2976, %v2973
    %v3205 = vpack.c.b16 %v2980, %v2977
    %v3206 = vpack.c.b16 %v2981, %v2978
    %v3207 = vpack.c.b16 %v2982, %v2979
    %v3208 = vpack.c.b16 %v2986, %v2983
    %v3209 = vpack.c.b16 %v2987, %v2984
    %v3210 = vpack.c.b16 %v2988, %v2985
    %v3211 = vpack.c.b16 %v2992, %v2989
    %v3212 = vpack.c.b16 %v2993, %v2990
    %v3213 = vpack.c.b16 %v2994, %v2991
    %v3214 = vpack.c.b16 %v2998, %v2995
    %v3215 = vpack.c.b16 %v2999, %v2996
    %v3216 = vpack.c.b16 %v3000, %v2997
    %v3217 = vpack.c.b16 %v3004, %v3001
    %v3218 = vpack.c.b16 %v3005, %v3002
    %v3219 = vpack.c.b16 %v3006, %v3003
    %v3220 = vpack.c.b16 %v3010, %v3007
    %v3221 = vpack.c.b16 %v3011, %v3008
    %v3222 = vpack.c.b16 %v3012, %v3009
    %v3223 = vpack.c.b16 %v3016, %v3013
    %v3224 = vpack.c.b16 %v3017, %v3014
    %v3225 = vpack.c.b16 %v3018, %v3015
    %v3226 = vpack.c.b16 %v3022, %v3019
    %v3227 = vpack.c.b16 %v3023, %v3020
    %v3228 = vpack.c.b16 %v3024, %v3021
    %v3229 = vpack.c.b16 %v3028, %v3025
    %v3230 = vpack.c.b16 %v3029, %v3026
    %v3231 = vpack.c.b16 %v3030, %v3027
    %v3232 = vpack.c.b16 %v3034, %v3031
    %v3233 = vpack.c.b16 %v3035, %v3032
    %v3234 = vpack.c.b16 %v3036, %v3033
    %v3235 = vpack.c.b16 %v3040, %v3037
    %v3236 = vpack.c.b16 %v3041, %v3038
    %v3237 = vpack.c.b16 %v3042, %v3039
    %v3238 = vpack.c.b16 %v3046, %v3043
    %v3239 = vpack.c.b16 %v3047, %v3044
    %v3240 = vpack.c.b16 %v3048, %v3045
    %v3241 = vpack.c.b16 %v3052, %v3049
    %v3242 = vpack.c.b16 %v3053, %v3050
    %v3243 = vpack.c.b16 %v3054, %v3051
    %v3244 = vpack.c.b16 %v3058, %v3055
    %v3245 = vpack.c.b16 %v3059, %v3056
    %v3246 = vpack.c.b16 %v3060, %v3057
    %v3247 = vpack.c.b16 %v3064, %v3061
    %v3248 = vpack.c.b16 %v3065, %v3062
    %v3249 = vpack.c.b16 %v3066, %v3063
    %v3250 = vpack.c.b16 %v3070, %v3067
    %v3251 = vpack.c.b16 %v3071, %v3068
    %v3252 = vpack.c.b16 %v3072, %v3069
    %v3253 = vpack.c.b16 %v3076, %v3073
    %v3254 = vpack.c.b16 %v3077, %v3074
    %v3255 = vpack.c.b16 %v3078, %v3075
    %v3256 = vpack.c.b16 %v3082, %v3079
    %v3257 = vpack.c.b16 %v3083, %v3080
    %v3258 = vpack.c.b16 %v3084, %v3081
    %v3259 = vpack.c.b16 %v3088, %v3085
    %v3260 = vpack.c.b16 %v3089, %v3086
    %v3261 = vpack.c.b16 %v3090, %v3087
    %v3262 = vpack.c.b16 %v3094, %v3091
    %v3263 = vpack.c.b16 %v3095, %v3092
    %v3264 = vpack.c.b16 %v3096, %v3093
    %v3265 = vpack.c.b16 %v3100, %v3097
    %v3266 = vpack.c.b16 %v3101, %v3098
    %v3267 = vpack.c.b16 %v3102, %v3099
    %v3268 = vpack.c.b16 %v3106, %v3103
    %v3269 = vpack.c.b16 %v3107, %v3104
    %v3270 = vpack.c.b16 %v3108, %v3105
    %v3271 = vpack.c.b16 %v3112, %v3109
    %v3272 = vpack.c.b16 %v3113, %v3110
    %v3273 = vpack.c.b16 %v3114, %v3111
    %v3274 = vpack.c.b16 %v3118, %v3115
    %v3275 = vpack.c.b16 %v3119, %v3116
    %v3276 = vpack.c.b16 %v3120, %v3117
    %v3277 = vpack.c.b16 %v3124, %v3121
    %v3278 = vpack.c.b16 %v3125, %v3122
    %v3279 = vpack.c.b16 %v3126, %v3123
    %v3280 = vpack.c.b16 %v3130, %v3127
    %v3281 = vpack.c.b16 %v3131, %v3128
    %v3282 = vpack.c.b16 %v3132, %v3129
    %v3283 = vpack.c.b16 %v3136, %v3133
    %v3284 = vpack.c.b16 %v3137, %v3134
    %v3285 = vpack.c.b16 %v3138, %v3135
    %v3286 = vpack.c.b16 %v3142, %v3139
    %v3287 = vpack.c.b16 %v3143, %v3140
    %v3288 = vpack.c.b16 %v3144, %v3141
    %3433 = vmatpush.bf16.msra.mxu0 %v3166
    %3434 = vmatpush.bf16.msra.mxu0 %v3163
    %3435 = vmatpush.bf16.msra.mxu0 %v3160
    %3436 = vmatpush.bf16.msra.mxu0 %v3157
    %3437 = vmatpush.bf16.msra.mxu0 %v3154
    %3438 = vmatpush.bf16.msra.mxu0 %v3151
    %3439 = vmatpush.bf16.msra.mxu0 %v3148
    %3440 = vmatpush.bf16.msra.mxu0 %v3145
    %3441 = vmatmul.bf16.gmra.mxu0 %v2459
    %v3442 = vpop.f32.mrf.mxu0
    %v3443 = vadd.f32 %v2659, %v3442
    %v3444 = vpop.f32.mrf.mxu0
    %3445 = vdwg.mxu0
    %3446 = vmatpush.bf16.msra.mxu0 %v3190
    %3447 = vmatpush.bf16.msra.mxu0 %v3187
    %3448 = vmatpush.bf16.msra.mxu0 %v3184
    %3449 = vmatpush.bf16.msra.mxu0 %v3181
    %3450 = vmatpush.bf16.msra.mxu0 %v3178
    %3451 = vmatpush.bf16.msra.mxu0 %v3175
    %3452 = vmatpush.bf16.msra.mxu0 %v3172
    %3453 = vmatpush.bf16.msra.mxu0 %v3169
    %3454 = vmatmul.bf16.gmra.mxu0 %v2460
    %v3455 = vpop.f32.mrf.mxu0
    %v3456 = vadd.f32 %v3443, %v3455
    %v3457 = vpop.f32.mrf.mxu0
    %3458 = vdwg.mxu0
    %3459 = vmatpush.bf16.msra.mxu0 %v3214
    %3460 = vmatpush.bf16.msra.mxu0 %v3211
    %3461 = vmatpush.bf16.msra.mxu0 %v3208
    %3462 = vmatpush.bf16.msra.mxu0 %v3205
    %3463 = vmatpush.bf16.msra.mxu0 %v3202
    %3464 = vmatpush.bf16.msra.mxu0 %v3199
    %3465 = vmatpush.bf16.msra.mxu0 %v3196
    %3466 = vmatpush.bf16.msra.mxu0 %v3193
    %3467 = vmatmul.bf16.gmra.mxu0 %v2461
    %v3468 = vpop.f32.mrf.mxu0
    %v3469 = vadd.f32 %v3456, %v3468
    %v3470 = vpop.f32.mrf.mxu0
    %3471 = vdwg.mxu0
    %3472 = vmatpush.bf16.msra.mxu0 %v3238
    %3473 = vmatpush.bf16.msra.mxu0 %v3235
    %3474 = vmatpush.bf16.msra.mxu0 %v3232
    %3475 = vmatpush.bf16.msra.mxu0 %v3229
    %3476 = vmatpush.bf16.msra.mxu0 %v3226
    %3477 = vmatpush.bf16.msra.mxu0 %v3223
    %3478 = vmatpush.bf16.msra.mxu0 %v3220
    %3479 = vmatpush.bf16.msra.mxu0 %v3217
    %3480 = vmatmul.bf16.gmra.mxu0 %v2462
    %v3481 = vpop.f32.mrf.mxu0
    %v3482 = vadd.f32 %v3469, %v3481
    %v3483 = vpop.f32.mrf.mxu0
    %3484 = vdwg.mxu0
    %3485 = vmatpush.bf16.msra.mxu0 %v3262
    %3486 = vmatpush.bf16.msra.mxu0 %v3259
    %3487 = vmatpush.bf16.msra.mxu0 %v3256
    %3488 = vmatpush.bf16.msra.mxu0 %v3253
    %3489 = vmatpush.bf16.msra.mxu0 %v3250
    %3490 = vmatpush.bf16.msra.mxu0 %v3247
    %3491 = vmatpush.bf16.msra.mxu0 %v3244
    %3492 = vmatpush.bf16.msra.mxu0 %v3241
    %3493 = vmatmul.bf16.gmra.mxu0 %v2463
    %v3494 = vpop.f32.mrf.mxu0
    %v3495 = vadd.f32 %v3482, %v3494
    %v3496 = vpop.f32.mrf.mxu0
    %3497 = vdwg.mxu0
    %3498 = vmatpush.bf16.msra.mxu0 %v3286
    %3499 = vmatpush.bf16.msra.mxu0 %v3283
    %3500 = vmatpush.bf16.msra.mxu0 %v3280
    %3501 = vmatpush.bf16.msra.mxu0 %v3277
    %3502 = vmatpush.bf16.msra.mxu0 %v3274
    %3503 = vmatpush.bf16.msra.mxu0 %v3271
    %3504 = vmatpush.bf16.msra.mxu0 %v3268
    %3505 = vmatpush.bf16.msra.mxu0 %v3265
    %3506 = vmatmul.bf16.gmra.mxu0 %v2464
    %v3507 = vpop.f32.mrf.mxu0
    %v3508 = vadd.f32 %v3495, %v3507
    %v3509 = vpop.f32.mrf.mxu0
    %3510 = vdwg.mxu0
    %3511 = vmatpush.bf16.msra.mxu0 %v3167
    %3512 = vmatpush.bf16.msra.mxu0 %v3164
    %3513 = vmatpush.bf16.msra.mxu0 %v3161
    %3514 = vmatpush.bf16.msra.mxu0 %v3158
    %3515 = vmatpush.bf16.msra.mxu0 %v3155
    %3516 = vmatpush.bf16.msra.mxu0 %v3152
    %3517 = vmatpush.bf16.msra.mxu0 %v3149
    %3518 = vmatpush.bf16.msra.mxu0 %v3146
    %3519 = vmatmul.bf16.gmra.mxu0 %v2459
    %v3520 = vpop.f32.mrf.mxu0
    %v3521 = vadd.f32 %v2660, %v3520
    %v3522 = vpop.f32.mrf.mxu0
    %3523 = vdwg.mxu0
    %3524 = vmatpush.bf16.msra.mxu0 %v3191
    %3525 = vmatpush.bf16.msra.mxu0 %v3188
    %3526 = vmatpush.bf16.msra.mxu0 %v3185
    %3527 = vmatpush.bf16.msra.mxu0 %v3182
    %3528 = vmatpush.bf16.msra.mxu0 %v3179
    %3529 = vmatpush.bf16.msra.mxu0 %v3176
    %3530 = vmatpush.bf16.msra.mxu0 %v3173
    %3531 = vmatpush.bf16.msra.mxu0 %v3170
    %3532 = vmatmul.bf16.gmra.mxu0 %v2460
    %v3533 = vpop.f32.mrf.mxu0
    %v3534 = vadd.f32 %v3521, %v3533
    %v3535 = vpop.f32.mrf.mxu0
    %3536 = vdwg.mxu0
    %3537 = vmatpush.bf16.msra.mxu0 %v3215
    %3538 = vmatpush.bf16.msra.mxu0 %v3212
    %3539 = vmatpush.bf16.msra.mxu0 %v3209
    %3540 = vmatpush.bf16.msra.mxu0 %v3206
    %3541 = vmatpush.bf16.msra.mxu0 %v3203
    %3542 = vmatpush.bf16.msra.mxu0 %v3200
    %3543 = vmatpush.bf16.msra.mxu0 %v3197
    %3544 = vmatpush.bf16.msra.mxu0 %v3194
    %3545 = vmatmul.bf16.gmra.mxu0 %v2461
    %v3546 = vpop.f32.mrf.mxu0
    %v3547 = vadd.f32 %v3534, %v3546
    %v3548 = vpop.f32.mrf.mxu0
    %3549 = vdwg.mxu0
    %3550 = vmatpush.bf16.msra.mxu0 %v3239
    %3551 = vmatpush.bf16.msra.mxu0 %v3236
    %3552 = vmatpush.bf16.msra.mxu0 %v3233
    %3553 = vmatpush.bf16.msra.mxu0 %v3230
    %3554 = vmatpush.bf16.msra.mxu0 %v3227
    %3555 = vmatpush.bf16.msra.mxu0 %v3224
    %3556 = vmatpush.bf16.msra.mxu0 %v3221
    %3557 = vmatpush.bf16.msra.mxu0 %v3218
    %3558 = vmatmul.bf16.gmra.mxu0 %v2462
    %v3559 = vpop.f32.mrf.mxu0
    %v3560 = vadd.f32 %v3547, %v3559
    %v3561 = vpop.f32.mrf.mxu0
    %3562 = vdwg.mxu0
    %3563 = vmatpush.bf16.msra.mxu0 %v3263
    %3564 = vmatpush.bf16.msra.mxu0 %v3260
    %3565 = vmatpush.bf16.msra.mxu0 %v3257
    %3566 = vmatpush.bf16.msra.mxu0 %v3254
    %3567 = vmatpush.bf16.msra.mxu0 %v3251
    %3568 = vmatpush.bf16.msra.mxu0 %v3248
    %3569 = vmatpush.bf16.msra.mxu0 %v3245
    %3570 = vmatpush.bf16.msra.mxu0 %v3242
    %3571 = vmatmul.bf16.gmra.mxu0 %v2463
    %v3572 = vpop.f32.mrf.mxu0
    %v3573 = vadd.f32 %v3560, %v3572
    %v3574 = vpop.f32.mrf.mxu0
    %3575 = vdwg.mxu0
    %3576 = vmatpush.bf16.msra.mxu0 %v3287
    %3577 = vmatpush.bf16.msra.mxu0 %v3284
    %3578 = vmatpush.bf16.msra.mxu0 %v3281
    %3579 = vmatpush.bf16.msra.mxu0 %v3278
    %3580 = vmatpush.bf16.msra.mxu0 %v3275
    %3581 = vmatpush.bf16.msra.mxu0 %v3272
    %3582 = vmatpush.bf16.msra.mxu0 %v3269
    %3583 = vmatpush.bf16.msra.mxu0 %v3266
    %3584 = vmatmul.bf16.gmra.mxu0 %v2464
    %v3585 = vpop.f32.mrf.mxu0
    %v3586 = vadd.f32 %v3573, %v3585
    %v3587 = vpop.f32.mrf.mxu0
    %3588 = vdwg.mxu0
    %3589 = vmatpush.bf16.msra.mxu0 %v3168
    %3590 = vmatpush.bf16.msra.mxu0 %v3165
    %3591 = vmatpush.bf16.msra.mxu0 %v3162
    %3592 = vmatpush.bf16.msra.mxu0 %v3159
    %3593 = vmatpush.bf16.msra.mxu0 %v3156
    %3594 = vmatpush.bf16.msra.mxu0 %v3153
    %3595 = vmatpush.bf16.msra.mxu0 %v3150
    %3596 = vmatpush.bf16.msra.mxu0 %v3147
    %3597 = vmatmul.bf16.gmra.mxu0 %v2459
    %v3598 = vpop.f32.mrf.mxu0
    %v3599 = vadd.f32 %v2661, %v3598
    %v3600 = vpop.f32.mrf.mxu0
    %3601 = vdwg.mxu0
    %3602 = vmatpush.bf16.msra.mxu0 %v3192
    %3603 = vmatpush.bf16.msra.mxu0 %v3189
    %3604 = vmatpush.bf16.msra.mxu0 %v3186
    %3605 = vmatpush.bf16.msra.mxu0 %v3183
    %3606 = vmatpush.bf16.msra.mxu0 %v3180
    %3607 = vmatpush.bf16.msra.mxu0 %v3177
    %3608 = vmatpush.bf16.msra.mxu0 %v3174
    %3609 = vmatpush.bf16.msra.mxu0 %v3171
    %3610 = vmatmul.bf16.gmra.mxu0 %v2460
    %v3611 = vpop.f32.mrf.mxu0
    %v3612 = vadd.f32 %v3599, %v3611
    %v3613 = vpop.f32.mrf.mxu0
    %3614 = vdwg.mxu0
    %3615 = vmatpush.bf16.msra.mxu0 %v3216
    %3616 = vmatpush.bf16.msra.mxu0 %v3213
    %3617 = vmatpush.bf16.msra.mxu0 %v3210
    %3618 = vmatpush.bf16.msra.mxu0 %v3207
    %3619 = vmatpush.bf16.msra.mxu0 %v3204
    %3620 = vmatpush.bf16.msra.mxu0 %v3201
    %3621 = vmatpush.bf16.msra.mxu0 %v3198
    %3622 = vmatpush.bf16.msra.mxu0 %v3195
    %3623 = vmatmul.bf16.gmra.mxu0 %v2461
    %v3624 = vpop.f32.mrf.mxu0
    %v3625 = vadd.f32 %v3612, %v3624
    %v3626 = vpop.f32.mrf.mxu0
    %3627 = vdwg.mxu0
    %3628 = vmatpush.bf16.msra.mxu0 %v3240
    %3629 = vmatpush.bf16.msra.mxu0 %v3237
    %3630 = vmatpush.bf16.msra.mxu0 %v3234
    %3631 = vmatpush.bf16.msra.mxu0 %v3231
    %3632 = vmatpush.bf16.msra.mxu0 %v3228
    %3633 = vmatpush.bf16.msra.mxu0 %v3225
    %3634 = vmatpush.bf16.msra.mxu0 %v3222
    %3635 = vmatpush.bf16.msra.mxu0 %v3219
    %3636 = vmatmul.bf16.gmra.mxu0 %v2462
    %v3637 = vpop.f32.mrf.mxu0
    %v3638 = vadd.f32 %v3625, %v3637
    %v3639 = vpop.f32.mrf.mxu0
    %3640 = vdwg.mxu0
    %3641 = vmatpush.bf16.msra.mxu0 %v3264
    %3642 = vmatpush.bf16.msra.mxu0 %v3261
    %3643 = vmatpush.bf16.msra.mxu0 %v3258
    %3644 = vmatpush.bf16.msra.mxu0 %v3255
    %3645 = vmatpush.bf16.msra.mxu0 %v3252
    %3646 = vmatpush.bf16.msra.mxu0 %v3249
    %3647 = vmatpush.bf16.msra.mxu0 %v3246
    %3648 = vmatpush.bf16.msra.mxu0 %v3243
    %3649 = vmatmul.bf16.gmra.mxu0 %v2463
    %v3650 = vpop.f32.mrf.mxu0
    %v3651 = vadd.f32 %v3638, %v3650
    %v3652 = vpop.f32.mrf.mxu0
    %3653 = vdwg.mxu0
    %3654 = vmatpush.bf16.msra.mxu0 %v3288
    %3655 = vmatpush.bf16.msra.mxu0 %v3285
    %3656 = vmatpush.bf16.msra.mxu0 %v3282
    %3657 = vmatpush.bf16.msra.mxu0 %v3279
    %3658 = vmatpush.bf16.msra.mxu0 %v3276
    %3659 = vmatpush.bf16.msra.mxu0 %v3273
    %3660 = vmatpush.bf16.msra.mxu0 %v3270
    %3661 = vmatpush.bf16.msra.mxu0 %v3267
    %3662 = vmatmul.bf16.gmra.mxu0 %v2464
    %v3663 = vpop.f32.mrf.mxu0
    %v3664 = vadd.f32 %v3651, %v3663
    %v3665 = vpop.f32.mrf.mxu0
    %3666 = vdwg.mxu0
    %v3667 = vmax.f32 %v3508, 0.0
    %v3668 = vmax.f32 %v3586, 0.0
    %v3669 = vmax.f32 %v3664, 0.0
    %v3670 = vpack.c.bf16 %v3667, %v3667
    %v3671 = vpack.c.bf16 %v3668, %v3668
    %v3672 = vpack.c.bf16 %v3669, %v3669
    %v3673 = vld [vmem:[#allocation9] sm:$0xff]
    %v3674 = vld [vmem:[#allocation9 + $0x8] sm:$0xff]
    %v3675 = vld [vmem:[#allocation9 + $0x10] sm:$0xff]
    %v3676 = vld [vmem:[#allocation9 + $0x18] sm:$0xff]
    %v3677 = vld [vmem:[#allocation9 + $0x20] sm:$0xff]
    %v3678 = vld [vmem:[#allocation9 + $0x28] sm:$0xff]
    %v3679 = vld [vmem:[#allocation9 + $0x30] sm:$0xff]
    %v3680 = vld [vmem:[#allocation9 + $0x38] sm:$0xff]
    %v3681 = vld [vmem:[#allocation9 + $0x40] sm:$0xff]
    %v3682 = vld [vmem:[#allocation9 + $0x48] sm:$0xff]
    %v3683 = vld [vmem:[#allocation9 + $0x50] sm:$0xff]
    %v3684 = vld [vmem:[#allocation9 + $0x58] sm:$0xff]
    %v3685 = vld [vmem:[#allocation9 + $0x60] sm:$0xff]
    %v3686 = vld [vmem:[#allocation9 + $0x68] sm:$0xff]
    %v3687 = vld [vmem:[#allocation9 + $0x70] sm:$0xff]
    %v3688 = vld [vmem:[#allocation9 + $0x78] sm:$0xff]
    %v3689 = vld [vmem:[#allocation9 + $0x80] sm:$0xff]
    %v3690 = vld [vmem:[#allocation9 + $0x88] sm:$0xff]
    %v3691 = vld [vmem:[#allocation9 + $0x90] sm:$0xff]
    %v3692 = vld [vmem:[#allocation9 + $0x98] sm:$0xff]
    %v3693 = vld [vmem:[#allocation9 + $0xa0] sm:$0xff]
    %v3694 = vld [vmem:[#allocation9 + $0xa8] sm:$0xff]
    %v3695 = vld [vmem:[#allocation9 + $0xb0] sm:$0xff]
    %v3696 = vld [vmem:[#allocation9 + $0xb8] sm:$0xff]
    %v3697 = vld [vmem:[#allocation9 + $0xc0] sm:$0xff]
    %v3698 = vld [vmem:[#allocation9 + $0xc8] sm:$0xff]
    %v3699 = vld [vmem:[#allocation9 + $0xd0] sm:$0xff]
    %v3700 = vld [vmem:[#allocation9 + $0xd8] sm:$0xff]
    %v3701 = vld [vmem:[#allocation9 + $0xe0] sm:$0xff]
    %v3702 = vld [vmem:[#allocation9 + $0xe8] sm:$0xff]
    %v3703 = vld [vmem:[#allocation9 + $0xf0] sm:$0xff]
    %v3704 = vld [vmem:[#allocation9 + $0xf8] sm:$0xff]
    %v3705 = vld [vmem:[#allocation9 + $0x100] sm:$0xff]
    %v3706 = vld [vmem:[#allocation9 + $0x108] sm:$0xff]
    %v3707 = vld [vmem:[#allocation9 + $0x110] sm:$0xff]
    %v3708 = vld [vmem:[#allocation9 + $0x118] sm:$0xff]
    %v3709 = vld [vmem:[#allocation9 + $0x120] sm:$0xff]
    %v3710 = vld [vmem:[#allocation9 + $0x128] sm:$0xff]
    %v3711 = vld [vmem:[#allocation9 + $0x130] sm:$0xff]
    %v3712 = vld [vmem:[#allocation9 + $0x138] sm:$0xff]
    %v3713 = vld [vmem:[#allocation9 + $0x140] sm:$0xff]
    %v3714 = vld [vmem:[#allocation9 + $0x148] sm:$0xff]
    %v3715 = vld [vmem:[#allocation9 + $0x150] sm:$0xff]
    %v3716 = vld [vmem:[#allocation9 + $0x158] sm:$0xff]
    %v3717 = vld [vmem:[#allocation9 + $0x160] sm:$0xff]
    %v3718 = vld [vmem:[#allocation9 + $0x168] sm:$0xff]
    %v3719 = vld [vmem:[#allocation9 + $0x170] sm:$0xff]
    %v3720 = vld [vmem:[#allocation9 + $0x178] sm:$0xff]
    %v3721 = vld [vmem:[#allocation10] sm:$0x3]
    %v3723 = vperm.slane %v3721, 0
    %v3724 = vperm.slane %v3721, 1
    %v3775 = vunpack.c.l.b16 %v3673
    %v3776 = vunpack.c.h.b16 %v3673
    %v3777 = vunpack.c.l.b16 %v3674
    %v3778 = vunpack.c.h.b16 %v3674
    %v3779 = vunpack.c.l.b16 %v3675
    %v3780 = vunpack.c.h.b16 %v3675
    %v3781 = vunpack.c.l.b16 %v3676
    %v3782 = vunpack.c.h.b16 %v3676
    %v3783 = vunpack.c.l.b16 %v3677
    %v3784 = vunpack.c.h.b16 %v3677
    %v3785 = vunpack.c.l.b16 %v3678
    %v3786 = vunpack.c.h.b16 %v3678
    %v3787 = vunpack.c.l.b16 %v3679
    %v3788 = vunpack.c.h.b16 %v3679
    %v3789 = vunpack.c.l.b16 %v3680
    %v3790 = vunpack.c.h.b16 %v3680
    %v3791 = vunpack.c.l.b16 %v3681
    %v3792 = vunpack.c.h.b16 %v3681
    %v3793 = vunpack.c.l.b16 %v3682
    %v3794 = vunpack.c.h.b16 %v3682
    %v3795 = vunpack.c.l.b16 %v3683
    %v3796 = vunpack.c.h.b16 %v3683
    %v3797 = vunpack.c.l.b16 %v3684
    %v3798 = vunpack.c.h.b16 %v3684
    %v3799 = vunpack.c.l.b16 %v3685
    %v3800 = vunpack.c.h.b16 %v3685
    %v3801 = vunpack.c.l.b16 %v3686
    %v3802 = vunpack.c.h.b16 %v3686
    %v3803 = vunpack.c.l.b16 %v3687
    %v3804 = vunpack.c.h.b16 %v3687
    %v3805 = vunpack.c.l.b16 %v3688
    %v3806 = vunpack.c.h.b16 %v3688
    %v3807 = vunpack.c.l.b16 %v3689
    %v3808 = vunpack.c.h.b16 %v3689
    %v3809 = vunpack.c.l.b16 %v3690
    %v3810 = vunpack.c.h.b16 %v3690
    %v3811 = vunpack.c.l.b16 %v3691
    %v3812 = vunpack.c.h.b16 %v3691
    %v3813 = vunpack.c.l.b16 %v3692
    %v3814 = vunpack.c.h.b16 %v3692
    %v3815 = vunpack.c.l.b16 %v3693
    %v3816 = vunpack.c.h.b16 %v3693
    %v3817 = vunpack.c.l.b16 %v3694
    %v3818 = vunpack.c.h.b16 %v3694
    %v3819 = vunpack.c.l.b16 %v3695
    %v3820 = vunpack.c.h.b16 %v3695
    %v3821 = vunpack.c.l.b16 %v3696
    %v3822 = vunpack.c.h.b16 %v3696
    %v3823 = vunpack.c.l.b16 %v3697
    %v3824 = vunpack.c.h.b16 %v3697
    %v3825 = vunpack.c.l.b16 %v3698
    %v3826 = vunpack.c.h.b16 %v3698
    %v3827 = vunpack.c.l.b16 %v3699
    %v3828 = vunpack.c.h.b16 %v3699
    %v3829 = vunpack.c.l.b16 %v3700
    %v3830 = vunpack.c.h.b16 %v3700
    %v3831 = vunpack.c.l.b16 %v3701
    %v3832 = vunpack.c.h.b16 %v3701
    %v3833 = vunpack.c.l.b16 %v3702
    %v3834 = vunpack.c.h.b16 %v3702
    %v3835 = vunpack.c.l.b16 %v3703
    %v3836 = vunpack.c.h.b16 %v3703
    %v3837 = vunpack.c.l.b16 %v3704
    %v3838 = vunpack.c.h.b16 %v3704
    %v3839 = vunpack.c.l.b16 %v3705
    %v3840 = vunpack.c.h.b16 %v3705
    %v3841 = vunpack.c.l.b16 %v3706
    %v3842 = vunpack.c.h.b16 %v3706
    %v3843 = vunpack.c.l.b16 %v3707
    %v3844 = vunpack.c.h.b16 %v3707
    %v3845 = vunpack.c.l.b16 %v3708
    %v3846 = vunpack.c.h.b16 %v3708
    %v3847 = vunpack.c.l.b16 %v3709
    %v3848 = vunpack.c.h.b16 %v3709
    %v3849 = vunpack.c.l.b16 %v3710
    %v3850 = vunpack.c.h.b16 %v3710
    %v3851 = vunpack.c.l.b16 %v3711
    %v3852 = vunpack.c.h.b16 %v3711
    %v3853 = vunpack.c.l.b16 %v3712
    %v3854 = vunpack.c.h.b16 %v3712
    %v3855 = vunpack.c.l.b16 %v3713
    %v3856 = vunpack.c.h.b16 %v3713
    %v3857 = vunpack.c.l.b16 %v3714
    %v3858 = vunpack.c.h.b16 %v3714
    %v3859 = vunpack.c.l.b16 %v3715
    %v3860 = vunpack.c.h.b16 %v3715
    %v3861 = vunpack.c.l.b16 %v3716
    %v3862 = vunpack.c.h.b16 %v3716
    %v3863 = vunpack.c.l.b16 %v3717
    %v3864 = vunpack.c.h.b16 %v3717
    %v3865 = vunpack.c.l.b16 %v3718
    %v3866 = vunpack.c.h.b16 %v3718
    %v3867 = vunpack.c.l.b16 %v3719
    %v3868 = vunpack.c.h.b16 %v3719
    %v3869 = vunpack.c.l.b16 %v3720
    %v3870 = vunpack.c.h.b16 %v3720
    %v3871 = vpack.c.b16 %v3777, %v3775
    %v3872 = vpack.c.b16 %v3778, %v3776
    %v3873 = vpack.c.b16 %v3781, %v3779
    %v3874 = vpack.c.b16 %v3782, %v3780
    %v3875 = vpack.c.b16 %v3785, %v3783
    %v3876 = vpack.c.b16 %v3786, %v3784
    %v3877 = vpack.c.b16 %v3789, %v3787
    %v3878 = vpack.c.b16 %v3790, %v3788
    %v3879 = vpack.c.b16 %v3793, %v3791
    %v3880 = vpack.c.b16 %v3794, %v3792
    %v3881 = vpack.c.b16 %v3797, %v3795
    %v3882 = vpack.c.b16 %v3798, %v3796
    %v3883 = vpack.c.b16 %v3801, %v3799
    %v3884 = vpack.c.b16 %v3802, %v3800
    %v3885 = vpack.c.b16 %v3805, %v3803
    %v3886 = vpack.c.b16 %v3806, %v3804
    %v3887 = vpack.c.b16 %v3809, %v3807
    %v3888 = vpack.c.b16 %v3810, %v3808
    %v3889 = vpack.c.b16 %v3813, %v3811
    %v3890 = vpack.c.b16 %v3814, %v3812
    %v3891 = vpack.c.b16 %v3817, %v3815
    %v3892 = vpack.c.b16 %v3818, %v3816
    %v3893 = vpack.c.b16 %v3821, %v3819
    %v3894 = vpack.c.b16 %v3822, %v3820
    %v3895 = vpack.c.b16 %v3825, %v3823
    %v3896 = vpack.c.b16 %v3826, %v3824
    %v3897 = vpack.c.b16 %v3829, %v3827
    %v3898 = vpack.c.b16 %v3830, %v3828
    %v3899 = vpack.c.b16 %v3833, %v3831
    %v3900 = vpack.c.b16 %v3834, %v3832
    %v3901 = vpack.c.b16 %v3837, %v3835
    %v3902 = vpack.c.b16 %v3838, %v3836
    %v3903 = vpack.c.b16 %v3841, %v3839
    %v3904 = vpack.c.b16 %v3842, %v3840
    %v3905 = vpack.c.b16 %v3845, %v3843
    %v3906 = vpack.c.b16 %v3846, %v3844
    %v3907 = vpack.c.b16 %v3849, %v3847
    %v3908 = vpack.c.b16 %v3850, %v3848
    %v3909 = vpack.c.b16 %v3853, %v3851
    %v3910 = vpack.c.b16 %v3854, %v3852
    %v3911 = vpack.c.b16 %v3857, %v3855
    %v3912 = vpack.c.b16 %v3858, %v3856
    %v3913 = vpack.c.b16 %v3861, %v3859
    %v3914 = vpack.c.b16 %v3862, %v3860
    %v3915 = vpack.c.b16 %v3865, %v3863
    %v3916 = vpack.c.b16 %v3866, %v3864
    %v3917 = vpack.c.b16 %v3869, %v3867
    %v3918 = vpack.c.b16 %v3870, %v3868
    %3967 = vmatpush.bf16.msra.mxu0 %v3885
    %3968 = vmatpush.bf16.msra.mxu0 %v3883
    %3969 = vmatpush.bf16.msra.mxu0 %v3881
    %3970 = vmatpush.bf16.msra.mxu0 %v3879
    %3971 = vmatpush.bf16.msra.mxu0 %v3877
    %3972 = vmatpush.bf16.msra.mxu0 %v3875
    %3973 = vmatpush.bf16.msra.mxu0 %v3873
    %3974 = vmatpush.bf16.msra.mxu0 %v3871
    %3975 = vmatmul.bf16.gmra.mxu0 %v3670
    %v3976 = vpop.f32.mrf.mxu0
    %v3977 = vadd.f32 %v3723, %v3976
    %v3978 = vpop.f32.mrf.mxu0
    %3979 = vdwg.mxu0
    %3980 = vmatpush.bf16.msra.mxu0 %v3901
    %3981 = vmatpush.bf16.msra.mxu0 %v3899
    %3982 = vmatpush.bf16.msra.mxu0 %v3897
    %3983 = vmatpush.bf16.msra.mxu0 %v3895
    %3984 = vmatpush.bf16.msra.mxu0 %v3893
    %3985 = vmatpush.bf16.msra.mxu0 %v3891
    %3986 = vmatpush.bf16.msra.mxu0 %v3889
    %3987 = vmatpush.bf16.msra.mxu0 %v3887
    %3988 = vmatmul.bf16.gmra.mxu0 %v3671
    %v3989 = vpop.f32.mrf.mxu0
    %v3990 = vadd.f32 %v3977, %v3989
    %v3991 = vpop.f32.mrf.mxu0
    %3992 = vdwg.mxu0
    %3993 = vmatpush.bf16.msra.mxu0 %v3917
    %3994 = vmatpush.bf16.msra.mxu0 %v3915
    %3995 = vmatpush.bf16.msra.mxu0 %v3913
    %3996 = vmatpush.bf16.msra.mxu0 %v3911
    %3997 = vmatpush.bf16.msra.mxu0 %v3909
    %3998 = vmatpush.bf16.msra.mxu0 %v3907
    %3999 = vmatpush.bf16.msra.mxu0 %v3905
    %4000 = vmatpush.bf16.msra.mxu0 %v3903
    %4001 = vmatmul.bf16.gmra.mxu0 %v3672
    %v4002 = vpop.f32.mrf.mxu0
    %v4003 = vadd.f32 %v3990, %v4002
    %v4004 = vpop.f32.mrf.mxu0
    %4005 = vdwg.mxu0
    %4006 = vmatpush.bf16.msra.mxu0 %v3886
    %4007 = vmatpush.bf16.msra.mxu0 %v3884
    %4008 = vmatpush.bf16.msra.mxu0 %v3882
    %4009 = vmatpush.bf16.msra.mxu0 %v3880
    %4010 = vmatpush.bf16.msra.mxu0 %v3878
    %4011 = vmatpush.bf16.msra.mxu0 %v3876
    %4012 = vmatpush.bf16.msra.mxu0 %v3874
    %4013 = vmatpush.bf16.msra.mxu0 %v3872
    %4014 = vmatmul.bf16.gmra.mxu0 %v3670
    %v4015 = vpop.f32.mrf.mxu0
    %v4016 = vadd.f32 %v3724, %v4015
    %v4017 = vpop.f32.mrf.mxu0
    %4018 = vdwg.mxu0
    %4019 = vmatpush.bf16.msra.mxu0 %v3902
    %4020 = vmatpush.bf16.msra.mxu0 %v3900
    %4021 = vmatpush.bf16.msra.mxu0 %v3898
    %4022 = vmatpush.bf16.msra.mxu0 %v3896
    %4023 = vmatpush.bf16.msra.mxu0 %v3894
    %4024 = vmatpush.bf16.msra.mxu0 %v3892
    %4025 = vmatpush.bf16.msra.mxu0 %v3890
    %4026 = vmatpush.bf16.msra.mxu0 %v3888
    %4027 = vmatmul.bf16.gmra.mxu0 %v3671
    %v4028 = vpop.f32.mrf.mxu0
    %v4029 = vadd.f32 %v4016, %v4028
    %v4030 = vpop.f32.mrf.mxu0
    %4031 = vdwg.mxu0
    %4032 = vmatpush.bf16.msra.mxu0 %v3918
    %4033 = vmatpush.bf16.msra.mxu0 %v3916
    %4034 = vmatpush.bf16.msra.mxu0 %v3914
    %4035 = vmatpush.bf16.msra.mxu0 %v3912
    %4036 = vmatpush.bf16.msra.mxu0 %v3910
    %4037 = vmatpush.bf16.msra.mxu0 %v3908
    %4038 = vmatpush.bf16.msra.mxu0 %v3906
    %4039 = vmatpush.bf16.msra.mxu0 %v3904
    %4040 = vmatmul.bf16.gmra.mxu0 %v3672
    %v4041 = vpop.f32.mrf.mxu0
    %v4042 = vadd.f32 %v4029, %v4041
    %v4043 = vpop.f32.mrf.mxu0
    %4044 = vdwg.mxu0
    %v4045 = vmax.f32 %v4003, 0.0
    %v4046 = vmax.f32 %v4042, 0.0
    %v4047 = vpack.c.bf16 %v4045, %v4045
    %v4048 = vpack.c.bf16 %v4046, %v4046
    %v4049 = vld [vmem:[#allocation12] sm:$0xff]
    %v4050 = vld [vmem:[#allocation12 + $0x8] sm:$0xf]
    %v4051 = vld [vmem:[#allocation12 + $0xc] sm:$0xff]
    %v4052 = vld [vmem:[#allocation12 + $0x14] sm:$0xf]
    %v4053 = vld [vmem:[#allocation12 + $0x18] sm:$0xff]
    %v4054 = vld [vmem:[#allocation12 + $0x20] sm:$0xf]
    %v4055 = vld [vmem:[#allocation12 + $0x24] sm:$0xff]
    %v4056 = vld [vmem:[#allocation12 + $0x2c] sm:$0xf]
    %v4057 = vld [vmem:[#allocation12 + $0x30] sm:$0xff]
    %v4058 = vld [vmem:[#allocation12 + $0x38] sm:$0xf]
    %v4059 = vld [vmem:[#allocation12 + $0x3c] sm:$0xff]
    %v4060 = vld [vmem:[#allocation12 + $0x44] sm:$0xf]
    %v4061 = vld [vmem:[#allocation12 + $0x48] sm:$0xff]
    %v4062 = vld [vmem:[#allocation12 + $0x50] sm:$0xf]
    %v4063 = vld [vmem:[#allocation12 + $0x54] sm:$0xff]
    %v4064 = vld [vmem:[#allocation12 + $0x5c] sm:$0xf]
    %v4065 = vld [vmem:[#allocation12 + $0x60] sm:$0xff]
    %v4066 = vld [vmem:[#allocation12 + $0x68] sm:$0xf]
    %v4067 = vld [vmem:[#allocation12 + $0x6c] sm:$0xff]
    %v4068 = vld [vmem:[#allocation12 + $0x74] sm:$0xf]
    %v4069 = vld [vmem:[#allocation12 + $0x78] sm:$0xff]
    %v4070 = vld [vmem:[#allocation12 + $0x80] sm:$0xf]
    %v4071 = vld [vmem:[#allocation12 + $0x84] sm:$0xff]
    %v4072 = vld [vmem:[#allocation12 + $0x8c] sm:$0xf]
    %v4073 = vld [vmem:[#allocation12 + $0x90] sm:$0xff]
    %v4074 = vld [vmem:[#allocation12 + $0x98] sm:$0xf]
    %v4075 = vld [vmem:[#allocation12 + $0x9c] sm:$0xff]
    %v4076 = vld [vmem:[#allocation12 + $0xa4] sm:$0xf]
    %v4077 = vld [vmem:[#allocation12 + $0xa8] sm:$0xff]
    %v4078 = vld [vmem:[#allocation12 + $0xb0] sm:$0xf]
    %v4079 = vld [vmem:[#allocation12 + $0xb4] sm:$0xff]
    %v4080 = vld [vmem:[#allocation12 + $0xbc] sm:$0xf]
    %v4081 = vld [vmem:[#allocation12 + $0xc0] sm:$0xff]
    %v4082 = vld [vmem:[#allocation12 + $0xc8] sm:$0xf]
    %v4083 = vld [vmem:[#allocation12 + $0xcc] sm:$0xff]
    %v4084 = vld [vmem:[#allocation12 + $0xd4] sm:$0xf]
    %v4085 = vld [vmem:[#allocation12 + $0xd8] sm:$0xff]
    %v4086 = vld [vmem:[#allocation12 + $0xe0] sm:$0xf]
    %v4087 = vld [vmem:[#allocation12 + $0xe4] sm:$0xff]
    %v4088 = vld [vmem:[#allocation12 + $0xec] sm:$0xf]
    %v4089 = vld [vmem:[#allocation12 + $0xf0] sm:$0xff]
    %v4090 = vld [vmem:[#allocation12 + $0xf8] sm:$0xf]
    %v4091 = vld [vmem:[#allocation12 + $0xfc] sm:$0xff]
    %v4092 = vld [vmem:[#allocation12 + $0x104] sm:$0xf]
    %v4093 = vld [vmem:[#allocation12 + $0x108] sm:$0xff]
    %v4094 = vld [vmem:[#allocation12 + $0x110] sm:$0xf]
    %v4095 = vld [vmem:[#allocation12 + $0x114] sm:$0xff]
    %v4096 = vld [vmem:[#allocation12 + $0x11c] sm:$0xf]
    %v4097 = vld [vmem:[#allocation12 + $0x120] sm:$0xff]
    %v4098 = vld [vmem:[#allocation12 + $0x128] sm:$0xf]
    %v4099 = vld [vmem:[#allocation12 + $0x12c] sm:$0xff]
    %v4100 = vld [vmem:[#allocation12 + $0x134] sm:$0xf]
    %v4101 = vld [vmem:[#allocation12 + $0x138] sm:$0xff]
    %v4102 = vld [vmem:[#allocation12 + $0x140] sm:$0xf]
    %v4103 = vld [vmem:[#allocation12 + $0x144] sm:$0xff]
    %v4104 = vld [vmem:[#allocation12 + $0x14c] sm:$0xf]
    %v4105 = vld [vmem:[#allocation12 + $0x150] sm:$0xff]
    %v4106 = vld [vmem:[#allocation12 + $0x158] sm:$0xf]
    %v4107 = vld [vmem:[#allocation12 + $0x15c] sm:$0xff]
    %v4108 = vld [vmem:[#allocation12 + $0x164] sm:$0xf]
    %v4109 = vld [vmem:[#allocation12 + $0x168] sm:$0xff]
    %v4110 = vld [vmem:[#allocation12 + $0x170] sm:$0xf]
    %v4111 = vld [vmem:[#allocation12 + $0x174] sm:$0xff]
    %v4112 = vld [vmem:[#allocation12 + $0x17c] sm:$0xf]
    %v4113 = vld [vmem:[#allocation13] sm:$0x7]
    %v4115 = vperm.slane %v4113, 0
    %v4116 = vperm.slane %v4113, 1
    %v4117 = vperm.slane %v4113, 2
    %v4185 = vunpack.c.l.b16 %v4049
    %v4186 = vunpack.c.h.b16 %v4049
    %v4187 = vunpack.c.l.b16 %v4050
    %v4188 = vunpack.c.l.b16 %v4051
    %v4189 = vunpack.c.h.b16 %v4051
    %v4190 = vunpack.c.l.b16 %v4052
    %v4191 = vunpack.c.l.b16 %v4053
    %v4192 = vunpack.c.h.b16 %v4053
    %v4193 = vunpack.c.l.b16 %v4054
    %v4194 = vunpack.c.l.b16 %v4055
    %v4195 = vunpack.c.h.b16 %v4055
    %v4196 = vunpack.c.l.b16 %v4056
    %v4197 = vunpack.c.l.b16 %v4057
    %v4198 = vunpack.c.h.b16 %v4057
    %v4199 = vunpack.c.l.b16 %v4058
    %v4200 = vunpack.c.l.b16 %v4059
    %v4201 = vunpack.c.h.b16 %v4059
    %v4202 = vunpack.c.l.b16 %v4060
    %v4203 = vunpack.c.l.b16 %v4061
    %v4204 = vunpack.c.h.b16 %v4061
    %v4205 = vunpack.c.l.b16 %v4062
    %v4206 = vunpack.c.l.b16 %v4063
    %v4207 = vunpack.c.h.b16 %v4063
    %v4208 = vunpack.c.l.b16 %v4064
    %v4209 = vunpack.c.l.b16 %v4065
    %v4210 = vunpack.c.h.b16 %v4065
    %v4211 = vunpack.c.l.b16 %v4066
    %v4212 = vunpack.c.l.b16 %v4067
    %v4213 = vunpack.c.h.b16 %v4067
    %v4214 = vunpack.c.l.b16 %v4068
    %v4215 = vunpack.c.l.b16 %v4069
    %v4216 = vunpack.c.h.b16 %v4069
    %v4217 = vunpack.c.l.b16 %v4070
    %v4218 = vunpack.c.l.b16 %v4071
    %v4219 = vunpack.c.h.b16 %v4071
    %v4220 = vunpack.c.l.b16 %v4072
    %v4221 = vunpack.c.l.b16 %v4073
    %v4222 = vunpack.c.h.b16 %v4073
    %v4223 = vunpack.c.l.b16 %v4074
    %v4224 = vunpack.c.l.b16 %v4075
    %v4225 = vunpack.c.h.b16 %v4075
    %v4226 = vunpack.c.l.b16 %v4076
    %v4227 = vunpack.c.l.b16 %v4077
    %v4228 = vunpack.c.h.b16 %v4077
    %v4229 = vunpack.c.l.b16 %v4078
    %v4230 = vunpack.c.l.b16 %v4079
    %v4231 = vunpack.c.h.b16 %v4079
    %v4232 = vunpack.c.l.b16 %v4080
    %v4233 = vunpack.c.l.b16 %v4081
    %v4234 = vunpack.c.h.b16 %v4081
    %v4235 = vunpack.c.l.b16 %v4082
    %v4236 = vunpack.c.l.b16 %v4083
    %v4237 = vunpack.c.h.b16 %v4083
    %v4238 = vunpack.c.l.b16 %v4084
    %v4239 = vunpack.c.l.b16 %v4085
    %v4240 = vunpack.c.h.b16 %v4085
    %v4241 = vunpack.c.l.b16 %v4086
    %v4242 = vunpack.c.l.b16 %v4087
    %v4243 = vunpack.c.h.b16 %v4087
    %v4244 = vunpack.c.l.b16 %v4088
    %v4245 = vunpack.c.l.b16 %v4089
    %v4246 = vunpack.c.h.b16 %v4089
    %v4247 = vunpack.c.l.b16 %v4090
    %v4248 = vunpack.c.l.b16 %v4091
    %v4249 = vunpack.c.h.b16 %v4091
    %v4250 = vunpack.c.l.b16 %v4092
    %v4251 = vunpack.c.l.b16 %v4093
    %v4252 = vunpack.c.h.b16 %v4093
    %v4253 = vunpack.c.l.b16 %v4094
    %v4254 = vunpack.c.l.b16 %v4095
    %v4255 = vunpack.c.h.b16 %v4095
    %v4256 = vunpack.c.l.b16 %v4096
    %v4257 = vunpack.c.l.b16 %v4097
    %v4258 = vunpack.c.h.b16 %v4097
    %v4259 = vunpack.c.l.b16 %v4098
    %v4260 = vunpack.c.l.b16 %v4099
    %v4261 = vunpack.c.h.b16 %v4099
    %v4262 = vunpack.c.l.b16 %v4100
    %v4263 = vunpack.c.l.b16 %v4101
    %v4264 = vunpack.c.h.b16 %v4101
    %v4265 = vunpack.c.l.b16 %v4102
    %v4266 = vunpack.c.l.b16 %v4103
    %v4267 = vunpack.c.h.b16 %v4103
    %v4268 = vunpack.c.l.b16 %v4104
    %v4269 = vunpack.c.l.b16 %v4105
    %v4270 = vunpack.c.h.b16 %v4105
    %v4271 = vunpack.c.l.b16 %v4106
    %v4272 = vunpack.c.l.b16 %v4107
    %v4273 = vunpack.c.h.b16 %v4107
    %v4274 = vunpack.c.l.b16 %v4108
    %v4275 = vunpack.c.l.b16 %v4109
    %v4276 = vunpack.c.h.b16 %v4109
    %v4277 = vunpack.c.l.b16 %v4110
    %v4278 = vunpack.c.l.b16 %v4111
    %v4279 = vunpack.c.h.b16 %v4111
    %v4280 = vunpack.c.l.b16 %v4112
    %v4281 = vpack.c.b16 %v4188, %v4185
    %v4282 = vpack.c.b16 %v4189, %v4186
    %v4283 = vpack.c.b16 %v4190, %v4187
    %v4284 = vpack.c.b16 %v4194, %v4191
    %v4285 = vpack.c.b16 %v4195, %v4192
    %v4286 = vpack.c.b16 %v4196, %v4193
    %v4287 = vpack.c.b16 %v4200, %v4197
    %v4288 = vpack.c.b16 %v4201, %v4198
    %v4289 = vpack.c.b16 %v4202, %v4199
    %v4290 = vpack.c.b16 %v4206, %v4203
    %v4291 = vpack.c.b16 %v4207, %v4204
    %v4292 = vpack.c.b16 %v4208, %v4205
    %v4293 = vpack.c.b16 %v4212, %v4209
    %v4294 = vpack.c.b16 %v4213, %v4210
    %v4295 = vpack.c.b16 %v4214, %v4211
    %v4296 = vpack.c.b16 %v4218, %v4215
    %v4297 = vpack.c.b16 %v4219, %v4216
    %v4298 = vpack.c.b16 %v4220, %v4217
    %v4299 = vpack.c.b16 %v4224, %v4221
    %v4300 = vpack.c.b16 %v4225, %v4222
    %v4301 = vpack.c.b16 %v4226, %v4223
    %v4302 = vpack.c.b16 %v4230, %v4227
    %v4303 = vpack.c.b16 %v4231, %v4228
    %v4304 = vpack.c.b16 %v4232, %v4229
    %v4305 = vpack.c.b16 %v4236, %v4233
    %v4306 = vpack.c.b16 %v4237, %v4234
    %v4307 = vpack.c.b16 %v4238, %v4235
    %v4308 = vpack.c.b16 %v4242, %v4239
    %v4309 = vpack.c.b16 %v4243, %v4240
    %v4310 = vpack.c.b16 %v4244, %v4241
    %v4311 = vpack.c.b16 %v4248, %v4245
    %v4312 = vpack.c.b16 %v4249, %v4246
    %v4313 = vpack.c.b16 %v4250, %v4247
    %v4314 = vpack.c.b16 %v4254, %v4251
    %v4315 = vpack.c.b16 %v4255, %v4252
    %v4316 = vpack.c.b16 %v4256, %v4253
    %v4317 = vpack.c.b16 %v4260, %v4257
    %v4318 = vpack.c.b16 %v4261, %v4258
    %v4319 = vpack.c.b16 %v4262, %v4259
    %v4320 = vpack.c.b16 %v4266, %v4263
    %v4321 = vpack.c.b16 %v4267, %v4264
    %v4322 = vpack.c.b16 %v4268, %v4265
    %v4323 = vpack.c.b16 %v4272, %v4269
    %v4324 = vpack.c.b16 %v4273, %v4270
    %v4325 = vpack.c.b16 %v4274, %v4271
    %v4326 = vpack.c.b16 %v4278, %v4275
    %v4327 = vpack.c.b16 %v4279, %v4276
    %v4328 = vpack.c.b16 %v4280, %v4277
    %4377 = vmatpush.bf16.msra.mxu0 %v4302
    %4378 = vmatpush.bf16.msra.mxu0 %v4299
    %4379 = vmatpush.bf16.msra.mxu0 %v4296
    %4380 = vmatpush.bf16.msra.mxu0 %v4293
    %4381 = vmatpush.bf16.msra.mxu0 %v4290
    %4382 = vmatpush.bf16.msra.mxu0 %v4287
    %4383 = vmatpush.bf16.msra.mxu0 %v4284
    %4384 = vmatpush.bf16.msra.mxu0 %v4281
    %4385 = vmatmul.bf16.gmra.mxu0 %v4047
    %v4386 = vpop.f32.mrf.mxu0
    %v4387 = vadd.f32 %v4115, %v4386
    %v4388 = vpop.f32.mrf.mxu0
    %4389 = vdwg.mxu0
    %4390 = vmatpush.bf16.msra.mxu0 %v4326
    %4391 = vmatpush.bf16.msra.mxu0 %v4323
    %4392 = vmatpush.bf16.msra.mxu0 %v4320
    %4393 = vmatpush.bf16.msra.mxu0 %v4317
    %4394 = vmatpush.bf16.msra.mxu0 %v4314
    %4395 = vmatpush.bf16.msra.mxu0 %v4311
    %4396 = vmatpush.bf16.msra.mxu0 %v4308
    %4397 = vmatpush.bf16.msra.mxu0 %v4305
    %4398 = vmatmul.bf16.gmra.mxu0 %v4048
    %v4399 = vpop.f32.mrf.mxu0
    %v4400 = vadd.f32 %v4387, %v4399
    %v4401 = vpop.f32.mrf.mxu0
    %4402 = vdwg.mxu0
    %4403 = vmatpush.bf16.msra.mxu0 %v4303
    %4404 = vmatpush.bf16.msra.mxu0 %v4300
    %4405 = vmatpush.bf16.msra.mxu0 %v4297
    %4406 = vmatpush.bf16.msra.mxu0 %v4294
    %4407 = vmatpush.bf16.msra.mxu0 %v4291
    %4408 = vmatpush.bf16.msra.mxu0 %v4288
    %4409 = vmatpush.bf16.msra.mxu0 %v4285
    %4410 = vmatpush.bf16.msra.mxu0 %v4282
    %4411 = vmatmul.bf16.gmra.mxu0 %v4047
    %v4412 = vpop.f32.mrf.mxu0
    %v4413 = vadd.f32 %v4116, %v4412
    %v4414 = vpop.f32.mrf.mxu0
    %4415 = vdwg.mxu0
    %4416 = vmatpush.bf16.msra.mxu0 %v4327
    %4417 = vmatpush.bf16.msra.mxu0 %v4324
    %4418 = vmatpush.bf16.msra.mxu0 %v4321
    %4419 = vmatpush.bf16.msra.mxu0 %v4318
    %4420 = vmatpush.bf16.msra.mxu0 %v4315
    %4421 = vmatpush.bf16.msra.mxu0 %v4312
    %4422 = vmatpush.bf16.msra.mxu0 %v4309
    %4423 = vmatpush.bf16.msra.mxu0 %v4306
    %4424 = vmatmul.bf16.gmra.mxu0 %v4048
    %v4425 = vpop.f32.mrf.mxu0
    %v4426 = vadd.f32 %v4413, %v4425
    %v4427 = vpop.f32.mrf.mxu0
    %4428 = vdwg.mxu0
    %4429 = vmatpush.bf16.msra.mxu0 %v4304
    %4430 = vmatpush.bf16.msra.mxu0 %v4301
    %4431 = vmatpush.bf16.msra.mxu0 %v4298
    %4432 = vmatpush.bf16.msra.mxu0 %v4295
    %4433 = vmatpush.bf16.msra.mxu0 %v4292
    %4434 = vmatpush.bf16.msra.mxu0 %v4289
    %4435 = vmatpush.bf16.msra.mxu0 %v4286
    %4436 = vmatpush.bf16.msra.mxu0 %v4283
    %4437 = vmatmul.bf16.gmra.mxu0 %v4047
    %v4438 = vpop.f32.mrf.mxu0
    %v4439 = vadd.f32 %v4117, %v4438
    %v4440 = vpop.f32.mrf.mxu0
    %4441 = vdwg.mxu0
    %4442 = vmatpush.bf16.msra.mxu0 %v4328
    %4443 = vmatpush.bf16.msra.mxu0 %v4325
    %4444 = vmatpush.bf16.msra.mxu0 %v4322
    %4445 = vmatpush.bf16.msra.mxu0 %v4319
    %4446 = vmatpush.bf16.msra.mxu0 %v4316
    %4447 = vmatpush.bf16.msra.mxu0 %v4313
    %4448 = vmatpush.bf16.msra.mxu0 %v4310
    %4449 = vmatpush.bf16.msra.mxu0 %v4307
    %4450 = vmatmul.bf16.gmra.mxu0 %v4048
    %v4451 = vpop.f32.mrf.mxu0
    %v4452 = vadd.f32 %v4439, %v4451
    %v4453 = vpop.f32.mrf.mxu0
    %4454 = vdwg.mxu0
    %v4455 = vmax.f32 %v4400, 0.0
    %v4456 = vmax.f32 %v4426, 0.0
    %v4457 = vmax.f32 %v4452, 0.0
    %v4458 = vpack.c.bf16 %v4455, %v4455
    %v4459 = vpack.c.bf16 %v4456, %v4456
    %v4460 = vpack.c.bf16 %v4457, %v4457
    %v4461 = vld [vmem:[#allocation15] sm:$0xff]
    %v4462 = vld [vmem:[#allocation15 + $0x8] sm:$0xff]
    %v4463 = vld [vmem:[#allocation15 + $0x10] sm:$0xff]
    %v4464 = vld [vmem:[#allocation15 + $0x18] sm:$0xff]
    %v4465 = vld [vmem:[#allocation15 + $0x20] sm:$0xff]
    %v4466 = vld [vmem:[#allocation15 + $0x28] sm:$0xff]
    %v4467 = vld [vmem:[#allocation15 + $0x30] sm:$0xff]
    %v4468 = vld [vmem:[#allocation15 + $0x38] sm:$0xff]
    %v4469 = vld [vmem:[#allocation15 + $0x40] sm:$0xff]
    %v4470 = vld [vmem:[#allocation15 + $0x48] sm:$0xff]
    %v4471 = vld [vmem:[#allocation15 + $0x50] sm:$0xff]
    %v4472 = vld [vmem:[#allocation15 + $0x58] sm:$0xff]
    %v4473 = vld [vmem:[#allocation15 + $0x60] sm:$0xff]
    %v4474 = vld [vmem:[#allocation15 + $0x68] sm:$0xff]
    %v4475 = vld [vmem:[#allocation15 + $0x70] sm:$0xff]
    %v4476 = vld [vmem:[#allocation15 + $0x78] sm:$0xff]
    %v4477 = vld [vmem:[#allocation15 + $0x80] sm:$0xff]
    %v4478 = vld [vmem:[#allocation15 + $0x88] sm:$0xff]
    %v4479 = vld [vmem:[#allocation15 + $0x90] sm:$0xff]
    %v4480 = vld [vmem:[#allocation15 + $0x98] sm:$0xff]
    %v4481 = vld [vmem:[#allocation15 + $0xa0] sm:$0xff]
    %v4482 = vld [vmem:[#allocation15 + $0xa8] sm:$0xff]
    %v4483 = vld [vmem:[#allocation15 + $0xb0] sm:$0xff]
    %v4484 = vld [vmem:[#allocation15 + $0xb8] sm:$0xff]
    %v4485 = vld [vmem:[#allocation15 + $0xc0] sm:$0xff]
    %v4486 = vld [vmem:[#allocation15 + $0xc8] sm:$0xff]
    %v4487 = vld [vmem:[#allocation15 + $0xd0] sm:$0xff]
    %v4488 = vld [vmem:[#allocation15 + $0xd8] sm:$0xff]
    %v4489 = vld [vmem:[#allocation15 + $0xe0] sm:$0xff]
    %v4490 = vld [vmem:[#allocation15 + $0xe8] sm:$0xff]
    %v4491 = vld [vmem:[#allocation15 + $0xf0] sm:$0xff]
    %v4492 = vld [vmem:[#allocation15 + $0xf8] sm:$0xff]
    %v4493 = vld [vmem:[#allocation15 + $0x100] sm:$0xff]
    %v4494 = vld [vmem:[#allocation15 + $0x108] sm:$0xff]
    %v4495 = vld [vmem:[#allocation15 + $0x110] sm:$0xff]
    %v4496 = vld [vmem:[#allocation15 + $0x118] sm:$0xff]
    %v4497 = vld [vmem:[#allocation15 + $0x120] sm:$0xff]
    %v4498 = vld [vmem:[#allocation15 + $0x128] sm:$0xff]
    %v4499 = vld [vmem:[#allocation15 + $0x130] sm:$0xff]
    %v4500 = vld [vmem:[#allocation15 + $0x138] sm:$0xff]
    %v4501 = vld [vmem:[#allocation15 + $0x140] sm:$0xff]
    %v4502 = vld [vmem:[#allocation15 + $0x148] sm:$0xff]
    %v4503 = vld [vmem:[#allocation15 + $0x150] sm:$0xff]
    %v4504 = vld [vmem:[#allocation15 + $0x158] sm:$0xff]
    %v4505 = vld [vmem:[#allocation15 + $0x160] sm:$0xff]
    %v4506 = vld [vmem:[#allocation15 + $0x168] sm:$0xff]
    %v4507 = vld [vmem:[#allocation15 + $0x170] sm:$0xff]
    %v4508 = vld [vmem:[#allocation15 + $0x178] sm:$0xff]
    %v4509 = vld [vmem:[#allocation15 + $0x180] sm:$0xff]
    %v4510 = vld [vmem:[#allocation15 + $0x188] sm:$0xff]
    %v4511 = vld [vmem:[#allocation15 + $0x190] sm:$0xff]
    %v4512 = vld [vmem:[#allocation15 + $0x198] sm:$0xff]
    %v4513 = vld [vmem:[#allocation15 + $0x1a0] sm:$0xff]
    %v4514 = vld [vmem:[#allocation15 + $0x1a8] sm:$0xff]
    %v4515 = vld [vmem:[#allocation15 + $0x1b0] sm:$0xff]
    %v4516 = vld [vmem:[#allocation15 + $0x1b8] sm:$0xff]
    %v4517 = vld [vmem:[#allocation15 + $0x1c0] sm:$0xff]
    %v4518 = vld [vmem:[#allocation15 + $0x1c8] sm:$0xff]
    %v4519 = vld [vmem:[#allocation15 + $0x1d0] sm:$0xff]
    %v4520 = vld [vmem:[#allocation15 + $0x1d8] sm:$0xff]
    %v4521 = vld [vmem:[#allocation15 + $0x1e0] sm:$0xff]
    %v4522 = vld [vmem:[#allocation15 + $0x1e8] sm:$0xff]
    %v4523 = vld [vmem:[#allocation15 + $0x1f0] sm:$0xff]
    %v4524 = vld [vmem:[#allocation15 + $0x1f8] sm:$0xff]
    %v4525 = vld [vmem:[#allocation15 + $0x200] sm:$0xff]
    %v4526 = vld [vmem:[#allocation15 + $0x208] sm:$0xff]
    %v4527 = vld [vmem:[#allocation15 + $0x210] sm:$0xff]
    %v4528 = vld [vmem:[#allocation15 + $0x218] sm:$0xff]
    %v4529 = vld [vmem:[#allocation15 + $0x220] sm:$0xff]
    %v4530 = vld [vmem:[#allocation15 + $0x228] sm:$0xff]
    %v4531 = vld [vmem:[#allocation15 + $0x230] sm:$0xff]
    %v4532 = vld [vmem:[#allocation15 + $0x238] sm:$0xff]
    %v4533 = vld [vmem:[#allocation15 + $0x240] sm:$0xff]
    %v4534 = vld [vmem:[#allocation15 + $0x248] sm:$0xff]
    %v4535 = vld [vmem:[#allocation15 + $0x250] sm:$0xff]
    %v4536 = vld [vmem:[#allocation15 + $0x258] sm:$0xff]
    %v4537 = vld [vmem:[#allocation15 + $0x260] sm:$0xff]
    %v4538 = vld [vmem:[#allocation15 + $0x268] sm:$0xff]
    %v4539 = vld [vmem:[#allocation15 + $0x270] sm:$0xff]
    %v4540 = vld [vmem:[#allocation15 + $0x278] sm:$0xff]
    %v4541 = vld [vmem:[#allocation15 + $0x280] sm:$0xff]
    %v4542 = vld [vmem:[#allocation15 + $0x288] sm:$0xff]
    %v4543 = vld [vmem:[#allocation15 + $0x290] sm:$0xff]
    %v4544 = vld [vmem:[#allocation15 + $0x298] sm:$0xff]
    %v4545 = vld [vmem:[#allocation15 + $0x2a0] sm:$0xff]
    %v4546 = vld [vmem:[#allocation15 + $0x2a8] sm:$0xff]
    %v4547 = vld [vmem:[#allocation15 + $0x2b0] sm:$0xff]
    %v4548 = vld [vmem:[#allocation15 + $0x2b8] sm:$0xff]
    %v4549 = vld [vmem:[#allocation15 + $0x2c0] sm:$0xff]
    %v4550 = vld [vmem:[#allocation15 + $0x2c8] sm:$0xff]
    %v4551 = vld [vmem:[#allocation15 + $0x2d0] sm:$0xff]
    %v4552 = vld [vmem:[#allocation15 + $0x2d8] sm:$0xff]
    %v4553 = vld [vmem:[#allocation15 + $0x2e0] sm:$0xff]
    %v4554 = vld [vmem:[#allocation15 + $0x2e8] sm:$0xff]
    %v4555 = vld [vmem:[#allocation15 + $0x2f0] sm:$0xff]
    %v4556 = vld [vmem:[#allocation15 + $0x2f8] sm:$0xff]
    %v4557 = vld [vmem:[#allocation15 + $0x300] sm:$0xff]
    %v4558 = vld [vmem:[#allocation15 + $0x308] sm:$0xff]
    %v4559 = vld [vmem:[#allocation15 + $0x310] sm:$0xff]
    %v4560 = vld [vmem:[#allocation15 + $0x318] sm:$0xff]
    %v4561 = vld [vmem:[#allocation15 + $0x320] sm:$0xff]
    %v4562 = vld [vmem:[#allocation15 + $0x328] sm:$0xff]
    %v4563 = vld [vmem:[#allocation15 + $0x330] sm:$0xff]
    %v4564 = vld [vmem:[#allocation15 + $0x338] sm:$0xff]
    %v4565 = vld [vmem:[#allocation15 + $0x340] sm:$0xff]
    %v4566 = vld [vmem:[#allocation15 + $0x348] sm:$0xff]
    %v4567 = vld [vmem:[#allocation15 + $0x350] sm:$0xff]
    %v4568 = vld [vmem:[#allocation15 + $0x358] sm:$0xff]
    %v4569 = vld [vmem:[#allocation15 + $0x360] sm:$0xff]
    %v4570 = vld [vmem:[#allocation15 + $0x368] sm:$0xff]
    %v4571 = vld [vmem:[#allocation15 + $0x370] sm:$0xff]
    %v4572 = vld [vmem:[#allocation15 + $0x378] sm:$0xff]
    %v4573 = vld [vmem:[#allocation15 + $0x380] sm:$0xff]
    %v4574 = vld [vmem:[#allocation15 + $0x388] sm:$0xff]
    %v4575 = vld [vmem:[#allocation15 + $0x390] sm:$0xff]
    %v4576 = vld [vmem:[#allocation15 + $0x398] sm:$0xff]
    %v4577 = vld [vmem:[#allocation15 + $0x3a0] sm:$0xff]
    %v4578 = vld [vmem:[#allocation15 + $0x3a8] sm:$0xff]
    %v4579 = vld [vmem:[#allocation15 + $0x3b0] sm:$0xff]
    %v4580 = vld [vmem:[#allocation15 + $0x3b8] sm:$0xff]
    %v4581 = vld [vmem:[#allocation15 + $0x3c0] sm:$0xff]
    %v4582 = vld [vmem:[#allocation15 + $0x3c8] sm:$0xff]
    %v4583 = vld [vmem:[#allocation15 + $0x3d0] sm:$0xff]
    %v4584 = vld [vmem:[#allocation15 + $0x3d8] sm:$0xff]
    %v4585 = vld [vmem:[#allocation15 + $0x3e0] sm:$0xff]
    %v4586 = vld [vmem:[#allocation15 + $0x3e8] sm:$0xff]
    %v4587 = vld [vmem:[#allocation15 + $0x3f0] sm:$0xff]
    %v4588 = vld [vmem:[#allocation15 + $0x3f8] sm:$0xff]
    %v4589 = vld [vmem:[#allocation15 + $0x400] sm:$0xff]
    %v4590 = vld [vmem:[#allocation15 + $0x408] sm:$0xff]
    %v4591 = vld [vmem:[#allocation15 + $0x410] sm:$0xff]
    %v4592 = vld [vmem:[#allocation15 + $0x418] sm:$0xff]
    %v4593 = vld [vmem:[#allocation15 + $0x420] sm:$0xff]
    %v4594 = vld [vmem:[#allocation15 + $0x428] sm:$0xff]
    %v4595 = vld [vmem:[#allocation15 + $0x430] sm:$0xff]
    %v4596 = vld [vmem:[#allocation15 + $0x438] sm:$0xff]
    %v4597 = vld [vmem:[#allocation15 + $0x440] sm:$0xff]
    %v4598 = vld [vmem:[#allocation15 + $0x448] sm:$0xff]
    %v4599 = vld [vmem:[#allocation15 + $0x450] sm:$0xff]
    %v4600 = vld [vmem:[#allocation15 + $0x458] sm:$0xff]
    %v4601 = vld [vmem:[#allocation15 + $0x460] sm:$0xff]
    %v4602 = vld [vmem:[#allocation15 + $0x468] sm:$0xff]
    %v4603 = vld [vmem:[#allocation15 + $0x470] sm:$0xff]
    %v4604 = vld [vmem:[#allocation15 + $0x478] sm:$0xff]
    %v4605 = vld [vmem:[#allocation16] sm:$0x3f]
    %v4607 = vperm.slane %v4605, 0
    %v4608 = vperm.slane %v4605, 1
    %v4609 = vperm.slane %v4605, 2
    %v4610 = vperm.slane %v4605, 3
    %v4611 = vperm.slane %v4605, 4
    %v4612 = vperm.slane %v4605, 5
    %v4763 = vunpack.c.l.b16 %v4461
    %v4764 = vunpack.c.h.b16 %v4461
    %v4765 = vunpack.c.l.b16 %v4462
    %v4766 = vunpack.c.h.b16 %v4462
    %v4767 = vunpack.c.l.b16 %v4463
    %v4768 = vunpack.c.h.b16 %v4463
    %v4769 = vunpack.c.l.b16 %v4464
    %v4770 = vunpack.c.h.b16 %v4464
    %v4771 = vunpack.c.l.b16 %v4465
    %v4772 = vunpack.c.h.b16 %v4465
    %v4773 = vunpack.c.l.b16 %v4466
    %v4774 = vunpack.c.h.b16 %v4466
    %v4775 = vunpack.c.l.b16 %v4467
    %v4776 = vunpack.c.h.b16 %v4467
    %v4777 = vunpack.c.l.b16 %v4468
    %v4778 = vunpack.c.h.b16 %v4468
    %v4779 = vunpack.c.l.b16 %v4469
    %v4780 = vunpack.c.h.b16 %v4469
    %v4781 = vunpack.c.l.b16 %v4470
    %v4782 = vunpack.c.h.b16 %v4470
    %v4783 = vunpack.c.l.b16 %v4471
    %v4784 = vunpack.c.h.b16 %v4471
    %v4785 = vunpack.c.l.b16 %v4472
    %v4786 = vunpack.c.h.b16 %v4472
    %v4787 = vunpack.c.l.b16 %v4473
    %v4788 = vunpack.c.h.b16 %v4473
    %v4789 = vunpack.c.l.b16 %v4474
    %v4790 = vunpack.c.h.b16 %v4474
    %v4791 = vunpack.c.l.b16 %v4475
    %v4792 = vunpack.c.h.b16 %v4475
    %v4793 = vunpack.c.l.b16 %v4476
    %v4794 = vunpack.c.h.b16 %v4476
    %v4795 = vunpack.c.l.b16 %v4477
    %v4796 = vunpack.c.h.b16 %v4477
    %v4797 = vunpack.c.l.b16 %v4478
    %v4798 = vunpack.c.h.b16 %v4478
    %v4799 = vunpack.c.l.b16 %v4479
    %v4800 = vunpack.c.h.b16 %v4479
    %v4801 = vunpack.c.l.b16 %v4480
    %v4802 = vunpack.c.h.b16 %v4480
    %v4803 = vunpack.c.l.b16 %v4481
    %v4804 = vunpack.c.h.b16 %v4481
    %v4805 = vunpack.c.l.b16 %v4482
    %v4806 = vunpack.c.h.b16 %v4482
    %v4807 = vunpack.c.l.b16 %v4483
    %v4808 = vunpack.c.h.b16 %v4483
    %v4809 = vunpack.c.l.b16 %v4484
    %v4810 = vunpack.c.h.b16 %v4484
    %v4811 = vunpack.c.l.b16 %v4485
    %v4812 = vunpack.c.h.b16 %v4485
    %v4813 = vunpack.c.l.b16 %v4486
    %v4814 = vunpack.c.h.b16 %v4486
    %v4815 = vunpack.c.l.b16 %v4487
    %v4816 = vunpack.c.h.b16 %v4487
    %v4817 = vunpack.c.l.b16 %v4488
    %v4818 = vunpack.c.h.b16 %v4488
    %v4819 = vunpack.c.l.b16 %v4489
    %v4820 = vunpack.c.h.b16 %v4489
    %v4821 = vunpack.c.l.b16 %v4490
    %v4822 = vunpack.c.h.b16 %v4490
    %v4823 = vunpack.c.l.b16 %v4491
    %v4824 = vunpack.c.h.b16 %v4491
    %v4825 = vunpack.c.l.b16 %v4492
    %v4826 = vunpack.c.h.b16 %v4492
    %v4827 = vunpack.c.l.b16 %v4493
    %v4828 = vunpack.c.h.b16 %v4493
    %v4829 = vunpack.c.l.b16 %v4494
    %v4830 = vunpack.c.h.b16 %v4494
    %v4831 = vunpack.c.l.b16 %v4495
    %v4832 = vunpack.c.h.b16 %v4495
    %v4833 = vunpack.c.l.b16 %v4496
    %v4834 = vunpack.c.h.b16 %v4496
    %v4835 = vunpack.c.l.b16 %v4497
    %v4836 = vunpack.c.h.b16 %v4497
    %v4837 = vunpack.c.l.b16 %v4498
    %v4838 = vunpack.c.h.b16 %v4498
    %v4839 = vunpack.c.l.b16 %v4499
    %v4840 = vunpack.c.h.b16 %v4499
    %v4841 = vunpack.c.l.b16 %v4500
    %v4842 = vunpack.c.h.b16 %v4500
    %v4843 = vunpack.c.l.b16 %v4501
    %v4844 = vunpack.c.h.b16 %v4501
    %v4845 = vunpack.c.l.b16 %v4502
    %v4846 = vunpack.c.h.b16 %v4502
    %v4847 = vunpack.c.l.b16 %v4503
    %v4848 = vunpack.c.h.b16 %v4503
    %v4849 = vunpack.c.l.b16 %v4504
    %v4850 = vunpack.c.h.b16 %v4504
    %v4851 = vunpack.c.l.b16 %v4505
    %v4852 = vunpack.c.h.b16 %v4505
    %v4853 = vunpack.c.l.b16 %v4506
    %v4854 = vunpack.c.h.b16 %v4506
    %v4855 = vunpack.c.l.b16 %v4507
    %v4856 = vunpack.c.h.b16 %v4507
    %v4857 = vunpack.c.l.b16 %v4508
    %v4858 = vunpack.c.h.b16 %v4508
    %v4859 = vunpack.c.l.b16 %v4509
    %v4860 = vunpack.c.h.b16 %v4509
    %v4861 = vunpack.c.l.b16 %v4510
    %v4862 = vunpack.c.h.b16 %v4510
    %v4863 = vunpack.c.l.b16 %v4511
    %v4864 = vunpack.c.h.b16 %v4511
    %v4865 = vunpack.c.l.b16 %v4512
    %v4866 = vunpack.c.h.b16 %v4512
    %v4867 = vunpack.c.l.b16 %v4513
    %v4868 = vunpack.c.h.b16 %v4513
    %v4869 = vunpack.c.l.b16 %v4514
    %v4870 = vunpack.c.h.b16 %v4514
    %v4871 = vunpack.c.l.b16 %v4515
    %v4872 = vunpack.c.h.b16 %v4515
    %v4873 = vunpack.c.l.b16 %v4516
    %v4874 = vunpack.c.h.b16 %v4516
    %v4875 = vunpack.c.l.b16 %v4517
    %v4876 = vunpack.c.h.b16 %v4517
    %v4877 = vunpack.c.l.b16 %v4518
    %v4878 = vunpack.c.h.b16 %v4518
    %v4879 = vunpack.c.l.b16 %v4519
    %v4880 = vunpack.c.h.b16 %v4519
    %v4881 = vunpack.c.l.b16 %v4520
    %v4882 = vunpack.c.h.b16 %v4520
    %v4883 = vunpack.c.l.b16 %v4521
    %v4884 = vunpack.c.h.b16 %v4521
    %v4885 = vunpack.c.l.b16 %v4522
    %v4886 = vunpack.c.h.b16 %v4522
    %v4887 = vunpack.c.l.b16 %v4523
    %v4888 = vunpack.c.h.b16 %v4523
    %v4889 = vunpack.c.l.b16 %v4524
    %v4890 = vunpack.c.h.b16 %v4524
    %v4891 = vunpack.c.l.b16 %v4525
    %v4892 = vunpack.c.h.b16 %v4525
    %v4893 = vunpack.c.l.b16 %v4526
    %v4894 = vunpack.c.h.b16 %v4526
    %v4895 = vunpack.c.l.b16 %v4527
    %v4896 = vunpack.c.h.b16 %v4527
    %v4897 = vunpack.c.l.b16 %v4528
    %v4898 = vunpack.c.h.b16 %v4528
    %v4899 = vunpack.c.l.b16 %v4529
    %v4900 = vunpack.c.h.b16 %v4529
    %v4901 = vunpack.c.l.b16 %v4530
    %v4902 = vunpack.c.h.b16 %v4530
    %v4903 = vunpack.c.l.b16 %v4531
    %v4904 = vunpack.c.h.b16 %v4531
    %v4905 = vunpack.c.l.b16 %v4532
    %v4906 = vunpack.c.h.b16 %v4532
    %v4907 = vunpack.c.l.b16 %v4533
    %v4908 = vunpack.c.h.b16 %v4533
    %v4909 = vunpack.c.l.b16 %v4534
    %v4910 = vunpack.c.h.b16 %v4534
    %v4911 = vunpack.c.l.b16 %v4535
    %v4912 = vunpack.c.h.b16 %v4535
    %v4913 = vunpack.c.l.b16 %v4536
    %v4914 = vunpack.c.h.b16 %v4536
    %v4915 = vunpack.c.l.b16 %v4537
    %v4916 = vunpack.c.h.b16 %v4537
    %v4917 = vunpack.c.l.b16 %v4538
    %v4918 = vunpack.c.h.b16 %v4538
    %v4919 = vunpack.c.l.b16 %v4539
    %v4920 = vunpack.c.h.b16 %v4539
    %v4921 = vunpack.c.l.b16 %v4540
    %v4922 = vunpack.c.h.b16 %v4540
    %v4923 = vunpack.c.l.b16 %v4541
    %v4924 = vunpack.c.h.b16 %v4541
    %v4925 = vunpack.c.l.b16 %v4542
    %v4926 = vunpack.c.h.b16 %v4542
    %v4927 = vunpack.c.l.b16 %v4543
    %v4928 = vunpack.c.h.b16 %v4543
    %v4929 = vunpack.c.l.b16 %v4544
    %v4930 = vunpack.c.h.b16 %v4544
    %v4931 = vunpack.c.l.b16 %v4545
    %v4932 = vunpack.c.h.b16 %v4545
    %v4933 = vunpack.c.l.b16 %v4546
    %v4934 = vunpack.c.h.b16 %v4546
    %v4935 = vunpack.c.l.b16 %v4547
    %v4936 = vunpack.c.h.b16 %v4547
    %v4937 = vunpack.c.l.b16 %v4548
    %v4938 = vunpack.c.h.b16 %v4548
    %v4939 = vunpack.c.l.b16 %v4549
    %v4940 = vunpack.c.h.b16 %v4549
    %v4941 = vunpack.c.l.b16 %v4550
    %v4942 = vunpack.c.h.b16 %v4550
    %v4943 = vunpack.c.l.b16 %v4551
    %v4944 = vunpack.c.h.b16 %v4551
    %v4945 = vunpack.c.l.b16 %v4552
    %v4946 = vunpack.c.h.b16 %v4552
    %v4947 = vunpack.c.l.b16 %v4553
    %v4948 = vunpack.c.h.b16 %v4553
    %v4949 = vunpack.c.l.b16 %v4554
    %v4950 = vunpack.c.h.b16 %v4554
    %v4951 = vunpack.c.l.b16 %v4555
    %v4952 = vunpack.c.h.b16 %v4555
    %v4953 = vunpack.c.l.b16 %v4556
    %v4954 = vunpack.c.h.b16 %v4556
    %v4955 = vunpack.c.l.b16 %v4557
    %v4956 = vunpack.c.h.b16 %v4557
    %v4957 = vunpack.c.l.b16 %v4558
    %v4958 = vunpack.c.h.b16 %v4558
    %v4959 = vunpack.c.l.b16 %v4559
    %v4960 = vunpack.c.h.b16 %v4559
    %v4961 = vunpack.c.l.b16 %v4560
    %v4962 = vunpack.c.h.b16 %v4560
    %v4963 = vunpack.c.l.b16 %v4561
    %v4964 = vunpack.c.h.b16 %v4561
    %v4965 = vunpack.c.l.b16 %v4562
    %v4966 = vunpack.c.h.b16 %v4562
    %v4967 = vunpack.c.l.b16 %v4563
    %v4968 = vunpack.c.h.b16 %v4563
    %v4969 = vunpack.c.l.b16 %v4564
    %v4970 = vunpack.c.h.b16 %v4564
    %v4971 = vunpack.c.l.b16 %v4565
    %v4972 = vunpack.c.h.b16 %v4565
    %v4973 = vunpack.c.l.b16 %v4566
    %v4974 = vunpack.c.h.b16 %v4566
    %v4975 = vunpack.c.l.b16 %v4567
    %v4976 = vunpack.c.h.b16 %v4567
    %v4977 = vunpack.c.l.b16 %v4568
    %v4978 = vunpack.c.h.b16 %v4568
    %v4979 = vunpack.c.l.b16 %v4569
    %v4980 = vunpack.c.h.b16 %v4569
    %v4981 = vunpack.c.l.b16 %v4570
    %v4982 = vunpack.c.h.b16 %v4570
    %v4983 = vunpack.c.l.b16 %v4571
    %v4984 = vunpack.c.h.b16 %v4571
    %v4985 = vunpack.c.l.b16 %v4572
    %v4986 = vunpack.c.h.b16 %v4572
    %v4987 = vunpack.c.l.b16 %v4573
    %v4988 = vunpack.c.h.b16 %v4573
    %v4989 = vunpack.c.l.b16 %v4574
    %v4990 = vunpack.c.h.b16 %v4574
    %v4991 = vunpack.c.l.b16 %v4575
    %v4992 = vunpack.c.h.b16 %v4575
    %v4993 = vunpack.c.l.b16 %v4576
    %v4994 = vunpack.c.h.b16 %v4576
    %v4995 = vunpack.c.l.b16 %v4577
    %v4996 = vunpack.c.h.b16 %v4577
    %v4997 = vunpack.c.l.b16 %v4578
    %v4998 = vunpack.c.h.b16 %v4578
    %v4999 = vunpack.c.l.b16 %v4579
    %v5000 = vunpack.c.h.b16 %v4579
    %v5001 = vunpack.c.l.b16 %v4580
    %v5002 = vunpack.c.h.b16 %v4580
    %v5003 = vunpack.c.l.b16 %v4581
    %v5004 = vunpack.c.h.b16 %v4581
    %v5005 = vunpack.c.l.b16 %v4582
    %v5006 = vunpack.c.h.b16 %v4582
    %v5007 = vunpack.c.l.b16 %v4583
    %v5008 = vunpack.c.h.b16 %v4583
    %v5009 = vunpack.c.l.b16 %v4584
    %v5010 = vunpack.c.h.b16 %v4584
    %v5011 = vunpack.c.l.b16 %v4585
    %v5012 = vunpack.c.h.b16 %v4585
    %v5013 = vunpack.c.l.b16 %v4586
    %v5014 = vunpack.c.h.b16 %v4586
    %v5015 = vunpack.c.l.b16 %v4587
    %v5016 = vunpack.c.h.b16 %v4587
    %v5017 = vunpack.c.l.b16 %v4588
    %v5018 = vunpack.c.h.b16 %v4588
    %v5019 = vunpack.c.l.b16 %v4589
    %v5020 = vunpack.c.h.b16 %v4589
    %v5021 = vunpack.c.l.b16 %v4590
    %v5022 = vunpack.c.h.b16 %v4590
    %v5023 = vunpack.c.l.b16 %v4591
    %v5024 = vunpack.c.h.b16 %v4591
    %v5025 = vunpack.c.l.b16 %v4592
    %v5026 = vunpack.c.h.b16 %v4592
    %v5027 = vunpack.c.l.b16 %v4593
    %v5028 = vunpack.c.h.b16 %v4593
    %v5029 = vunpack.c.l.b16 %v4594
    %v5030 = vunpack.c.h.b16 %v4594
    %v5031 = vunpack.c.l.b16 %v4595
    %v5032 = vunpack.c.h.b16 %v4595
    %v5033 = vunpack.c.l.b16 %v4596
    %v5034 = vunpack.c.h.b16 %v4596
    %v5035 = vunpack.c.l.b16 %v4597
    %v5036 = vunpack.c.h.b16 %v4597
    %v5037 = vunpack.c.l.b16 %v4598
    %v5038 = vunpack.c.h.b16 %v4598
    %v5039 = vunpack.c.l.b16 %v4599
    %v5040 = vunpack.c.h.b16 %v4599
    %v5041 = vunpack.c.l.b16 %v4600
    %v5042 = vunpack.c.h.b16 %v4600
    %v5043 = vunpack.c.l.b16 %v4601
    %v5044 = vunpack.c.h.b16 %v4601
    %v5045 = vunpack.c.l.b16 %v4602
    %v5046 = vunpack.c.h.b16 %v4602
    %v5047 = vunpack.c.l.b16 %v4603
    %v5048 = vunpack.c.h.b16 %v4603
    %v5049 = vunpack.c.l.b16 %v4604
    %v5050 = vunpack.c.h.b16 %v4604
    %v5051 = vpack.c.b16 %v4769, %v4763
    %v5052 = vpack.c.b16 %v4770, %v4764
    %v5053 = vpack.c.b16 %v4771, %v4765
    %v5054 = vpack.c.b16 %v4772, %v4766
    %v5055 = vpack.c.b16 %v4773, %v4767
    %v5056 = vpack.c.b16 %v4774, %v4768
    %v5057 = vpack.c.b16 %v4781, %v4775
    %v5058 = vpack.c.b16 %v4782, %v4776
    %v5059 = vpack.c.b16 %v4783, %v4777
    %v5060 = vpack.c.b16 %v4784, %v4778
    %v5061 = vpack.c.b16 %v4785, %v4779
    %v5062 = vpack.c.b16 %v4786, %v4780
    %v5063 = vpack.c.b16 %v4793, %v4787
    %v5064 = vpack.c.b16 %v4794, %v4788
    %v5065 = vpack.c.b16 %v4795, %v4789
    %v5066 = vpack.c.b16 %v4796, %v4790
    %v5067 = vpack.c.b16 %v4797, %v4791
    %v5068 = vpack.c.b16 %v4798, %v4792
    %v5069 = vpack.c.b16 %v4805, %v4799
    %v5070 = vpack.c.b16 %v4806, %v4800
    %v5071 = vpack.c.b16 %v4807, %v4801
    %v5072 = vpack.c.b16 %v4808, %v4802
    %v5073 = vpack.c.b16 %v4809, %v4803
    %v5074 = vpack.c.b16 %v4810, %v4804
    %v5075 = vpack.c.b16 %v4817, %v4811
    %v5076 = vpack.c.b16 %v4818, %v4812
    %v5077 = vpack.c.b16 %v4819, %v4813
    %v5078 = vpack.c.b16 %v4820, %v4814
    %v5079 = vpack.c.b16 %v4821, %v4815
    %v5080 = vpack.c.b16 %v4822, %v4816
    %v5081 = vpack.c.b16 %v4829, %v4823
    %v5082 = vpack.c.b16 %v4830, %v4824
    %v5083 = vpack.c.b16 %v4831, %v4825
    %v5084 = vpack.c.b16 %v4832, %v4826
    %v5085 = vpack.c.b16 %v4833, %v4827
    %v5086 = vpack.c.b16 %v4834, %v4828
    %v5087 = vpack.c.b16 %v4841, %v4835
    %v5088 = vpack.c.b16 %v4842, %v4836
    %v5089 = vpack.c.b16 %v4843, %v4837
    %v5090 = vpack.c.b16 %v4844, %v4838
    %v5091 = vpack.c.b16 %v4845, %v4839
    %v5092 = vpack.c.b16 %v4846, %v4840
    %v5093 = vpack.c.b16 %v4853, %v4847
    %v5094 = vpack.c.b16 %v4854, %v4848
    %v5095 = vpack.c.b16 %v4855, %v4849
    %v5096 = vpack.c.b16 %v4856, %v4850
    %v5097 = vpack.c.b16 %v4857, %v4851
    %v5098 = vpack.c.b16 %v4858, %v4852
    %v5099 = vpack.c.b16 %v4865, %v4859
    %v5100 = vpack.c.b16 %v4866, %v4860
    %v5101 = vpack.c.b16 %v4867, %v4861
    %v5102 = vpack.c.b16 %v4868, %v4862
    %v5103 = vpack.c.b16 %v4869, %v4863
    %v5104 = vpack.c.b16 %v4870, %v4864
    %v5105 = vpack.c.b16 %v4877, %v4871
    %v5106 = vpack.c.b16 %v4878, %v4872
    %v5107 = vpack.c.b16 %v4879, %v4873
    %v5108 = vpack.c.b16 %v4880, %v4874
    %v5109 = vpack.c.b16 %v4881, %v4875
    %v5110 = vpack.c.b16 %v4882, %v4876
    %v5111 = vpack.c.b16 %v4889, %v4883
    %v5112 = vpack.c.b16 %v4890, %v4884
    %v5113 = vpack.c.b16 %v4891, %v4885
    %v5114 = vpack.c.b16 %v4892, %v4886
    %v5115 = vpack.c.b16 %v4893, %v4887
    %v5116 = vpack.c.b16 %v4894, %v4888
    %v5117 = vpack.c.b16 %v4901, %v4895
    %v5118 = vpack.c.b16 %v4902, %v4896
    %v5119 = vpack.c.b16 %v4903, %v4897
    %v5120 = vpack.c.b16 %v4904, %v4898
    %v5121 = vpack.c.b16 %v4905, %v4899
    %v5122 = vpack.c.b16 %v4906, %v4900
    %v5123 = vpack.c.b16 %v4913, %v4907
    %v5124 = vpack.c.b16 %v4914, %v4908
    %v5125 = vpack.c.b16 %v4915, %v4909
    %v5126 = vpack.c.b16 %v4916, %v4910
    %v5127 = vpack.c.b16 %v4917, %v4911
    %v5128 = vpack.c.b16 %v4918, %v4912
    %v5129 = vpack.c.b16 %v4925, %v4919
    %v5130 = vpack.c.b16 %v4926, %v4920
    %v5131 = vpack.c.b16 %v4927, %v4921
    %v5132 = vpack.c.b16 %v4928, %v4922
    %v5133 = vpack.c.b16 %v4929, %v4923
    %v5134 = vpack.c.b16 %v4930, %v4924
    %v5135 = vpack.c.b16 %v4937, %v4931
    %v5136 = vpack.c.b16 %v4938, %v4932
    %v5137 = vpack.c.b16 %v4939, %v4933
    %v5138 = vpack.c.b16 %v4940, %v4934
    %v5139 = vpack.c.b16 %v4941, %v4935
    %v5140 = vpack.c.b16 %v4942, %v4936
    %v5141 = vpack.c.b16 %v4949, %v4943
    %v5142 = vpack.c.b16 %v4950, %v4944
    %v5143 = vpack.c.b16 %v4951, %v4945
    %v5144 = vpack.c.b16 %v4952, %v4946
    %v5145 = vpack.c.b16 %v4953, %v4947
    %v5146 = vpack.c.b16 %v4954, %v4948
    %v5147 = vpack.c.b16 %v4961, %v4955
    %v5148 = vpack.c.b16 %v4962, %v4956
    %v5149 = vpack.c.b16 %v4963, %v4957
    %v5150 = vpack.c.b16 %v4964, %v4958
    %v5151 = vpack.c.b16 %v4965, %v4959
    %v5152 = vpack.c.b16 %v4966, %v4960
    %v5153 = vpack.c.b16 %v4973, %v4967
    %v5154 = vpack.c.b16 %v4974, %v4968
    %v5155 = vpack.c.b16 %v4975, %v4969
    %v5156 = vpack.c.b16 %v4976, %v4970
    %v5157 = vpack.c.b16 %v4977, %v4971
    %v5158 = vpack.c.b16 %v4978, %v4972
    %v5159 = vpack.c.b16 %v4985, %v4979
    %v5160 = vpack.c.b16 %v4986, %v4980
    %v5161 = vpack.c.b16 %v4987, %v4981
    %v5162 = vpack.c.b16 %v4988, %v4982
    %v5163 = vpack.c.b16 %v4989, %v4983
    %v5164 = vpack.c.b16 %v4990, %v4984
    %v5165 = vpack.c.b16 %v4997, %v4991
    %v5166 = vpack.c.b16 %v4998, %v4992
    %v5167 = vpack.c.b16 %v4999, %v4993
    %v5168 = vpack.c.b16 %v5000, %v4994
    %v5169 = vpack.c.b16 %v5001, %v4995
    %v5170 = vpack.c.b16 %v5002, %v4996
    %v5171 = vpack.c.b16 %v5009, %v5003
    %v5172 = vpack.c.b16 %v5010, %v5004
    %v5173 = vpack.c.b16 %v5011, %v5005
    %v5174 = vpack.c.b16 %v5012, %v5006
    %v5175 = vpack.c.b16 %v5013, %v5007
    %v5176 = vpack.c.b16 %v5014, %v5008
    %v5177 = vpack.c.b16 %v5021, %v5015
    %v5178 = vpack.c.b16 %v5022, %v5016
    %v5179 = vpack.c.b16 %v5023, %v5017
    %v5180 = vpack.c.b16 %v5024, %v5018
    %v5181 = vpack.c.b16 %v5025, %v5019
    %v5182 = vpack.c.b16 %v5026, %v5020
    %v5183 = vpack.c.b16 %v5033, %v5027
    %v5184 = vpack.c.b16 %v5034, %v5028
    %v5185 = vpack.c.b16 %v5035, %v5029
    %v5186 = vpack.c.b16 %v5036, %v5030
    %v5187 = vpack.c.b16 %v5037, %v5031
    %v5188 = vpack.c.b16 %v5038, %v5032
    %v5189 = vpack.c.b16 %v5045, %v5039
    %v5190 = vpack.c.b16 %v5046, %v5040
    %v5191 = vpack.c.b16 %v5047, %v5041
    %v5192 = vpack.c.b16 %v5048, %v5042
    %v5193 = vpack.c.b16 %v5049, %v5043
    %v5194 = vpack.c.b16 %v5050, %v5044
    %5339 = vmatpush.bf16.msra.mxu0 %v5093
    %5340 = vmatpush.bf16.msra.mxu0 %v5087
    %5341 = vmatpush.bf16.msra.mxu0 %v5081
    %5342 = vmatpush.bf16.msra.mxu0 %v5075
    %5343 = vmatpush.bf16.msra.mxu0 %v5069
    %5344 = vmatpush.bf16.msra.mxu0 %v5063
    %5345 = vmatpush.bf16.msra.mxu0 %v5057
    %5346 = vmatpush.bf16.msra.mxu0 %v5051
    %5347 = vmatmul.bf16.gmra.mxu0 %v4458
    %v5348 = vpop.f32.mrf.mxu0
    %v5349 = vadd.f32 %v4607, %v5348
    %v5350 = vpop.f32.mrf.mxu0
    %5351 = vdwg.mxu0
    %5352 = vmatpush.bf16.msra.mxu0 %v5141
    %5353 = vmatpush.bf16.msra.mxu0 %v5135
    %5354 = vmatpush.bf16.msra.mxu0 %v5129
    %5355 = vmatpush.bf16.msra.mxu0 %v5123
    %5356 = vmatpush.bf16.msra.mxu0 %v5117
    %5357 = vmatpush.bf16.msra.mxu0 %v5111
    %5358 = vmatpush.bf16.msra.mxu0 %v5105
    %5359 = vmatpush.bf16.msra.mxu0 %v5099
    %5360 = vmatmul.bf16.gmra.mxu0 %v4459
    %v5361 = vpop.f32.mrf.mxu0
    %v5362 = vadd.f32 %v5349, %v5361
    %v5363 = vpop.f32.mrf.mxu0
    %5364 = vdwg.mxu0
    %5365 = vmatpush.bf16.msra.mxu0 %v5189
    %5366 = vmatpush.bf16.msra.mxu0 %v5183
    %5367 = vmatpush.bf16.msra.mxu0 %v5177
    %5368 = vmatpush.bf16.msra.mxu0 %v5171
    %5369 = vmatpush.bf16.msra.mxu0 %v5165
    %5370 = vmatpush.bf16.msra.mxu0 %v5159
    %5371 = vmatpush.bf16.msra.mxu0 %v5153
    %5372 = vmatpush.bf16.msra.mxu0 %v5147
    %5373 = vmatmul.bf16.gmra.mxu0 %v4460
    %v5374 = vpop.f32.mrf.mxu0
    %v5375 = vadd.f32 %v5362, %v5374
    %v5376 = vpop.f32.mrf.mxu0
    %5377 = vdwg.mxu0
    %5378 = vmatpush.bf16.msra.mxu0 %v5094
    %5379 = vmatpush.bf16.msra.mxu0 %v5088
    %5380 = vmatpush.bf16.msra.mxu0 %v5082
    %5381 = vmatpush.bf16.msra.mxu0 %v5076
    %5382 = vmatpush.bf16.msra.mxu0 %v5070
    %5383 = vmatpush.bf16.msra.mxu0 %v5064
    %5384 = vmatpush.bf16.msra.mxu0 %v5058
    %5385 = vmatpush.bf16.msra.mxu0 %v5052
    %5386 = vmatmul.bf16.gmra.mxu0 %v4458
    %v5387 = vpop.f32.mrf.mxu0
    %v5388 = vadd.f32 %v4608, %v5387
    %v5389 = vpop.f32.mrf.mxu0
    %5390 = vdwg.mxu0
    %5391 = vmatpush.bf16.msra.mxu0 %v5142
    %5392 = vmatpush.bf16.msra.mxu0 %v5136
    %5393 = vmatpush.bf16.msra.mxu0 %v5130
    %5394 = vmatpush.bf16.msra.mxu0 %v5124
    %5395 = vmatpush.bf16.msra.mxu0 %v5118
    %5396 = vmatpush.bf16.msra.mxu0 %v5112
    %5397 = vmatpush.bf16.msra.mxu0 %v5106
    %5398 = vmatpush.bf16.msra.mxu0 %v5100
    %5399 = vmatmul.bf16.gmra.mxu0 %v4459
    %v5400 = vpop.f32.mrf.mxu0
    %v5401 = vadd.f32 %v5388, %v5400
    %v5402 = vpop.f32.mrf.mxu0
    %5403 = vdwg.mxu0
    %5404 = vmatpush.bf16.msra.mxu0 %v5190
    %5405 = vmatpush.bf16.msra.mxu0 %v5184
    %5406 = vmatpush.bf16.msra.mxu0 %v5178
    %5407 = vmatpush.bf16.msra.mxu0 %v5172
    %5408 = vmatpush.bf16.msra.mxu0 %v5166
    %5409 = vmatpush.bf16.msra.mxu0 %v5160
    %5410 = vmatpush.bf16.msra.mxu0 %v5154
    %5411 = vmatpush.bf16.msra.mxu0 %v5148
    %5412 = vmatmul.bf16.gmra.mxu0 %v4460
    %v5413 = vpop.f32.mrf.mxu0
    %v5414 = vadd.f32 %v5401, %v5413
    %v5415 = vpop.f32.mrf.mxu0
    %5416 = vdwg.mxu0
    %5417 = vmatpush.bf16.msra.mxu0 %v5095
    %5418 = vmatpush.bf16.msra.mxu0 %v5089
    %5419 = vmatpush.bf16.msra.mxu0 %v5083
    %5420 = vmatpush.bf16.msra.mxu0 %v5077
    %5421 = vmatpush.bf16.msra.mxu0 %v5071
    %5422 = vmatpush.bf16.msra.mxu0 %v5065
    %5423 = vmatpush.bf16.msra.mxu0 %v5059
    %5424 = vmatpush.bf16.msra.mxu0 %v5053
    %5425 = vmatmul.bf16.gmra.mxu0 %v4458
    %v5426 = vpop.f32.mrf.mxu0
    %v5427 = vadd.f32 %v4609, %v5426
    %v5428 = vpop.f32.mrf.mxu0
    %5429 = vdwg.mxu0
    %5430 = vmatpush.bf16.msra.mxu0 %v5143
    %5431 = vmatpush.bf16.msra.mxu0 %v5137
    %5432 = vmatpush.bf16.msra.mxu0 %v5131
    %5433 = vmatpush.bf16.msra.mxu0 %v5125
    %5434 = vmatpush.bf16.msra.mxu0 %v5119
    %5435 = vmatpush.bf16.msra.mxu0 %v5113
    %5436 = vmatpush.bf16.msra.mxu0 %v5107
    %5437 = vmatpush.bf16.msra.mxu0 %v5101
    %5438 = vmatmul.bf16.gmra.mxu0 %v4459
    %v5439 = vpop.f32.mrf.mxu0
    %v5440 = vadd.f32 %v5427, %v5439
    %v5441 = vpop.f32.mrf.mxu0
    %5442 = vdwg.mxu0
    %5443 = vmatpush.bf16.msra.mxu0 %v5191
    %5444 = vmatpush.bf16.msra.mxu0 %v5185
    %5445 = vmatpush.bf16.msra.mxu0 %v5179
    %5446 = vmatpush.bf16.msra.mxu0 %v5173
    %5447 = vmatpush.bf16.msra.mxu0 %v5167
    %5448 = vmatpush.bf16.msra.mxu0 %v5161
    %5449 = vmatpush.bf16.msra.mxu0 %v5155
    %5450 = vmatpush.bf16.msra.mxu0 %v5149
    %5451 = vmatmul.bf16.gmra.mxu0 %v4460
    %v5452 = vpop.f32.mrf.mxu0
    %v5453 = vadd.f32 %v5440, %v5452
    %v5454 = vpop.f32.mrf.mxu0
    %5455 = vdwg.mxu0
    %5456 = vmatpush.bf16.msra.mxu0 %v5096
    %5457 = vmatpush.bf16.msra.mxu0 %v5090
    %5458 = vmatpush.bf16.msra.mxu0 %v5084
    %5459 = vmatpush.bf16.msra.mxu0 %v5078
    %5460 = vmatpush.bf16.msra.mxu0 %v5072
    %5461 = vmatpush.bf16.msra.mxu0 %v5066
    %5462 = vmatpush.bf16.msra.mxu0 %v5060
    %5463 = vmatpush.bf16.msra.mxu0 %v5054
    %5464 = vmatmul.bf16.gmra.mxu0 %v4458
    %v5465 = vpop.f32.mrf.mxu0
    %v5466 = vadd.f32 %v4610, %v5465
    %v5467 = vpop.f32.mrf.mxu0
    %5468 = vdwg.mxu0
    %5469 = vmatpush.bf16.msra.mxu0 %v5144
    %5470 = vmatpush.bf16.msra.mxu0 %v5138
    %5471 = vmatpush.bf16.msra.mxu0 %v5132
    %5472 = vmatpush.bf16.msra.mxu0 %v5126
    %5473 = vmatpush.bf16.msra.mxu0 %v5120
    %5474 = vmatpush.bf16.msra.mxu0 %v5114
    %5475 = vmatpush.bf16.msra.mxu0 %v5108
    %5476 = vmatpush.bf16.msra.mxu0 %v5102
    %5477 = vmatmul.bf16.gmra.mxu0 %v4459
    %v5478 = vpop.f32.mrf.mxu0
    %v5479 = vadd.f32 %v5466, %v5478
    %v5480 = vpop.f32.mrf.mxu0
    %5481 = vdwg.mxu0
    %5482 = vmatpush.bf16.msra.mxu0 %v5192
    %5483 = vmatpush.bf16.msra.mxu0 %v5186
    %5484 = vmatpush.bf16.msra.mxu0 %v5180
    %5485 = vmatpush.bf16.msra.mxu0 %v5174
    %5486 = vmatpush.bf16.msra.mxu0 %v5168
    %5487 = vmatpush.bf16.msra.mxu0 %v5162
    %5488 = vmatpush.bf16.msra.mxu0 %v5156
    %5489 = vmatpush.bf16.msra.mxu0 %v5150
    %5490 = vmatmul.bf16.gmra.mxu0 %v4460
    %v5491 = vpop.f32.mrf.mxu0
    %v5492 = vadd.f32 %v5479, %v5491
    %v5493 = vpop.f32.mrf.mxu0
    %5494 = vdwg.mxu0
    %5495 = vmatpush.bf16.msra.mxu0 %v5097
    %5496 = vmatpush.bf16.msra.mxu0 %v5091
    %5497 = vmatpush.bf16.msra.mxu0 %v5085
    %5498 = vmatpush.bf16.msra.mxu0 %v5079
    %5499 = vmatpush.bf16.msra.mxu0 %v5073
    %5500 = vmatpush.bf16.msra.mxu0 %v5067
    %5501 = vmatpush.bf16.msra.mxu0 %v5061
    %5502 = vmatpush.bf16.msra.mxu0 %v5055
    %5503 = vmatmul.bf16.gmra.mxu0 %v4458
    %v5504 = vpop.f32.mrf.mxu0
    %v5505 = vadd.f32 %v4611, %v5504
    %v5506 = vpop.f32.mrf.mxu0
    %5507 = vdwg.mxu0
    %5508 = vmatpush.bf16.msra.mxu0 %v5145
    %5509 = vmatpush.bf16.msra.mxu0 %v5139
    %5510 = vmatpush.bf16.msra.mxu0 %v5133
    %5511 = vmatpush.bf16.msra.mxu0 %v5127
    %5512 = vmatpush.bf16.msra.mxu0 %v5121
    %5513 = vmatpush.bf16.msra.mxu0 %v5115
    %5514 = vmatpush.bf16.msra.mxu0 %v5109
    %5515 = vmatpush.bf16.msra.mxu0 %v5103
    %5516 = vmatmul.bf16.gmra.mxu0 %v4459
    %v5517 = vpop.f32.mrf.mxu0
    %v5518 = vadd.f32 %v5505, %v5517
    %v5519 = vpop.f32.mrf.mxu0
    %5520 = vdwg.mxu0
    %5521 = vmatpush.bf16.msra.mxu0 %v5193
    %5522 = vmatpush.bf16.msra.mxu0 %v5187
    %5523 = vmatpush.bf16.msra.mxu0 %v5181
    %5524 = vmatpush.bf16.msra.mxu0 %v5175
    %5525 = vmatpush.bf16.msra.mxu0 %v5169
    %5526 = vmatpush.bf16.msra.mxu0 %v5163
    %5527 = vmatpush.bf16.msra.mxu0 %v5157
    %5528 = vmatpush.bf16.msra.mxu0 %v5151
    %5529 = vmatmul.bf16.gmra.mxu0 %v4460
    %v5530 = vpop.f32.mrf.mxu0
    %v5531 = vadd.f32 %v5518, %v5530
    %v5532 = vpop.f32.mrf.mxu0
    %5533 = vdwg.mxu0
    %5534 = vmatpush.bf16.msra.mxu0 %v5098
    %5535 = vmatpush.bf16.msra.mxu0 %v5092
    %5536 = vmatpush.bf16.msra.mxu0 %v5086
    %5537 = vmatpush.bf16.msra.mxu0 %v5080
    %5538 = vmatpush.bf16.msra.mxu0 %v5074
    %5539 = vmatpush.bf16.msra.mxu0 %v5068
    %5540 = vmatpush.bf16.msra.mxu0 %v5062
    %5541 = vmatpush.bf16.msra.mxu0 %v5056
    %5542 = vmatmul.bf16.gmra.mxu0 %v4458
    %v5543 = vpop.f32.mrf.mxu0
    %v5544 = vadd.f32 %v4612, %v5543
    %v5545 = vpop.f32.mrf.mxu0
    %5546 = vdwg.mxu0
    %5547 = vmatpush.bf16.msra.mxu0 %v5146
    %5548 = vmatpush.bf16.msra.mxu0 %v5140
    %5549 = vmatpush.bf16.msra.mxu0 %v5134
    %5550 = vmatpush.bf16.msra.mxu0 %v5128
    %5551 = vmatpush.bf16.msra.mxu0 %v5122
    %5552 = vmatpush.bf16.msra.mxu0 %v5116
    %5553 = vmatpush.bf16.msra.mxu0 %v5110
    %5554 = vmatpush.bf16.msra.mxu0 %v5104
    %5555 = vmatmul.bf16.gmra.mxu0 %v4459
    %v5556 = vpop.f32.mrf.mxu0
    %v5557 = vadd.f32 %v5544, %v5556
    %v5558 = vpop.f32.mrf.mxu0
    %5559 = vdwg.mxu0
    %5560 = vmatpush.bf16.msra.mxu0 %v5194
    %5561 = vmatpush.bf16.msra.mxu0 %v5188
    %5562 = vmatpush.bf16.msra.mxu0 %v5182
    %5563 = vmatpush.bf16.msra.mxu0 %v5176
    %5564 = vmatpush.bf16.msra.mxu0 %v5170
    %5565 = vmatpush.bf16.msra.mxu0 %v5164
    %5566 = vmatpush.bf16.msra.mxu0 %v5158
    %5567 = vmatpush.bf16.msra.mxu0 %v5152
    %5568 = vmatmul.bf16.gmra.mxu0 %v4460
    %v5569 = vpop.f32.mrf.mxu0
    %v5570 = vadd.f32 %v5557, %v5569
    %v5571 = vpop.f32.mrf.mxu0
    %5572 = vdwg.mxu0
    %v5573 = vmax.f32 %v5375, 0.0
    %v5574 = vmax.f32 %v5414, 0.0
    %v5575 = vmax.f32 %v5453, 0.0
    %v5576 = vmax.f32 %v5492, 0.0
    %v5577 = vmax.f32 %v5531, 0.0
    %v5578 = vmax.f32 %v5570, 0.0
    %v5579 = vpack.c.bf16 %v5573, %v5573
    %v5580 = vpack.c.bf16 %v5574, %v5574
    %v5581 = vpack.c.bf16 %v5575, %v5575
    %v5582 = vpack.c.bf16 %v5576, %v5576
    %v5583 = vpack.c.bf16 %v5577, %v5577
    %v5584 = vpack.c.bf16 %v5578, %v5578
    %v5585 = vld [vmem:[#allocation18] sm:$0xff]
    %v5586 = vld [vmem:[#allocation18 + $0x8] sm:$0xff]
    %v5587 = vld [vmem:[#allocation18 + $0x10] sm:$0xff]
    %v5588 = vld [vmem:[#allocation18 + $0x18] sm:$0xff]
    %v5589 = vld [vmem:[#allocation18 + $0x20] sm:$0xff]
    %v5590 = vld [vmem:[#allocation18 + $0x28] sm:$0xff]
    %v5591 = vld [vmem:[#allocation18 + $0x30] sm:$0xff]
    %v5592 = vld [vmem:[#allocation18 + $0x38] sm:$0xff]
    %v5593 = vld [vmem:[#allocation18 + $0x40] sm:$0xff]
    %v5594 = vld [vmem:[#allocation18 + $0x48] sm:$0xff]
    %v5595 = vld [vmem:[#allocation18 + $0x50] sm:$0xff]
    %v5596 = vld [vmem:[#allocation18 + $0x58] sm:$0xff]
    %v5597 = vld [vmem:[#allocation18 + $0x60] sm:$0xff]
    %v5598 = vld [vmem:[#allocation18 + $0x68] sm:$0xff]
    %v5599 = vld [vmem:[#allocation18 + $0x70] sm:$0xff]
    %v5600 = vld [vmem:[#allocation18 + $0x78] sm:$0xff]
    %v5601 = vld [vmem:[#allocation18 + $0x80] sm:$0xff]
    %v5602 = vld [vmem:[#allocation18 + $0x88] sm:$0xff]
    %v5603 = vld [vmem:[#allocation18 + $0x90] sm:$0xff]
    %v5604 = vld [vmem:[#allocation18 + $0x98] sm:$0xff]
    %v5605 = vld [vmem:[#allocation18 + $0xa0] sm:$0xff]
    %v5606 = vld [vmem:[#allocation18 + $0xa8] sm:$0xff]
    %v5607 = vld [vmem:[#allocation18 + $0xb0] sm:$0xff]
    %v5608 = vld [vmem:[#allocation18 + $0xb8] sm:$0xff]
    %v5609 = vld [vmem:[#allocation18 + $0xc0] sm:$0xff]
    %v5610 = vld [vmem:[#allocation18 + $0xc8] sm:$0xff]
    %v5611 = vld [vmem:[#allocation18 + $0xd0] sm:$0xff]
    %v5612 = vld [vmem:[#allocation18 + $0xd8] sm:$0xff]
    %v5613 = vld [vmem:[#allocation18 + $0xe0] sm:$0xff]
    %v5614 = vld [vmem:[#allocation18 + $0xe8] sm:$0xff]
    %v5615 = vld [vmem:[#allocation18 + $0xf0] sm:$0xff]
    %v5616 = vld [vmem:[#allocation18 + $0xf8] sm:$0xff]
    %v5617 = vld [vmem:[#allocation18 + $0x100] sm:$0xff]
    %v5618 = vld [vmem:[#allocation18 + $0x108] sm:$0xff]
    %v5619 = vld [vmem:[#allocation18 + $0x110] sm:$0xff]
    %v5620 = vld [vmem:[#allocation18 + $0x118] sm:$0xff]
    %v5621 = vld [vmem:[#allocation18 + $0x120] sm:$0xff]
    %v5622 = vld [vmem:[#allocation18 + $0x128] sm:$0xff]
    %v5623 = vld [vmem:[#allocation18 + $0x130] sm:$0xff]
    %v5624 = vld [vmem:[#allocation18 + $0x138] sm:$0xff]
    %v5625 = vld [vmem:[#allocation18 + $0x140] sm:$0xff]
    %v5626 = vld [vmem:[#allocation18 + $0x148] sm:$0xff]
    %v5627 = vld [vmem:[#allocation18 + $0x150] sm:$0xff]
    %v5628 = vld [vmem:[#allocation18 + $0x158] sm:$0xff]
    %v5629 = vld [vmem:[#allocation18 + $0x160] sm:$0xff]
    %v5630 = vld [vmem:[#allocation18 + $0x168] sm:$0xff]
    %v5631 = vld [vmem:[#allocation18 + $0x170] sm:$0xff]
    %v5632 = vld [vmem:[#allocation18 + $0x178] sm:$0xff]
    %v5633 = vld [vmem:[#allocation18 + $0x180] sm:$0xff]
    %v5634 = vld [vmem:[#allocation18 + $0x188] sm:$0xff]
    %v5635 = vld [vmem:[#allocation18 + $0x190] sm:$0xff]
    %v5636 = vld [vmem:[#allocation18 + $0x198] sm:$0xff]
    %v5637 = vld [vmem:[#allocation18 + $0x1a0] sm:$0xff]
    %v5638 = vld [vmem:[#allocation18 + $0x1a8] sm:$0xff]
    %v5639 = vld [vmem:[#allocation18 + $0x1b0] sm:$0xff]
    %v5640 = vld [vmem:[#allocation18 + $0x1b8] sm:$0xff]
    %v5641 = vld [vmem:[#allocation18 + $0x1c0] sm:$0xff]
    %v5642 = vld [vmem:[#allocation18 + $0x1c8] sm:$0xff]
    %v5643 = vld [vmem:[#allocation18 + $0x1d0] sm:$0xff]
    %v5644 = vld [vmem:[#allocation18 + $0x1d8] sm:$0xff]
    %v5645 = vld [vmem:[#allocation18 + $0x1e0] sm:$0xff]
    %v5646 = vld [vmem:[#allocation18 + $0x1e8] sm:$0xff]
    %v5647 = vld [vmem:[#allocation18 + $0x1f0] sm:$0xff]
    %v5648 = vld [vmem:[#allocation18 + $0x1f8] sm:$0xff]
    %v5649 = vld [vmem:[#allocation18 + $0x200] sm:$0xff]
    %v5650 = vld [vmem:[#allocation18 + $0x208] sm:$0xff]
    %v5651 = vld [vmem:[#allocation18 + $0x210] sm:$0xff]
    %v5652 = vld [vmem:[#allocation18 + $0x218] sm:$0xff]
    %v5653 = vld [vmem:[#allocation18 + $0x220] sm:$0xff]
    %v5654 = vld [vmem:[#allocation18 + $0x228] sm:$0xff]
    %v5655 = vld [vmem:[#allocation18 + $0x230] sm:$0xff]
    %v5656 = vld [vmem:[#allocation18 + $0x238] sm:$0xff]
    %v5657 = vld [vmem:[#allocation18 + $0x240] sm:$0xff]
    %v5658 = vld [vmem:[#allocation18 + $0x248] sm:$0xff]
    %v5659 = vld [vmem:[#allocation18 + $0x250] sm:$0xff]
    %v5660 = vld [vmem:[#allocation18 + $0x258] sm:$0xff]
    %v5661 = vld [vmem:[#allocation18 + $0x260] sm:$0xff]
    %v5662 = vld [vmem:[#allocation18 + $0x268] sm:$0xff]
    %v5663 = vld [vmem:[#allocation18 + $0x270] sm:$0xff]
    %v5664 = vld [vmem:[#allocation18 + $0x278] sm:$0xff]
    %v5665 = vld [vmem:[#allocation18 + $0x280] sm:$0xff]
    %v5666 = vld [vmem:[#allocation18 + $0x288] sm:$0xff]
    %v5667 = vld [vmem:[#allocation18 + $0x290] sm:$0xff]
    %v5668 = vld [vmem:[#allocation18 + $0x298] sm:$0xff]
    %v5669 = vld [vmem:[#allocation18 + $0x2a0] sm:$0xff]
    %v5670 = vld [vmem:[#allocation18 + $0x2a8] sm:$0xff]
    %v5671 = vld [vmem:[#allocation18 + $0x2b0] sm:$0xff]
    %v5672 = vld [vmem:[#allocation18 + $0x2b8] sm:$0xff]
    %v5673 = vld [vmem:[#allocation18 + $0x2c0] sm:$0xff]
    %v5674 = vld [vmem:[#allocation18 + $0x2c8] sm:$0xff]
    %v5675 = vld [vmem:[#allocation18 + $0x2d0] sm:$0xff]
    %v5676 = vld [vmem:[#allocation18 + $0x2d8] sm:$0xff]
    %v5677 = vld [vmem:[#allocation18 + $0x2e0] sm:$0xff]
    %v5678 = vld [vmem:[#allocation18 + $0x2e8] sm:$0xff]
    %v5679 = vld [vmem:[#allocation18 + $0x2f0] sm:$0xff]
    %v5680 = vld [vmem:[#allocation18 + $0x2f8] sm:$0xff]
    %v5681 = vld [vmem:[#allocation18 + $0x300] sm:$0xff]
    %v5682 = vld [vmem:[#allocation18 + $0x308] sm:$0xff]
    %v5683 = vld [vmem:[#allocation18 + $0x310] sm:$0xff]
    %v5684 = vld [vmem:[#allocation18 + $0x318] sm:$0xff]
    %v5685 = vld [vmem:[#allocation18 + $0x320] sm:$0xff]
    %v5686 = vld [vmem:[#allocation18 + $0x328] sm:$0xff]
    %v5687 = vld [vmem:[#allocation18 + $0x330] sm:$0xff]
    %v5688 = vld [vmem:[#allocation18 + $0x338] sm:$0xff]
    %v5689 = vld [vmem:[#allocation18 + $0x340] sm:$0xff]
    %v5690 = vld [vmem:[#allocation18 + $0x348] sm:$0xff]
    %v5691 = vld [vmem:[#allocation18 + $0x350] sm:$0xff]
    %v5692 = vld [vmem:[#allocation18 + $0x358] sm:$0xff]
    %v5693 = vld [vmem:[#allocation18 + $0x360] sm:$0xff]
    %v5694 = vld [vmem:[#allocation18 + $0x368] sm:$0xff]
    %v5695 = vld [vmem:[#allocation18 + $0x370] sm:$0xff]
    %v5696 = vld [vmem:[#allocation18 + $0x378] sm:$0xff]
    %v5697 = vld [vmem:[#allocation18 + $0x380] sm:$0xff]
    %v5698 = vld [vmem:[#allocation18 + $0x388] sm:$0xff]
    %v5699 = vld [vmem:[#allocation18 + $0x390] sm:$0xff]
    %v5700 = vld [vmem:[#allocation18 + $0x398] sm:$0xff]
    %v5701 = vld [vmem:[#allocation18 + $0x3a0] sm:$0xff]
    %v5702 = vld [vmem:[#allocation18 + $0x3a8] sm:$0xff]
    %v5703 = vld [vmem:[#allocation18 + $0x3b0] sm:$0xff]
    %v5704 = vld [vmem:[#allocation18 + $0x3b8] sm:$0xff]
    %v5705 = vld [vmem:[#allocation18 + $0x3c0] sm:$0xff]
    %v5706 = vld [vmem:[#allocation18 + $0x3c8] sm:$0xff]
    %v5707 = vld [vmem:[#allocation18 + $0x3d0] sm:$0xff]
    %v5708 = vld [vmem:[#allocation18 + $0x3d8] sm:$0xff]
    %v5709 = vld [vmem:[#allocation18 + $0x3e0] sm:$0xff]
    %v5710 = vld [vmem:[#allocation18 + $0x3e8] sm:$0xff]
    %v5711 = vld [vmem:[#allocation18 + $0x3f0] sm:$0xff]
    %v5712 = vld [vmem:[#allocation18 + $0x3f8] sm:$0xff]
    %v5713 = vld [vmem:[#allocation18 + $0x400] sm:$0xff]
    %v5714 = vld [vmem:[#allocation18 + $0x408] sm:$0xff]
    %v5715 = vld [vmem:[#allocation18 + $0x410] sm:$0xff]
    %v5716 = vld [vmem:[#allocation18 + $0x418] sm:$0xff]
    %v5717 = vld [vmem:[#allocation18 + $0x420] sm:$0xff]
    %v5718 = vld [vmem:[#allocation18 + $0x428] sm:$0xff]
    %v5719 = vld [vmem:[#allocation18 + $0x430] sm:$0xff]
    %v5720 = vld [vmem:[#allocation18 + $0x438] sm:$0xff]
    %v5721 = vld [vmem:[#allocation18 + $0x440] sm:$0xff]
    %v5722 = vld [vmem:[#allocation18 + $0x448] sm:$0xff]
    %v5723 = vld [vmem:[#allocation18 + $0x450] sm:$0xff]
    %v5724 = vld [vmem:[#allocation18 + $0x458] sm:$0xff]
    %v5725 = vld [vmem:[#allocation18 + $0x460] sm:$0xff]
    %v5726 = vld [vmem:[#allocation18 + $0x468] sm:$0xff]
    %v5727 = vld [vmem:[#allocation18 + $0x470] sm:$0xff]
    %v5728 = vld [vmem:[#allocation18 + $0x478] sm:$0xff]
    %v5729 = vld [vmem:[#allocation18 + $0x480] sm:$0xff]
    %v5730 = vld [vmem:[#allocation18 + $0x488] sm:$0xff]
    %v5731 = vld [vmem:[#allocation18 + $0x490] sm:$0xff]
    %v5732 = vld [vmem:[#allocation18 + $0x498] sm:$0xff]
    %v5733 = vld [vmem:[#allocation18 + $0x4a0] sm:$0xff]
    %v5734 = vld [vmem:[#allocation18 + $0x4a8] sm:$0xff]
    %v5735 = vld [vmem:[#allocation18 + $0x4b0] sm:$0xff]
    %v5736 = vld [vmem:[#allocation18 + $0x4b8] sm:$0xff]
    %v5737 = vld [vmem:[#allocation18 + $0x4c0] sm:$0xff]
    %v5738 = vld [vmem:[#allocation18 + $0x4c8] sm:$0xff]
    %v5739 = vld [vmem:[#allocation18 + $0x4d0] sm:$0xff]
    %v5740 = vld [vmem:[#allocation18 + $0x4d8] sm:$0xff]
    %v5741 = vld [vmem:[#allocation18 + $0x4e0] sm:$0xff]
    %v5742 = vld [vmem:[#allocation18 + $0x4e8] sm:$0xff]
    %v5743 = vld [vmem:[#allocation18 + $0x4f0] sm:$0xff]
    %v5744 = vld [vmem:[#allocation18 + $0x4f8] sm:$0xff]
    %v5745 = vld [vmem:[#allocation18 + $0x500] sm:$0xff]
    %v5746 = vld [vmem:[#allocation18 + $0x508] sm:$0xff]
    %v5747 = vld [vmem:[#allocation18 + $0x510] sm:$0xff]
    %v5748 = vld [vmem:[#allocation18 + $0x518] sm:$0xff]
    %v5749 = vld [vmem:[#allocation18 + $0x520] sm:$0xff]
    %v5750 = vld [vmem:[#allocation18 + $0x528] sm:$0xff]
    %v5751 = vld [vmem:[#allocation18 + $0x530] sm:$0xff]
    %v5752 = vld [vmem:[#allocation18 + $0x538] sm:$0xff]
    %v5753 = vld [vmem:[#allocation18 + $0x540] sm:$0xff]
    %v5754 = vld [vmem:[#allocation18 + $0x548] sm:$0xff]
    %v5755 = vld [vmem:[#allocation18 + $0x550] sm:$0xff]
    %v5756 = vld [vmem:[#allocation18 + $0x558] sm:$0xff]
    %v5757 = vld [vmem:[#allocation18 + $0x560] sm:$0xff]
    %v5758 = vld [vmem:[#allocation18 + $0x568] sm:$0xff]
    %v5759 = vld [vmem:[#allocation18 + $0x570] sm:$0xff]
    %v5760 = vld [vmem:[#allocation18 + $0x578] sm:$0xff]
    %v5761 = vld [vmem:[#allocation18 + $0x580] sm:$0xff]
    %v5762 = vld [vmem:[#allocation18 + $0x588] sm:$0xff]
    %v5763 = vld [vmem:[#allocation18 + $0x590] sm:$0xff]
    %v5764 = vld [vmem:[#allocation18 + $0x598] sm:$0xff]
    %v5765 = vld [vmem:[#allocation18 + $0x5a0] sm:$0xff]
    %v5766 = vld [vmem:[#allocation18 + $0x5a8] sm:$0xff]
    %v5767 = vld [vmem:[#allocation18 + $0x5b0] sm:$0xff]
    %v5768 = vld [vmem:[#allocation18 + $0x5b8] sm:$0xff]
    %v5769 = vld [vmem:[#allocation18 + $0x5c0] sm:$0xff]
    %v5770 = vld [vmem:[#allocation18 + $0x5c8] sm:$0xff]
    %v5771 = vld [vmem:[#allocation18 + $0x5d0] sm:$0xff]
    %v5772 = vld [vmem:[#allocation18 + $0x5d8] sm:$0xff]
    %v5773 = vld [vmem:[#allocation18 + $0x5e0] sm:$0xff]
    %v5774 = vld [vmem:[#allocation18 + $0x5e8] sm:$0xff]
    %v5775 = vld [vmem:[#allocation18 + $0x5f0] sm:$0xff]
    %v5776 = vld [vmem:[#allocation18 + $0x5f8] sm:$0xff]
    %v5777 = vld [vmem:[#allocation18 + $0x600] sm:$0xff]
    %v5778 = vld [vmem:[#allocation18 + $0x608] sm:$0xff]
    %v5779 = vld [vmem:[#allocation18 + $0x610] sm:$0xff]
    %v5780 = vld [vmem:[#allocation18 + $0x618] sm:$0xff]
    %v5781 = vld [vmem:[#allocation18 + $0x620] sm:$0xff]
    %v5782 = vld [vmem:[#allocation18 + $0x628] sm:$0xff]
    %v5783 = vld [vmem:[#allocation18 + $0x630] sm:$0xff]
    %v5784 = vld [vmem:[#allocation18 + $0x638] sm:$0xff]
    %v5785 = vld [vmem:[#allocation18 + $0x640] sm:$0xff]
    %v5786 = vld [vmem:[#allocation18 + $0x648] sm:$0xff]
    %v5787 = vld [vmem:[#allocation18 + $0x650] sm:$0xff]
    %v5788 = vld [vmem:[#allocation18 + $0x658] sm:$0xff]
    %v5789 = vld [vmem:[#allocation18 + $0x660] sm:$0xff]
    %v5790 = vld [vmem:[#allocation18 + $0x668] sm:$0xff]
    %v5791 = vld [vmem:[#allocation18 + $0x670] sm:$0xff]
    %v5792 = vld [vmem:[#allocation18 + $0x678] sm:$0xff]
    %v5793 = vld [vmem:[#allocation18 + $0x680] sm:$0xff]
    %v5794 = vld [vmem:[#allocation18 + $0x688] sm:$0xff]
    %v5795 = vld [vmem:[#allocation18 + $0x690] sm:$0xff]
    %v5796 = vld [vmem:[#allocation18 + $0x698] sm:$0xff]
    %v5797 = vld [vmem:[#allocation18 + $0x6a0] sm:$0xff]
    %v5798 = vld [vmem:[#allocation18 + $0x6a8] sm:$0xff]
    %v5799 = vld [vmem:[#allocation18 + $0x6b0] sm:$0xff]
    %v5800 = vld [vmem:[#allocation18 + $0x6b8] sm:$0xff]
    %v5801 = vld [vmem:[#allocation18 + $0x6c0] sm:$0xff]
    %v5802 = vld [vmem:[#allocation18 + $0x6c8] sm:$0xff]
    %v5803 = vld [vmem:[#allocation18 + $0x6d0] sm:$0xff]
    %v5804 = vld [vmem:[#allocation18 + $0x6d8] sm:$0xff]
    %v5805 = vld [vmem:[#allocation18 + $0x6e0] sm:$0xff]
    %v5806 = vld [vmem:[#allocation18 + $0x6e8] sm:$0xff]
    %v5807 = vld [vmem:[#allocation18 + $0x6f0] sm:$0xff]
    %v5808 = vld [vmem:[#allocation18 + $0x6f8] sm:$0xff]
    %v5809 = vld [vmem:[#allocation18 + $0x700] sm:$0xff]
    %v5810 = vld [vmem:[#allocation18 + $0x708] sm:$0xff]
    %v5811 = vld [vmem:[#allocation18 + $0x710] sm:$0xff]
    %v5812 = vld [vmem:[#allocation18 + $0x718] sm:$0xff]
    %v5813 = vld [vmem:[#allocation18 + $0x720] sm:$0xff]
    %v5814 = vld [vmem:[#allocation18 + $0x728] sm:$0xff]
    %v5815 = vld [vmem:[#allocation18 + $0x730] sm:$0xff]
    %v5816 = vld [vmem:[#allocation18 + $0x738] sm:$0xff]
    %v5817 = vld [vmem:[#allocation18 + $0x740] sm:$0xff]
    %v5818 = vld [vmem:[#allocation18 + $0x748] sm:$0xff]
    %v5819 = vld [vmem:[#allocation18 + $0x750] sm:$0xff]
    %v5820 = vld [vmem:[#allocation18 + $0x758] sm:$0xff]
    %v5821 = vld [vmem:[#allocation18 + $0x760] sm:$0xff]
    %v5822 = vld [vmem:[#allocation18 + $0x768] sm:$0xff]
    %v5823 = vld [vmem:[#allocation18 + $0x770] sm:$0xff]
    %v5824 = vld [vmem:[#allocation18 + $0x778] sm:$0xff]
    %v5825 = vld [vmem:[#allocation18 + $0x780] sm:$0xff]
    %v5826 = vld [vmem:[#allocation18 + $0x788] sm:$0xff]
    %v5827 = vld [vmem:[#allocation18 + $0x790] sm:$0xff]
    %v5828 = vld [vmem:[#allocation18 + $0x798] sm:$0xff]
    %v5829 = vld [vmem:[#allocation18 + $0x7a0] sm:$0xff]
    %v5830 = vld [vmem:[#allocation18 + $0x7a8] sm:$0xff]
    %v5831 = vld [vmem:[#allocation18 + $0x7b0] sm:$0xff]
    %v5832 = vld [vmem:[#allocation18 + $0x7b8] sm:$0xff]
    %v5833 = vld [vmem:[#allocation18 + $0x7c0] sm:$0xff]
    %v5834 = vld [vmem:[#allocation18 + $0x7c8] sm:$0xff]
    %v5835 = vld [vmem:[#allocation18 + $0x7d0] sm:$0xff]
    %v5836 = vld [vmem:[#allocation18 + $0x7d8] sm:$0xff]
    %v5837 = vld [vmem:[#allocation18 + $0x7e0] sm:$0xff]
    %v5838 = vld [vmem:[#allocation18 + $0x7e8] sm:$0xff]
    %v5839 = vld [vmem:[#allocation18 + $0x7f0] sm:$0xff]
    %v5840 = vld [vmem:[#allocation18 + $0x7f8] sm:$0xff]
    %v5841 = vld [vmem:[#allocation18 + $0x800] sm:$0xff]
    %v5842 = vld [vmem:[#allocation18 + $0x808] sm:$0xff]
    %v5843 = vld [vmem:[#allocation18 + $0x810] sm:$0xff]
    %v5844 = vld [vmem:[#allocation18 + $0x818] sm:$0xff]
    %v5845 = vld [vmem:[#allocation18 + $0x820] sm:$0xff]
    %v5846 = vld [vmem:[#allocation18 + $0x828] sm:$0xff]
    %v5847 = vld [vmem:[#allocation18 + $0x830] sm:$0xff]
    %v5848 = vld [vmem:[#allocation18 + $0x838] sm:$0xff]
    %v5849 = vld [vmem:[#allocation18 + $0x840] sm:$0xff]
    %v5850 = vld [vmem:[#allocation18 + $0x848] sm:$0xff]
    %v5851 = vld [vmem:[#allocation18 + $0x850] sm:$0xff]
    %v5852 = vld [vmem:[#allocation18 + $0x858] sm:$0xff]
    %v5853 = vld [vmem:[#allocation18 + $0x860] sm:$0xff]
    %v5854 = vld [vmem:[#allocation18 + $0x868] sm:$0xff]
    %v5855 = vld [vmem:[#allocation18 + $0x870] sm:$0xff]
    %v5856 = vld [vmem:[#allocation18 + $0x878] sm:$0xff]
    %v5857 = vld [vmem:[#allocation18 + $0x880] sm:$0xff]
    %v5858 = vld [vmem:[#allocation18 + $0x888] sm:$0xff]
    %v5859 = vld [vmem:[#allocation18 + $0x890] sm:$0xff]
    %v5860 = vld [vmem:[#allocation18 + $0x898] sm:$0xff]
    %v5861 = vld [vmem:[#allocation18 + $0x8a0] sm:$0xff]
    %v5862 = vld [vmem:[#allocation18 + $0x8a8] sm:$0xff]
    %v5863 = vld [vmem:[#allocation18 + $0x8b0] sm:$0xff]
    %v5864 = vld [vmem:[#allocation18 + $0x8b8] sm:$0xff]
    %v5865 = vld [vmem:[#allocation18 + $0x8c0] sm:$0xff]
    %v5866 = vld [vmem:[#allocation18 + $0x8c8] sm:$0xff]
    %v5867 = vld [vmem:[#allocation18 + $0x8d0] sm:$0xff]
    %v5868 = vld [vmem:[#allocation18 + $0x8d8] sm:$0xff]
    %v5869 = vld [vmem:[#allocation18 + $0x8e0] sm:$0xff]
    %v5870 = vld [vmem:[#allocation18 + $0x8e8] sm:$0xff]
    %v5871 = vld [vmem:[#allocation18 + $0x8f0] sm:$0xff]
    %v5872 = vld [vmem:[#allocation18 + $0x8f8] sm:$0xff]
    %v5873 = vld [vmem:[#allocation19] sm:$0x3f]
    %v5875 = vperm.slane %v5873, 0
    %v5876 = vperm.slane %v5873, 1
    %v5877 = vperm.slane %v5873, 2
    %v5878 = vperm.slane %v5873, 3
    %v5879 = vperm.slane %v5873, 4
    %v5880 = vperm.slane %v5873, 5
    %v6175 = vunpack.c.l.b16 %v5585
    %v6176 = vunpack.c.h.b16 %v5585
    %v6177 = vunpack.c.l.b16 %v5586
    %v6178 = vunpack.c.h.b16 %v5586
    %v6179 = vunpack.c.l.b16 %v5587
    %v6180 = vunpack.c.h.b16 %v5587
    %v6181 = vunpack.c.l.b16 %v5588
    %v6182 = vunpack.c.h.b16 %v5588
    %v6183 = vunpack.c.l.b16 %v5589
    %v6184 = vunpack.c.h.b16 %v5589
    %v6185 = vunpack.c.l.b16 %v5590
    %v6186 = vunpack.c.h.b16 %v5590
    %v6187 = vunpack.c.l.b16 %v5591
    %v6188 = vunpack.c.h.b16 %v5591
    %v6189 = vunpack.c.l.b16 %v5592
    %v6190 = vunpack.c.h.b16 %v5592
    %v6191 = vunpack.c.l.b16 %v5593
    %v6192 = vunpack.c.h.b16 %v5593
    %v6193 = vunpack.c.l.b16 %v5594
    %v6194 = vunpack.c.h.b16 %v5594
    %v6195 = vunpack.c.l.b16 %v5595
    %v6196 = vunpack.c.h.b16 %v5595
    %v6197 = vunpack.c.l.b16 %v5596
    %v6198 = vunpack.c.h.b16 %v5596
    %v6199 = vunpack.c.l.b16 %v5597
    %v6200 = vunpack.c.h.b16 %v5597
    %v6201 = vunpack.c.l.b16 %v5598
    %v6202 = vunpack.c.h.b16 %v5598
    %v6203 = vunpack.c.l.b16 %v5599
    %v6204 = vunpack.c.h.b16 %v5599
    %v6205 = vunpack.c.l.b16 %v5600
    %v6206 = vunpack.c.h.b16 %v5600
    %v6207 = vunpack.c.l.b16 %v5601
    %v6208 = vunpack.c.h.b16 %v5601
    %v6209 = vunpack.c.l.b16 %v5602
    %v6210 = vunpack.c.h.b16 %v5602
    %v6211 = vunpack.c.l.b16 %v5603
    %v6212 = vunpack.c.h.b16 %v5603
    %v6213 = vunpack.c.l.b16 %v5604
    %v6214 = vunpack.c.h.b16 %v5604
    %v6215 = vunpack.c.l.b16 %v5605
    %v6216 = vunpack.c.h.b16 %v5605
    %v6217 = vunpack.c.l.b16 %v5606
    %v6218 = vunpack.c.h.b16 %v5606
    %v6219 = vunpack.c.l.b16 %v5607
    %v6220 = vunpack.c.h.b16 %v5607
    %v6221 = vunpack.c.l.b16 %v5608
    %v6222 = vunpack.c.h.b16 %v5608
    %v6223 = vunpack.c.l.b16 %v5609
    %v6224 = vunpack.c.h.b16 %v5609
    %v6225 = vunpack.c.l.b16 %v5610
    %v6226 = vunpack.c.h.b16 %v5610
    %v6227 = vunpack.c.l.b16 %v5611
    %v6228 = vunpack.c.h.b16 %v5611
    %v6229 = vunpack.c.l.b16 %v5612
    %v6230 = vunpack.c.h.b16 %v5612
    %v6231 = vunpack.c.l.b16 %v5613
    %v6232 = vunpack.c.h.b16 %v5613
    %v6233 = vunpack.c.l.b16 %v5614
    %v6234 = vunpack.c.h.b16 %v5614
    %v6235 = vunpack.c.l.b16 %v5615
    %v6236 = vunpack.c.h.b16 %v5615
    %v6237 = vunpack.c.l.b16 %v5616
    %v6238 = vunpack.c.h.b16 %v5616
    %v6239 = vunpack.c.l.b16 %v5617
    %v6240 = vunpack.c.h.b16 %v5617
    %v6241 = vunpack.c.l.b16 %v5618
    %v6242 = vunpack.c.h.b16 %v5618
    %v6243 = vunpack.c.l.b16 %v5619
    %v6244 = vunpack.c.h.b16 %v5619
    %v6245 = vunpack.c.l.b16 %v5620
    %v6246 = vunpack.c.h.b16 %v5620
    %v6247 = vunpack.c.l.b16 %v5621
    %v6248 = vunpack.c.h.b16 %v5621
    %v6249 = vunpack.c.l.b16 %v5622
    %v6250 = vunpack.c.h.b16 %v5622
    %v6251 = vunpack.c.l.b16 %v5623
    %v6252 = vunpack.c.h.b16 %v5623
    %v6253 = vunpack.c.l.b16 %v5624
    %v6254 = vunpack.c.h.b16 %v5624
    %v6255 = vunpack.c.l.b16 %v5625
    %v6256 = vunpack.c.h.b16 %v5625
    %v6257 = vunpack.c.l.b16 %v5626
    %v6258 = vunpack.c.h.b16 %v5626
    %v6259 = vunpack.c.l.b16 %v5627
    %v6260 = vunpack.c.h.b16 %v5627
    %v6261 = vunpack.c.l.b16 %v5628
    %v6262 = vunpack.c.h.b16 %v5628
    %v6263 = vunpack.c.l.b16 %v5629
    %v6264 = vunpack.c.h.b16 %v5629
    %v6265 = vunpack.c.l.b16 %v5630
    %v6266 = vunpack.c.h.b16 %v5630
    %v6267 = vunpack.c.l.b16 %v5631
    %v6268 = vunpack.c.h.b16 %v5631
    %v6269 = vunpack.c.l.b16 %v5632
    %v6270 = vunpack.c.h.b16 %v5632
    %v6271 = vunpack.c.l.b16 %v5633
    %v6272 = vunpack.c.h.b16 %v5633
    %v6273 = vunpack.c.l.b16 %v5634
    %v6274 = vunpack.c.h.b16 %v5634
    %v6275 = vunpack.c.l.b16 %v5635
    %v6276 = vunpack.c.h.b16 %v5635
    %v6277 = vunpack.c.l.b16 %v5636
    %v6278 = vunpack.c.h.b16 %v5636
    %v6279 = vunpack.c.l.b16 %v5637
    %v6280 = vunpack.c.h.b16 %v5637
    %v6281 = vunpack.c.l.b16 %v5638
    %v6282 = vunpack.c.h.b16 %v5638
    %v6283 = vunpack.c.l.b16 %v5639
    %v6284 = vunpack.c.h.b16 %v5639
    %v6285 = vunpack.c.l.b16 %v5640
    %v6286 = vunpack.c.h.b16 %v5640
    %v6287 = vunpack.c.l.b16 %v5641
    %v6288 = vunpack.c.h.b16 %v5641
    %v6289 = vunpack.c.l.b16 %v5642
    %v6290 = vunpack.c.h.b16 %v5642
    %v6291 = vunpack.c.l.b16 %v5643
    %v6292 = vunpack.c.h.b16 %v5643
    %v6293 = vunpack.c.l.b16 %v5644
    %v6294 = vunpack.c.h.b16 %v5644
    %v6295 = vunpack.c.l.b16 %v5645
    %v6296 = vunpack.c.h.b16 %v5645
    %v6297 = vunpack.c.l.b16 %v5646
    %v6298 = vunpack.c.h.b16 %v5646
    %v6299 = vunpack.c.l.b16 %v5647
    %v6300 = vunpack.c.h.b16 %v5647
    %v6301 = vunpack.c.l.b16 %v5648
    %v6302 = vunpack.c.h.b16 %v5648
    %v6303 = vunpack.c.l.b16 %v5649
    %v6304 = vunpack.c.h.b16 %v5649
    %v6305 = vunpack.c.l.b16 %v5650
    %v6306 = vunpack.c.h.b16 %v5650
    %v6307 = vunpack.c.l.b16 %v5651
    %v6308 = vunpack.c.h.b16 %v5651
    %v6309 = vunpack.c.l.b16 %v5652
    %v6310 = vunpack.c.h.b16 %v5652
    %v6311 = vunpack.c.l.b16 %v5653
    %v6312 = vunpack.c.h.b16 %v5653
    %v6313 = vunpack.c.l.b16 %v5654
    %v6314 = vunpack.c.h.b16 %v5654
    %v6315 = vunpack.c.l.b16 %v5655
    %v6316 = vunpack.c.h.b16 %v5655
    %v6317 = vunpack.c.l.b16 %v5656
    %v6318 = vunpack.c.h.b16 %v5656
    %v6319 = vunpack.c.l.b16 %v5657
    %v6320 = vunpack.c.h.b16 %v5657
    %v6321 = vunpack.c.l.b16 %v5658
    %v6322 = vunpack.c.h.b16 %v5658
    %v6323 = vunpack.c.l.b16 %v5659
    %v6324 = vunpack.c.h.b16 %v5659
    %v6325 = vunpack.c.l.b16 %v5660
    %v6326 = vunpack.c.h.b16 %v5660
    %v6327 = vunpack.c.l.b16 %v5661
    %v6328 = vunpack.c.h.b16 %v5661
    %v6329 = vunpack.c.l.b16 %v5662
    %v6330 = vunpack.c.h.b16 %v5662
    %v6331 = vunpack.c.l.b16 %v5663
    %v6332 = vunpack.c.h.b16 %v5663
    %v6333 = vunpack.c.l.b16 %v5664
    %v6334 = vunpack.c.h.b16 %v5664
    %v6335 = vunpack.c.l.b16 %v5665
    %v6336 = vunpack.c.h.b16 %v5665
    %v6337 = vunpack.c.l.b16 %v5666
    %v6338 = vunpack.c.h.b16 %v5666
    %v6339 = vunpack.c.l.b16 %v5667
    %v6340 = vunpack.c.h.b16 %v5667
    %v6341 = vunpack.c.l.b16 %v5668
    %v6342 = vunpack.c.h.b16 %v5668
    %v6343 = vunpack.c.l.b16 %v5669
    %v6344 = vunpack.c.h.b16 %v5669
    %v6345 = vunpack.c.l.b16 %v5670
    %v6346 = vunpack.c.h.b16 %v5670
    %v6347 = vunpack.c.l.b16 %v5671
    %v6348 = vunpack.c.h.b16 %v5671
    %v6349 = vunpack.c.l.b16 %v5672
    %v6350 = vunpack.c.h.b16 %v5672
    %v6351 = vunpack.c.l.b16 %v5673
    %v6352 = vunpack.c.h.b16 %v5673
    %v6353 = vunpack.c.l.b16 %v5674
    %v6354 = vunpack.c.h.b16 %v5674
    %v6355 = vunpack.c.l.b16 %v5675
    %v6356 = vunpack.c.h.b16 %v5675
    %v6357 = vunpack.c.l.b16 %v5676
    %v6358 = vunpack.c.h.b16 %v5676
    %v6359 = vunpack.c.l.b16 %v5677
    %v6360 = vunpack.c.h.b16 %v5677
    %v6361 = vunpack.c.l.b16 %v5678
    %v6362 = vunpack.c.h.b16 %v5678
    %v6363 = vunpack.c.l.b16 %v5679
    %v6364 = vunpack.c.h.b16 %v5679
    %v6365 = vunpack.c.l.b16 %v5680
    %v6366 = vunpack.c.h.b16 %v5680
    %v6367 = vunpack.c.l.b16 %v5681
    %v6368 = vunpack.c.h.b16 %v5681
    %v6369 = vunpack.c.l.b16 %v5682
    %v6370 = vunpack.c.h.b16 %v5682
    %v6371 = vunpack.c.l.b16 %v5683
    %v6372 = vunpack.c.h.b16 %v5683
    %v6373 = vunpack.c.l.b16 %v5684
    %v6374 = vunpack.c.h.b16 %v5684
    %v6375 = vunpack.c.l.b16 %v5685
    %v6376 = vunpack.c.h.b16 %v5685
    %v6377 = vunpack.c.l.b16 %v5686
    %v6378 = vunpack.c.h.b16 %v5686
    %v6379 = vunpack.c.l.b16 %v5687
    %v6380 = vunpack.c.h.b16 %v5687
    %v6381 = vunpack.c.l.b16 %v5688
    %v6382 = vunpack.c.h.b16 %v5688
    %v6383 = vunpack.c.l.b16 %v5689
    %v6384 = vunpack.c.h.b16 %v5689
    %v6385 = vunpack.c.l.b16 %v5690
    %v6386 = vunpack.c.h.b16 %v5690
    %v6387 = vunpack.c.l.b16 %v5691
    %v6388 = vunpack.c.h.b16 %v5691
    %v6389 = vunpack.c.l.b16 %v5692
    %v6390 = vunpack.c.h.b16 %v5692
    %v6391 = vunpack.c.l.b16 %v5693
    %v6392 = vunpack.c.h.b16 %v5693
    %v6393 = vunpack.c.l.b16 %v5694
    %v6394 = vunpack.c.h.b16 %v5694
    %v6395 = vunpack.c.l.b16 %v5695
    %v6396 = vunpack.c.h.b16 %v5695
    %v6397 = vunpack.c.l.b16 %v5696
    %v6398 = vunpack.c.h.b16 %v5696
    %v6399 = vunpack.c.l.b16 %v5697
    %v6400 = vunpack.c.h.b16 %v5697
    %v6401 = vunpack.c.l.b16 %v5698
    %v6402 = vunpack.c.h.b16 %v5698
    %v6403 = vunpack.c.l.b16 %v5699
    %v6404 = vunpack.c.h.b16 %v5699
    %v6405 = vunpack.c.l.b16 %v5700
    %v6406 = vunpack.c.h.b16 %v5700
    %v6407 = vunpack.c.l.b16 %v5701
    %v6408 = vunpack.c.h.b16 %v5701
    %v6409 = vunpack.c.l.b16 %v5702
    %v6410 = vunpack.c.h.b16 %v5702
    %v6411 = vunpack.c.l.b16 %v5703
    %v6412 = vunpack.c.h.b16 %v5703
    %v6413 = vunpack.c.l.b16 %v5704
    %v6414 = vunpack.c.h.b16 %v5704
    %v6415 = vunpack.c.l.b16 %v5705
    %v6416 = vunpack.c.h.b16 %v5705
    %v6417 = vunpack.c.l.b16 %v5706
    %v6418 = vunpack.c.h.b16 %v5706
    %v6419 = vunpack.c.l.b16 %v5707
    %v6420 = vunpack.c.h.b16 %v5707
    %v6421 = vunpack.c.l.b16 %v5708
    %v6422 = vunpack.c.h.b16 %v5708
    %v6423 = vunpack.c.l.b16 %v5709
    %v6424 = vunpack.c.h.b16 %v5709
    %v6425 = vunpack.c.l.b16 %v5710
    %v6426 = vunpack.c.h.b16 %v5710
    %v6427 = vunpack.c.l.b16 %v5711
    %v6428 = vunpack.c.h.b16 %v5711
    %v6429 = vunpack.c.l.b16 %v5712
    %v6430 = vunpack.c.h.b16 %v5712
    %v6431 = vunpack.c.l.b16 %v5713
    %v6432 = vunpack.c.h.b16 %v5713
    %v6433 = vunpack.c.l.b16 %v5714
    %v6434 = vunpack.c.h.b16 %v5714
    %v6435 = vunpack.c.l.b16 %v5715
    %v6436 = vunpack.c.h.b16 %v5715
    %v6437 = vunpack.c.l.b16 %v5716
    %v6438 = vunpack.c.h.b16 %v5716
    %v6439 = vunpack.c.l.b16 %v5717
    %v6440 = vunpack.c.h.b16 %v5717
    %v6441 = vunpack.c.l.b16 %v5718
    %v6442 = vunpack.c.h.b16 %v5718
    %v6443 = vunpack.c.l.b16 %v5719
    %v6444 = vunpack.c.h.b16 %v5719
    %v6445 = vunpack.c.l.b16 %v5720
    %v6446 = vunpack.c.h.b16 %v5720
    %v6447 = vunpack.c.l.b16 %v5721
    %v6448 = vunpack.c.h.b16 %v5721
    %v6449 = vunpack.c.l.b16 %v5722
    %v6450 = vunpack.c.h.b16 %v5722
    %v6451 = vunpack.c.l.b16 %v5723
    %v6452 = vunpack.c.h.b16 %v5723
    %v6453 = vunpack.c.l.b16 %v5724
    %v6454 = vunpack.c.h.b16 %v5724
    %v6455 = vunpack.c.l.b16 %v5725
    %v6456 = vunpack.c.h.b16 %v5725
    %v6457 = vunpack.c.l.b16 %v5726
    %v6458 = vunpack.c.h.b16 %v5726
    %v6459 = vunpack.c.l.b16 %v5727
    %v6460 = vunpack.c.h.b16 %v5727
    %v6461 = vunpack.c.l.b16 %v5728
    %v6462 = vunpack.c.h.b16 %v5728
    %v6463 = vunpack.c.l.b16 %v5729
    %v6464 = vunpack.c.h.b16 %v5729
    %v6465 = vunpack.c.l.b16 %v5730
    %v6466 = vunpack.c.h.b16 %v5730
    %v6467 = vunpack.c.l.b16 %v5731
    %v6468 = vunpack.c.h.b16 %v5731
    %v6469 = vunpack.c.l.b16 %v5732
    %v6470 = vunpack.c.h.b16 %v5732
    %v6471 = vunpack.c.l.b16 %v5733
    %v6472 = vunpack.c.h.b16 %v5733
    %v6473 = vunpack.c.l.b16 %v5734
    %v6474 = vunpack.c.h.b16 %v5734
    %v6475 = vunpack.c.l.b16 %v5735
    %v6476 = vunpack.c.h.b16 %v5735
    %v6477 = vunpack.c.l.b16 %v5736
    %v6478 = vunpack.c.h.b16 %v5736
    %v6479 = vunpack.c.l.b16 %v5737
    %v6480 = vunpack.c.h.b16 %v5737
    %v6481 = vunpack.c.l.b16 %v5738
    %v6482 = vunpack.c.h.b16 %v5738
    %v6483 = vunpack.c.l.b16 %v5739
    %v6484 = vunpack.c.h.b16 %v5739
    %v6485 = vunpack.c.l.b16 %v5740
    %v6486 = vunpack.c.h.b16 %v5740
    %v6487 = vunpack.c.l.b16 %v5741
    %v6488 = vunpack.c.h.b16 %v5741
    %v6489 = vunpack.c.l.b16 %v5742
    %v6490 = vunpack.c.h.b16 %v5742
    %v6491 = vunpack.c.l.b16 %v5743
    %v6492 = vunpack.c.h.b16 %v5743
    %v6493 = vunpack.c.l.b16 %v5744
    %v6494 = vunpack.c.h.b16 %v5744
    %v6495 = vunpack.c.l.b16 %v5745
    %v6496 = vunpack.c.h.b16 %v5745
    %v6497 = vunpack.c.l.b16 %v5746
    %v6498 = vunpack.c.h.b16 %v5746
    %v6499 = vunpack.c.l.b16 %v5747
    %v6500 = vunpack.c.h.b16 %v5747
    %v6501 = vunpack.c.l.b16 %v5748
    %v6502 = vunpack.c.h.b16 %v5748
    %v6503 = vunpack.c.l.b16 %v5749
    %v6504 = vunpack.c.h.b16 %v5749
    %v6505 = vunpack.c.l.b16 %v5750
    %v6506 = vunpack.c.h.b16 %v5750
    %v6507 = vunpack.c.l.b16 %v5751
    %v6508 = vunpack.c.h.b16 %v5751
    %v6509 = vunpack.c.l.b16 %v5752
    %v6510 = vunpack.c.h.b16 %v5752
    %v6511 = vunpack.c.l.b16 %v5753
    %v6512 = vunpack.c.h.b16 %v5753
    %v6513 = vunpack.c.l.b16 %v5754
    %v6514 = vunpack.c.h.b16 %v5754
    %v6515 = vunpack.c.l.b16 %v5755
    %v6516 = vunpack.c.h.b16 %v5755
    %v6517 = vunpack.c.l.b16 %v5756
    %v6518 = vunpack.c.h.b16 %v5756
    %v6519 = vunpack.c.l.b16 %v5757
    %v6520 = vunpack.c.h.b16 %v5757
    %v6521 = vunpack.c.l.b16 %v5758
    %v6522 = vunpack.c.h.b16 %v5758
    %v6523 = vunpack.c.l.b16 %v5759
    %v6524 = vunpack.c.h.b16 %v5759
    %v6525 = vunpack.c.l.b16 %v5760
    %v6526 = vunpack.c.h.b16 %v5760
    %v6527 = vunpack.c.l.b16 %v5761
    %v6528 = vunpack.c.h.b16 %v5761
    %v6529 = vunpack.c.l.b16 %v5762
    %v6530 = vunpack.c.h.b16 %v5762
    %v6531 = vunpack.c.l.b16 %v5763
    %v6532 = vunpack.c.h.b16 %v5763
    %v6533 = vunpack.c.l.b16 %v5764
    %v6534 = vunpack.c.h.b16 %v5764
    %v6535 = vunpack.c.l.b16 %v5765
    %v6536 = vunpack.c.h.b16 %v5765
    %v6537 = vunpack.c.l.b16 %v5766
    %v6538 = vunpack.c.h.b16 %v5766
    %v6539 = vunpack.c.l.b16 %v5767
    %v6540 = vunpack.c.h.b16 %v5767
    %v6541 = vunpack.c.l.b16 %v5768
    %v6542 = vunpack.c.h.b16 %v5768
    %v6543 = vunpack.c.l.b16 %v5769
    %v6544 = vunpack.c.h.b16 %v5769
    %v6545 = vunpack.c.l.b16 %v5770
    %v6546 = vunpack.c.h.b16 %v5770
    %v6547 = vunpack.c.l.b16 %v5771
    %v6548 = vunpack.c.h.b16 %v5771
    %v6549 = vunpack.c.l.b16 %v5772
    %v6550 = vunpack.c.h.b16 %v5772
    %v6551 = vunpack.c.l.b16 %v5773
    %v6552 = vunpack.c.h.b16 %v5773
    %v6553 = vunpack.c.l.b16 %v5774
    %v6554 = vunpack.c.h.b16 %v5774
    %v6555 = vunpack.c.l.b16 %v5775
    %v6556 = vunpack.c.h.b16 %v5775
    %v6557 = vunpack.c.l.b16 %v5776
    %v6558 = vunpack.c.h.b16 %v5776
    %v6559 = vunpack.c.l.b16 %v5777
    %v6560 = vunpack.c.h.b16 %v5777
    %v6561 = vunpack.c.l.b16 %v5778
    %v6562 = vunpack.c.h.b16 %v5778
    %v6563 = vunpack.c.l.b16 %v5779
    %v6564 = vunpack.c.h.b16 %v5779
    %v6565 = vunpack.c.l.b16 %v5780
    %v6566 = vunpack.c.h.b16 %v5780
    %v6567 = vunpack.c.l.b16 %v5781
    %v6568 = vunpack.c.h.b16 %v5781
    %v6569 = vunpack.c.l.b16 %v5782
    %v6570 = vunpack.c.h.b16 %v5782
    %v6571 = vunpack.c.l.b16 %v5783
    %v6572 = vunpack.c.h.b16 %v5783
    %v6573 = vunpack.c.l.b16 %v5784
    %v6574 = vunpack.c.h.b16 %v5784
    %v6575 = vunpack.c.l.b16 %v5785
    %v6576 = vunpack.c.h.b16 %v5785
    %v6577 = vunpack.c.l.b16 %v5786
    %v6578 = vunpack.c.h.b16 %v5786
    %v6579 = vunpack.c.l.b16 %v5787
    %v6580 = vunpack.c.h.b16 %v5787
    %v6581 = vunpack.c.l.b16 %v5788
    %v6582 = vunpack.c.h.b16 %v5788
    %v6583 = vunpack.c.l.b16 %v5789
    %v6584 = vunpack.c.h.b16 %v5789
    %v6585 = vunpack.c.l.b16 %v5790
    %v6586 = vunpack.c.h.b16 %v5790
    %v6587 = vunpack.c.l.b16 %v5791
    %v6588 = vunpack.c.h.b16 %v5791
    %v6589 = vunpack.c.l.b16 %v5792
    %v6590 = vunpack.c.h.b16 %v5792
    %v6591 = vunpack.c.l.b16 %v5793
    %v6592 = vunpack.c.h.b16 %v5793
    %v6593 = vunpack.c.l.b16 %v5794
    %v6594 = vunpack.c.h.b16 %v5794
    %v6595 = vunpack.c.l.b16 %v5795
    %v6596 = vunpack.c.h.b16 %v5795
    %v6597 = vunpack.c.l.b16 %v5796
    %v6598 = vunpack.c.h.b16 %v5796
    %v6599 = vunpack.c.l.b16 %v5797
    %v6600 = vunpack.c.h.b16 %v5797
    %v6601 = vunpack.c.l.b16 %v5798
    %v6602 = vunpack.c.h.b16 %v5798
    %v6603 = vunpack.c.l.b16 %v5799
    %v6604 = vunpack.c.h.b16 %v5799
    %v6605 = vunpack.c.l.b16 %v5800
    %v6606 = vunpack.c.h.b16 %v5800
    %v6607 = vunpack.c.l.b16 %v5801
    %v6608 = vunpack.c.h.b16 %v5801
    %v6609 = vunpack.c.l.b16 %v5802
    %v6610 = vunpack.c.h.b16 %v5802
    %v6611 = vunpack.c.l.b16 %v5803
    %v6612 = vunpack.c.h.b16 %v5803
    %v6613 = vunpack.c.l.b16 %v5804
    %v6614 = vunpack.c.h.b16 %v5804
    %v6615 = vunpack.c.l.b16 %v5805
    %v6616 = vunpack.c.h.b16 %v5805
    %v6617 = vunpack.c.l.b16 %v5806
    %v6618 = vunpack.c.h.b16 %v5806
    %v6619 = vunpack.c.l.b16 %v5807
    %v6620 = vunpack.c.h.b16 %v5807
    %v6621 = vunpack.c.l.b16 %v5808
    %v6622 = vunpack.c.h.b16 %v5808
    %v6623 = vunpack.c.l.b16 %v5809
    %v6624 = vunpack.c.h.b16 %v5809
    %v6625 = vunpack.c.l.b16 %v5810
    %v6626 = vunpack.c.h.b16 %v5810
    %v6627 = vunpack.c.l.b16 %v5811
    %v6628 = vunpack.c.h.b16 %v5811
    %v6629 = vunpack.c.l.b16 %v5812
    %v6630 = vunpack.c.h.b16 %v5812
    %v6631 = vunpack.c.l.b16 %v5813
    %v6632 = vunpack.c.h.b16 %v5813
    %v6633 = vunpack.c.l.b16 %v5814
    %v6634 = vunpack.c.h.b16 %v5814
    %v6635 = vunpack.c.l.b16 %v5815
    %v6636 = vunpack.c.h.b16 %v5815
    %v6637 = vunpack.c.l.b16 %v5816
    %v6638 = vunpack.c.h.b16 %v5816
    %v6639 = vunpack.c.l.b16 %v5817
    %v6640 = vunpack.c.h.b16 %v5817
    %v6641 = vunpack.c.l.b16 %v5818
    %v6642 = vunpack.c.h.b16 %v5818
    %v6643 = vunpack.c.l.b16 %v5819
    %v6644 = vunpack.c.h.b16 %v5819
    %v6645 = vunpack.c.l.b16 %v5820
    %v6646 = vunpack.c.h.b16 %v5820
    %v6647 = vunpack.c.l.b16 %v5821
    %v6648 = vunpack.c.h.b16 %v5821
    %v6649 = vunpack.c.l.b16 %v5822
    %v6650 = vunpack.c.h.b16 %v5822
    %v6651 = vunpack.c.l.b16 %v5823
    %v6652 = vunpack.c.h.b16 %v5823
    %v6653 = vunpack.c.l.b16 %v5824
    %v6654 = vunpack.c.h.b16 %v5824
    %v6655 = vunpack.c.l.b16 %v5825
    %v6656 = vunpack.c.h.b16 %v5825
    %v6657 = vunpack.c.l.b16 %v5826
    %v6658 = vunpack.c.h.b16 %v5826
    %v6659 = vunpack.c.l.b16 %v5827
    %v6660 = vunpack.c.h.b16 %v5827
    %v6661 = vunpack.c.l.b16 %v5828
    %v6662 = vunpack.c.h.b16 %v5828
    %v6663 = vunpack.c.l.b16 %v5829
    %v6664 = vunpack.c.h.b16 %v5829
    %v6665 = vunpack.c.l.b16 %v5830
    %v6666 = vunpack.c.h.b16 %v5830
    %v6667 = vunpack.c.l.b16 %v5831
    %v6668 = vunpack.c.h.b16 %v5831
    %v6669 = vunpack.c.l.b16 %v5832
    %v6670 = vunpack.c.h.b16 %v5832
    %v6671 = vunpack.c.l.b16 %v5833
    %v6672 = vunpack.c.h.b16 %v5833
    %v6673 = vunpack.c.l.b16 %v5834
    %v6674 = vunpack.c.h.b16 %v5834
    %v6675 = vunpack.c.l.b16 %v5835
    %v6676 = vunpack.c.h.b16 %v5835
    %v6677 = vunpack.c.l.b16 %v5836
    %v6678 = vunpack.c.h.b16 %v5836
    %v6679 = vunpack.c.l.b16 %v5837
    %v6680 = vunpack.c.h.b16 %v5837
    %v6681 = vunpack.c.l.b16 %v5838
    %v6682 = vunpack.c.h.b16 %v5838
    %v6683 = vunpack.c.l.b16 %v5839
    %v6684 = vunpack.c.h.b16 %v5839
    %v6685 = vunpack.c.l.b16 %v5840
    %v6686 = vunpack.c.h.b16 %v5840
    %v6687 = vunpack.c.l.b16 %v5841
    %v6688 = vunpack.c.h.b16 %v5841
    %v6689 = vunpack.c.l.b16 %v5842
    %v6690 = vunpack.c.h.b16 %v5842
    %v6691 = vunpack.c.l.b16 %v5843
    %v6692 = vunpack.c.h.b16 %v5843
    %v6693 = vunpack.c.l.b16 %v5844
    %v6694 = vunpack.c.h.b16 %v5844
    %v6695 = vunpack.c.l.b16 %v5845
    %v6696 = vunpack.c.h.b16 %v5845
    %v6697 = vunpack.c.l.b16 %v5846
    %v6698 = vunpack.c.h.b16 %v5846
    %v6699 = vunpack.c.l.b16 %v5847
    %v6700 = vunpack.c.h.b16 %v5847
    %v6701 = vunpack.c.l.b16 %v5848
    %v6702 = vunpack.c.h.b16 %v5848
    %v6703 = vunpack.c.l.b16 %v5849
    %v6704 = vunpack.c.h.b16 %v5849
    %v6705 = vunpack.c.l.b16 %v5850
    %v6706 = vunpack.c.h.b16 %v5850
    %v6707 = vunpack.c.l.b16 %v5851
    %v6708 = vunpack.c.h.b16 %v5851
    %v6709 = vunpack.c.l.b16 %v5852
    %v6710 = vunpack.c.h.b16 %v5852
    %v6711 = vunpack.c.l.b16 %v5853
    %v6712 = vunpack.c.h.b16 %v5853
    %v6713 = vunpack.c.l.b16 %v5854
    %v6714 = vunpack.c.h.b16 %v5854
    %v6715 = vunpack.c.l.b16 %v5855
    %v6716 = vunpack.c.h.b16 %v5855
    %v6717 = vunpack.c.l.b16 %v5856
    %v6718 = vunpack.c.h.b16 %v5856
    %v6719 = vunpack.c.l.b16 %v5857
    %v6720 = vunpack.c.h.b16 %v5857
    %v6721 = vunpack.c.l.b16 %v5858
    %v6722 = vunpack.c.h.b16 %v5858
    %v6723 = vunpack.c.l.b16 %v5859
    %v6724 = vunpack.c.h.b16 %v5859
    %v6725 = vunpack.c.l.b16 %v5860
    %v6726 = vunpack.c.h.b16 %v5860
    %v6727 = vunpack.c.l.b16 %v5861
    %v6728 = vunpack.c.h.b16 %v5861
    %v6729 = vunpack.c.l.b16 %v5862
    %v6730 = vunpack.c.h.b16 %v5862
    %v6731 = vunpack.c.l.b16 %v5863
    %v6732 = vunpack.c.h.b16 %v5863
    %v6733 = vunpack.c.l.b16 %v5864
    %v6734 = vunpack.c.h.b16 %v5864
    %v6735 = vunpack.c.l.b16 %v5865
    %v6736 = vunpack.c.h.b16 %v5865
    %v6737 = vunpack.c.l.b16 %v5866
    %v6738 = vunpack.c.h.b16 %v5866
    %v6739 = vunpack.c.l.b16 %v5867
    %v6740 = vunpack.c.h.b16 %v5867
    %v6741 = vunpack.c.l.b16 %v5868
    %v6742 = vunpack.c.h.b16 %v5868
    %v6743 = vunpack.c.l.b16 %v5869
    %v6744 = vunpack.c.h.b16 %v5869
    %v6745 = vunpack.c.l.b16 %v5870
    %v6746 = vunpack.c.h.b16 %v5870
    %v6747 = vunpack.c.l.b16 %v5871
    %v6748 = vunpack.c.h.b16 %v5871
    %v6749 = vunpack.c.l.b16 %v5872
    %v6750 = vunpack.c.h.b16 %v5872
    %v6751 = vpack.c.b16 %v6181, %v6175
    %v6752 = vpack.c.b16 %v6182, %v6176
    %v6753 = vpack.c.b16 %v6183, %v6177
    %v6754 = vpack.c.b16 %v6184, %v6178
    %v6755 = vpack.c.b16 %v6185, %v6179
    %v6756 = vpack.c.b16 %v6186, %v6180
    %v6757 = vpack.c.b16 %v6193, %v6187
    %v6758 = vpack.c.b16 %v6194, %v6188
    %v6759 = vpack.c.b16 %v6195, %v6189
    %v6760 = vpack.c.b16 %v6196, %v6190
    %v6761 = vpack.c.b16 %v6197, %v6191
    %v6762 = vpack.c.b16 %v6198, %v6192
    %v6763 = vpack.c.b16 %v6205, %v6199
    %v6764 = vpack.c.b16 %v6206, %v6200
    %v6765 = vpack.c.b16 %v6207, %v6201
    %v6766 = vpack.c.b16 %v6208, %v6202
    %v6767 = vpack.c.b16 %v6209, %v6203
    %v6768 = vpack.c.b16 %v6210, %v6204
    %v6769 = vpack.c.b16 %v6217, %v6211
    %v6770 = vpack.c.b16 %v6218, %v6212
    %v6771 = vpack.c.b16 %v6219, %v6213
    %v6772 = vpack.c.b16 %v6220, %v6214
    %v6773 = vpack.c.b16 %v6221, %v6215
    %v6774 = vpack.c.b16 %v6222, %v6216
    %v6775 = vpack.c.b16 %v6229, %v6223
    %v6776 = vpack.c.b16 %v6230, %v6224
    %v6777 = vpack.c.b16 %v6231, %v6225
    %v6778 = vpack.c.b16 %v6232, %v6226
    %v6779 = vpack.c.b16 %v6233, %v6227
    %v6780 = vpack.c.b16 %v6234, %v6228
    %v6781 = vpack.c.b16 %v6241, %v6235
    %v6782 = vpack.c.b16 %v6242, %v6236
    %v6783 = vpack.c.b16 %v6243, %v6237
    %v6784 = vpack.c.b16 %v6244, %v6238
    %v6785 = vpack.c.b16 %v6245, %v6239
    %v6786 = vpack.c.b16 %v6246, %v6240
    %v6787 = vpack.c.b16 %v6253, %v6247
    %v6788 = vpack.c.b16 %v6254, %v6248
    %v6789 = vpack.c.b16 %v6255, %v6249
    %v6790 = vpack.c.b16 %v6256, %v6250
    %v6791 = vpack.c.b16 %v6257, %v6251
    %v6792 = vpack.c.b16 %v6258, %v6252
    %v6793 = vpack.c.b16 %v6265, %v6259
    %v6794 = vpack.c.b16 %v6266, %v6260
    %v6795 = vpack.c.b16 %v6267, %v6261
    %v6796 = vpack.c.b16 %v6268, %v6262
    %v6797 = vpack.c.b16 %v6269, %v6263
    %v6798 = vpack.c.b16 %v6270, %v6264
    %v6799 = vpack.c.b16 %v6277, %v6271
    %v6800 = vpack.c.b16 %v6278, %v6272
    %v6801 = vpack.c.b16 %v6279, %v6273
    %v6802 = vpack.c.b16 %v6280, %v6274
    %v6803 = vpack.c.b16 %v6281, %v6275
    %v6804 = vpack.c.b16 %v6282, %v6276
    %v6805 = vpack.c.b16 %v6289, %v6283
    %v6806 = vpack.c.b16 %v6290, %v6284
    %v6807 = vpack.c.b16 %v6291, %v6285
    %v6808 = vpack.c.b16 %v6292, %v6286
    %v6809 = vpack.c.b16 %v6293, %v6287
    %v6810 = vpack.c.b16 %v6294, %v6288
    %v6811 = vpack.c.b16 %v6301, %v6295
    %v6812 = vpack.c.b16 %v6302, %v6296
    %v6813 = vpack.c.b16 %v6303, %v6297
    %v6814 = vpack.c.b16 %v6304, %v6298
    %v6815 = vpack.c.b16 %v6305, %v6299
    %v6816 = vpack.c.b16 %v6306, %v6300
    %v6817 = vpack.c.b16 %v6313, %v6307
    %v6818 = vpack.c.b16 %v6314, %v6308
    %v6819 = vpack.c.b16 %v6315, %v6309
    %v6820 = vpack.c.b16 %v6316, %v6310
    %v6821 = vpack.c.b16 %v6317, %v6311
    %v6822 = vpack.c.b16 %v6318, %v6312
    %v6823 = vpack.c.b16 %v6325, %v6319
    %v6824 = vpack.c.b16 %v6326, %v6320
    %v6825 = vpack.c.b16 %v6327, %v6321
    %v6826 = vpack.c.b16 %v6328, %v6322
    %v6827 = vpack.c.b16 %v6329, %v6323
    %v6828 = vpack.c.b16 %v6330, %v6324
    %v6829 = vpack.c.b16 %v6337, %v6331
    %v6830 = vpack.c.b16 %v6338, %v6332
    %v6831 = vpack.c.b16 %v6339, %v6333
    %v6832 = vpack.c.b16 %v6340, %v6334
    %v6833 = vpack.c.b16 %v6341, %v6335
    %v6834 = vpack.c.b16 %v6342, %v6336
    %v6835 = vpack.c.b16 %v6349, %v6343
    %v6836 = vpack.c.b16 %v6350, %v6344
    %v6837 = vpack.c.b16 %v6351, %v6345
    %v6838 = vpack.c.b16 %v6352, %v6346
    %v6839 = vpack.c.b16 %v6353, %v6347
    %v6840 = vpack.c.b16 %v6354, %v6348
    %v6841 = vpack.c.b16 %v6361, %v6355
    %v6842 = vpack.c.b16 %v6362, %v6356
    %v6843 = vpack.c.b16 %v6363, %v6357
    %v6844 = vpack.c.b16 %v6364, %v6358
    %v6845 = vpack.c.b16 %v6365, %v6359
    %v6846 = vpack.c.b16 %v6366, %v6360
    %v6847 = vpack.c.b16 %v6373, %v6367
    %v6848 = vpack.c.b16 %v6374, %v6368
    %v6849 = vpack.c.b16 %v6375, %v6369
    %v6850 = vpack.c.b16 %v6376, %v6370
    %v6851 = vpack.c.b16 %v6377, %v6371
    %v6852 = vpack.c.b16 %v6378, %v6372
    %v6853 = vpack.c.b16 %v6385, %v6379
    %v6854 = vpack.c.b16 %v6386, %v6380
    %v6855 = vpack.c.b16 %v6387, %v6381
    %v6856 = vpack.c.b16 %v6388, %v6382
    %v6857 = vpack.c.b16 %v6389, %v6383
    %v6858 = vpack.c.b16 %v6390, %v6384
    %v6859 = vpack.c.b16 %v6397, %v6391
    %v6860 = vpack.c.b16 %v6398, %v6392
    %v6861 = vpack.c.b16 %v6399, %v6393
    %v6862 = vpack.c.b16 %v6400, %v6394
    %v6863 = vpack.c.b16 %v6401, %v6395
    %v6864 = vpack.c.b16 %v6402, %v6396
    %v6865 = vpack.c.b16 %v6409, %v6403
    %v6866 = vpack.c.b16 %v6410, %v6404
    %v6867 = vpack.c.b16 %v6411, %v6405
    %v6868 = vpack.c.b16 %v6412, %v6406
    %v6869 = vpack.c.b16 %v6413, %v6407
    %v6870 = vpack.c.b16 %v6414, %v6408
    %v6871 = vpack.c.b16 %v6421, %v6415
    %v6872 = vpack.c.b16 %v6422, %v6416
    %v6873 = vpack.c.b16 %v6423, %v6417
    %v6874 = vpack.c.b16 %v6424, %v6418
    %v6875 = vpack.c.b16 %v6425, %v6419
    %v6876 = vpack.c.b16 %v6426, %v6420
    %v6877 = vpack.c.b16 %v6433, %v6427
    %v6878 = vpack.c.b16 %v6434, %v6428
    %v6879 = vpack.c.b16 %v6435, %v6429
    %v6880 = vpack.c.b16 %v6436, %v6430
    %v6881 = vpack.c.b16 %v6437, %v6431
    %v6882 = vpack.c.b16 %v6438, %v6432
    %v6883 = vpack.c.b16 %v6445, %v6439
    %v6884 = vpack.c.b16 %v6446, %v6440
    %v6885 = vpack.c.b16 %v6447, %v6441
    %v6886 = vpack.c.b16 %v6448, %v6442
    %v6887 = vpack.c.b16 %v6449, %v6443
    %v6888 = vpack.c.b16 %v6450, %v6444
    %v6889 = vpack.c.b16 %v6457, %v6451
    %v6890 = vpack.c.b16 %v6458, %v6452
    %v6891 = vpack.c.b16 %v6459, %v6453
    %v6892 = vpack.c.b16 %v6460, %v6454
    %v6893 = vpack.c.b16 %v6461, %v6455
    %v6894 = vpack.c.b16 %v6462, %v6456
    %v6895 = vpack.c.b16 %v6469, %v6463
    %v6896 = vpack.c.b16 %v6470, %v6464
    %v6897 = vpack.c.b16 %v6471, %v6465
    %v6898 = vpack.c.b16 %v6472, %v6466
    %v6899 = vpack.c.b16 %v6473, %v6467
    %v6900 = vpack.c.b16 %v6474, %v6468
    %v6901 = vpack.c.b16 %v6481, %v6475
    %v6902 = vpack.c.b16 %v6482, %v6476
    %v6903 = vpack.c.b16 %v6483, %v6477
    %v6904 = vpack.c.b16 %v6484, %v6478
    %v6905 = vpack.c.b16 %v6485, %v6479
    %v6906 = vpack.c.b16 %v6486, %v6480
    %v6907 = vpack.c.b16 %v6493, %v6487
    %v6908 = vpack.c.b16 %v6494, %v6488
    %v6909 = vpack.c.b16 %v6495, %v6489
    %v6910 = vpack.c.b16 %v6496, %v6490
    %v6911 = vpack.c.b16 %v6497, %v6491
    %v6912 = vpack.c.b16 %v6498, %v6492
    %v6913 = vpack.c.b16 %v6505, %v6499
    %v6914 = vpack.c.b16 %v6506, %v6500
    %v6915 = vpack.c.b16 %v6507, %v6501
    %v6916 = vpack.c.b16 %v6508, %v6502
    %v6917 = vpack.c.b16 %v6509, %v6503
    %v6918 = vpack.c.b16 %v6510, %v6504
    %v6919 = vpack.c.b16 %v6517, %v6511
    %v6920 = vpack.c.b16 %v6518, %v6512
    %v6921 = vpack.c.b16 %v6519, %v6513
    %v6922 = vpack.c.b16 %v6520, %v6514
    %v6923 = vpack.c.b16 %v6521, %v6515
    %v6924 = vpack.c.b16 %v6522, %v6516
    %v6925 = vpack.c.b16 %v6529, %v6523
    %v6926 = vpack.c.b16 %v6530, %v6524
    %v6927 = vpack.c.b16 %v6531, %v6525
    %v6928 = vpack.c.b16 %v6532, %v6526
    %v6929 = vpack.c.b16 %v6533, %v6527
    %v6930 = vpack.c.b16 %v6534, %v6528
    %v6931 = vpack.c.b16 %v6541, %v6535
    %v6932 = vpack.c.b16 %v6542, %v6536
    %v6933 = vpack.c.b16 %v6543, %v6537
    %v6934 = vpack.c.b16 %v6544, %v6538
    %v6935 = vpack.c.b16 %v6545, %v6539
    %v6936 = vpack.c.b16 %v6546, %v6540
    %v6937 = vpack.c.b16 %v6553, %v6547
    %v6938 = vpack.c.b16 %v6554, %v6548
    %v6939 = vpack.c.b16 %v6555, %v6549
    %v6940 = vpack.c.b16 %v6556, %v6550
    %v6941 = vpack.c.b16 %v6557, %v6551
    %v6942 = vpack.c.b16 %v6558, %v6552
    %v6943 = vpack.c.b16 %v6565, %v6559
    %v6944 = vpack.c.b16 %v6566, %v6560
    %v6945 = vpack.c.b16 %v6567, %v6561
    %v6946 = vpack.c.b16 %v6568, %v6562
    %v6947 = vpack.c.b16 %v6569, %v6563
    %v6948 = vpack.c.b16 %v6570, %v6564
    %v6949 = vpack.c.b16 %v6577, %v6571
    %v6950 = vpack.c.b16 %v6578, %v6572
    %v6951 = vpack.c.b16 %v6579, %v6573
    %v6952 = vpack.c.b16 %v6580, %v6574
    %v6953 = vpack.c.b16 %v6581, %v6575
    %v6954 = vpack.c.b16 %v6582, %v6576
    %v6955 = vpack.c.b16 %v6589, %v6583
    %v6956 = vpack.c.b16 %v6590, %v6584
    %v6957 = vpack.c.b16 %v6591, %v6585
    %v6958 = vpack.c.b16 %v6592, %v6586
    %v6959 = vpack.c.b16 %v6593, %v6587
    %v6960 = vpack.c.b16 %v6594, %v6588
    %v6961 = vpack.c.b16 %v6601, %v6595
    %v6962 = vpack.c.b16 %v6602, %v6596
    %v6963 = vpack.c.b16 %v6603, %v6597
    %v6964 = vpack.c.b16 %v6604, %v6598
    %v6965 = vpack.c.b16 %v6605, %v6599
    %v6966 = vpack.c.b16 %v6606, %v6600
    %v6967 = vpack.c.b16 %v6613, %v6607
    %v6968 = vpack.c.b16 %v6614, %v6608
    %v6969 = vpack.c.b16 %v6615, %v6609
    %v6970 = vpack.c.b16 %v6616, %v6610
    %v6971 = vpack.c.b16 %v6617, %v6611
    %v6972 = vpack.c.b16 %v6618, %v6612
    %v6973 = vpack.c.b16 %v6625, %v6619
    %v6974 = vpack.c.b16 %v6626, %v6620
    %v6975 = vpack.c.b16 %v6627, %v6621
    %v6976 = vpack.c.b16 %v6628, %v6622
    %v6977 = vpack.c.b16 %v6629, %v6623
    %v6978 = vpack.c.b16 %v6630, %v6624
    %v6979 = vpack.c.b16 %v6637, %v6631
    %v6980 = vpack.c.b16 %v6638, %v6632
    %v6981 = vpack.c.b16 %v6639, %v6633
    %v6982 = vpack.c.b16 %v6640, %v6634
    %v6983 = vpack.c.b16 %v6641, %v6635
    %v6984 = vpack.c.b16 %v6642, %v6636
    %v6985 = vpack.c.b16 %v6649, %v6643
    %v6986 = vpack.c.b16 %v6650, %v6644
    %v6987 = vpack.c.b16 %v6651, %v6645
    %v6988 = vpack.c.b16 %v6652, %v6646
    %v6989 = vpack.c.b16 %v6653, %v6647
    %v6990 = vpack.c.b16 %v6654, %v6648
    %v6991 = vpack.c.b16 %v6661, %v6655
    %v6992 = vpack.c.b16 %v6662, %v6656
    %v6993 = vpack.c.b16 %v6663, %v6657
    %v6994 = vpack.c.b16 %v6664, %v6658
    %v6995 = vpack.c.b16 %v6665, %v6659
    %v6996 = vpack.c.b16 %v6666, %v6660
    %v6997 = vpack.c.b16 %v6673, %v6667
    %v6998 = vpack.c.b16 %v6674, %v6668
    %v6999 = vpack.c.b16 %v6675, %v6669
    %v7000 = vpack.c.b16 %v6676, %v6670
    %v7001 = vpack.c.b16 %v6677, %v6671
    %v7002 = vpack.c.b16 %v6678, %v6672
    %v7003 = vpack.c.b16 %v6685, %v6679
    %v7004 = vpack.c.b16 %v6686, %v6680
    %v7005 = vpack.c.b16 %v6687, %v6681
    %v7006 = vpack.c.b16 %v6688, %v6682
    %v7007 = vpack.c.b16 %v6689, %v6683
    %v7008 = vpack.c.b16 %v6690, %v6684
    %v7009 = vpack.c.b16 %v6697, %v6691
    %v7010 = vpack.c.b16 %v6698, %v6692
    %v7011 = vpack.c.b16 %v6699, %v6693
    %v7012 = vpack.c.b16 %v6700, %v6694
    %v7013 = vpack.c.b16 %v6701, %v6695
    %v7014 = vpack.c.b16 %v6702, %v6696
    %v7015 = vpack.c.b16 %v6709, %v6703
    %v7016 = vpack.c.b16 %v6710, %v6704
    %v7017 = vpack.c.b16 %v6711, %v6705
    %v7018 = vpack.c.b16 %v6712, %v6706
    %v7019 = vpack.c.b16 %v6713, %v6707
    %v7020 = vpack.c.b16 %v6714, %v6708
    %v7021 = vpack.c.b16 %v6721, %v6715
    %v7022 = vpack.c.b16 %v6722, %v6716
    %v7023 = vpack.c.b16 %v6723, %v6717
    %v7024 = vpack.c.b16 %v6724, %v6718
    %v7025 = vpack.c.b16 %v6725, %v6719
    %v7026 = vpack.c.b16 %v6726, %v6720
    %v7027 = vpack.c.b16 %v6733, %v6727
    %v7028 = vpack.c.b16 %v6734, %v6728
    %v7029 = vpack.c.b16 %v6735, %v6729
    %v7030 = vpack.c.b16 %v6736, %v6730
    %v7031 = vpack.c.b16 %v6737, %v6731
    %v7032 = vpack.c.b16 %v6738, %v6732
    %v7033 = vpack.c.b16 %v6745, %v6739
    %v7034 = vpack.c.b16 %v6746, %v6740
    %v7035 = vpack.c.b16 %v6747, %v6741
    %v7036 = vpack.c.b16 %v6748, %v6742
    %v7037 = vpack.c.b16 %v6749, %v6743
    %v7038 = vpack.c.b16 %v6750, %v6744
    %7327 = vmatpush.bf16.msra.mxu0 %v6793
    %7328 = vmatpush.bf16.msra.mxu0 %v6787
    %7329 = vmatpush.bf16.msra.mxu0 %v6781
    %7330 = vmatpush.bf16.msra.mxu0 %v6775
    %7331 = vmatpush.bf16.msra.mxu0 %v6769
    %7332 = vmatpush.bf16.msra.mxu0 %v6763
    %7333 = vmatpush.bf16.msra.mxu0 %v6757
    %7334 = vmatpush.bf16.msra.mxu0 %v6751
    %7335 = vmatmul.bf16.gmra.mxu0 %v5579
    %v7336 = vpop.f32.mrf.mxu0
    %v7337 = vadd.f32 %v5875, %v7336
    %v7338 = vpop.f32.mrf.mxu0
    %7339 = vdwg.mxu0
    %7340 = vmatpush.bf16.msra.mxu0 %v6841
    %7341 = vmatpush.bf16.msra.mxu0 %v6835
    %7342 = vmatpush.bf16.msra.mxu0 %v6829
    %7343 = vmatpush.bf16.msra.mxu0 %v6823
    %7344 = vmatpush.bf16.msra.mxu0 %v6817
    %7345 = vmatpush.bf16.msra.mxu0 %v6811
    %7346 = vmatpush.bf16.msra.mxu0 %v6805
    %7347 = vmatpush.bf16.msra.mxu0 %v6799
    %7348 = vmatmul.bf16.gmra.mxu0 %v5580
    %v7349 = vpop.f32.mrf.mxu0
    %v7350 = vadd.f32 %v7337, %v7349
    %v7351 = vpop.f32.mrf.mxu0
    %7352 = vdwg.mxu0
    %7353 = vmatpush.bf16.msra.mxu0 %v6889
    %7354 = vmatpush.bf16.msra.mxu0 %v6883
    %7355 = vmatpush.bf16.msra.mxu0 %v6877
    %7356 = vmatpush.bf16.msra.mxu0 %v6871
    %7357 = vmatpush.bf16.msra.mxu0 %v6865
    %7358 = vmatpush.bf16.msra.mxu0 %v6859
    %7359 = vmatpush.bf16.msra.mxu0 %v6853
    %7360 = vmatpush.bf16.msra.mxu0 %v6847
    %7361 = vmatmul.bf16.gmra.mxu0 %v5581
    %v7362 = vpop.f32.mrf.mxu0
    %v7363 = vadd.f32 %v7350, %v7362
    %v7364 = vpop.f32.mrf.mxu0
    %7365 = vdwg.mxu0
    %7366 = vmatpush.bf16.msra.mxu0 %v6937
    %7367 = vmatpush.bf16.msra.mxu0 %v6931
    %7368 = vmatpush.bf16.msra.mxu0 %v6925
    %7369 = vmatpush.bf16.msra.mxu0 %v6919
    %7370 = vmatpush.bf16.msra.mxu0 %v6913
    %7371 = vmatpush.bf16.msra.mxu0 %v6907
    %7372 = vmatpush.bf16.msra.mxu0 %v6901
    %7373 = vmatpush.bf16.msra.mxu0 %v6895
    %7374 = vmatmul.bf16.gmra.mxu0 %v5582
    %v7375 = vpop.f32.mrf.mxu0
    %v7376 = vadd.f32 %v7363, %v7375
    %v7377 = vpop.f32.mrf.mxu0
    %7378 = vdwg.mxu0
    %7379 = vmatpush.bf16.msra.mxu0 %v6985
    %7380 = vmatpush.bf16.msra.mxu0 %v6979
    %7381 = vmatpush.bf16.msra.mxu0 %v6973
    %7382 = vmatpush.bf16.msra.mxu0 %v6967
    %7383 = vmatpush.bf16.msra.mxu0 %v6961
    %7384 = vmatpush.bf16.msra.mxu0 %v6955
    %7385 = vmatpush.bf16.msra.mxu0 %v6949
    %7386 = vmatpush.bf16.msra.mxu0 %v6943
    %7387 = vmatmul.bf16.gmra.mxu0 %v5583
    %v7388 = vpop.f32.mrf.mxu0
    %v7389 = vadd.f32 %v7376, %v7388
    %v7390 = vpop.f32.mrf.mxu0
    %7391 = vdwg.mxu0
    %7392 = vmatpush.bf16.msra.mxu0 %v7033
    %7393 = vmatpush.bf16.msra.mxu0 %v7027
    %7394 = vmatpush.bf16.msra.mxu0 %v7021
    %7395 = vmatpush.bf16.msra.mxu0 %v7015
    %7396 = vmatpush.bf16.msra.mxu0 %v7009
    %7397 = vmatpush.bf16.msra.mxu0 %v7003
    %7398 = vmatpush.bf16.msra.mxu0 %v6997
    %7399 = vmatpush.bf16.msra.mxu0 %v6991
    %7400 = vmatmul.bf16.gmra.mxu0 %v5584
    %v7401 = vpop.f32.mrf.mxu0
    %v7402 = vadd.f32 %v7389, %v7401
    %v7403 = vpop.f32.mrf.mxu0
    %7404 = vdwg.mxu0
    %7405 = vmatpush.bf16.msra.mxu0 %v6794
    %7406 = vmatpush.bf16.msra.mxu0 %v6788
    %7407 = vmatpush.bf16.msra.mxu0 %v6782
    %7408 = vmatpush.bf16.msra.mxu0 %v6776
    %7409 = vmatpush.bf16.msra.mxu0 %v6770
    %7410 = vmatpush.bf16.msra.mxu0 %v6764
    %7411 = vmatpush.bf16.msra.mxu0 %v6758
    %7412 = vmatpush.bf16.msra.mxu0 %v6752
    %7413 = vmatmul.bf16.gmra.mxu0 %v5579
    %v7414 = vpop.f32.mrf.mxu0
    %v7415 = vadd.f32 %v5876, %v7414
    %v7416 = vpop.f32.mrf.mxu0
    %7417 = vdwg.mxu0
    %7418 = vmatpush.bf16.msra.mxu0 %v6842
    %7419 = vmatpush.bf16.msra.mxu0 %v6836
    %7420 = vmatpush.bf16.msra.mxu0 %v6830
    %7421 = vmatpush.bf16.msra.mxu0 %v6824
    %7422 = vmatpush.bf16.msra.mxu0 %v6818
    %7423 = vmatpush.bf16.msra.mxu0 %v6812
    %7424 = vmatpush.bf16.msra.mxu0 %v6806
    %7425 = vmatpush.bf16.msra.mxu0 %v6800
    %7426 = vmatmul.bf16.gmra.mxu0 %v5580
    %v7427 = vpop.f32.mrf.mxu0
    %v7428 = vadd.f32 %v7415, %v7427
    %v7429 = vpop.f32.mrf.mxu0
    %7430 = vdwg.mxu0
    %7431 = vmatpush.bf16.msra.mxu0 %v6890
    %7432 = vmatpush.bf16.msra.mxu0 %v6884
    %7433 = vmatpush.bf16.msra.mxu0 %v6878
    %7434 = vmatpush.bf16.msra.mxu0 %v6872
    %7435 = vmatpush.bf16.msra.mxu0 %v6866
    %7436 = vmatpush.bf16.msra.mxu0 %v6860
    %7437 = vmatpush.bf16.msra.mxu0 %v6854
    %7438 = vmatpush.bf16.msra.mxu0 %v6848
    %7439 = vmatmul.bf16.gmra.mxu0 %v5581
    %v7440 = vpop.f32.mrf.mxu0
    %v7441 = vadd.f32 %v7428, %v7440
    %v7442 = vpop.f32.mrf.mxu0
    %7443 = vdwg.mxu0
    %7444 = vmatpush.bf16.msra.mxu0 %v6938
    %7445 = vmatpush.bf16.msra.mxu0 %v6932
    %7446 = vmatpush.bf16.msra.mxu0 %v6926
    %7447 = vmatpush.bf16.msra.mxu0 %v6920
    %7448 = vmatpush.bf16.msra.mxu0 %v6914
    %7449 = vmatpush.bf16.msra.mxu0 %v6908
    %7450 = vmatpush.bf16.msra.mxu0 %v6902
    %7451 = vmatpush.bf16.msra.mxu0 %v6896
    %7452 = vmatmul.bf16.gmra.mxu0 %v5582
    %v7453 = vpop.f32.mrf.mxu0
    %v7454 = vadd.f32 %v7441, %v7453
    %v7455 = vpop.f32.mrf.mxu0
    %7456 = vdwg.mxu0
    %7457 = vmatpush.bf16.msra.mxu0 %v6986
    %7458 = vmatpush.bf16.msra.mxu0 %v6980
    %7459 = vmatpush.bf16.msra.mxu0 %v6974
    %7460 = vmatpush.bf16.msra.mxu0 %v6968
    %7461 = vmatpush.bf16.msra.mxu0 %v6962
    %7462 = vmatpush.bf16.msra.mxu0 %v6956
    %7463 = vmatpush.bf16.msra.mxu0 %v6950
    %7464 = vmatpush.bf16.msra.mxu0 %v6944
    %7465 = vmatmul.bf16.gmra.mxu0 %v5583
    %v7466 = vpop.f32.mrf.mxu0
    %v7467 = vadd.f32 %v7454, %v7466
    %v7468 = vpop.f32.mrf.mxu0
    %7469 = vdwg.mxu0
    %7470 = vmatpush.bf16.msra.mxu0 %v7034
    %7471 = vmatpush.bf16.msra.mxu0 %v7028
    %7472 = vmatpush.bf16.msra.mxu0 %v7022
    %7473 = vmatpush.bf16.msra.mxu0 %v7016
    %7474 = vmatpush.bf16.msra.mxu0 %v7010
    %7475 = vmatpush.bf16.msra.mxu0 %v7004
    %7476 = vmatpush.bf16.msra.mxu0 %v6998
    %7477 = vmatpush.bf16.msra.mxu0 %v6992
    %7478 = vmatmul.bf16.gmra.mxu0 %v5584
    %v7479 = vpop.f32.mrf.mxu0
    %v7480 = vadd.f32 %v7467, %v7479
    %v7481 = vpop.f32.mrf.mxu0
    %7482 = vdwg.mxu0
    %7483 = vmatpush.bf16.msra.mxu0 %v6795
    %7484 = vmatpush.bf16.msra.mxu0 %v6789
    %7485 = vmatpush.bf16.msra.mxu0 %v6783
    %7486 = vmatpush.bf16.msra.mxu0 %v6777
    %7487 = vmatpush.bf16.msra.mxu0 %v6771
    %7488 = vmatpush.bf16.msra.mxu0 %v6765
    %7489 = vmatpush.bf16.msra.mxu0 %v6759
    %7490 = vmatpush.bf16.msra.mxu0 %v6753
    %7491 = vmatmul.bf16.gmra.mxu0 %v5579
    %v7492 = vpop.f32.mrf.mxu0
    %v7493 = vadd.f32 %v5877, %v7492
    %v7494 = vpop.f32.mrf.mxu0
    %7495 = vdwg.mxu0
    %7496 = vmatpush.bf16.msra.mxu0 %v6843
    %7497 = vmatpush.bf16.msra.mxu0 %v6837
    %7498 = vmatpush.bf16.msra.mxu0 %v6831
    %7499 = vmatpush.bf16.msra.mxu0 %v6825
    %7500 = vmatpush.bf16.msra.mxu0 %v6819
    %7501 = vmatpush.bf16.msra.mxu0 %v6813
    %7502 = vmatpush.bf16.msra.mxu0 %v6807
    %7503 = vmatpush.bf16.msra.mxu0 %v6801
    %7504 = vmatmul.bf16.gmra.mxu0 %v5580
    %v7505 = vpop.f32.mrf.mxu0
    %v7506 = vadd.f32 %v7493, %v7505
    %v7507 = vpop.f32.mrf.mxu0
    %7508 = vdwg.mxu0
    %7509 = vmatpush.bf16.msra.mxu0 %v6891
    %7510 = vmatpush.bf16.msra.mxu0 %v6885
    %7511 = vmatpush.bf16.msra.mxu0 %v6879
    %7512 = vmatpush.bf16.msra.mxu0 %v6873
    %7513 = vmatpush.bf16.msra.mxu0 %v6867
    %7514 = vmatpush.bf16.msra.mxu0 %v6861
    %7515 = vmatpush.bf16.msra.mxu0 %v6855
    %7516 = vmatpush.bf16.msra.mxu0 %v6849
    %7517 = vmatmul.bf16.gmra.mxu0 %v5581
    %v7518 = vpop.f32.mrf.mxu0
    %v7519 = vadd.f32 %v7506, %v7518
    %v7520 = vpop.f32.mrf.mxu0
    %7521 = vdwg.mxu0
    %7522 = vmatpush.bf16.msra.mxu0 %v6939
    %7523 = vmatpush.bf16.msra.mxu0 %v6933
    %7524 = vmatpush.bf16.msra.mxu0 %v6927
    %7525 = vmatpush.bf16.msra.mxu0 %v6921
    %7526 = vmatpush.bf16.msra.mxu0 %v6915
    %7527 = vmatpush.bf16.msra.mxu0 %v6909
    %7528 = vmatpush.bf16.msra.mxu0 %v6903
    %7529 = vmatpush.bf16.msra.mxu0 %v6897
    %7530 = vmatmul.bf16.gmra.mxu0 %v5582
    %v7531 = vpop.f32.mrf.mxu0
    %v7532 = vadd.f32 %v7519, %v7531
    %v7533 = vpop.f32.mrf.mxu0
    %7534 = vdwg.mxu0
    %7535 = vmatpush.bf16.msra.mxu0 %v6987
    %7536 = vmatpush.bf16.msra.mxu0 %v6981
    %7537 = vmatpush.bf16.msra.mxu0 %v6975
    %7538 = vmatpush.bf16.msra.mxu0 %v6969
    %7539 = vmatpush.bf16.msra.mxu0 %v6963
    %7540 = vmatpush.bf16.msra.mxu0 %v6957
    %7541 = vmatpush.bf16.msra.mxu0 %v6951
    %7542 = vmatpush.bf16.msra.mxu0 %v6945
    %7543 = vmatmul.bf16.gmra.mxu0 %v5583
    %v7544 = vpop.f32.mrf.mxu0
    %v7545 = vadd.f32 %v7532, %v7544
    %v7546 = vpop.f32.mrf.mxu0
    %7547 = vdwg.mxu0
    %7548 = vmatpush.bf16.msra.mxu0 %v7035
    %7549 = vmatpush.bf16.msra.mxu0 %v7029
    %7550 = vmatpush.bf16.msra.mxu0 %v7023
    %7551 = vmatpush.bf16.msra.mxu0 %v7017
    %7552 = vmatpush.bf16.msra.mxu0 %v7011
    %7553 = vmatpush.bf16.msra.mxu0 %v7005
    %7554 = vmatpush.bf16.msra.mxu0 %v6999
    %7555 = vmatpush.bf16.msra.mxu0 %v6993
    %7556 = vmatmul.bf16.gmra.mxu0 %v5584
    %v7557 = vpop.f32.mrf.mxu0
    %v7558 = vadd.f32 %v7545, %v7557
    %v7559 = vpop.f32.mrf.mxu0
    %7560 = vdwg.mxu0
    %7561 = vmatpush.bf16.msra.mxu0 %v6796
    %7562 = vmatpush.bf16.msra.mxu0 %v6790
    %7563 = vmatpush.bf16.msra.mxu0 %v6784
    %7564 = vmatpush.bf16.msra.mxu0 %v6778
    %7565 = vmatpush.bf16.msra.mxu0 %v6772
    %7566 = vmatpush.bf16.msra.mxu0 %v6766
    %7567 = vmatpush.bf16.msra.mxu0 %v6760
    %7568 = vmatpush.bf16.msra.mxu0 %v6754
    %7569 = vmatmul.bf16.gmra.mxu0 %v5579
    %v7570 = vpop.f32.mrf.mxu0
    %v7571 = vadd.f32 %v5878, %v7570
    %v7572 = vpop.f32.mrf.mxu0
    %7573 = vdwg.mxu0
    %7574 = vmatpush.bf16.msra.mxu0 %v6844
    %7575 = vmatpush.bf16.msra.mxu0 %v6838
    %7576 = vmatpush.bf16.msra.mxu0 %v6832
    %7577 = vmatpush.bf16.msra.mxu0 %v6826
    %7578 = vmatpush.bf16.msra.mxu0 %v6820
    %7579 = vmatpush.bf16.msra.mxu0 %v6814
    %7580 = vmatpush.bf16.msra.mxu0 %v6808
    %7581 = vmatpush.bf16.msra.mxu0 %v6802
    %7582 = vmatmul.bf16.gmra.mxu0 %v5580
    %v7583 = vpop.f32.mrf.mxu0
    %v7584 = vadd.f32 %v7571, %v7583
    %v7585 = vpop.f32.mrf.mxu0
    %7586 = vdwg.mxu0
    %7587 = vmatpush.bf16.msra.mxu0 %v6892
    %7588 = vmatpush.bf16.msra.mxu0 %v6886
    %7589 = vmatpush.bf16.msra.mxu0 %v6880
    %7590 = vmatpush.bf16.msra.mxu0 %v6874
    %7591 = vmatpush.bf16.msra.mxu0 %v6868
    %7592 = vmatpush.bf16.msra.mxu0 %v6862
    %7593 = vmatpush.bf16.msra.mxu0 %v6856
    %7594 = vmatpush.bf16.msra.mxu0 %v6850
    %7595 = vmatmul.bf16.gmra.mxu0 %v5581
    %v7596 = vpop.f32.mrf.mxu0
    %v7597 = vadd.f32 %v7584, %v7596
    %v7598 = vpop.f32.mrf.mxu0
    %7599 = vdwg.mxu0
    %7600 = vmatpush.bf16.msra.mxu0 %v6940
    %7601 = vmatpush.bf16.msra.mxu0 %v6934
    %7602 = vmatpush.bf16.msra.mxu0 %v6928
    %7603 = vmatpush.bf16.msra.mxu0 %v6922
    %7604 = vmatpush.bf16.msra.mxu0 %v6916
    %7605 = vmatpush.bf16.msra.mxu0 %v6910
    %7606 = vmatpush.bf16.msra.mxu0 %v6904
    %7607 = vmatpush.bf16.msra.mxu0 %v6898
    %7608 = vmatmul.bf16.gmra.mxu0 %v5582
    %v7609 = vpop.f32.mrf.mxu0
    %v7610 = vadd.f32 %v7597, %v7609
    %v7611 = vpop.f32.mrf.mxu0
    %7612 = vdwg.mxu0
    %7613 = vmatpush.bf16.msra.mxu0 %v6988
    %7614 = vmatpush.bf16.msra.mxu0 %v6982
    %7615 = vmatpush.bf16.msra.mxu0 %v6976
    %7616 = vmatpush.bf16.msra.mxu0 %v6970
    %7617 = vmatpush.bf16.msra.mxu0 %v6964
    %7618 = vmatpush.bf16.msra.mxu0 %v6958
    %7619 = vmatpush.bf16.msra.mxu0 %v6952
    %7620 = vmatpush.bf16.msra.mxu0 %v6946
    %7621 = vmatmul.bf16.gmra.mxu0 %v5583
    %v7622 = vpop.f32.mrf.mxu0
    %v7623 = vadd.f32 %v7610, %v7622
    %v7624 = vpop.f32.mrf.mxu0
    %7625 = vdwg.mxu0
    %7626 = vmatpush.bf16.msra.mxu0 %v7036
    %7627 = vmatpush.bf16.msra.mxu0 %v7030
    %7628 = vmatpush.bf16.msra.mxu0 %v7024
    %7629 = vmatpush.bf16.msra.mxu0 %v7018
    %7630 = vmatpush.bf16.msra.mxu0 %v7012
    %7631 = vmatpush.bf16.msra.mxu0 %v7006
    %7632 = vmatpush.bf16.msra.mxu0 %v7000
    %7633 = vmatpush.bf16.msra.mxu0 %v6994
    %7634 = vmatmul.bf16.gmra.mxu0 %v5584
    %v7635 = vpop.f32.mrf.mxu0
    %v7636 = vadd.f32 %v7623, %v7635
    %v7637 = vpop.f32.mrf.mxu0
    %7638 = vdwg.mxu0
    %7639 = vmatpush.bf16.msra.mxu0 %v6797
    %7640 = vmatpush.bf16.msra.mxu0 %v6791
    %7641 = vmatpush.bf16.msra.mxu0 %v6785
    %7642 = vmatpush.bf16.msra.mxu0 %v6779
    %7643 = vmatpush.bf16.msra.mxu0 %v6773
    %7644 = vmatpush.bf16.msra.mxu0 %v6767
    %7645 = vmatpush.bf16.msra.mxu0 %v6761
    %7646 = vmatpush.bf16.msra.mxu0 %v6755
    %7647 = vmatmul.bf16.gmra.mxu0 %v5579
    %v7648 = vpop.f32.mrf.mxu0
    %v7649 = vadd.f32 %v5879, %v7648
    %v7650 = vpop.f32.mrf.mxu0
    %7651 = vdwg.mxu0
    %7652 = vmatpush.bf16.msra.mxu0 %v6845
    %7653 = vmatpush.bf16.msra.mxu0 %v6839
    %7654 = vmatpush.bf16.msra.mxu0 %v6833
    %7655 = vmatpush.bf16.msra.mxu0 %v6827
    %7656 = vmatpush.bf16.msra.mxu0 %v6821
    %7657 = vmatpush.bf16.msra.mxu0 %v6815
    %7658 = vmatpush.bf16.msra.mxu0 %v6809
    %7659 = vmatpush.bf16.msra.mxu0 %v6803
    %7660 = vmatmul.bf16.gmra.mxu0 %v5580
    %v7661 = vpop.f32.mrf.mxu0
    %v7662 = vadd.f32 %v7649, %v7661
    %v7663 = vpop.f32.mrf.mxu0
    %7664 = vdwg.mxu0
    %7665 = vmatpush.bf16.msra.mxu0 %v6893
    %7666 = vmatpush.bf16.msra.mxu0 %v6887
    %7667 = vmatpush.bf16.msra.mxu0 %v6881
    %7668 = vmatpush.bf16.msra.mxu0 %v6875
    %7669 = vmatpush.bf16.msra.mxu0 %v6869
    %7670 = vmatpush.bf16.msra.mxu0 %v6863
    %7671 = vmatpush.bf16.msra.mxu0 %v6857
    %7672 = vmatpush.bf16.msra.mxu0 %v6851
    %7673 = vmatmul.bf16.gmra.mxu0 %v5581
    %v7674 = vpop.f32.mrf.mxu0
    %v7675 = vadd.f32 %v7662, %v7674
    %v7676 = vpop.f32.mrf.mxu0
    %7677 = vdwg.mxu0
    %7678 = vmatpush.bf16.msra.mxu0 %v6941
    %7679 = vmatpush.bf16.msra.mxu0 %v6935
    %7680 = vmatpush.bf16.msra.mxu0 %v6929
    %7681 = vmatpush.bf16.msra.mxu0 %v6923
    %7682 = vmatpush.bf16.msra.mxu0 %v6917
    %7683 = vmatpush.bf16.msra.mxu0 %v6911
    %7684 = vmatpush.bf16.msra.mxu0 %v6905
    %7685 = vmatpush.bf16.msra.mxu0 %v6899
    %7686 = vmatmul.bf16.gmra.mxu0 %v5582
    %v7687 = vpop.f32.mrf.mxu0
    %v7688 = vadd.f32 %v7675, %v7687
    %v7689 = vpop.f32.mrf.mxu0
    %7690 = vdwg.mxu0
    %7691 = vmatpush.bf16.msra.mxu0 %v6989
    %7692 = vmatpush.bf16.msra.mxu0 %v6983
    %7693 = vmatpush.bf16.msra.mxu0 %v6977
    %7694 = vmatpush.bf16.msra.mxu0 %v6971
    %7695 = vmatpush.bf16.msra.mxu0 %v6965
    %7696 = vmatpush.bf16.msra.mxu0 %v6959
    %7697 = vmatpush.bf16.msra.mxu0 %v6953
    %7698 = vmatpush.bf16.msra.mxu0 %v6947
    %7699 = vmatmul.bf16.gmra.mxu0 %v5583
    %v7700 = vpop.f32.mrf.mxu0
    %v7701 = vadd.f32 %v7688, %v7700
    %v7702 = vpop.f32.mrf.mxu0
    %7703 = vdwg.mxu0
    %7704 = vmatpush.bf16.msra.mxu0 %v7037
    %7705 = vmatpush.bf16.msra.mxu0 %v7031
    %7706 = vmatpush.bf16.msra.mxu0 %v7025
    %7707 = vmatpush.bf16.msra.mxu0 %v7019
    %7708 = vmatpush.bf16.msra.mxu0 %v7013
    %7709 = vmatpush.bf16.msra.mxu0 %v7007
    %7710 = vmatpush.bf16.msra.mxu0 %v7001
    %7711 = vmatpush.bf16.msra.mxu0 %v6995
    %7712 = vmatmul.bf16.gmra.mxu0 %v5584
    %v7713 = vpop.f32.mrf.mxu0
    %v7714 = vadd.f32 %v7701, %v7713
    %v7715 = vpop.f32.mrf.mxu0
    %7716 = vdwg.mxu0
    %7717 = vmatpush.bf16.msra.mxu0 %v6798
    %7718 = vmatpush.bf16.msra.mxu0 %v6792
    %7719 = vmatpush.bf16.msra.mxu0 %v6786
    %7720 = vmatpush.bf16.msra.mxu0 %v6780
    %7721 = vmatpush.bf16.msra.mxu0 %v6774
    %7722 = vmatpush.bf16.msra.mxu0 %v6768
    %7723 = vmatpush.bf16.msra.mxu0 %v6762
    %7724 = vmatpush.bf16.msra.mxu0 %v6756
    %7725 = vmatmul.bf16.gmra.mxu0 %v5579
    %v7726 = vpop.f32.mrf.mxu0
    %v7727 = vadd.f32 %v5880, %v7726
    %v7728 = vpop.f32.mrf.mxu0
    %7729 = vdwg.mxu0
    %7730 = vmatpush.bf16.msra.mxu0 %v6846
    %7731 = vmatpush.bf16.msra.mxu0 %v6840
    %7732 = vmatpush.bf16.msra.mxu0 %v6834
    %7733 = vmatpush.bf16.msra.mxu0 %v6828
    %7734 = vmatpush.bf16.msra.mxu0 %v6822
    %7735 = vmatpush.bf16.msra.mxu0 %v6816
    %7736 = vmatpush.bf16.msra.mxu0 %v6810
    %7737 = vmatpush.bf16.msra.mxu0 %v6804
    %7738 = vmatmul.bf16.gmra.mxu0 %v5580
    %v7739 = vpop.f32.mrf.mxu0
    %v7740 = vadd.f32 %v7727, %v7739
    %v7741 = vpop.f32.mrf.mxu0
    %7742 = vdwg.mxu0
    %7743 = vmatpush.bf16.msra.mxu0 %v6894
    %7744 = vmatpush.bf16.msra.mxu0 %v6888
    %7745 = vmatpush.bf16.msra.mxu0 %v6882
    %7746 = vmatpush.bf16.msra.mxu0 %v6876
    %7747 = vmatpush.bf16.msra.mxu0 %v6870
    %7748 = vmatpush.bf16.msra.mxu0 %v6864
    %7749 = vmatpush.bf16.msra.mxu0 %v6858
    %7750 = vmatpush.bf16.msra.mxu0 %v6852
    %7751 = vmatmul.bf16.gmra.mxu0 %v5581
    %v7752 = vpop.f32.mrf.mxu0
    %v7753 = vadd.f32 %v7740, %v7752
    %v7754 = vpop.f32.mrf.mxu0
    %7755 = vdwg.mxu0
    %7756 = vmatpush.bf16.msra.mxu0 %v6942
    %7757 = vmatpush.bf16.msra.mxu0 %v6936
    %7758 = vmatpush.bf16.msra.mxu0 %v6930
    %7759 = vmatpush.bf16.msra.mxu0 %v6924
    %7760 = vmatpush.bf16.msra.mxu0 %v6918
    %7761 = vmatpush.bf16.msra.mxu0 %v6912
    %7762 = vmatpush.bf16.msra.mxu0 %v6906
    %7763 = vmatpush.bf16.msra.mxu0 %v6900
    %7764 = vmatmul.bf16.gmra.mxu0 %v5582
    %v7765 = vpop.f32.mrf.mxu0
    %v7766 = vadd.f32 %v7753, %v7765
    %v7767 = vpop.f32.mrf.mxu0
    %7768 = vdwg.mxu0
    %7769 = vmatpush.bf16.msra.mxu0 %v6990
    %7770 = vmatpush.bf16.msra.mxu0 %v6984
    %7771 = vmatpush.bf16.msra.mxu0 %v6978
    %7772 = vmatpush.bf16.msra.mxu0 %v6972
    %7773 = vmatpush.bf16.msra.mxu0 %v6966
    %7774 = vmatpush.bf16.msra.mxu0 %v6960
    %7775 = vmatpush.bf16.msra.mxu0 %v6954
    %7776 = vmatpush.bf16.msra.mxu0 %v6948
    %7777 = vmatmul.bf16.gmra.mxu0 %v5583
    %v7778 = vpop.f32.mrf.mxu0
    %v7779 = vadd.f32 %v7766, %v7778
    %v7780 = vpop.f32.mrf.mxu0
    %7781 = vdwg.mxu0
    %7782 = vmatpush.bf16.msra.mxu0 %v7038
    %7783 = vmatpush.bf16.msra.mxu0 %v7032
    %7784 = vmatpush.bf16.msra.mxu0 %v7026
    %7785 = vmatpush.bf16.msra.mxu0 %v7020
    %7786 = vmatpush.bf16.msra.mxu0 %v7014
    %7787 = vmatpush.bf16.msra.mxu0 %v7008
    %7788 = vmatpush.bf16.msra.mxu0 %v7002
    %7789 = vmatpush.bf16.msra.mxu0 %v6996
    %7790 = vmatmul.bf16.gmra.mxu0 %v5584
    %v7791 = vpop.f32.mrf.mxu0
    %v7792 = vadd.f32 %v7779, %v7791
    %v7793 = vpop.f32.mrf.mxu0
    %7794 = vdwg.mxu0
    %v7795 = vtanh.pop %v7402
    %v7796 = vtanh.pop %v7480
    %v7797 = vtanh.pop %v7558
    %v7798 = vtanh.pop %v7636
    %v7799 = vtanh.pop %v7714
    %v7800 = vtanh.pop %v7792
    %7801 = vst [vmem:[%s13] sm:$0xff] %v7795
    %7802 = vst [vmem:[%s13 + $0x8] sm:$0xff] %v7796
    %7803 = vst [vmem:[%s13 + $0x10] sm:$0xff] %v7797
    %7804 = vst [vmem:[%s13 + $0x18] sm:$0xff] %v7798
    %7805 = vst [vmem:[%s13 + $0x20] sm:$0xff] %v7799
    %7806 = vst [vmem:[%s13 + $0x28] sm:$0xff] %v7800
    // Predicated region
    $region102: #{conv_autoencoder_forward.1} parent=1 // pred_check
      _
    $region103: #{conv_autoencoder_forward.1} parent=1 // pred_check_branch
      %7808 = sbr.rel (0) target = $region105
    $region104: #{conv_autoencoder_forward.1} parent=1 // pred_region
      _
    $region105: #{conv_autoencoder_forward.1} parent=1 // pred_fallthru
      _
    // Predicated region
    $region106: #{conv_autoencoder_forward.1} parent=1 // pred_check
      _
    $region107: #{conv_autoencoder_forward.1} parent=1 // pred_check_branch
      %7810 = sbr.rel (0) target = $region109
    $region108: #{conv_autoencoder_forward.1} parent=1 // pred_region
      _
    $region109: #{conv_autoencoder_forward.1} parent=1 // pred_fallthru
      _
    %7811 = vsyncpa [#allocation3], 1
    %7812 = vsyncpa [#allocation5], 1
    %7813 = vsyncpa [#allocation8], 1
    %7814 = vsyncpa [#allocation11], 1
    %7815 = vsyncpa [#allocation14], 1
    %7816 = vsyncpa [#allocation17], 1
    %7817 = vsyncpa [#allocation20], 1

</llo_original>
